<compile_context>
chip_gen: v7x
topology: tpu7x:2x2x1
jax: 0.10.0
libtpu: 0.0.40
codegen_flags: <defaults>
</compile_context>

<pallas_src>
import functools

import jax
import jax.numpy as jnp
from jax.experimental import pallas as pl
from jax.experimental.pallas import tpu as pltpu  # noqa: F401  (TPU backend)

# ---- model configuration (cfg.MODEL.*) ----
NUM_NODES = 16           # cfg.MODEL.NUM_NODES
RNN_UNITS = 32           # cfg.MODEL.RNN_UNITS
INPUT_DIM = 2            # cfg.MODEL.INPUT_DIM
OUTPUT_DIM = 1           # cfg.MODEL.OUTPUT_DIM
MAX_DIFFUSION_STEP = 2   # cfg.MODEL.MAX_DIFFUSION_STEP
NUM_RNN_LAYERS = 1       # cfg.MODEL.NUM_RNN_LAYERS (encoder/decoder use 1 cell)
SEQ_LEN = 8              # cfg.MODEL.SEQ_LEN
HORIZON = 4              # cfg.MODEL.HORIZON
BATCH = 2
NUM_MATRICES = MAX_DIFFUSION_STEP + 1  # single random-walk support


# ----------------------------- Pallas kernel -----------------------------

def _cheb_terms(S, x, K):
    """Chebyshev diffusion terms T_0=x, T_1=Sx, T_k=2*S*T_{k-1}-T_{k-2} (list of M)."""
    terms = [x]
    if K >= 1:
        x0 = x
        x1 = jnp.dot(S, x0, preferred_element_type=jnp.float32)
        terms.append(x1)
        for _ in range(2, K + 1):
            x2 = 2.0 * jnp.dot(S, x1, preferred_element_type=jnp.float32) - x0
            terms.append(x2)
            x0, x1 = x1, x2
    return terms


def _dcgru_cell(x, h, S, W_ru, b_ru, W_c, b_c, K, U):
    """One DCGRU cell update in (B*N, feature) layout.

    x: (BN, D)  h: (BN, U)  S: (BN, BN) block-diag support
    W_ru: (M*(D+U), 2U)  W_c: (M*(D+U), U)
    """
    D = x.shape[-1]
    M = K + 1

    # diffusion terms of concat([x, h]) -- linearity: T_m(concat) = concat(T_m parts)
    xh = jnp.concatenate([x, h], axis=-1)                 # (BN, D+U)
    t_xh = _cheb_terms(S, xh, K)                          # M x (BN, D+U)

    # fused r/u gate: one wide matmul over all M terms
    feat = jnp.concatenate(t_xh, axis=-1)                 # (BN, M*(D+U))
    ru = jax.nn.sigmoid(
        jnp.dot(feat, W_ru, preferred_element_type=jnp.float32) + b_ru)  # (BN, 2U)
    r = ru[:, :U]
    u = ru[:, U:]

    # candidate: reuse input-side terms, recompute the r*h diffusion chain
    t_rh = _cheb_terms(S, r * h, K)                       # M x (BN, U)
    feat_c = jnp.concatenate(
        [jnp.concatenate([t_xh[m][:, :D], t_rh[m]], axis=-1) for m in range(M)],
        axis=-1)                                          # (BN, M*(D+U))
    c = jnp.tanh(
        jnp.dot(feat_c, W_c, preferred_element_type=jnp.float32) + b_c)  # (BN, U)

    return u * h + (1.0 - u) * c


def _dcrnn_kernel(K, U,
                  x_ref, S_ref,
                  Wru_e, bru_e, Wc_e, bc_e,
                  Wru_d, bru_d, Wc_d, bc_d,
                  Wp_ref, bp_ref,
                  out_ref):
    """Full encoder + decoder recurrence, state resident in VMEM/vregs."""
    S = S_ref[...]                                        # (BN, BN)
    BN = S.shape[0]
    T = x_ref.shape[0]
    H = out_ref.shape[0]
    O = Wp_ref.shape[-1]

    # ---- encoder: SEQ_LEN steps, h starts at zeros ----
    h = jnp.zeros((BN, U), jnp.float32)
    for t in range(T):
        x_t = x_ref[t]                                    # (BN, Din)
        h = _dcgru_cell(x_t, h, S,
                        Wru_e[...], bru_e[...], Wc_e[...], bc_e[...], K, U)

    # ---- decoder: go_symbol = zeros, autoregressive over HORIZON ----
    dec_in = jnp.zeros((BN, O), jnp.float32)
    for t in range(H):
        h = _dcgru_cell(dec_in, h, S,
                        Wru_d[...], bru_d[...], Wc_d[...], bc_d[...], K, U)
        proj = jnp.dot(h, Wp_ref[...],
                       preferred_element_type=jnp.float32) + bp_ref[...]  # (BN, O)
        out_ref[t] = proj
        dec_in = proj


# ----------------------------- JAX wrapper -----------------------------

def dcrnn_forward(inputs, S, enc_params, dec_params, proj_params):
    """DCRNNModel.forward (inference path).

    inputs: (seq_len, B, num_nodes * input_dim)
    returns: (horizon, B, num_nodes * output_dim)
    """
    T, B, _ = inputs.shape
    BN = B * NUM_NODES

    # fold batch into the node (sublane) axis
    x = inputs.reshape(T, B, NUM_NODES, INPUT_DIM).reshape(T, BN, INPUT_DIM)
    # block-diagonal support so one matmul diffuses all batch elements at once
    S_block = jnp.kron(jnp.eye(B, dtype=S.dtype), S)      # (BN, BN)

    kernel = functools.partial(_dcrnn_kernel, MAX_DIFFUSION_STEP, RNN_UNITS)
    out = pl.pallas_call(
        kernel,
        out_shape=jax.ShapeDtypeStruct((HORIZON, BN, OUTPUT_DIM), jnp.float32),
    )(x, S_block, *enc_params, *dec_params, *proj_params)

    return out.reshape(HORIZON, B, NUM_NODES * OUTPUT_DIM)


def init_packed_cell_params(key, din, U, M):
    """Packed DCGRU weights: r/u fused along output axis, M terms flattened along rows."""
    ks = jax.random.split(key, 2)
    scale = 0.1
    W_ru = scale * jax.random.normal(ks[0], (M * (din + U), 2 * U), jnp.float32)
    b_ru = jnp.ones((1, 2 * U), jnp.float32)      # bias_start = 1.0 for r/u gates
    W_c = scale * jax.random.normal(ks[1], (M * (din + U), U), jnp.float32)
    b_c = jnp.zeros((1, U), jnp.float32)
    return (W_ru, b_ru, W_c, b_c)


if __name__ == "__main__":
    key = jax.random.PRNGKey(0)
    k_adj, k_enc, k_dec, k_proj, k_in = jax.random.split(key, 5)

    # random-walk support: S = (D^{-1} A)^T   (filter_type = "random_walk")
    adj = jax.random.uniform(k_adj, (NUM_NODES, NUM_NODES), jnp.float32) + 0.1
    d_inv = 1.0 / jnp.sum(adj, axis=1)
    S = jnp.transpose(adj * d_inv[:, None]).astype(jnp.float32)

    enc_params = init_packed_cell_params(k_enc, INPUT_DIM, RNN_UNITS, NUM_MATRICES)
    dec_params = init_packed_cell_params(k_dec, OUTPUT_DIM, RNN_UNITS, NUM_MATRICES)
    Wp = 0.1 * jax.random.normal(k_proj, (RNN_UNITS, OUTPUT_DIM), jnp.float32)
    bp = jnp.zeros((1, OUTPUT_DIM), jnp.float32)
    proj_params = (Wp, bp)

    inputs = jax.random.normal(
        k_in, (SEQ_LEN, BATCH, NUM_NODES * INPUT_DIM), jnp.float32)

    fwd = jax.jit(dcrnn_forward)
    out = fwd(inputs, S, enc_params, dec_params, proj_params)
    out = jax.block_until_ready(out)

    assert out.shape == (HORIZON, BATCH, NUM_NODES * OUTPUT_DIM), out.shape
    assert jnp.all(jnp.isfinite(out))
    print("KERNEL_OK")
</pallas_src>

<mosaic_0001>
module attributes {stable_mosaic.version = 11 : i64} {
  func.func @_dcrnn_kernel(%arg0: memref<8x32x2xf32, #tpu.memory_space<vmem>>, %arg1: memref<32x32xf32, #tpu.memory_space<vmem>>, %arg2: memref<102x64xf32, #tpu.memory_space<vmem>>, %arg3: memref<1x64xf32, #tpu.memory_space<vmem>>, %arg4: memref<102x32xf32, #tpu.memory_space<vmem>>, %arg5: memref<1x32xf32, #tpu.memory_space<vmem>>, %arg6: memref<99x64xf32, #tpu.memory_space<vmem>>, %arg7: memref<1x64xf32, #tpu.memory_space<vmem>>, %arg8: memref<99x32xf32, #tpu.memory_space<vmem>>, %arg9: memref<1x32xf32, #tpu.memory_space<vmem>>, %arg10: memref<32x1xf32, #tpu.memory_space<vmem>>, %arg11: memref<1x1xf32, #tpu.memory_space<vmem>>, %arg12: memref<4x32x1xf32, #tpu.memory_space<vmem>>) attributes {dimension_semantics = [], scalar_prefetch = 0 : i64, scratch_operands = 0 : i64, tpu.core_type = #tpu.core_type<tc>} {
    %c0 = arith.constant 0 : index
    %c0_0 = arith.constant 0 : index
    %0 = vector.load %arg1[%c0, %c0_0] : memref<32x32xf32, #tpu.memory_space<vmem>>, vector<32x32xf32>
    %cst = arith.constant 0.000000e+00 : f32
    %1 = vector.broadcast %cst : f32 to vector<32x32xf32>
    %c0_1 = arith.constant 0 : index
    %c0_2 = arith.constant 0 : index
    %c0_3 = arith.constant 0 : index
    %2 = vector.load %arg0[%c0_1, %c0_2, %c0_3] : memref<8x32x2xf32, #tpu.memory_space<vmem>>, vector<1x32x2xf32>
    %3 = vector.shape_cast %2 : vector<1x32x2xf32> to vector<32x2xf32>
    %c0_4 = arith.constant 0 : index
    %c0_5 = arith.constant 0 : index
    %4 = vector.load %arg2[%c0_4, %c0_5] : memref<102x64xf32, #tpu.memory_space<vmem>>, vector<102x64xf32>
    %c0_6 = arith.constant 0 : index
    %c0_7 = arith.constant 0 : index
    %5 = vector.load %arg3[%c0_6, %c0_7] : memref<1x64xf32, #tpu.memory_space<vmem>>, vector<1x64xf32>
    %c0_8 = arith.constant 0 : index
    %c0_9 = arith.constant 0 : index
    %6 = vector.load %arg4[%c0_8, %c0_9] : memref<102x32xf32, #tpu.memory_space<vmem>>, vector<102x32xf32>
    %c0_10 = arith.constant 0 : index
    %c0_11 = arith.constant 0 : index
    %7 = vector.load %arg5[%c0_10, %c0_11] : memref<1x32xf32, #tpu.memory_space<vmem>>, vector<1x32xf32>
    %8 = tpu.concatenate %3, %1 in 1 : vector<32x2xf32>, vector<32x32xf32> -> vector<32x34xf32>
    %cst_12 = arith.constant dense<0.000000e+00> : vector<32x34xf32>
    %9 = tpu.matmul %0, %8, %cst_12 {dimension_numbers = #tpu.dot_dimension_numbers<[1], [0], [0], [1], [0, 0, 1, 1], [], []>} : vector<32x32xf32>, vector<32x34xf32>, vector<32x34xf32> -> vector<32x34xf32>
    %cst_13 = arith.constant dense<0.000000e+00> : vector<32x34xf32>
    %10 = tpu.matmul %0, %9, %cst_13 {dimension_numbers = #tpu.dot_dimension_numbers<[1], [0], [0], [1], [0, 0, 1, 1], [], []>} : vector<32x32xf32>, vector<32x34xf32>, vector<32x34xf32> -> vector<32x34xf32>
    %cst_14 = arith.constant 2.000000e+00 : f32
    %11 = vector.broadcast %cst_14 : f32 to vector<32x34xf32>
    %12 = arith.mulf %11, %10 : vector<32x34xf32>
    %13 = arith.subf %12, %8 : vector<32x34xf32>
    %14 = tpu.concatenate %8, %9, %13 in 1 : vector<32x34xf32>, vector<32x34xf32>, vector<32x34xf32> -> vector<32x102xf32>
    %cst_15 = arith.constant dense<0.000000e+00> : vector<32x64xf32>
    %15 = tpu.matmul %14, %4, %cst_15 {dimension_numbers = #tpu.dot_dimension_numbers<[1], [0], [0], [1], [0, 0, 1, 1], [], []>} : vector<32x102xf32>, vector<102x64xf32>, vector<32x64xf32> -> vector<32x64xf32>
    %16 = vector.broadcast %5 : vector<1x64xf32> to vector<32x64xf32>
    %17 = arith.addf %15, %16 : vector<32x64xf32>
    %18 = arith.negf %17 : vector<32x64xf32>
    %19 = math.exp %18 : vector<32x64xf32>
    %cst_16 = arith.constant 1.000000e+00 : f32
    %20 = vector.broadcast %cst_16 : f32 to vector<32x64xf32>
    %21 = arith.addf %20, %19 : vector<32x64xf32>
    %22 = arith.divf %20, %21 : vector<32x64xf32>
    %23 = vector.extract_strided_slice %22 {offsets = [0, 0], sizes = [32, 32], strides = [1, 1]} : vector<32x64xf32> to vector<32x32xf32>
    %24 = vector.extract_strided_slice %22 {offsets = [0, 32], sizes = [32, 32], strides = [1, 1]} : vector<32x64xf32> to vector<32x32xf32>
    %25 = arith.mulf %23, %1 : vector<32x32xf32>
    %cst_17 = arith.constant dense<0.000000e+00> : vector<32x32xf32>
    %26 = tpu.matmul %0, %25, %cst_17 {dimension_numbers = #tpu.dot_dimension_numbers<[1], [0], [0], [1], [0, 0, 1, 1], [], []>} : vector<32x32xf32>, vector<32x32xf32>, vector<32x32xf32> -> vector<32x32xf32>
    %cst_18 = arith.constant dense<0.000000e+00> : vector<32x32xf32>
    %27 = tpu.matmul %0, %26, %cst_18 {dimension_numbers = #tpu.dot_dimension_numbers<[1], [0], [0], [1], [0, 0, 1, 1], [], []>} : vector<32x32xf32>, vector<32x32xf32>, vector<32x32xf32> -> vector<32x32xf32>
    %cst_19 = arith.constant 2.000000e+00 : f32
    %28 = vector.broadcast %cst_19 : f32 to vector<32x32xf32>
    %29 = arith.mulf %28, %27 : vector<32x32xf32>
    %30 = arith.subf %29, %25 : vector<32x32xf32>
    %31 = vector.extract_strided_slice %8 {offsets = [0, 0], sizes = [32, 2], strides = [1, 1]} : vector<32x34xf32> to vector<32x2xf32>
    %32 = tpu.concatenate %31, %25 in 1 : vector<32x2xf32>, vector<32x32xf32> -> vector<32x34xf32>
    %33 = vector.extract_strided_slice %9 {offsets = [0, 0], sizes = [32, 2], strides = [1, 1]} : vector<32x34xf32> to vector<32x2xf32>
    %34 = tpu.concatenate %33, %26 in 1 : vector<32x2xf32>, vector<32x32xf32> -> vector<32x34xf32>
    %35 = vector.extract_strided_slice %13 {offsets = [0, 0], sizes = [32, 2], strides = [1, 1]} : vector<32x34xf32> to vector<32x2xf32>
    %36 = tpu.concatenate %35, %30 in 1 : vector<32x2xf32>, vector<32x32xf32> -> vector<32x34xf32>
    %37 = tpu.concatenate %32, %34, %36 in 1 : vector<32x34xf32>, vector<32x34xf32>, vector<32x34xf32> -> vector<32x102xf32>
    %cst_20 = arith.constant dense<0.000000e+00> : vector<32x32xf32>
    %38 = tpu.matmul %37, %6, %cst_20 {dimension_numbers = #tpu.dot_dimension_numbers<[1], [0], [0], [1], [0, 0, 1, 1], [], []>} : vector<32x102xf32>, vector<102x32xf32>, vector<32x32xf32> -> vector<32x32xf32>
    %39 = vector.broadcast %7 : vector<1x32xf32> to vector<32x32xf32>
    %40 = arith.addf %38, %39 : vector<32x32xf32>
    %41 = math.tanh %40 : vector<32x32xf32>
    %42 = arith.mulf %24, %1 : vector<32x32xf32>
    %cst_21 = arith.constant 1.000000e+00 : f32
    %43 = vector.broadcast %cst_21 : f32 to vector<32x32xf32>
    %44 = arith.subf %43, %24 : vector<32x32xf32>
    %45 = arith.mulf %44, %41 : vector<32x32xf32>
    %46 = arith.addf %42, %45 : vector<32x32xf32>
    %c1 = arith.constant 1 : index
    %c0_22 = arith.constant 0 : index
    %c0_23 = arith.constant 0 : index
    %47 = vector.load %arg0[%c1, %c0_22, %c0_23] : memref<8x32x2xf32, #tpu.memory_space<vmem>>, vector<1x32x2xf32>
    %48 = vector.shape_cast %47 : vector<1x32x2xf32> to vector<32x2xf32>
    %c0_24 = arith.constant 0 : index
    %c0_25 = arith.constant 0 : index
    %49 = vector.load %arg2[%c0_24, %c0_25] : memref<102x64xf32, #tpu.memory_space<vmem>>, vector<102x64xf32>
    %c0_26 = arith.constant 0 : index
    %c0_27 = arith.constant 0 : index
    %50 = vector.load %arg3[%c0_26, %c0_27] : memref<1x64xf32, #tpu.memory_space<vmem>>, vector<1x64xf32>
    %c0_28 = arith.constant 0 : index
    %c0_29 = arith.constant 0 : index
    %51 = vector.load %arg4[%c0_28, %c0_29] : memref<102x32xf32, #tpu.memory_space<vmem>>, vector<102x32xf32>
    %c0_30 = arith.constant 0 : index
    %c0_31 = arith.constant 0 : index
    %52 = vector.load %arg5[%c0_30, %c0_31] : memref<1x32xf32, #tpu.memory_space<vmem>>, vector<1x32xf32>
    %53 = tpu.concatenate %48, %46 in 1 : vector<32x2xf32>, vector<32x32xf32> -> vector<32x34xf32>
    %cst_32 = arith.constant dense<0.000000e+00> : vector<32x34xf32>
    %54 = tpu.matmul %0, %53, %cst_32 {dimension_numbers = #tpu.dot_dimension_numbers<[1], [0], [0], [1], [0, 0, 1, 1], [], []>} : vector<32x32xf32>, vector<32x34xf32>, vector<32x34xf32> -> vector<32x34xf32>
    %cst_33 = arith.constant dense<0.000000e+00> : vector<32x34xf32>
    %55 = tpu.matmul %0, %54, %cst_33 {dimension_numbers = #tpu.dot_dimension_numbers<[1], [0], [0], [1], [0, 0, 1, 1], [], []>} : vector<32x32xf32>, vector<32x34xf32>, vector<32x34xf32> -> vector<32x34xf32>
    %cst_34 = arith.constant 2.000000e+00 : f32
    %56 = vector.broadcast %cst_34 : f32 to vector<32x34xf32>
    %57 = arith.mulf %56, %55 : vector<32x34xf32>
    %58 = arith.subf %57, %53 : vector<32x34xf32>
    %59 = tpu.concatenate %53, %54, %58 in 1 : vector<32x34xf32>, vector<32x34xf32>, vector<32x34xf32> -> vector<32x102xf32>
    %cst_35 = arith.constant dense<0.000000e+00> : vector<32x64xf32>
    %60 = tpu.matmul %59, %49, %cst_35 {dimension_numbers = #tpu.dot_dimension_numbers<[1], [0], [0], [1], [0, 0, 1, 1], [], []>} : vector<32x102xf32>, vector<102x64xf32>, vector<32x64xf32> -> vector<32x64xf32>
    %61 = vector.broadcast %50 : vector<1x64xf32> to vector<32x64xf32>
    %62 = arith.addf %60, %61 : vector<32x64xf32>
    %63 = arith.negf %62 : vector<32x64xf32>
    %64 = math.exp %63 : vector<32x64xf32>
    %cst_36 = arith.constant 1.000000e+00 : f32
    %65 = vector.broadcast %cst_36 : f32 to vector<32x64xf32>
    %66 = arith.addf %65, %64 : vector<32x64xf32>
    %67 = arith.divf %65, %66 : vector<32x64xf32>
    %68 = vector.extract_strided_slice %67 {offsets = [0, 0], sizes = [32, 32], strides = [1, 1]} : vector<32x64xf32> to vector<32x32xf32>
    %69 = vector.extract_strided_slice %67 {offsets = [0, 32], sizes = [32, 32], strides = [1, 1]} : vector<32x64xf32> to vector<32x32xf32>
    %70 = arith.mulf %68, %46 : vector<32x32xf32>
    %cst_37 = arith.constant dense<0.000000e+00> : vector<32x32xf32>
    %71 = tpu.matmul %0, %70, %cst_37 {dimension_numbers = #tpu.dot_dimension_numbers<[1], [0], [0], [1], [0, 0, 1, 1], [], []>} : vector<32x32xf32>, vector<32x32xf32>, vector<32x32xf32> -> vector<32x32xf32>
    %cst_38 = arith.constant dense<0.000000e+00> : vector<32x32xf32>
    %72 = tpu.matmul %0, %71, %cst_38 {dimension_numbers = #tpu.dot_dimension_numbers<[1], [0], [0], [1], [0, 0, 1, 1], [], []>} : vector<32x32xf32>, vector<32x32xf32>, vector<32x32xf32> -> vector<32x32xf32>
    %cst_39 = arith.constant 2.000000e+00 : f32
    %73 = vector.broadcast %cst_39 : f32 to vector<32x32xf32>
    %74 = arith.mulf %73, %72 : vector<32x32xf32>
    %75 = arith.subf %74, %70 : vector<32x32xf32>
    %76 = vector.extract_strided_slice %53 {offsets = [0, 0], sizes = [32, 2], strides = [1, 1]} : vector<32x34xf32> to vector<32x2xf32>
    %77 = tpu.concatenate %76, %70 in 1 : vector<32x2xf32>, vector<32x32xf32> -> vector<32x34xf32>
    %78 = vector.extract_strided_slice %54 {offsets = [0, 0], sizes = [32, 2], strides = [1, 1]} : vector<32x34xf32> to vector<32x2xf32>
    %79 = tpu.concatenate %78, %71 in 1 : vector<32x2xf32>, vector<32x32xf32> -> vector<32x34xf32>
    %80 = vector.extract_strided_slice %58 {offsets = [0, 0], sizes = [32, 2], strides = [1, 1]} : vector<32x34xf32> to vector<32x2xf32>
    %81 = tpu.concatenate %80, %75 in 1 : vector<32x2xf32>, vector<32x32xf32> -> vector<32x34xf32>
    %82 = tpu.concatenate %77, %79, %81 in 1 : vector<32x34xf32>, vector<32x34xf32>, vector<32x34xf32> -> vector<32x102xf32>
    %cst_40 = arith.constant dense<0.000000e+00> : vector<32x32xf32>
    %83 = tpu.matmul %82, %51, %cst_40 {dimension_numbers = #tpu.dot_dimension_numbers<[1], [0], [0], [1], [0, 0, 1, 1], [], []>} : vector<32x102xf32>, vector<102x32xf32>, vector<32x32xf32> -> vector<32x32xf32>
    %84 = vector.broadcast %52 : vector<1x32xf32> to vector<32x32xf32>
    %85 = arith.addf %83, %84 : vector<32x32xf32>
    %86 = math.tanh %85 : vector<32x32xf32>
    %87 = arith.mulf %69, %46 : vector<32x32xf32>
    %cst_41 = arith.constant 1.000000e+00 : f32
    %88 = vector.broadcast %cst_41 : f32 to vector<32x32xf32>
    %89 = arith.subf %88, %69 : vector<32x32xf32>
    %90 = arith.mulf %89, %86 : vector<32x32xf32>
    %91 = arith.addf %87, %90 : vector<32x32xf32>
    %c2 = arith.constant 2 : index
    %c0_42 = arith.constant 0 : index
    %c0_43 = arith.constant 0 : index
    %92 = vector.load %arg0[%c2, %c0_42, %c0_43] : memref<8x32x2xf32, #tpu.memory_space<vmem>>, vector<1x32x2xf32>
    %93 = vector.shape_cast %92 : vector<1x32x2xf32> to vector<32x2xf32>
    %c0_44 = arith.constant 0 : index
    %c0_45 = arith.constant 0 : index
    %94 = vector.load %arg2[%c0_44, %c0_45] : memref<102x64xf32, #tpu.memory_space<vmem>>, vector<102x64xf32>
    %c0_46 = arith.constant 0 : index
    %c0_47 = arith.constant 0 : index
    %95 = vector.load %arg3[%c0_46, %c0_47] : memref<1x64xf32, #tpu.memory_space<vmem>>, vector<1x64xf32>
    %c0_48 = arith.constant 0 : index
    %c0_49 = arith.constant 0 : index
    %96 = vector.load %arg4[%c0_48, %c0_49] : memref<102x32xf32, #tpu.memory_space<vmem>>, vector<102x32xf32>
    %c0_50 = arith.constant 0 : index
    %c0_51 = arith.constant 0 : index
    %97 = vector.load %arg5[%c0_50, %c0_51] : memref<1x32xf32, #tpu.memory_space<vmem>>, vector<1x32xf32>
    %98 = tpu.concatenate %93, %91 in 1 : vector<32x2xf32>, vector<32x32xf32> -> vector<32x34xf32>
    %cst_52 = arith.constant dense<0.000000e+00> : vector<32x34xf32>
    %99 = tpu.matmul %0, %98, %cst_52 {dimension_numbers = #tpu.dot_dimension_numbers<[1], [0], [0], [1], [0, 0, 1, 1], [], []>} : vector<32x32xf32>, vector<32x34xf32>, vector<32x34xf32> -> vector<32x34xf32>
    %cst_53 = arith.constant dense<0.000000e+00> : vector<32x34xf32>
    %100 = tpu.matmul %0, %99, %cst_53 {dimension_numbers = #tpu.dot_dimension_numbers<[1], [0], [0], [1], [0, 0, 1, 1], [], []>} : vector<32x32xf32>, vector<32x34xf32>, vector<32x34xf32> -> vector<32x34xf32>
    %cst_54 = arith.constant 2.000000e+00 : f32
    %101 = vector.broadcast %cst_54 : f32 to vector<32x34xf32>
    %102 = arith.mulf %101, %100 : vector<32x34xf32>
    %103 = arith.subf %102, %98 : vector<32x34xf32>
    %104 = tpu.concatenate %98, %99, %103 in 1 : vector<32x34xf32>, vector<32x34xf32>, vector<32x34xf32> -> vector<32x102xf32>
    %cst_55 = arith.constant dense<0.000000e+00> : vector<32x64xf32>
    %105 = tpu.matmul %104, %94, %cst_55 {dimension_numbers = #tpu.dot_dimension_numbers<[1], [0], [0], [1], [0, 0, 1, 1], [], []>} : vector<32x102xf32>, vector<102x64xf32>, vector<32x64xf32> -> vector<32x64xf32>
    %106 = vector.broadcast %95 : vector<1x64xf32> to vector<32x64xf32>
    %107 = arith.addf %105, %106 : vector<32x64xf32>
    %108 = arith.negf %107 : vector<32x64xf32>
    %109 = math.exp %108 : vector<32x64xf32>
    %cst_56 = arith.constant 1.000000e+00 : f32
    %110 = vector.broadcast %cst_56 : f32 to vector<32x64xf32>
    %111 = arith.addf %110, %109 : vector<32x64xf32>
    %112 = arith.divf %110, %111 : vector<32x64xf32>
    %113 = vector.extract_strided_slice %112 {offsets = [0, 0], sizes = [32, 32], strides = [1, 1]} : vector<32x64xf32> to vector<32x32xf32>
    %114 = vector.extract_strided_slice %112 {offsets = [0, 32], sizes = [32, 32], strides = [1, 1]} : vector<32x64xf32> to vector<32x32xf32>
    %115 = arith.mulf %113, %91 : vector<32x32xf32>
    %cst_57 = arith.constant dense<0.000000e+00> : vector<32x32xf32>
    %116 = tpu.matmul %0, %115, %cst_57 {dimension_numbers = #tpu.dot_dimension_numbers<[1], [0], [0], [1], [0, 0, 1, 1], [], []>} : vector<32x32xf32>, vector<32x32xf32>, vector<32x32xf32> -> vector<32x32xf32>
    %cst_58 = arith.constant dense<0.000000e+00> : vector<32x32xf32>
    %117 = tpu.matmul %0, %116, %cst_58 {dimension_numbers = #tpu.dot_dimension_numbers<[1], [0], [0], [1], [0, 0, 1, 1], [], []>} : vector<32x32xf32>, vector<32x32xf32>, vector<32x32xf32> -> vector<32x32xf32>
    %cst_59 = arith.constant 2.000000e+00 : f32
    %118 = vector.broadcast %cst_59 : f32 to vector<32x32xf32>
    %119 = arith.mulf %118, %117 : vector<32x32xf32>
    %120 = arith.subf %119, %115 : vector<32x32xf32>
    %121 = vector.extract_strided_slice %98 {offsets = [0, 0], sizes = [32, 2], strides = [1, 1]} : vector<32x34xf32> to vector<32x2xf32>
    %122 = tpu.concatenate %121, %115 in 1 : vector<32x2xf32>, vector<32x32xf32> -> vector<32x34xf32>
    %123 = vector.extract_strided_slice %99 {offsets = [0, 0], sizes = [32, 2], strides = [1, 1]} : vector<32x34xf32> to vector<32x2xf32>
    %124 = tpu.concatenate %123, %116 in 1 : vector<32x2xf32>, vector<32x32xf32> -> vector<32x34xf32>
    %125 = vector.extract_strided_slice %103 {offsets = [0, 0], sizes = [32, 2], strides = [1, 1]} : vector<32x34xf32> to vector<32x2xf32>
    %126 = tpu.concatenate %125, %120 in 1 : vector<32x2xf32>, vector<32x32xf32> -> vector<32x34xf32>
    %127 = tpu.concatenate %122, %124, %126 in 1 : vector<32x34xf32>, vector<32x34xf32>, vector<32x34xf32> -> vector<32x102xf32>
    %cst_60 = arith.constant dense<0.000000e+00> : vector<32x32xf32>
    %128 = tpu.matmul %127, %96, %cst_60 {dimension_numbers = #tpu.dot_dimension_numbers<[1], [0], [0], [1], [0, 0, 1, 1], [], []>} : vector<32x102xf32>, vector<102x32xf32>, vector<32x32xf32> -> vector<32x32xf32>
    %129 = vector.broadcast %97 : vector<1x32xf32> to vector<32x32xf32>
    %130 = arith.addf %128, %129 : vector<32x32xf32>
    %131 = math.tanh %130 : vector<32x32xf32>
    %132 = arith.mulf %114, %91 : vector<32x32xf32>
    %cst_61 = arith.constant 1.000000e+00 : f32
    %133 = vector.broadcast %cst_61 : f32 to vector<32x32xf32>
    %134 = arith.subf %133, %114 : vector<32x32xf32>
    %135 = arith.mulf %134, %131 : vector<32x32xf32>
    %136 = arith.addf %132, %135 : vector<32x32xf32>
    %c3 = arith.constant 3 : index
    %c0_62 = arith.constant 0 : index
    %c0_63 = arith.constant 0 : index
    %137 = vector.load %arg0[%c3, %c0_62, %c0_63] : memref<8x32x2xf32, #tpu.memory_space<vmem>>, vector<1x32x2xf32>
    %138 = vector.shape_cast %137 : vector<1x32x2xf32> to vector<32x2xf32>
    %c0_64 = arith.constant 0 : index
    %c0_65 = arith.constant 0 : index
    %139 = vector.load %arg2[%c0_64, %c0_65] : memref<102x64xf32, #tpu.memory_space<vmem>>, vector<102x64xf32>
    %c0_66 = arith.constant 0 : index
    %c0_67 = arith.constant 0 : index
    %140 = vector.load %arg3[%c0_66, %c0_67] : memref<1x64xf32, #tpu.memory_space<vmem>>, vector<1x64xf32>
    %c0_68 = arith.constant 0 : index
    %c0_69 = arith.constant 0 : index
    %141 = vector.load %arg4[%c0_68, %c0_69] : memref<102x32xf32, #tpu.memory_space<vmem>>, vector<102x32xf32>
    %c0_70 = arith.constant 0 : index
    %c0_71 = arith.constant 0 : index
    %142 = vector.load %arg5[%c0_70, %c0_71] : memref<1x32xf32, #tpu.memory_space<vmem>>, vector<1x32xf32>
    %143 = tpu.concatenate %138, %136 in 1 : vector<32x2xf32>, vector<32x32xf32> -> vector<32x34xf32>
    %cst_72 = arith.constant dense<0.000000e+00> : vector<32x34xf32>
    %144 = tpu.matmul %0, %143, %cst_72 {dimension_numbers = #tpu.dot_dimension_numbers<[1], [0], [0], [1], [0, 0, 1, 1], [], []>} : vector<32x32xf32>, vector<32x34xf32>, vector<32x34xf32> -> vector<32x34xf32>
    %cst_73 = arith.constant dense<0.000000e+00> : vector<32x34xf32>
    %145 = tpu.matmul %0, %144, %cst_73 {dimension_numbers = #tpu.dot_dimension_numbers<[1], [0], [0], [1], [0, 0, 1, 1], [], []>} : vector<32x32xf32>, vector<32x34xf32>, vector<32x34xf32> -> vector<32x34xf32>
    %cst_74 = arith.constant 2.000000e+00 : f32
    %146 = vector.broadcast %cst_74 : f32 to vector<32x34xf32>
    %147 = arith.mulf %146, %145 : vector<32x34xf32>
    %148 = arith.subf %147, %143 : vector<32x34xf32>
    %149 = tpu.concatenate %143, %144, %148 in 1 : vector<32x34xf32>, vector<32x34xf32>, vector<32x34xf32> -> vector<32x102xf32>
    %cst_75 = arith.constant dense<0.000000e+00> : vector<32x64xf32>
    %150 = tpu.matmul %149, %139, %cst_75 {dimension_numbers = #tpu.dot_dimension_numbers<[1], [0], [0], [1], [0, 0, 1, 1], [], []>} : vector<32x102xf32>, vector<102x64xf32>, vector<32x64xf32> -> vector<32x64xf32>
    %151 = vector.broadcast %140 : vector<1x64xf32> to vector<32x64xf32>
    %152 = arith.addf %150, %151 : vector<32x64xf32>
    %153 = arith.negf %152 : vector<32x64xf32>
    %154 = math.exp %153 : vector<32x64xf32>
    %cst_76 = arith.constant 1.000000e+00 : f32
    %155 = vector.broadcast %cst_76 : f32 to vector<32x64xf32>
    %156 = arith.addf %155, %154 : vector<32x64xf32>
    %157 = arith.divf %155, %156 : vector<32x64xf32>
    %158 = vector.extract_strided_slice %157 {offsets = [0, 0], sizes = [32, 32], strides = [1, 1]} : vector<32x64xf32> to vector<32x32xf32>
    %159 = vector.extract_strided_slice %157 {offsets = [0, 32], sizes = [32, 32], strides = [1, 1]} : vector<32x64xf32> to vector<32x32xf32>
    %160 = arith.mulf %158, %136 : vector<32x32xf32>
    %cst_77 = arith.constant dense<0.000000e+00> : vector<32x32xf32>
    %161 = tpu.matmul %0, %160, %cst_77 {dimension_numbers = #tpu.dot_dimension_numbers<[1], [0], [0], [1], [0, 0, 1, 1], [], []>} : vector<32x32xf32>, vector<32x32xf32>, vector<32x32xf32> -> vector<32x32xf32>
    %cst_78 = arith.constant dense<0.000000e+00> : vector<32x32xf32>
    %162 = tpu.matmul %0, %161, %cst_78 {dimension_numbers = #tpu.dot_dimension_numbers<[1], [0], [0], [1], [0, 0, 1, 1], [], []>} : vector<32x32xf32>, vector<32x32xf32>, vector<32x32xf32> -> vector<32x32xf32>
    %cst_79 = arith.constant 2.000000e+00 : f32
    %163 = vector.broadcast %cst_79 : f32 to vector<32x32xf32>
    %164 = arith.mulf %163, %162 : vector<32x32xf32>
    %165 = arith.subf %164, %160 : vector<32x32xf32>
    %166 = vector.extract_strided_slice %143 {offsets = [0, 0], sizes = [32, 2], strides = [1, 1]} : vector<32x34xf32> to vector<32x2xf32>
    %167 = tpu.concatenate %166, %160 in 1 : vector<32x2xf32>, vector<32x32xf32> -> vector<32x34xf32>
    %168 = vector.extract_strided_slice %144 {offsets = [0, 0], sizes = [32, 2], strides = [1, 1]} : vector<32x34xf32> to vector<32x2xf32>
    %169 = tpu.concatenate %168, %161 in 1 : vector<32x2xf32>, vector<32x32xf32> -> vector<32x34xf32>
    %170 = vector.extract_strided_slice %148 {offsets = [0, 0], sizes = [32, 2], strides = [1, 1]} : vector<32x34xf32> to vector<32x2xf32>
    %171 = tpu.concatenate %170, %165 in 1 : vector<32x2xf32>, vector<32x32xf32> -> vector<32x34xf32>
    %172 = tpu.concatenate %167, %169, %171 in 1 : vector<32x34xf32>, vector<32x34xf32>, vector<32x34xf32> -> vector<32x102xf32>
    %cst_80 = arith.constant dense<0.000000e+00> : vector<32x32xf32>
    %173 = tpu.matmul %172, %141, %cst_80 {dimension_numbers = #tpu.dot_dimension_numbers<[1], [0], [0], [1], [0, 0, 1, 1], [], []>} : vector<32x102xf32>, vector<102x32xf32>, vector<32x32xf32> -> vector<32x32xf32>
    %174 = vector.broadcast %142 : vector<1x32xf32> to vector<32x32xf32>
    %175 = arith.addf %173, %174 : vector<32x32xf32>
    %176 = math.tanh %175 : vector<32x32xf32>
    %177 = arith.mulf %159, %136 : vector<32x32xf32>
    %cst_81 = arith.constant 1.000000e+00 : f32
    %178 = vector.broadcast %cst_81 : f32 to vector<32x32xf32>
    %179 = arith.subf %178, %159 : vector<32x32xf32>
    %180 = arith.mulf %179, %176 : vector<32x32xf32>
    %181 = arith.addf %177, %180 : vector<32x32xf32>
    %c4 = arith.constant 4 : index
    %c0_82 = arith.constant 0 : index
    %c0_83 = arith.constant 0 : index
    %182 = vector.load %arg0[%c4, %c0_82, %c0_83] : memref<8x32x2xf32, #tpu.memory_space<vmem>>, vector<1x32x2xf32>
    %183 = vector.shape_cast %182 : vector<1x32x2xf32> to vector<32x2xf32>
    %c0_84 = arith.constant 0 : index
    %c0_85 = arith.constant 0 : index
    %184 = vector.load %arg2[%c0_84, %c0_85] : memref<102x64xf32, #tpu.memory_space<vmem>>, vector<102x64xf32>
    %c0_86 = arith.constant 0 : index
    %c0_87 = arith.constant 0 : index
    %185 = vector.load %arg3[%c0_86, %c0_87] : memref<1x64xf32, #tpu.memory_space<vmem>>, vector<1x64xf32>
    %c0_88 = arith.constant 0 : index
    %c0_89 = arith.constant 0 : index
    %186 = vector.load %arg4[%c0_88, %c0_89] : memref<102x32xf32, #tpu.memory_space<vmem>>, vector<102x32xf32>
    %c0_90 = arith.constant 0 : index
    %c0_91 = arith.constant 0 : index
    %187 = vector.load %arg5[%c0_90, %c0_91] : memref<1x32xf32, #tpu.memory_space<vmem>>, vector<1x32xf32>
    %188 = tpu.concatenate %183, %181 in 1 : vector<32x2xf32>, vector<32x32xf32> -> vector<32x34xf32>
    %cst_92 = arith.constant dense<0.000000e+00> : vector<32x34xf32>
    %189 = tpu.matmul %0, %188, %cst_92 {dimension_numbers = #tpu.dot_dimension_numbers<[1], [0], [0], [1], [0, 0, 1, 1], [], []>} : vector<32x32xf32>, vector<32x34xf32>, vector<32x34xf32> -> vector<32x34xf32>
    %cst_93 = arith.constant dense<0.000000e+00> : vector<32x34xf32>
    %190 = tpu.matmul %0, %189, %cst_93 {dimension_numbers = #tpu.dot_dimension_numbers<[1], [0], [0], [1], [0, 0, 1, 1], [], []>} : vector<32x32xf32>, vector<32x34xf32>, vector<32x34xf32> -> vector<32x34xf32>
    %cst_94 = arith.constant 2.000000e+00 : f32
    %191 = vector.broadcast %cst_94 : f32 to vector<32x34xf32>
    %192 = arith.mulf %191, %190 : vector<32x34xf32>
    %193 = arith.subf %192, %188 : vector<32x34xf32>
    %194 = tpu.concatenate %188, %189, %193 in 1 : vector<32x34xf32>, vector<32x34xf32>, vector<32x34xf32> -> vector<32x102xf32>
    %cst_95 = arith.constant dense<0.000000e+00> : vector<32x64xf32>
    %195 = tpu.matmul %194, %184, %cst_95 {dimension_numbers = #tpu.dot_dimension_numbers<[1], [0], [0], [1], [0, 0, 1, 1], [], []>} : vector<32x102xf32>, vector<102x64xf32>, vector<32x64xf32> -> vector<32x64xf32>
    %196 = vector.broadcast %185 : vector<1x64xf32> to vector<32x64xf32>
    %197 = arith.addf %195, %196 : vector<32x64xf32>
    %198 = arith.negf %197 : vector<32x64xf32>
    %199 = math.exp %198 : vector<32x64xf32>
    %cst_96 = arith.constant 1.000000e+00 : f32
    %200 = vector.broadcast %cst_96 : f32 to vector<32x64xf32>
    %201 = arith.addf %200, %199 : vector<32x64xf32>
    %202 = arith.divf %200, %201 : vector<32x64xf32>
    %203 = vector.extract_strided_slice %202 {offsets = [0, 0], sizes = [32, 32], strides = [1, 1]} : vector<32x64xf32> to vector<32x32xf32>
    %204 = vector.extract_strided_slice %202 {offsets = [0, 32], sizes = [32, 32], strides = [1, 1]} : vector<32x64xf32> to vector<32x32xf32>
    %205 = arith.mulf %203, %181 : vector<32x32xf32>
    %cst_97 = arith.constant dense<0.000000e+00> : vector<32x32xf32>
    %206 = tpu.matmul %0, %205, %cst_97 {dimension_numbers = #tpu.dot_dimension_numbers<[1], [0], [0], [1], [0, 0, 1, 1], [], []>} : vector<32x32xf32>, vector<32x32xf32>, vector<32x32xf32> -> vector<32x32xf32>
    %cst_98 = arith.constant dense<0.000000e+00> : vector<32x32xf32>
    %207 = tpu.matmul %0, %206, %cst_98 {dimension_numbers = #tpu.dot_dimension_numbers<[1], [0], [0], [1], [0, 0, 1, 1], [], []>} : vector<32x32xf32>, vector<32x32xf32>, vector<32x32xf32> -> vector<32x32xf32>
    %cst_99 = arith.constant 2.000000e+00 : f32
    %208 = vector.broadcast %cst_99 : f32 to vector<32x32xf32>
    %209 = arith.mulf %208, %207 : vector<32x32xf32>
    %210 = arith.subf %209, %205 : vector<32x32xf32>
    %211 = vector.extract_strided_slice %188 {offsets = [0, 0], sizes = [32, 2], strides = [1, 1]} : vector<32x34xf32> to vector<32x2xf32>
    %212 = tpu.concatenate %211, %205 in 1 : vector<32x2xf32>, vector<32x32xf32> -> vector<32x34xf32>
    %213 = vector.extract_strided_slice %189 {offsets = [0, 0], sizes = [32, 2], strides = [1, 1]} : vector<32x34xf32> to vector<32x2xf32>
    %214 = tpu.concatenate %213, %206 in 1 : vector<32x2xf32>, vector<32x32xf32> -> vector<32x34xf32>
    %215 = vector.extract_strided_slice %193 {offsets = [0, 0], sizes = [32, 2], strides = [1, 1]} : vector<32x34xf32> to vector<32x2xf32>
    %216 = tpu.concatenate %215, %210 in 1 : vector<32x2xf32>, vector<32x32xf32> -> vector<32x34xf32>
    %217 = tpu.concatenate %212, %214, %216 in 1 : vector<32x34xf32>, vector<32x34xf32>, vector<32x34xf32> -> vector<32x102xf32>
    %cst_100 = arith.constant dense<0.000000e+00> : vector<32x32xf32>
    %218 = tpu.matmul %217, %186, %cst_100 {dimension_numbers = #tpu.dot_dimension_numbers<[1], [0], [0], [1], [0, 0, 1, 1], [], []>} : vector<32x102xf32>, vector<102x32xf32>, vector<32x32xf32> -> vector<32x32xf32>
    %219 = vector.broadcast %187 : vector<1x32xf32> to vector<32x32xf32>
    %220 = arith.addf %218, %219 : vector<32x32xf32>
    %221 = math.tanh %220 : vector<32x32xf32>
    %222 = arith.mulf %204, %181 : vector<32x32xf32>
    %cst_101 = arith.constant 1.000000e+00 : f32
    %223 = vector.broadcast %cst_101 : f32 to vector<32x32xf32>
    %224 = arith.subf %223, %204 : vector<32x32xf32>
    %225 = arith.mulf %224, %221 : vector<32x32xf32>
    %226 = arith.addf %222, %225 : vector<32x32xf32>
    %c5 = arith.constant 5 : index
    %c0_102 = arith.constant 0 : index
    %c0_103 = arith.constant 0 : index
    %227 = vector.load %arg0[%c5, %c0_102, %c0_103] : memref<8x32x2xf32, #tpu.memory_space<vmem>>, vector<1x32x2xf32>
    %228 = vector.shape_cast %227 : vector<1x32x2xf32> to vector<32x2xf32>
    %c0_104 = arith.constant 0 : index
    %c0_105 = arith.constant 0 : index
    %229 = vector.load %arg2[%c0_104, %c0_105] : memref<102x64xf32, #tpu.memory_space<vmem>>, vector<102x64xf32>
    %c0_106 = arith.constant 0 : index
    %c0_107 = arith.constant 0 : index
    %230 = vector.load %arg3[%c0_106, %c0_107] : memref<1x64xf32, #tpu.memory_space<vmem>>, vector<1x64xf32>
    %c0_108 = arith.constant 0 : index
    %c0_109 = arith.constant 0 : index
    %231 = vector.load %arg4[%c0_108, %c0_109] : memref<102x32xf32, #tpu.memory_space<vmem>>, vector<102x32xf32>
    %c0_110 = arith.constant 0 : index
    %c0_111 = arith.constant 0 : index
    %232 = vector.load %arg5[%c0_110, %c0_111] : memref<1x32xf32, #tpu.memory_space<vmem>>, vector<1x32xf32>
    %233 = tpu.concatenate %228, %226 in 1 : vector<32x2xf32>, vector<32x32xf32> -> vector<32x34xf32>
    %cst_112 = arith.constant dense<0.000000e+00> : vector<32x34xf32>
    %234 = tpu.matmul %0, %233, %cst_112 {dimension_numbers = #tpu.dot_dimension_numbers<[1], [0], [0], [1], [0, 0, 1, 1], [], []>} : vector<32x32xf32>, vector<32x34xf32>, vector<32x34xf32> -> vector<32x34xf32>
    %cst_113 = arith.constant dense<0.000000e+00> : vector<32x34xf32>
    %235 = tpu.matmul %0, %234, %cst_113 {dimension_numbers = #tpu.dot_dimension_numbers<[1], [0], [0], [1], [0, 0, 1, 1], [], []>} : vector<32x32xf32>, vector<32x34xf32>, vector<32x34xf32> -> vector<32x34xf32>
    %cst_114 = arith.constant 2.000000e+00 : f32
    %236 = vector.broadcast %cst_114 : f32 to vector<32x34xf32>
    %237 = arith.mulf %236, %235 : vector<32x34xf32>
    %238 = arith.subf %237, %233 : vector<32x34xf32>
    %239 = tpu.concatenate %233, %234, %238 in 1 : vector<32x34xf32>, vector<32x34xf32>, vector<32x34xf32> -> vector<32x102xf32>
    %cst_115 = arith.constant dense<0.000000e+00> : vector<32x64xf32>
    %240 = tpu.matmul %239, %229, %cst_115 {dimension_numbers = #tpu.dot_dimension_numbers<[1], [0], [0], [1], [0, 0, 1, 1], [], []>} : vector<32x102xf32>, vector<102x64xf32>, vector<32x64xf32> -> vector<32x64xf32>
    %241 = vector.broadcast %230 : vector<1x64xf32> to vector<32x64xf32>
    %242 = arith.addf %240, %241 : vector<32x64xf32>
    %243 = arith.negf %242 : vector<32x64xf32>
    %244 = math.exp %243 : vector<32x64xf32>
    %cst_116 = arith.constant 1.000000e+00 : f32
    %245 = vector.broadcast %cst_116 : f32 to vector<32x64xf32>
    %246 = arith.addf %245, %244 : vector<32x64xf32>
    %247 = arith.divf %245, %246 : vector<32x64xf32>
    %248 = vector.extract_strided_slice %247 {offsets = [0, 0], sizes = [32, 32], strides = [1, 1]} : vector<32x64xf32> to vector<32x32xf32>
    %249 = vector.extract_strided_slice %247 {offsets = [0, 32], sizes = [32, 32], strides = [1, 1]} : vector<32x64xf32> to vector<32x32xf32>
    %250 = arith.mulf %248, %226 : vector<32x32xf32>
    %cst_117 = arith.constant dense<0.000000e+00> : vector<32x32xf32>
    %251 = tpu.matmul %0, %250, %cst_117 {dimension_numbers = #tpu.dot_dimension_numbers<[1], [0], [0], [1], [0, 0, 1, 1], [], []>} : vector<32x32xf32>, vector<32x32xf32>, vector<32x32xf32> -> vector<32x32xf32>
    %cst_118 = arith.constant dense<0.000000e+00> : vector<32x32xf32>
    %252 = tpu.matmul %0, %251, %cst_118 {dimension_numbers = #tpu.dot_dimension_numbers<[1], [0], [0], [1], [0, 0, 1, 1], [], []>} : vector<32x32xf32>, vector<32x32xf32>, vector<32x32xf32> -> vector<32x32xf32>
    %cst_119 = arith.constant 2.000000e+00 : f32
    %253 = vector.broadcast %cst_119 : f32 to vector<32x32xf32>
    %254 = arith.mulf %253, %252 : vector<32x32xf32>
    %255 = arith.subf %254, %250 : vector<32x32xf32>
    %256 = vector.extract_strided_slice %233 {offsets = [0, 0], sizes = [32, 2], strides = [1, 1]} : vector<32x34xf32> to vector<32x2xf32>
    %257 = tpu.concatenate %256, %250 in 1 : vector<32x2xf32>, vector<32x32xf32> -> vector<32x34xf32>
    %258 = vector.extract_strided_slice %234 {offsets = [0, 0], sizes = [32, 2], strides = [1, 1]} : vector<32x34xf32> to vector<32x2xf32>
    %259 = tpu.concatenate %258, %251 in 1 : vector<32x2xf32>, vector<32x32xf32> -> vector<32x34xf32>
    %260 = vector.extract_strided_slice %238 {offsets = [0, 0], sizes = [32, 2], strides = [1, 1]} : vector<32x34xf32> to vector<32x2xf32>
    %261 = tpu.concatenate %260, %255 in 1 : vector<32x2xf32>, vector<32x32xf32> -> vector<32x34xf32>
    %262 = tpu.concatenate %257, %259, %261 in 1 : vector<32x34xf32>, vector<32x34xf32>, vector<32x34xf32> -> vector<32x102xf32>
    %cst_120 = arith.constant dense<0.000000e+00> : vector<32x32xf32>
    %263 = tpu.matmul %262, %231, %cst_120 {dimension_numbers = #tpu.dot_dimension_numbers<[1], [0], [0], [1], [0, 0, 1, 1], [], []>} : vector<32x102xf32>, vector<102x32xf32>, vector<32x32xf32> -> vector<32x32xf32>
    %264 = vector.broadcast %232 : vector<1x32xf32> to vector<32x32xf32>
    %265 = arith.addf %263, %264 : vector<32x32xf32>
    %266 = math.tanh %265 : vector<32x32xf32>
    %267 = arith.mulf %249, %226 : vector<32x32xf32>
    %cst_121 = arith.constant 1.000000e+00 : f32
    %268 = vector.broadcast %cst_121 : f32 to vector<32x32xf32>
    %269 = arith.subf %268, %249 : vector<32x32xf32>
    %270 = arith.mulf %269, %266 : vector<32x32xf32>
    %271 = arith.addf %267, %270 : vector<32x32xf32>
    %c6 = arith.constant 6 : index
    %c0_122 = arith.constant 0 : index
    %c0_123 = arith.constant 0 : index
    %272 = vector.load %arg0[%c6, %c0_122, %c0_123] : memref<8x32x2xf32, #tpu.memory_space<vmem>>, vector<1x32x2xf32>
    %273 = vector.shape_cast %272 : vector<1x32x2xf32> to vector<32x2xf32>
    %c0_124 = arith.constant 0 : index
    %c0_125 = arith.constant 0 : index
    %274 = vector.load %arg2[%c0_124, %c0_125] : memref<102x64xf32, #tpu.memory_space<vmem>>, vector<102x64xf32>
    %c0_126 = arith.constant 0 : index
    %c0_127 = arith.constant 0 : index
    %275 = vector.load %arg3[%c0_126, %c0_127] : memref<1x64xf32, #tpu.memory_space<vmem>>, vector<1x64xf32>
    %c0_128 = arith.constant 0 : index
    %c0_129 = arith.constant 0 : index
    %276 = vector.load %arg4[%c0_128, %c0_129] : memref<102x32xf32, #tpu.memory_space<vmem>>, vector<102x32xf32>
    %c0_130 = arith.constant 0 : index
    %c0_131 = arith.constant 0 : index
    %277 = vector.load %arg5[%c0_130, %c0_131] : memref<1x32xf32, #tpu.memory_space<vmem>>, vector<1x32xf32>
    %278 = tpu.concatenate %273, %271 in 1 : vector<32x2xf32>, vector<32x32xf32> -> vector<32x34xf32>
    %cst_132 = arith.constant dense<0.000000e+00> : vector<32x34xf32>
    %279 = tpu.matmul %0, %278, %cst_132 {dimension_numbers = #tpu.dot_dimension_numbers<[1], [0], [0], [1], [0, 0, 1, 1], [], []>} : vector<32x32xf32>, vector<32x34xf32>, vector<32x34xf32> -> vector<32x34xf32>
    %cst_133 = arith.constant dense<0.000000e+00> : vector<32x34xf32>
    %280 = tpu.matmul %0, %279, %cst_133 {dimension_numbers = #tpu.dot_dimension_numbers<[1], [0], [0], [1], [0, 0, 1, 1], [], []>} : vector<32x32xf32>, vector<32x34xf32>, vector<32x34xf32> -> vector<32x34xf32>
    %cst_134 = arith.constant 2.000000e+00 : f32
    %281 = vector.broadcast %cst_134 : f32 to vector<32x34xf32>
    %282 = arith.mulf %281, %280 : vector<32x34xf32>
    %283 = arith.subf %282, %278 : vector<32x34xf32>
    %284 = tpu.concatenate %278, %279, %283 in 1 : vector<32x34xf32>, vector<32x34xf32>, vector<32x34xf32> -> vector<32x102xf32>
    %cst_135 = arith.constant dense<0.000000e+00> : vector<32x64xf32>
    %285 = tpu.matmul %284, %274, %cst_135 {dimension_numbers = #tpu.dot_dimension_numbers<[1], [0], [0], [1], [0, 0, 1, 1], [], []>} : vector<32x102xf32>, vector<102x64xf32>, vector<32x64xf32> -> vector<32x64xf32>
    %286 = vector.broadcast %275 : vector<1x64xf32> to vector<32x64xf32>
    %287 = arith.addf %285, %286 : vector<32x64xf32>
    %288 = arith.negf %287 : vector<32x64xf32>
    %289 = math.exp %288 : vector<32x64xf32>
    %cst_136 = arith.constant 1.000000e+00 : f32
    %290 = vector.broadcast %cst_136 : f32 to vector<32x64xf32>
    %291 = arith.addf %290, %289 : vector<32x64xf32>
    %292 = arith.divf %290, %291 : vector<32x64xf32>
    %293 = vector.extract_strided_slice %292 {offsets = [0, 0], sizes = [32, 32], strides = [1, 1]} : vector<32x64xf32> to vector<32x32xf32>
    %294 = vector.extract_strided_slice %292 {offsets = [0, 32], sizes = [32, 32], strides = [1, 1]} : vector<32x64xf32> to vector<32x32xf32>
    %295 = arith.mulf %293, %271 : vector<32x32xf32>
    %cst_137 = arith.constant dense<0.000000e+00> : vector<32x32xf32>
    %296 = tpu.matmul %0, %295, %cst_137 {dimension_numbers = #tpu.dot_dimension_numbers<[1], [0], [0], [1], [0, 0, 1, 1], [], []>} : vector<32x32xf32>, vector<32x32xf32>, vector<32x32xf32> -> vector<32x32xf32>
    %cst_138 = arith.constant dense<0.000000e+00> : vector<32x32xf32>
    %297 = tpu.matmul %0, %296, %cst_138 {dimension_numbers = #tpu.dot_dimension_numbers<[1], [0], [0], [1], [0, 0, 1, 1], [], []>} : vector<32x32xf32>, vector<32x32xf32>, vector<32x32xf32> -> vector<32x32xf32>
    %cst_139 = arith.constant 2.000000e+00 : f32
    %298 = vector.broadcast %cst_139 : f32 to vector<32x32xf32>
    %299 = arith.mulf %298, %297 : vector<32x32xf32>
    %300 = arith.subf %299, %295 : vector<32x32xf32>
    %301 = vector.extract_strided_slice %278 {offsets = [0, 0], sizes = [32, 2], strides = [1, 1]} : vector<32x34xf32> to vector<32x2xf32>
    %302 = tpu.concatenate %301, %295 in 1 : vector<32x2xf32>, vector<32x32xf32> -> vector<32x34xf32>
    %303 = vector.extract_strided_slice %279 {offsets = [0, 0], sizes = [32, 2], strides = [1, 1]} : vector<32x34xf32> to vector<32x2xf32>
    %304 = tpu.concatenate %303, %296 in 1 : vector<32x2xf32>, vector<32x32xf32> -> vector<32x34xf32>
    %305 = vector.extract_strided_slice %283 {offsets = [0, 0], sizes = [32, 2], strides = [1, 1]} : vector<32x34xf32> to vector<32x2xf32>
    %306 = tpu.concatenate %305, %300 in 1 : vector<32x2xf32>, vector<32x32xf32> -> vector<32x34xf32>
    %307 = tpu.concatenate %302, %304, %306 in 1 : vector<32x34xf32>, vector<32x34xf32>, vector<32x34xf32> -> vector<32x102xf32>
    %cst_140 = arith.constant dense<0.000000e+00> : vector<32x32xf32>
    %308 = tpu.matmul %307, %276, %cst_140 {dimension_numbers = #tpu.dot_dimension_numbers<[1], [0], [0], [1], [0, 0, 1, 1], [], []>} : vector<32x102xf32>, vector<102x32xf32>, vector<32x32xf32> -> vector<32x32xf32>
    %309 = vector.broadcast %277 : vector<1x32xf32> to vector<32x32xf32>
    %310 = arith.addf %308, %309 : vector<32x32xf32>
    %311 = math.tanh %310 : vector<32x32xf32>
    %312 = arith.mulf %294, %271 : vector<32x32xf32>
    %cst_141 = arith.constant 1.000000e+00 : f32
    %313 = vector.broadcast %cst_141 : f32 to vector<32x32xf32>
    %314 = arith.subf %313, %294 : vector<32x32xf32>
    %315 = arith.mulf %314, %311 : vector<32x32xf32>
    %316 = arith.addf %312, %315 : vector<32x32xf32>
    %c7 = arith.constant 7 : index
    %c0_142 = arith.constant 0 : index
    %c0_143 = arith.constant 0 : index
    %317 = vector.load %arg0[%c7, %c0_142, %c0_143] : memref<8x32x2xf32, #tpu.memory_space<vmem>>, vector<1x32x2xf32>
    %318 = vector.shape_cast %317 : vector<1x32x2xf32> to vector<32x2xf32>
    %c0_144 = arith.constant 0 : index
    %c0_145 = arith.constant 0 : index
    %319 = vector.load %arg2[%c0_144, %c0_145] : memref<102x64xf32, #tpu.memory_space<vmem>>, vector<102x64xf32>
    %c0_146 = arith.constant 0 : index
    %c0_147 = arith.constant 0 : index
    %320 = vector.load %arg3[%c0_146, %c0_147] : memref<1x64xf32, #tpu.memory_space<vmem>>, vector<1x64xf32>
    %c0_148 = arith.constant 0 : index
    %c0_149 = arith.constant 0 : index
    %321 = vector.load %arg4[%c0_148, %c0_149] : memref<102x32xf32, #tpu.memory_space<vmem>>, vector<102x32xf32>
    %c0_150 = arith.constant 0 : index
    %c0_151 = arith.constant 0 : index
    %322 = vector.load %arg5[%c0_150, %c0_151] : memref<1x32xf32, #tpu.memory_space<vmem>>, vector<1x32xf32>
    %323 = tpu.concatenate %318, %316 in 1 : vector<32x2xf32>, vector<32x32xf32> -> vector<32x34xf32>
    %cst_152 = arith.constant dense<0.000000e+00> : vector<32x34xf32>
    %324 = tpu.matmul %0, %323, %cst_152 {dimension_numbers = #tpu.dot_dimension_numbers<[1], [0], [0], [1], [0, 0, 1, 1], [], []>} : vector<32x32xf32>, vector<32x34xf32>, vector<32x34xf32> -> vector<32x34xf32>
    %cst_153 = arith.constant dense<0.000000e+00> : vector<32x34xf32>
    %325 = tpu.matmul %0, %324, %cst_153 {dimension_numbers = #tpu.dot_dimension_numbers<[1], [0], [0], [1], [0, 0, 1, 1], [], []>} : vector<32x32xf32>, vector<32x34xf32>, vector<32x34xf32> -> vector<32x34xf32>
    %cst_154 = arith.constant 2.000000e+00 : f32
    %326 = vector.broadcast %cst_154 : f32 to vector<32x34xf32>
    %327 = arith.mulf %326, %325 : vector<32x34xf32>
    %328 = arith.subf %327, %323 : vector<32x34xf32>
    %329 = tpu.concatenate %323, %324, %328 in 1 : vector<32x34xf32>, vector<32x34xf32>, vector<32x34xf32> -> vector<32x102xf32>
    %cst_155 = arith.constant dense<0.000000e+00> : vector<32x64xf32>
    %330 = tpu.matmul %329, %319, %cst_155 {dimension_numbers = #tpu.dot_dimension_numbers<[1], [0], [0], [1], [0, 0, 1, 1], [], []>} : vector<32x102xf32>, vector<102x64xf32>, vector<32x64xf32> -> vector<32x64xf32>
    %331 = vector.broadcast %320 : vector<1x64xf32> to vector<32x64xf32>
    %332 = arith.addf %330, %331 : vector<32x64xf32>
    %333 = arith.negf %332 : vector<32x64xf32>
    %334 = math.exp %333 : vector<32x64xf32>
    %cst_156 = arith.constant 1.000000e+00 : f32
    %335 = vector.broadcast %cst_156 : f32 to vector<32x64xf32>
    %336 = arith.addf %335, %334 : vector<32x64xf32>
    %337 = arith.divf %335, %336 : vector<32x64xf32>
    %338 = vector.extract_strided_slice %337 {offsets = [0, 0], sizes = [32, 32], strides = [1, 1]} : vector<32x64xf32> to vector<32x32xf32>
    %339 = vector.extract_strided_slice %337 {offsets = [0, 32], sizes = [32, 32], strides = [1, 1]} : vector<32x64xf32> to vector<32x32xf32>
    %340 = arith.mulf %338, %316 : vector<32x32xf32>
    %cst_157 = arith.constant dense<0.000000e+00> : vector<32x32xf32>
    %341 = tpu.matmul %0, %340, %cst_157 {dimension_numbers = #tpu.dot_dimension_numbers<[1], [0], [0], [1], [0, 0, 1, 1], [], []>} : vector<32x32xf32>, vector<32x32xf32>, vector<32x32xf32> -> vector<32x32xf32>
    %cst_158 = arith.constant dense<0.000000e+00> : vector<32x32xf32>
    %342 = tpu.matmul %0, %341, %cst_158 {dimension_numbers = #tpu.dot_dimension_numbers<[1], [0], [0], [1], [0, 0, 1, 1], [], []>} : vector<32x32xf32>, vector<32x32xf32>, vector<32x32xf32> -> vector<32x32xf32>
    %cst_159 = arith.constant 2.000000e+00 : f32
    %343 = vector.broadcast %cst_159 : f32 to vector<32x32xf32>
    %344 = arith.mulf %343, %342 : vector<32x32xf32>
    %345 = arith.subf %344, %340 : vector<32x32xf32>
    %346 = vector.extract_strided_slice %323 {offsets = [0, 0], sizes = [32, 2], strides = [1, 1]} : vector<32x34xf32> to vector<32x2xf32>
    %347 = tpu.concatenate %346, %340 in 1 : vector<32x2xf32>, vector<32x32xf32> -> vector<32x34xf32>
    %348 = vector.extract_strided_slice %324 {offsets = [0, 0], sizes = [32, 2], strides = [1, 1]} : vector<32x34xf32> to vector<32x2xf32>
    %349 = tpu.concatenate %348, %341 in 1 : vector<32x2xf32>, vector<32x32xf32> -> vector<32x34xf32>
    %350 = vector.extract_strided_slice %328 {offsets = [0, 0], sizes = [32, 2], strides = [1, 1]} : vector<32x34xf32> to vector<32x2xf32>
    %351 = tpu.concatenate %350, %345 in 1 : vector<32x2xf32>, vector<32x32xf32> -> vector<32x34xf32>
    %352 = tpu.concatenate %347, %349, %351 in 1 : vector<32x34xf32>, vector<32x34xf32>, vector<32x34xf32> -> vector<32x102xf32>
    %cst_160 = arith.constant dense<0.000000e+00> : vector<32x32xf32>
    %353 = tpu.matmul %352, %321, %cst_160 {dimension_numbers = #tpu.dot_dimension_numbers<[1], [0], [0], [1], [0, 0, 1, 1], [], []>} : vector<32x102xf32>, vector<102x32xf32>, vector<32x32xf32> -> vector<32x32xf32>
    %354 = vector.broadcast %322 : vector<1x32xf32> to vector<32x32xf32>
    %355 = arith.addf %353, %354 : vector<32x32xf32>
    %356 = math.tanh %355 : vector<32x32xf32>
    %357 = arith.mulf %339, %316 : vector<32x32xf32>
    %cst_161 = arith.constant 1.000000e+00 : f32
    %358 = vector.broadcast %cst_161 : f32 to vector<32x32xf32>
    %359 = arith.subf %358, %339 : vector<32x32xf32>
    %360 = arith.mulf %359, %356 : vector<32x32xf32>
    %361 = arith.addf %357, %360 : vector<32x32xf32>
    %cst_162 = arith.constant 0.000000e+00 : f32
    %362 = vector.broadcast %cst_162 : f32 to vector<32x1xf32>
    %c0_163 = arith.constant 0 : index
    %c0_164 = arith.constant 0 : index
    %363 = vector.load %arg6[%c0_163, %c0_164] : memref<99x64xf32, #tpu.memory_space<vmem>>, vector<99x64xf32>
    %c0_165 = arith.constant 0 : index
    %c0_166 = arith.constant 0 : index
    %364 = vector.load %arg7[%c0_165, %c0_166] : memref<1x64xf32, #tpu.memory_space<vmem>>, vector<1x64xf32>
    %c0_167 = arith.constant 0 : index
    %c0_168 = arith.constant 0 : index
    %365 = vector.load %arg8[%c0_167, %c0_168] : memref<99x32xf32, #tpu.memory_space<vmem>>, vector<99x32xf32>
    %c0_169 = arith.constant 0 : index
    %c0_170 = arith.constant 0 : index
    %366 = vector.load %arg9[%c0_169, %c0_170] : memref<1x32xf32, #tpu.memory_space<vmem>>, vector<1x32xf32>
    %367 = tpu.concatenate %362, %361 in 1 : vector<32x1xf32>, vector<32x32xf32> -> vector<32x33xf32>
    %cst_171 = arith.constant dense<0.000000e+00> : vector<32x33xf32>
    %368 = tpu.matmul %0, %367, %cst_171 {dimension_numbers = #tpu.dot_dimension_numbers<[1], [0], [0], [1], [0, 0, 1, 1], [], []>} : vector<32x32xf32>, vector<32x33xf32>, vector<32x33xf32> -> vector<32x33xf32>
    %cst_172 = arith.constant dense<0.000000e+00> : vector<32x33xf32>
    %369 = tpu.matmul %0, %368, %cst_172 {dimension_numbers = #tpu.dot_dimension_numbers<[1], [0], [0], [1], [0, 0, 1, 1], [], []>} : vector<32x32xf32>, vector<32x33xf32>, vector<32x33xf32> -> vector<32x33xf32>
    %cst_173 = arith.constant 2.000000e+00 : f32
    %370 = vector.broadcast %cst_173 : f32 to vector<32x33xf32>
    %371 = arith.mulf %370, %369 : vector<32x33xf32>
    %372 = arith.subf %371, %367 : vector<32x33xf32>
    %373 = tpu.concatenate %367, %368, %372 in 1 : vector<32x33xf32>, vector<32x33xf32>, vector<32x33xf32> -> vector<32x99xf32>
    %cst_174 = arith.constant dense<0.000000e+00> : vector<32x64xf32>
    %374 = tpu.matmul %373, %363, %cst_174 {dimension_numbers = #tpu.dot_dimension_numbers<[1], [0], [0], [1], [0, 0, 1, 1], [], []>} : vector<32x99xf32>, vector<99x64xf32>, vector<32x64xf32> -> vector<32x64xf32>
    %375 = vector.broadcast %364 : vector<1x64xf32> to vector<32x64xf32>
    %376 = arith.addf %374, %375 : vector<32x64xf32>
    %377 = arith.negf %376 : vector<32x64xf32>
    %378 = math.exp %377 : vector<32x64xf32>
    %cst_175 = arith.constant 1.000000e+00 : f32
    %379 = vector.broadcast %cst_175 : f32 to vector<32x64xf32>
    %380 = arith.addf %379, %378 : vector<32x64xf32>
    %381 = arith.divf %379, %380 : vector<32x64xf32>
    %382 = vector.extract_strided_slice %381 {offsets = [0, 0], sizes = [32, 32], strides = [1, 1]} : vector<32x64xf32> to vector<32x32xf32>
    %383 = vector.extract_strided_slice %381 {offsets = [0, 32], sizes = [32, 32], strides = [1, 1]} : vector<32x64xf32> to vector<32x32xf32>
    %384 = arith.mulf %382, %361 : vector<32x32xf32>
    %cst_176 = arith.constant dense<0.000000e+00> : vector<32x32xf32>
    %385 = tpu.matmul %0, %384, %cst_176 {dimension_numbers = #tpu.dot_dimension_numbers<[1], [0], [0], [1], [0, 0, 1, 1], [], []>} : vector<32x32xf32>, vector<32x32xf32>, vector<32x32xf32> -> vector<32x32xf32>
    %cst_177 = arith.constant dense<0.000000e+00> : vector<32x32xf32>
    %386 = tpu.matmul %0, %385, %cst_177 {dimension_numbers = #tpu.dot_dimension_numbers<[1], [0], [0], [1], [0, 0, 1, 1], [], []>} : vector<32x32xf32>, vector<32x32xf32>, vector<32x32xf32> -> vector<32x32xf32>
    %cst_178 = arith.constant 2.000000e+00 : f32
    %387 = vector.broadcast %cst_178 : f32 to vector<32x32xf32>
    %388 = arith.mulf %387, %386 : vector<32x32xf32>
    %389 = arith.subf %388, %384 : vector<32x32xf32>
    %390 = vector.extract_strided_slice %367 {offsets = [0, 0], sizes = [32, 1], strides = [1, 1]} : vector<32x33xf32> to vector<32x1xf32>
    %391 = tpu.concatenate %390, %384 in 1 : vector<32x1xf32>, vector<32x32xf32> -> vector<32x33xf32>
    %392 = vector.extract_strided_slice %368 {offsets = [0, 0], sizes = [32, 1], strides = [1, 1]} : vector<32x33xf32> to vector<32x1xf32>
    %393 = tpu.concatenate %392, %385 in 1 : vector<32x1xf32>, vector<32x32xf32> -> vector<32x33xf32>
    %394 = vector.extract_strided_slice %372 {offsets = [0, 0], sizes = [32, 1], strides = [1, 1]} : vector<32x33xf32> to vector<32x1xf32>
    %395 = tpu.concatenate %394, %389 in 1 : vector<32x1xf32>, vector<32x32xf32> -> vector<32x33xf32>
    %396 = tpu.concatenate %391, %393, %395 in 1 : vector<32x33xf32>, vector<32x33xf32>, vector<32x33xf32> -> vector<32x99xf32>
    %cst_179 = arith.constant dense<0.000000e+00> : vector<32x32xf32>
    %397 = tpu.matmul %396, %365, %cst_179 {dimension_numbers = #tpu.dot_dimension_numbers<[1], [0], [0], [1], [0, 0, 1, 1], [], []>} : vector<32x99xf32>, vector<99x32xf32>, vector<32x32xf32> -> vector<32x32xf32>
    %398 = vector.broadcast %366 : vector<1x32xf32> to vector<32x32xf32>
    %399 = arith.addf %397, %398 : vector<32x32xf32>
    %400 = math.tanh %399 : vector<32x32xf32>
    %401 = arith.mulf %383, %361 : vector<32x32xf32>
    %cst_180 = arith.constant 1.000000e+00 : f32
    %402 = vector.broadcast %cst_180 : f32 to vector<32x32xf32>
    %403 = arith.subf %402, %383 : vector<32x32xf32>
    %404 = arith.mulf %403, %400 : vector<32x32xf32>
    %405 = arith.addf %401, %404 : vector<32x32xf32>
    %c0_181 = arith.constant 0 : index
    %c0_182 = arith.constant 0 : index
    %406 = vector.load %arg10[%c0_181, %c0_182] : memref<32x1xf32, #tpu.memory_space<vmem>>, vector<32x1xf32>
    %cst_183 = arith.constant dense<0.000000e+00> : vector<32x1xf32>
    %407 = tpu.matmul %405, %406, %cst_183 {dimension_numbers = #tpu.dot_dimension_numbers<[1], [0], [0], [1], [0, 0, 1, 1], [], []>} : vector<32x32xf32>, vector<32x1xf32>, vector<32x1xf32> -> vector<32x1xf32>
    %c0_184 = arith.constant 0 : index
    %c0_185 = arith.constant 0 : index
    %408 = vector.load %arg11[%c0_184, %c0_185] : memref<1x1xf32, #tpu.memory_space<vmem>>, vector<1x1xf32>
    %409 = vector.broadcast %408 : vector<1x1xf32> to vector<32x1xf32>
    %410 = arith.addf %407, %409 : vector<32x1xf32>
    %c0_186 = arith.constant 0 : index
    %c0_187 = arith.constant 0 : index
    %c0_188 = arith.constant 0 : index
    %411 = vector.load %arg12[%c0_186, %c0_187, %c0_188] : memref<4x32x1xf32, #tpu.memory_space<vmem>>, vector<1x32x1xf32>
    %412 = vector.shape_cast %411 : vector<1x32x1xf32> to vector<32x1xf32>
    %413 = vector.shape_cast %410 : vector<32x1xf32> to vector<1x32x1xf32>
    tpu.vector_store %arg12[%c0_186, %c0_187, %c0_188], %413 {strides = array<i32>} : memref<4x32x1xf32, #tpu.memory_space<vmem>>, vector<1x32x1xf32>,
    %c0_189 = arith.constant 0 : index
    %c0_190 = arith.constant 0 : index
    %414 = vector.load %arg6[%c0_189, %c0_190] : memref<99x64xf32, #tpu.memory_space<vmem>>, vector<99x64xf32>
    %c0_191 = arith.constant 0 : index
    %c0_192 = arith.constant 0 : index
    %415 = vector.load %arg7[%c0_191, %c0_192] : memref<1x64xf32, #tpu.memory_space<vmem>>, vector<1x64xf32>
    %c0_193 = arith.constant 0 : index
    %c0_194 = arith.constant 0 : index
    %416 = vector.load %arg8[%c0_193, %c0_194] : memref<99x32xf32, #tpu.memory_space<vmem>>, vector<99x32xf32>
    %c0_195 = arith.constant 0 : index
    %c0_196 = arith.constant 0 : index
    %417 = vector.load %arg9[%c0_195, %c0_196] : memref<1x32xf32, #tpu.memory_space<vmem>>, vector<1x32xf32>
    %418 = tpu.concatenate %410, %405 in 1 : vector<32x1xf32>, vector<32x32xf32> -> vector<32x33xf32>
    %cst_197 = arith.constant dense<0.000000e+00> : vector<32x33xf32>
    %419 = tpu.matmul %0, %418, %cst_197 {dimension_numbers = #tpu.dot_dimension_numbers<[1], [0], [0], [1], [0, 0, 1, 1], [], []>} : vector<32x32xf32>, vector<32x33xf32>, vector<32x33xf32> -> vector<32x33xf32>
    %cst_198 = arith.constant dense<0.000000e+00> : vector<32x33xf32>
    %420 = tpu.matmul %0, %419, %cst_198 {dimension_numbers = #tpu.dot_dimension_numbers<[1], [0], [0], [1], [0, 0, 1, 1], [], []>} : vector<32x32xf32>, vector<32x33xf32>, vector<32x33xf32> -> vector<32x33xf32>
    %cst_199 = arith.constant 2.000000e+00 : f32
    %421 = vector.broadcast %cst_199 : f32 to vector<32x33xf32>
    %422 = arith.mulf %421, %420 : vector<32x33xf32>
    %423 = arith.subf %422, %418 : vector<32x33xf32>
    %424 = tpu.concatenate %418, %419, %423 in 1 : vector<32x33xf32>, vector<32x33xf32>, vector<32x33xf32> -> vector<32x99xf32>
    %cst_200 = arith.constant dense<0.000000e+00> : vector<32x64xf32>
    %425 = tpu.matmul %424, %414, %cst_200 {dimension_numbers = #tpu.dot_dimension_numbers<[1], [0], [0], [1], [0, 0, 1, 1], [], []>} : vector<32x99xf32>, vector<99x64xf32>, vector<32x64xf32> -> vector<32x64xf32>
    %426 = vector.broadcast %415 : vector<1x64xf32> to vector<32x64xf32>
    %427 = arith.addf %425, %426 : vector<32x64xf32>
    %428 = arith.negf %427 : vector<32x64xf32>
    %429 = math.exp %428 : vector<32x64xf32>
    %cst_201 = arith.constant 1.000000e+00 : f32
    %430 = vector.broadcast %cst_201 : f32 to vector<32x64xf32>
    %431 = arith.addf %430, %429 : vector<32x64xf32>
    %432 = arith.divf %430, %431 : vector<32x64xf32>
    %433 = vector.extract_strided_slice %432 {offsets = [0, 0], sizes = [32, 32], strides = [1, 1]} : vector<32x64xf32> to vector<32x32xf32>
    %434 = vector.extract_strided_slice %432 {offsets = [0, 32], sizes = [32, 32], strides = [1, 1]} : vector<32x64xf32> to vector<32x32xf32>
    %435 = arith.mulf %433, %405 : vector<32x32xf32>
    %cst_202 = arith.constant dense<0.000000e+00> : vector<32x32xf32>
    %436 = tpu.matmul %0, %435, %cst_202 {dimension_numbers = #tpu.dot_dimension_numbers<[1], [0], [0], [1], [0, 0, 1, 1], [], []>} : vector<32x32xf32>, vector<32x32xf32>, vector<32x32xf32> -> vector<32x32xf32>
    %cst_203 = arith.constant dense<0.000000e+00> : vector<32x32xf32>
    %437 = tpu.matmul %0, %436, %cst_203 {dimension_numbers = #tpu.dot_dimension_numbers<[1], [0], [0], [1], [0, 0, 1, 1], [], []>} : vector<32x32xf32>, vector<32x32xf32>, vector<32x32xf32> -> vector<32x32xf32>
    %cst_204 = arith.constant 2.000000e+00 : f32
    %438 = vector.broadcast %cst_204 : f32 to vector<32x32xf32>
    %439 = arith.mulf %438, %437 : vector<32x32xf32>
    %440 = arith.subf %439, %435 : vector<32x32xf32>
    %441 = vector.extract_strided_slice %418 {offsets = [0, 0], sizes = [32, 1], strides = [1, 1]} : vector<32x33xf32> to vector<32x1xf32>
    %442 = tpu.concatenate %441, %435 in 1 : vector<32x1xf32>, vector<32x32xf32> -> vector<32x33xf32>
    %443 = vector.extract_strided_slice %419 {offsets = [0, 0], sizes = [32, 1], strides = [1, 1]} : vector<32x33xf32> to vector<32x1xf32>
    %444 = tpu.concatenate %443, %436 in 1 : vector<32x1xf32>, vector<32x32xf32> -> vector<32x33xf32>
    %445 = vector.extract_strided_slice %423 {offsets = [0, 0], sizes = [32, 1], strides = [1, 1]} : vector<32x33xf32> to vector<32x1xf32>
    %446 = tpu.concatenate %445, %440 in 1 : vector<32x1xf32>, vector<32x32xf32> -> vector<32x33xf32>
    %447 = tpu.concatenate %442, %444, %446 in 1 : vector<32x33xf32>, vector<32x33xf32>, vector<32x33xf32> -> vector<32x99xf32>
    %cst_205 = arith.constant dense<0.000000e+00> : vector<32x32xf32>
    %448 = tpu.matmul %447, %416, %cst_205 {dimension_numbers = #tpu.dot_dimension_numbers<[1], [0], [0], [1], [0, 0, 1, 1], [], []>} : vector<32x99xf32>, vector<99x32xf32>, vector<32x32xf32> -> vector<32x32xf32>
    %449 = vector.broadcast %417 : vector<1x32xf32> to vector<32x32xf32>
    %450 = arith.addf %448, %449 : vector<32x32xf32>
    %451 = math.tanh %450 : vector<32x32xf32>
    %452 = arith.mulf %434, %405 : vector<32x32xf32>
    %cst_206 = arith.constant 1.000000e+00 : f32
    %453 = vector.broadcast %cst_206 : f32 to vector<32x32xf32>
    %454 = arith.subf %453, %434 : vector<32x32xf32>
    %455 = arith.mulf %454, %451 : vector<32x32xf32>
    %456 = arith.addf %452, %455 : vector<32x32xf32>
    %c0_207 = arith.constant 0 : index
    %c0_208 = arith.constant 0 : index
    %457 = vector.load %arg10[%c0_207, %c0_208] : memref<32x1xf32, #tpu.memory_space<vmem>>, vector<32x1xf32>
    %cst_209 = arith.constant dense<0.000000e+00> : vector<32x1xf32>
    %458 = tpu.matmul %456, %457, %cst_209 {dimension_numbers = #tpu.dot_dimension_numbers<[1], [0], [0], [1], [0, 0, 1, 1], [], []>} : vector<32x32xf32>, vector<32x1xf32>, vector<32x1xf32> -> vector<32x1xf32>
    %c0_210 = arith.constant 0 : index
    %c0_211 = arith.constant 0 : index
    %459 = vector.load %arg11[%c0_210, %c0_211] : memref<1x1xf32, #tpu.memory_space<vmem>>, vector<1x1xf32>
    %460 = vector.broadcast %459 : vector<1x1xf32> to vector<32x1xf32>
    %461 = arith.addf %458, %460 : vector<32x1xf32>
    %c1_212 = arith.constant 1 : index
    %c0_213 = arith.constant 0 : index
    %c0_214 = arith.constant 0 : index
    %462 = vector.load %arg12[%c1_212, %c0_213, %c0_214] : memref<4x32x1xf32, #tpu.memory_space<vmem>>, vector<1x32x1xf32>
    %463 = vector.shape_cast %462 : vector<1x32x1xf32> to vector<32x1xf32>
    %464 = vector.shape_cast %461 : vector<32x1xf32> to vector<1x32x1xf32>
    tpu.vector_store %arg12[%c1_212, %c0_213, %c0_214], %464 {strides = array<i32>} : memref<4x32x1xf32, #tpu.memory_space<vmem>>, vector<1x32x1xf32>,
    %c0_215 = arith.constant 0 : index
    %c0_216 = arith.constant 0 : index
    %465 = vector.load %arg6[%c0_215, %c0_216] : memref<99x64xf32, #tpu.memory_space<vmem>>, vector<99x64xf32>
    %c0_217 = arith.constant 0 : index
    %c0_218 = arith.constant 0 : index
    %466 = vector.load %arg7[%c0_217, %c0_218] : memref<1x64xf32, #tpu.memory_space<vmem>>, vector<1x64xf32>
    %c0_219 = arith.constant 0 : index
    %c0_220 = arith.constant 0 : index
    %467 = vector.load %arg8[%c0_219, %c0_220] : memref<99x32xf32, #tpu.memory_space<vmem>>, vector<99x32xf32>
    %c0_221 = arith.constant 0 : index
    %c0_222 = arith.constant 0 : index
    %468 = vector.load %arg9[%c0_221, %c0_222] : memref<1x32xf32, #tpu.memory_space<vmem>>, vector<1x32xf32>
    %469 = tpu.concatenate %461, %456 in 1 : vector<32x1xf32>, vector<32x32xf32> -> vector<32x33xf32>
    %cst_223 = arith.constant dense<0.000000e+00> : vector<32x33xf32>
    %470 = tpu.matmul %0, %469, %cst_223 {dimension_numbers = #tpu.dot_dimension_numbers<[1], [0], [0], [1], [0, 0, 1, 1], [], []>} : vector<32x32xf32>, vector<32x33xf32>, vector<32x33xf32> -> vector<32x33xf32>
    %cst_224 = arith.constant dense<0.000000e+00> : vector<32x33xf32>
    %471 = tpu.matmul %0, %470, %cst_224 {dimension_numbers = #tpu.dot_dimension_numbers<[1], [0], [0], [1], [0, 0, 1, 1], [], []>} : vector<32x32xf32>, vector<32x33xf32>, vector<32x33xf32> -> vector<32x33xf32>
    %cst_225 = arith.constant 2.000000e+00 : f32
    %472 = vector.broadcast %cst_225 : f32 to vector<32x33xf32>
    %473 = arith.mulf %472, %471 : vector<32x33xf32>
    %474 = arith.subf %473, %469 : vector<32x33xf32>
    %475 = tpu.concatenate %469, %470, %474 in 1 : vector<32x33xf32>, vector<32x33xf32>, vector<32x33xf32> -> vector<32x99xf32>
    %cst_226 = arith.constant dense<0.000000e+00> : vector<32x64xf32>
    %476 = tpu.matmul %475, %465, %cst_226 {dimension_numbers = #tpu.dot_dimension_numbers<[1], [0], [0], [1], [0, 0, 1, 1], [], []>} : vector<32x99xf32>, vector<99x64xf32>, vector<32x64xf32> -> vector<32x64xf32>
    %477 = vector.broadcast %466 : vector<1x64xf32> to vector<32x64xf32>
    %478 = arith.addf %476, %477 : vector<32x64xf32>
    %479 = arith.negf %478 : vector<32x64xf32>
    %480 = math.exp %479 : vector<32x64xf32>
    %cst_227 = arith.constant 1.000000e+00 : f32
    %481 = vector.broadcast %cst_227 : f32 to vector<32x64xf32>
    %482 = arith.addf %481, %480 : vector<32x64xf32>
    %483 = arith.divf %481, %482 : vector<32x64xf32>
    %484 = vector.extract_strided_slice %483 {offsets = [0, 0], sizes = [32, 32], strides = [1, 1]} : vector<32x64xf32> to vector<32x32xf32>
    %485 = vector.extract_strided_slice %483 {offsets = [0, 32], sizes = [32, 32], strides = [1, 1]} : vector<32x64xf32> to vector<32x32xf32>
    %486 = arith.mulf %484, %456 : vector<32x32xf32>
    %cst_228 = arith.constant dense<0.000000e+00> : vector<32x32xf32>
    %487 = tpu.matmul %0, %486, %cst_228 {dimension_numbers = #tpu.dot_dimension_numbers<[1], [0], [0], [1], [0, 0, 1, 1], [], []>} : vector<32x32xf32>, vector<32x32xf32>, vector<32x32xf32> -> vector<32x32xf32>
    %cst_229 = arith.constant dense<0.000000e+00> : vector<32x32xf32>
    %488 = tpu.matmul %0, %487, %cst_229 {dimension_numbers = #tpu.dot_dimension_numbers<[1], [0], [0], [1], [0, 0, 1, 1], [], []>} : vector<32x32xf32>, vector<32x32xf32>, vector<32x32xf32> -> vector<32x32xf32>
    %cst_230 = arith.constant 2.000000e+00 : f32
    %489 = vector.broadcast %cst_230 : f32 to vector<32x32xf32>
    %490 = arith.mulf %489, %488 : vector<32x32xf32>
    %491 = arith.subf %490, %486 : vector<32x32xf32>
    %492 = vector.extract_strided_slice %469 {offsets = [0, 0], sizes = [32, 1], strides = [1, 1]} : vector<32x33xf32> to vector<32x1xf32>
    %493 = tpu.concatenate %492, %486 in 1 : vector<32x1xf32>, vector<32x32xf32> -> vector<32x33xf32>
    %494 = vector.extract_strided_slice %470 {offsets = [0, 0], sizes = [32, 1], strides = [1, 1]} : vector<32x33xf32> to vector<32x1xf32>
    %495 = tpu.concatenate %494, %487 in 1 : vector<32x1xf32>, vector<32x32xf32> -> vector<32x33xf32>
    %496 = vector.extract_strided_slice %474 {offsets = [0, 0], sizes = [32, 1], strides = [1, 1]} : vector<32x33xf32> to vector<32x1xf32>
    %497 = tpu.concatenate %496, %491 in 1 : vector<32x1xf32>, vector<32x32xf32> -> vector<32x33xf32>
    %498 = tpu.concatenate %493, %495, %497 in 1 : vector<32x33xf32>, vector<32x33xf32>, vector<32x33xf32> -> vector<32x99xf32>
    %cst_231 = arith.constant dense<0.000000e+00> : vector<32x32xf32>
    %499 = tpu.matmul %498, %467, %cst_231 {dimension_numbers = #tpu.dot_dimension_numbers<[1], [0], [0], [1], [0, 0, 1, 1], [], []>} : vector<32x99xf32>, vector<99x32xf32>, vector<32x32xf32> -> vector<32x32xf32>
    %500 = vector.broadcast %468 : vector<1x32xf32> to vector<32x32xf32>
    %501 = arith.addf %499, %500 : vector<32x32xf32>
    %502 = math.tanh %501 : vector<32x32xf32>
    %503 = arith.mulf %485, %456 : vector<32x32xf32>
    %cst_232 = arith.constant 1.000000e+00 : f32
    %504 = vector.broadcast %cst_232 : f32 to vector<32x32xf32>
    %505 = arith.subf %504, %485 : vector<32x32xf32>
    %506 = arith.mulf %505, %502 : vector<32x32xf32>
    %507 = arith.addf %503, %506 : vector<32x32xf32>
    %c0_233 = arith.constant 0 : index
    %c0_234 = arith.constant 0 : index
    %508 = vector.load %arg10[%c0_233, %c0_234] : memref<32x1xf32, #tpu.memory_space<vmem>>, vector<32x1xf32>
    %cst_235 = arith.constant dense<0.000000e+00> : vector<32x1xf32>
    %509 = tpu.matmul %507, %508, %cst_235 {dimension_numbers = #tpu.dot_dimension_numbers<[1], [0], [0], [1], [0, 0, 1, 1], [], []>} : vector<32x32xf32>, vector<32x1xf32>, vector<32x1xf32> -> vector<32x1xf32>
    %c0_236 = arith.constant 0 : index
    %c0_237 = arith.constant 0 : index
    %510 = vector.load %arg11[%c0_236, %c0_237] : memref<1x1xf32, #tpu.memory_space<vmem>>, vector<1x1xf32>
    %511 = vector.broadcast %510 : vector<1x1xf32> to vector<32x1xf32>
    %512 = arith.addf %509, %511 : vector<32x1xf32>
    %c2_238 = arith.constant 2 : index
    %c0_239 = arith.constant 0 : index
    %c0_240 = arith.constant 0 : index
    %513 = vector.load %arg12[%c2_238, %c0_239, %c0_240] : memref<4x32x1xf32, #tpu.memory_space<vmem>>, vector<1x32x1xf32>
    %514 = vector.shape_cast %513 : vector<1x32x1xf32> to vector<32x1xf32>
    %515 = vector.shape_cast %512 : vector<32x1xf32> to vector<1x32x1xf32>
    tpu.vector_store %arg12[%c2_238, %c0_239, %c0_240], %515 {strides = array<i32>} : memref<4x32x1xf32, #tpu.memory_space<vmem>>, vector<1x32x1xf32>,
    %c0_241 = arith.constant 0 : index
    %c0_242 = arith.constant 0 : index
    %516 = vector.load %arg6[%c0_241, %c0_242] : memref<99x64xf32, #tpu.memory_space<vmem>>, vector<99x64xf32>
    %c0_243 = arith.constant 0 : index
    %c0_244 = arith.constant 0 : index
    %517 = vector.load %arg7[%c0_243, %c0_244] : memref<1x64xf32, #tpu.memory_space<vmem>>, vector<1x64xf32>
    %c0_245 = arith.constant 0 : index
    %c0_246 = arith.constant 0 : index
    %518 = vector.load %arg8[%c0_245, %c0_246] : memref<99x32xf32, #tpu.memory_space<vmem>>, vector<99x32xf32>
    %c0_247 = arith.constant 0 : index
    %c0_248 = arith.constant 0 : index
    %519 = vector.load %arg9[%c0_247, %c0_248] : memref<1x32xf32, #tpu.memory_space<vmem>>, vector<1x32xf32>
    %520 = tpu.concatenate %512, %507 in 1 : vector<32x1xf32>, vector<32x32xf32> -> vector<32x33xf32>
    %cst_249 = arith.constant dense<0.000000e+00> : vector<32x33xf32>
    %521 = tpu.matmul %0, %520, %cst_249 {dimension_numbers = #tpu.dot_dimension_numbers<[1], [0], [0], [1], [0, 0, 1, 1], [], []>} : vector<32x32xf32>, vector<32x33xf32>, vector<32x33xf32> -> vector<32x33xf32>
    %cst_250 = arith.constant dense<0.000000e+00> : vector<32x33xf32>
    %522 = tpu.matmul %0, %521, %cst_250 {dimension_numbers = #tpu.dot_dimension_numbers<[1], [0], [0], [1], [0, 0, 1, 1], [], []>} : vector<32x32xf32>, vector<32x33xf32>, vector<32x33xf32> -> vector<32x33xf32>
    %cst_251 = arith.constant 2.000000e+00 : f32
    %523 = vector.broadcast %cst_251 : f32 to vector<32x33xf32>
    %524 = arith.mulf %523, %522 : vector<32x33xf32>
    %525 = arith.subf %524, %520 : vector<32x33xf32>
    %526 = tpu.concatenate %520, %521, %525 in 1 : vector<32x33xf32>, vector<32x33xf32>, vector<32x33xf32> -> vector<32x99xf32>
    %cst_252 = arith.constant dense<0.000000e+00> : vector<32x64xf32>
    %527 = tpu.matmul %526, %516, %cst_252 {dimension_numbers = #tpu.dot_dimension_numbers<[1], [0], [0], [1], [0, 0, 1, 1], [], []>} : vector<32x99xf32>, vector<99x64xf32>, vector<32x64xf32> -> vector<32x64xf32>
    %528 = vector.broadcast %517 : vector<1x64xf32> to vector<32x64xf32>
    %529 = arith.addf %527, %528 : vector<32x64xf32>
    %530 = arith.negf %529 : vector<32x64xf32>
    %531 = math.exp %530 : vector<32x64xf32>
    %cst_253 = arith.constant 1.000000e+00 : f32
    %532 = vector.broadcast %cst_253 : f32 to vector<32x64xf32>
    %533 = arith.addf %532, %531 : vector<32x64xf32>
    %534 = arith.divf %532, %533 : vector<32x64xf32>
    %535 = vector.extract_strided_slice %534 {offsets = [0, 0], sizes = [32, 32], strides = [1, 1]} : vector<32x64xf32> to vector<32x32xf32>
    %536 = vector.extract_strided_slice %534 {offsets = [0, 32], sizes = [32, 32], strides = [1, 1]} : vector<32x64xf32> to vector<32x32xf32>
    %537 = arith.mulf %535, %507 : vector<32x32xf32>
    %cst_254 = arith.constant dense<0.000000e+00> : vector<32x32xf32>
    %538 = tpu.matmul %0, %537, %cst_254 {dimension_numbers = #tpu.dot_dimension_numbers<[1], [0], [0], [1], [0, 0, 1, 1], [], []>} : vector<32x32xf32>, vector<32x32xf32>, vector<32x32xf32> -> vector<32x32xf32>
    %cst_255 = arith.constant dense<0.000000e+00> : vector<32x32xf32>
    %539 = tpu.matmul %0, %538, %cst_255 {dimension_numbers = #tpu.dot_dimension_numbers<[1], [0], [0], [1], [0, 0, 1, 1], [], []>} : vector<32x32xf32>, vector<32x32xf32>, vector<32x32xf32> -> vector<32x32xf32>
    %cst_256 = arith.constant 2.000000e+00 : f32
    %540 = vector.broadcast %cst_256 : f32 to vector<32x32xf32>
    %541 = arith.mulf %540, %539 : vector<32x32xf32>
    %542 = arith.subf %541, %537 : vector<32x32xf32>
    %543 = vector.extract_strided_slice %520 {offsets = [0, 0], sizes = [32, 1], strides = [1, 1]} : vector<32x33xf32> to vector<32x1xf32>
    %544 = tpu.concatenate %543, %537 in 1 : vector<32x1xf32>, vector<32x32xf32> -> vector<32x33xf32>
    %545 = vector.extract_strided_slice %521 {offsets = [0, 0], sizes = [32, 1], strides = [1, 1]} : vector<32x33xf32> to vector<32x1xf32>
    %546 = tpu.concatenate %545, %538 in 1 : vector<32x1xf32>, vector<32x32xf32> -> vector<32x33xf32>
    %547 = vector.extract_strided_slice %525 {offsets = [0, 0], sizes = [32, 1], strides = [1, 1]} : vector<32x33xf32> to vector<32x1xf32>
    %548 = tpu.concatenate %547, %542 in 1 : vector<32x1xf32>, vector<32x32xf32> -> vector<32x33xf32>
    %549 = tpu.concatenate %544, %546, %548 in 1 : vector<32x33xf32>, vector<32x33xf32>, vector<32x33xf32> -> vector<32x99xf32>
    %cst_257 = arith.constant dense<0.000000e+00> : vector<32x32xf32>
    %550 = tpu.matmul %549, %518, %cst_257 {dimension_numbers = #tpu.dot_dimension_numbers<[1], [0], [0], [1], [0, 0, 1, 1], [], []>} : vector<32x99xf32>, vector<99x32xf32>, vector<32x32xf32> -> vector<32x32xf32>
    %551 = vector.broadcast %519 : vector<1x32xf32> to vector<32x32xf32>
    %552 = arith.addf %550, %551 : vector<32x32xf32>
    %553 = math.tanh %552 : vector<32x32xf32>
    %554 = arith.mulf %536, %507 : vector<32x32xf32>
    %cst_258 = arith.constant 1.000000e+00 : f32
    %555 = vector.broadcast %cst_258 : f32 to vector<32x32xf32>
    %556 = arith.subf %555, %536 : vector<32x32xf32>
    %557 = arith.mulf %556, %553 : vector<32x32xf32>
    %558 = arith.addf %554, %557 : vector<32x32xf32>
    %c0_259 = arith.constant 0 : index
    %c0_260 = arith.constant 0 : index
    %559 = vector.load %arg10[%c0_259, %c0_260] : memref<32x1xf32, #tpu.memory_space<vmem>>, vector<32x1xf32>
    %cst_261 = arith.constant dense<0.000000e+00> : vector<32x1xf32>
    %560 = tpu.matmul %558, %559, %cst_261 {dimension_numbers = #tpu.dot_dimension_numbers<[1], [0], [0], [1], [0, 0, 1, 1], [], []>} : vector<32x32xf32>, vector<32x1xf32>, vector<32x1xf32> -> vector<32x1xf32>
    %c0_262 = arith.constant 0 : index
    %c0_263 = arith.constant 0 : index
    %561 = vector.load %arg11[%c0_262, %c0_263] : memref<1x1xf32, #tpu.memory_space<vmem>>, vector<1x1xf32>
    %562 = vector.broadcast %561 : vector<1x1xf32> to vector<32x1xf32>
    %563 = arith.addf %560, %562 : vector<32x1xf32>
    %c3_264 = arith.constant 3 : index
    %c0_265 = arith.constant 0 : index
    %c0_266 = arith.constant 0 : index
    %564 = vector.load %arg12[%c3_264, %c0_265, %c0_266] : memref<4x32x1xf32, #tpu.memory_space<vmem>>, vector<1x32x1xf32>
    %565 = vector.shape_cast %564 : vector<1x32x1xf32> to vector<32x1xf32>
    %566 = vector.shape_cast %563 : vector<32x1xf32> to vector<1x32x1xf32>
    tpu.vector_store %arg12[%c3_264, %c0_265, %c0_266], %566 {strides = array<i32>} : memref<4x32x1xf32, #tpu.memory_space<vmem>>, vector<1x32x1xf32>,
    return
  }
}

</mosaic_0001>

<llo_original>
// kernel: dcrnn_forward.1
$region0: #{dcrnn_forward.1}
  #allocation0 [shape = 'u32[]', space=smem, size = 0x4, offset = 0x4, fixed_abs, tag = 'smem constant byte address 0x4 - core index']
  #allocation1 [shape = 'u32[144,128]{1,0:T(1,128)}', space=vmem, size = 0x12000, scoped, tag = 'internal scratch']
  #allocation2 [shape = 'f32[1,1]{1,0:T(1,128)S(1)}', space=vmem, size = 0x200, scoped, tag = 'scoped memory for dcrnn_forward.1']
  %s0 = inlined_call_operand.vmem [shape: f32[8,32,2], index: 0, kind: input, shape index: {}]
  %s1 = inlined_call_operand.vmem [shape: f32[32,32], index: 1, kind: input, shape index: {}]
  %s2 = inlined_call_operand.vmem [shape: f32[102,64], index: 2, kind: input, shape index: {}]
  %s3 = inlined_call_operand.vmem [shape: f32[1,64], index: 3, kind: input, shape index: {}]
  %s4 = inlined_call_operand.vmem [shape: f32[102,32], index: 4, kind: input, shape index: {}]
  %s5 = inlined_call_operand.vmem [shape: f32[1,32], index: 5, kind: input, shape index: {}]
  %s6 = inlined_call_operand.vmem [shape: f32[99,64], index: 6, kind: input, shape index: {}]
  %s7 = inlined_call_operand.vmem [shape: f32[1,64], index: 7, kind: input, shape index: {}]
  %s8 = inlined_call_operand.vmem [shape: f32[99,32], index: 8, kind: input, shape index: {}]
  %s9 = inlined_call_operand.vmem [shape: f32[1,32], index: 9, kind: input, shape index: {}]
  %s10 = inlined_call_operand.vmem [shape: f32[32,1], index: 10, kind: input, shape index: {}]
  %s11 = inlined_call_operand.<no memory space> [shape: f32[1,1], index: 11, kind: input, shape index: {}]
  %s12 = inlined_call_operand.vmem [shape: f32[4,32,1], index: 12, kind: output, shape index: {}]
  %s13 = sld [smem:[#allocation0]]
  $region58: #{dcrnn_forward.1} parent=0
    _
  %s15 = ssub.s32 1, %s13
  %s16 = scalar_select 0, %s15, %s13
  %v17 = vstv %s11
  %18 = vst [vmem:[#allocation2] sm:$0x1] %v17
  // Predicated region
  $region2: #{dcrnn_forward.1} parent=0 // pred_check
    _
  $region3: #{dcrnn_forward.1} parent=0 // pred_check_branch
    %20 = sbr.rel (0) target = $region5
  $region4: #{dcrnn_forward.1} parent=0 // pred_region
    _
  $region5: #{dcrnn_forward.1} parent=0 // pred_fallthru
    _
  // Predicated region
  $region6: #{dcrnn_forward.1} parent=0 // pred_check
    _
  $region7: #{dcrnn_forward.1} parent=0 // pred_check_branch
    %22 = sbr.rel (0) target = $region9
  $region8: #{dcrnn_forward.1} parent=0 // pred_region
    _
  $region9: #{dcrnn_forward.1} parent=0 // pred_fallthru
    _
  // Predicated region
  $region10: #{dcrnn_forward.1} parent=0 // pred_check
    _
  $region11: #{dcrnn_forward.1} parent=0 // pred_check_branch
    %24 = sbr.rel (0) target = $region13
  $region12: #{dcrnn_forward.1} parent=0 // pred_region
    _
  $region13: #{dcrnn_forward.1} parent=0 // pred_fallthru
    _
  // Predicated region
  $region14: #{dcrnn_forward.1} parent=0 // pred_check
    _
  $region15: #{dcrnn_forward.1} parent=0 // pred_check_branch
    %26 = sbr.rel (0) target = $region17
  $region16: #{dcrnn_forward.1} parent=0 // pred_region
    _
  $region17: #{dcrnn_forward.1} parent=0 // pred_fallthru
    _
  // Predicated region
  $region18: #{dcrnn_forward.1} parent=0 // pred_check
    _
  $region19: #{dcrnn_forward.1} parent=0 // pred_check_branch
    %28 = sbr.rel (0) target = $region21
  $region20: #{dcrnn_forward.1} parent=0 // pred_region
    _
  $region21: #{dcrnn_forward.1} parent=0 // pred_fallthru
    _
  // Predicated region
  $region22: #{dcrnn_forward.1} parent=0 // pred_check
    _
  $region23: #{dcrnn_forward.1} parent=0 // pred_check_branch
    %30 = sbr.rel (0) target = $region25
  $region24: #{dcrnn_forward.1} parent=0 // pred_region
    _
  $region25: #{dcrnn_forward.1} parent=0 // pred_fallthru
    _
  // Predicated region
  $region26: #{dcrnn_forward.1} parent=0 // pred_check
    _
  $region27: #{dcrnn_forward.1} parent=0 // pred_check_branch
    %32 = sbr.rel (0) target = $region29
  $region28: #{dcrnn_forward.1} parent=0 // pred_region
    _
  $region29: #{dcrnn_forward.1} parent=0 // pred_fallthru
    _
  // Predicated region
  $region30: #{dcrnn_forward.1} parent=0 // pred_check
    _
  $region31: #{dcrnn_forward.1} parent=0 // pred_check_branch
    %34 = sbr.rel (0) target = $region33
  $region32: #{dcrnn_forward.1} parent=0 // pred_region
    _
  $region33: #{dcrnn_forward.1} parent=0 // pred_fallthru
    _
  // Predicated region
  $region34: #{dcrnn_forward.1} parent=0 // pred_check
    _
  $region35: #{dcrnn_forward.1} parent=0 // pred_check_branch
    %36 = sbr.rel (0) target = $region37
  $region36: #{dcrnn_forward.1} parent=0 // pred_region
    _
  $region37: #{dcrnn_forward.1} parent=0 // pred_fallthru
    _
  // Predicated region
  $region38: #{dcrnn_forward.1} parent=0 // pred_check
    _
  $region39: #{dcrnn_forward.1} parent=0 // pred_check_branch
    %38 = sbr.rel (0) target = $region41
  $region40: #{dcrnn_forward.1} parent=0 // pred_region
    _
  $region41: #{dcrnn_forward.1} parent=0 // pred_fallthru
    _
  // Predicated region
  $region42: #{dcrnn_forward.1} parent=0 // pred_check
    _
  $region43: #{dcrnn_forward.1} parent=0 // pred_check_branch
    %40 = sbr.rel (0) target = $region45
  $region44: #{dcrnn_forward.1} parent=0 // pred_region
    _
  $region45: #{dcrnn_forward.1} parent=0 // pred_fallthru
    _
  // Predicated region
  $region46: #{dcrnn_forward.1} parent=0 // pred_check
    _
  $region47: #{dcrnn_forward.1} parent=0 // pred_check_branch
    %42 = sbr.rel (0) target = $region49
  $region48: #{dcrnn_forward.1} parent=0 // pred_region
    _
  $region49: #{dcrnn_forward.1} parent=0 // pred_fallthru
    _
  %v43 = vld [vmem:[%s1] sm:$0xff]
  %v44 = vld [vmem:[%s1 + $0x8] sm:$0xff]
  %v45 = vld [vmem:[%s1 + $0x10] sm:$0xff]
  %v46 = vld [vmem:[%s1 + $0x18] sm:$0xff]
  %v47 = vld [vmem:[%s0] sm:$0xff]
  %v48 = vld [vmem:[%s0 + $0x8] sm:$0xff]
  %v49 = vld [vmem:[%s0 + $0x10] sm:$0xff]
  %v50 = vld [vmem:[%s0 + $0x18] sm:$0xff]
  %v51 = vld [vmem:[%s2] sm:$0xff]
  %v52 = vld [vmem:[%s2 + $0x8] sm:$0xff]
  %v53 = vld [vmem:[%s2 + $0x10] sm:$0xff]
  %v54 = vld [vmem:[%s2 + $0x18] sm:$0xff]
  %v55 = vld [vmem:[%s2 + $0x20] sm:$0xff]
  %v56 = vld [vmem:[%s2 + $0x28] sm:$0xff]
  %v57 = vld [vmem:[%s2 + $0x30] sm:$0xff]
  %v58 = vld [vmem:[%s2 + $0x38] sm:$0xff]
  %v59 = vld [vmem:[%s2 + $0x40] sm:$0xff]
  %v60 = vld [vmem:[%s2 + $0x48] sm:$0xff]
  %v61 = vld [vmem:[%s2 + $0x50] sm:$0xff]
  %v62 = vld [vmem:[%s2 + $0x58] sm:$0xff]
  %v63 = vld [vmem:[%s2 + $0x60] sm:$0x3f]
  %v64 = vld [vmem:[%s3] sm:$0x1]
  %v65 = vld [vmem:[%s4] sm:$0xff]
  %v66 = vld [vmem:[%s4 + $0x8] sm:$0xff]
  %v67 = vld [vmem:[%s4 + $0x10] sm:$0xff]
  %v68 = vld [vmem:[%s4 + $0x18] sm:$0xff]
  %v69 = vld [vmem:[%s4 + $0x20] sm:$0xff]
  %v70 = vld [vmem:[%s4 + $0x28] sm:$0xff]
  %v71 = vld [vmem:[%s4 + $0x30] sm:$0xff]
  %v72 = vld [vmem:[%s4 + $0x38] sm:$0xff]
  %v73 = vld [vmem:[%s4 + $0x40] sm:$0xff]
  %v74 = vld [vmem:[%s4 + $0x48] sm:$0xff]
  %v75 = vld [vmem:[%s4 + $0x50] sm:$0xff]
  %v76 = vld [vmem:[%s4 + $0x58] sm:$0xff]
  %v77 = vld [vmem:[%s4 + $0x60] sm:$0x3f]
  %v78 = vld [vmem:[%s5] sm:$0x1]
  %vm79 = vcmask 15360
  %v80 = vsel %vm79, %v47, 0.0
  %v81 = vsel %vm79, %v48, 0.0
  %v82 = vsel %vm79, %v49, 0.0
  %v83 = vsel %vm79, %v50, 0.0
  %vm84 = vcmask 261120
  %v86 = vsel %vm84, %v43, 0
  %v89 = vsel %vm84, %v44, 0
  %v92 = vsel %vm84, %v45, 0
  %v95 = vsel %vm84, %v46, 0
  %97 = vmatprep.subr.mxu0 0.0
  %98 = vmatpush1.msra.mxu0 %v80
  %99 = vmatprep.subr.mxu0 0.0
  %100 = vmatpush1.msra.mxu0 %v81
  %101 = vmatprep.subr.mxu0 0.0
  %102 = vmatpush1.msra.mxu0 %v82
  %103 = vmatprep.subr.mxu0 0.0
  %104 = vmatpush1.msra.mxu0 %v83
  %105 = vmatprep.subr.mxu0 0.0
  %106 = vmatpush1.msra.mxu0 0.0
  %107 = vmatprep.subr.mxu0 0.0
  %108 = vmatpush1.msra.mxu0 0.0
  %109 = vmatprep.subr.mxu0 0.0
  %110 = vmatpush1.msra.mxu0 0.0
  %111 = vmatprep.subr.mxu0 0.0
  %112 = vmatpush1.msra.mxu0 0.0
  %113 = vmatprep.subr.mxu0 0.0
  %114 = vmatpush1.msra.mxu0 0.0
  %115 = vmatprep.subr.mxu0 0.0
  %116 = vmatpush1.msra.mxu0 0.0
  %117 = vmatprep.subr.mxu0 0.0
  %118 = vmatpush1.msra.mxu0 0.0
  %119 = vmatprep.subr.mxu0 0.0
  %120 = vmatpush1.msra.mxu0 0.0
  %121 = vmatprep.subr.mxu0 0.0
  %122 = vmatpush1.msra.mxu0 0.0
  %123 = vmatprep.subr.mxu0 0.0
  %124 = vmatpush1.msra.mxu0 0.0
  %125 = vmatprep.subr.mxu0 0.0
  %126 = vmatpush1.msra.mxu0 0.0
  %127 = vmatprep.subr.mxu0 0.0
  %128 = vmatpush1.msra.mxu0 0.0
  %129 = vmatprep.subr.mxu0 0.0
  %130 = vmatpush1.msra.mxu0 0.0
  %131 = vmatprep.subr.mxu0 0.0
  %132 = vmatpush1.msra.mxu0 0.0
  %133 = vmatprep.subr.mxu0 0.0
  %134 = vmatpush1.msra.mxu0 0.0
  %135 = vmatprep.subr.mxu0 0.0
  %136 = vmatpush1.msra.mxu0 0.0
  %137 = vmatprep.subr.mxu0 0.0
  %138 = vmatpush1.msra.mxu0 0.0
  %139 = vmatprep.subr.mxu0 0.0
  %140 = vmatpush1.msra.mxu0 0.0
  %141 = vmatprep.subr.mxu0 0.0
  %142 = vmatpush1.msra.mxu0 0.0
  %143 = vmatprep.subr.mxu0 0.0
  %144 = vmatpush1.msra.mxu0 0.0
  %145 = vmatprep.subr.mxu0 0.0
  %146 = vmatpush1.msra.mxu0 0.0
  %147 = vmatprep.subr.mxu0 0.0
  %148 = vmatpush1.msra.mxu0 0.0
  %149 = vmatprep.subr.mxu0 0.0
  %150 = vmatpush1.msra.mxu0 0.0
  %151 = vmatprep.subr.mxu0 0.0
  %152 = vmatpush1.msra.mxu0 0.0
  %153 = vmatprep.subr.mxu0 0.0
  %154 = vmatpush1.msra.mxu0 0.0
  %155 = vmatprep.subr.mxu0 0.0
  %156 = vmatpush1.msra.mxu0 0.0
  %157 = vmatprep.subr.mxu0 0.0
  %158 = vmatpush1.msra.mxu0 0.0
  %159 = vmatprep.subr.mxu0 0.0
  %160 = vmatpush1.msra.mxu0 0.0
  %161 = vmatprep.mubr.f32.mxu0 0.0
  %162 = vmatmul.mubr.f32.gmra.mrb[0].mxu0 %v86
  %v163 = vpop.f32.mrb[0].mxu0
  %v164 = vadd.f32 0.0, %v163
  %v165 = vpop.f32.mrb[0].mxu0
  %166 = vmatprep.mubr.f32.mxu0 0.0
  %167 = vmatmul.mubr.f32.gmra.mrb[0].mxu0 %v89
  %v168 = vpop.f32.mrb[0].mxu0
  %v169 = vadd.f32 0.0, %v168
  %v170 = vpop.f32.mrb[0].mxu0
  %171 = vmatprep.mubr.f32.mxu0 0.0
  %172 = vmatmul.mubr.f32.gmra.mrb[0].mxu0 %v92
  %v173 = vpop.f32.mrb[0].mxu0
  %v174 = vadd.f32 0.0, %v173
  %v175 = vpop.f32.mrb[0].mxu0
  %176 = vmatprep.mubr.f32.mxu0 0.0
  %177 = vmatmul.mubr.f32.gmra.mrb[0].mxu0 %v95
  %v178 = vpop.f32.mrb[0].mxu0
  %v179 = vadd.f32 0.0, %v178
  %v180 = vpop.f32.mrb[0].mxu0
  %181 = vdwg.mxu0
  %182 = vmatprep.subr.mxu0 0.0
  %183 = vmatpush1.msra.mxu0 %v164
  %184 = vmatprep.subr.mxu0 0.0
  %185 = vmatpush1.msra.mxu0 %v169
  %186 = vmatprep.subr.mxu0 0.0
  %187 = vmatpush1.msra.mxu0 %v174
  %188 = vmatprep.subr.mxu0 0.0
  %189 = vmatpush1.msra.mxu0 %v179
  %190 = vmatprep.subr.mxu0 0.0
  %191 = vmatpush1.msra.mxu0 0.0
  %192 = vmatprep.subr.mxu0 0.0
  %193 = vmatpush1.msra.mxu0 0.0
  %194 = vmatprep.subr.mxu0 0.0
  %195 = vmatpush1.msra.mxu0 0.0
  %196 = vmatprep.subr.mxu0 0.0
  %197 = vmatpush1.msra.mxu0 0.0
  %198 = vmatprep.subr.mxu0 0.0
  %199 = vmatpush1.msra.mxu0 0.0
  %200 = vmatprep.subr.mxu0 0.0
  %201 = vmatpush1.msra.mxu0 0.0
  %202 = vmatprep.subr.mxu0 0.0
  %203 = vmatpush1.msra.mxu0 0.0
  %204 = vmatprep.subr.mxu0 0.0
  %205 = vmatpush1.msra.mxu0 0.0
  %206 = vmatprep.subr.mxu0 0.0
  %207 = vmatpush1.msra.mxu0 0.0
  %208 = vmatprep.subr.mxu0 0.0
  %209 = vmatpush1.msra.mxu0 0.0
  %210 = vmatprep.subr.mxu0 0.0
  %211 = vmatpush1.msra.mxu0 0.0
  %212 = vmatprep.subr.mxu0 0.0
  %213 = vmatpush1.msra.mxu0 0.0
  %214 = vmatprep.subr.mxu0 0.0
  %215 = vmatpush1.msra.mxu0 0.0
  %216 = vmatprep.subr.mxu0 0.0
  %217 = vmatpush1.msra.mxu0 0.0
  %218 = vmatprep.subr.mxu0 0.0
  %219 = vmatpush1.msra.mxu0 0.0
  %220 = vmatprep.subr.mxu0 0.0
  %221 = vmatpush1.msra.mxu0 0.0
  %222 = vmatprep.subr.mxu0 0.0
  %223 = vmatpush1.msra.mxu0 0.0
  %224 = vmatprep.subr.mxu0 0.0
  %225 = vmatpush1.msra.mxu0 0.0
  %226 = vmatprep.subr.mxu0 0.0
  %227 = vmatpush1.msra.mxu0 0.0
  %228 = vmatprep.subr.mxu0 0.0
  %229 = vmatpush1.msra.mxu0 0.0
  %230 = vmatprep.subr.mxu0 0.0
  %231 = vmatpush1.msra.mxu0 0.0
  %232 = vmatprep.subr.mxu0 0.0
  %233 = vmatpush1.msra.mxu0 0.0
  %234 = vmatprep.subr.mxu0 0.0
  %235 = vmatpush1.msra.mxu0 0.0
  %236 = vmatprep.subr.mxu0 0.0
  %237 = vmatpush1.msra.mxu0 0.0
  %238 = vmatprep.subr.mxu0 0.0
  %239 = vmatpush1.msra.mxu0 0.0
  %240 = vmatprep.subr.mxu0 0.0
  %241 = vmatpush1.msra.mxu0 0.0
  %242 = vmatprep.subr.mxu0 0.0
  %243 = vmatpush1.msra.mxu0 0.0
  %244 = vmatprep.subr.mxu0 0.0
  %245 = vmatpush1.msra.mxu0 0.0
  %246 = vmatprep.mubr.f32.mxu0 0.0
  %247 = vmatmul.mubr.f32.gmra.mrb[0].mxu0 %v86
  %v248 = vpop.f32.mrb[0].mxu0
  %v249 = vadd.f32 0.0, %v248
  %v250 = vpop.f32.mrb[0].mxu0
  %251 = vmatprep.mubr.f32.mxu0 0.0
  %252 = vmatmul.mubr.f32.gmra.mrb[0].mxu0 %v89
  %v253 = vpop.f32.mrb[0].mxu0
  %v254 = vadd.f32 0.0, %v253
  %v255 = vpop.f32.mrb[0].mxu0
  %256 = vmatprep.mubr.f32.mxu0 0.0
  %257 = vmatmul.mubr.f32.gmra.mrb[0].mxu0 %v92
  %v258 = vpop.f32.mrb[0].mxu0
  %v259 = vadd.f32 0.0, %v258
  %v260 = vpop.f32.mrb[0].mxu0
  %261 = vmatprep.mubr.f32.mxu0 0.0
  %262 = vmatmul.mubr.f32.gmra.mrb[0].mxu0 %v95
  %v263 = vpop.f32.mrb[0].mxu0
  %v264 = vadd.f32 0.0, %v263
  %v265 = vpop.f32.mrb[0].mxu0
  %266 = vdwg.mxu0
  %v267 = vmul.f32 %v249, 2.0
  %v268 = vmul.f32 %v254, 2.0
  %v269 = vmul.f32 %v259, 2.0
  %v270 = vmul.f32 %v264, 2.0
  %v271 = vsub.f32 %v267, %v80
  %v272 = vsub.f32 %v268, %v81
  %v273 = vsub.f32 %v269, %v82
  %v274 = vsub.f32 %v270, %v83
  %279 = vrot.lane.b32.xlu0 %v164, 34
  %v280 = vpop.permute.xlu0 %279
  %281 = vrot.lane.b32.xlu0 %v169, 34
  %v282 = vpop.permute.xlu0 %281
  %283 = vrot.lane.b32.xlu0 %v174, 34
  %v284 = vpop.permute.xlu0 %283
  %285 = vrot.lane.b32.xlu0 %v179, 34
  %v286 = vpop.permute.xlu0 %285
  %295 = vrot.lane.b32.xlu0 %v271, 68
  %v296 = vpop.permute.xlu0 %295
  %297 = vrot.lane.b32.xlu0 %v272, 68
  %v298 = vpop.permute.xlu0 %297
  %299 = vrot.lane.b32.xlu0 %v273, 68
  %v300 = vpop.permute.xlu0 %299
  %301 = vrot.lane.b32.xlu0 %v274, 68
  %v302 = vpop.permute.xlu0 %301
  %vm307 = vcmask 277504
  %v308 = vsel %vm307, %v80, %v280
  %v309 = vsel %vm307, %v81, %v282
  %v310 = vsel %vm307, %v82, %v284
  %v311 = vsel %vm307, %v83, %v286
  %vm312 = vcmask 556032
  %v313 = vsel %vm312, %v308, %v296
  %v314 = vsel %vm312, %v309, %v298
  %v315 = vsel %vm312, %v310, %v300
  %v316 = vsel %vm312, %v311, %v302
  %v318 = vlaneseq
  %v319 = vshrl.u32 %v318, 7
  %v320 = vsub.s32 0, %v319
  %v321 = vrot.slane %v64, %v320
  %vm323 = vcmask 834560
  %v325 = vsel %vm323, %v313, 0
  %v328 = vsel %vm323, %v314, 0
  %v331 = vsel %vm323, %v315, 0
  %v334 = vsel %vm323, %v316, 0
  %vm336 = vcmask 1045504
  %v338 = vsel %vm336, %v63, 0
  %340 = vmatprep.subr.mxu0 0.0
  %341 = vmatpush1.msra.mxu0 %v51
  %342 = vmatprep.subr.mxu0 0.0
  %343 = vmatpush1.msra.mxu0 %v52
  %344 = vmatprep.subr.mxu0 0.0
  %345 = vmatpush1.msra.mxu0 %v53
  %346 = vmatprep.subr.mxu0 0.0
  %347 = vmatpush1.msra.mxu0 %v54
  %348 = vmatprep.subr.mxu0 0.0
  %349 = vmatpush1.msra.mxu0 %v55
  %350 = vmatprep.subr.mxu0 0.0
  %351 = vmatpush1.msra.mxu0 %v56
  %352 = vmatprep.subr.mxu0 0.0
  %353 = vmatpush1.msra.mxu0 %v57
  %354 = vmatprep.subr.mxu0 0.0
  %355 = vmatpush1.msra.mxu0 %v58
  %356 = vmatprep.subr.mxu0 0.0
  %357 = vmatpush1.msra.mxu0 %v59
  %358 = vmatprep.subr.mxu0 0.0
  %359 = vmatpush1.msra.mxu0 %v60
  %360 = vmatprep.subr.mxu0 0.0
  %361 = vmatpush1.msra.mxu0 %v61
  %362 = vmatprep.subr.mxu0 0.0
  %363 = vmatpush1.msra.mxu0 %v62
  %364 = vmatprep.subr.mxu0 0.0
  %365 = vmatpush1.msra.mxu0 %v338
  %366 = vmatprep.subr.mxu0 0.0
  %367 = vmatpush1.msra.mxu0 0.0
  %368 = vmatprep.subr.mxu0 0.0
  %369 = vmatpush1.msra.mxu0 0.0
  %370 = vmatprep.subr.mxu0 0.0
  %371 = vmatpush1.msra.mxu0 0.0
  %372 = vmatprep.subr.mxu0 0.0
  %373 = vmatpush1.msra.mxu0 0.0
  %374 = vmatprep.subr.mxu0 0.0
  %375 = vmatpush1.msra.mxu0 0.0
  %376 = vmatprep.subr.mxu0 0.0
  %377 = vmatpush1.msra.mxu0 0.0
  %378 = vmatprep.subr.mxu0 0.0
  %379 = vmatpush1.msra.mxu0 0.0
  %380 = vmatprep.subr.mxu0 0.0
  %381 = vmatpush1.msra.mxu0 0.0
  %382 = vmatprep.subr.mxu0 0.0
  %383 = vmatpush1.msra.mxu0 0.0
  %384 = vmatprep.subr.mxu0 0.0
  %385 = vmatpush1.msra.mxu0 0.0
  %386 = vmatprep.subr.mxu0 0.0
  %387 = vmatpush1.msra.mxu0 0.0
  %388 = vmatprep.subr.mxu0 0.0
  %389 = vmatpush1.msra.mxu0 0.0
  %390 = vmatprep.subr.mxu0 0.0
  %391 = vmatpush1.msra.mxu0 0.0
  %392 = vmatprep.subr.mxu0 0.0
  %393 = vmatpush1.msra.mxu0 0.0
  %394 = vmatprep.subr.mxu0 0.0
  %395 = vmatpush1.msra.mxu0 0.0
  %396 = vmatprep.subr.mxu0 0.0
  %397 = vmatpush1.msra.mxu0 0.0
  %398 = vmatprep.subr.mxu0 0.0
  %399 = vmatpush1.msra.mxu0 0.0
  %400 = vmatprep.subr.mxu0 0.0
  %401 = vmatpush1.msra.mxu0 0.0
  %402 = vmatprep.subr.mxu0 0.0
  %403 = vmatpush1.msra.mxu0 0.0
  %404 = vmatprep.mubr.f32.mxu0 0.0
  %405 = vmatmul.mubr.f32.gmra.mrb[0].mxu0 %v325
  %v406 = vpop.f32.mrb[0].mxu0
  %v407 = vadd.f32 %v321, %v406
  %v408 = vpop.f32.mrb[0].mxu0
  %409 = vmatprep.mubr.f32.mxu0 0.0
  %410 = vmatmul.mubr.f32.gmra.mrb[0].mxu0 %v328
  %v411 = vpop.f32.mrb[0].mxu0
  %v412 = vadd.f32 %v321, %v411
  %v413 = vpop.f32.mrb[0].mxu0
  %414 = vmatprep.mubr.f32.mxu0 0.0
  %415 = vmatmul.mubr.f32.gmra.mrb[0].mxu0 %v331
  %v416 = vpop.f32.mrb[0].mxu0
  %v417 = vadd.f32 %v321, %v416
  %v418 = vpop.f32.mrb[0].mxu0
  %419 = vmatprep.mubr.f32.mxu0 0.0
  %420 = vmatmul.mubr.f32.gmra.mrb[0].mxu0 %v334
  %v421 = vpop.f32.mrb[0].mxu0
  %v422 = vadd.f32 %v321, %v421
  %v423 = vpop.f32.mrb[0].mxu0
  %424 = vdwg.mxu0
  %v425 = vxor.u32 %v407, 2147483648
  %v426 = vxor.u32 %v412, 2147483648
  %v427 = vxor.u32 %v417, 2147483648
  %v428 = vxor.u32 %v422, 2147483648
  %v429 = vmul.f32 %v425, 1.442695
  %v430 = vpow.pop %v429
  %v431 = vmul.f32 %v426, 1.442695
  %v432 = vpow.pop %v431
  %v433 = vmul.f32 %v427, 1.442695
  %v434 = vpow.pop %v433
  %v435 = vmul.f32 %v428, 1.442695
  %v436 = vpow.pop %v435
  %v437 = vadd.f32 %v430, 1.0
  %v438 = vadd.f32 %v432, 1.0
  %v439 = vadd.f32 %v434, 1.0
  %v440 = vadd.f32 %v436, 1.0
  %v441 = vrcp.pop %v437
  %v442 = vmul.f32 1.0, %v441
  %v443 = vrcp.pop %v438
  %v444 = vmul.f32 1.0, %v443
  %v445 = vrcp.pop %v439
  %v446 = vmul.f32 1.0, %v445
  %v447 = vrcp.pop %v440
  %v448 = vmul.f32 1.0, %v447
  %v449 = vmul.f32 %v442, 0.0
  %v450 = vmul.f32 %v444, 0.0
  %v451 = vmul.f32 %v446, 0.0
  %v452 = vmul.f32 %v448, 0.0
  %453 = vmatprep.subr.mxu0 0.0
  %454 = vmatpush1.msra.mxu0 %v449
  %455 = vmatprep.subr.mxu0 0.0
  %456 = vmatpush1.msra.mxu0 %v450
  %457 = vmatprep.subr.mxu0 0.0
  %458 = vmatpush1.msra.mxu0 %v451
  %459 = vmatprep.subr.mxu0 0.0
  %460 = vmatpush1.msra.mxu0 %v452
  %461 = vmatprep.subr.mxu0 0.0
  %462 = vmatpush1.msra.mxu0 0.0
  %463 = vmatprep.subr.mxu0 0.0
  %464 = vmatpush1.msra.mxu0 0.0
  %465 = vmatprep.subr.mxu0 0.0
  %466 = vmatpush1.msra.mxu0 0.0
  %467 = vmatprep.subr.mxu0 0.0
  %468 = vmatpush1.msra.mxu0 0.0
  %469 = vmatprep.subr.mxu0 0.0
  %470 = vmatpush1.msra.mxu0 0.0
  %471 = vmatprep.subr.mxu0 0.0
  %472 = vmatpush1.msra.mxu0 0.0
  %473 = vmatprep.subr.mxu0 0.0
  %474 = vmatpush1.msra.mxu0 0.0
  %475 = vmatprep.subr.mxu0 0.0
  %476 = vmatpush1.msra.mxu0 0.0
  %477 = vmatprep.subr.mxu0 0.0
  %478 = vmatpush1.msra.mxu0 0.0
  %479 = vmatprep.subr.mxu0 0.0
  %480 = vmatpush1.msra.mxu0 0.0
  %481 = vmatprep.subr.mxu0 0.0
  %482 = vmatpush1.msra.mxu0 0.0
  %483 = vmatprep.subr.mxu0 0.0
  %484 = vmatpush1.msra.mxu0 0.0
  %485 = vmatprep.subr.mxu0 0.0
  %486 = vmatpush1.msra.mxu0 0.0
  %487 = vmatprep.subr.mxu0 0.0
  %488 = vmatpush1.msra.mxu0 0.0
  %489 = vmatprep.subr.mxu0 0.0
  %490 = vmatpush1.msra.mxu0 0.0
  %491 = vmatprep.subr.mxu0 0.0
  %492 = vmatpush1.msra.mxu0 0.0
  %493 = vmatprep.subr.mxu0 0.0
  %494 = vmatpush1.msra.mxu0 0.0
  %495 = vmatprep.subr.mxu0 0.0
  %496 = vmatpush1.msra.mxu0 0.0
  %497 = vmatprep.subr.mxu0 0.0
  %498 = vmatpush1.msra.mxu0 0.0
  %499 = vmatprep.subr.mxu0 0.0
  %500 = vmatpush1.msra.mxu0 0.0
  %501 = vmatprep.subr.mxu0 0.0
  %502 = vmatpush1.msra.mxu0 0.0
  %503 = vmatprep.subr.mxu0 0.0
  %504 = vmatpush1.msra.mxu0 0.0
  %505 = vmatprep.subr.mxu0 0.0
  %506 = vmatpush1.msra.mxu0 0.0
  %507 = vmatprep.subr.mxu0 0.0
  %508 = vmatpush1.msra.mxu0 0.0
  %509 = vmatprep.subr.mxu0 0.0
  %510 = vmatpush1.msra.mxu0 0.0
  %511 = vmatprep.subr.mxu0 0.0
  %512 = vmatpush1.msra.mxu0 0.0
  %513 = vmatprep.subr.mxu0 0.0
  %514 = vmatpush1.msra.mxu0 0.0
  %515 = vmatprep.subr.mxu0 0.0
  %516 = vmatpush1.msra.mxu0 0.0
  %517 = vmatprep.mubr.f32.mxu0 0.0
  %518 = vmatmul.mubr.f32.gmra.mrb[0].mxu0 %v86
  %v519 = vpop.f32.mrb[0].mxu0
  %v520 = vadd.f32 0.0, %v519
  %v521 = vpop.f32.mrb[0].mxu0
  %522 = vmatprep.mubr.f32.mxu0 0.0
  %523 = vmatmul.mubr.f32.gmra.mrb[0].mxu0 %v89
  %v524 = vpop.f32.mrb[0].mxu0
  %v525 = vadd.f32 0.0, %v524
  %v526 = vpop.f32.mrb[0].mxu0
  %527 = vmatprep.mubr.f32.mxu0 0.0
  %528 = vmatmul.mubr.f32.gmra.mrb[0].mxu0 %v92
  %v529 = vpop.f32.mrb[0].mxu0
  %v530 = vadd.f32 0.0, %v529
  %v531 = vpop.f32.mrb[0].mxu0
  %532 = vmatprep.mubr.f32.mxu0 0.0
  %533 = vmatmul.mubr.f32.gmra.mrb[0].mxu0 %v95
  %v534 = vpop.f32.mrb[0].mxu0
  %v535 = vadd.f32 0.0, %v534
  %v536 = vpop.f32.mrb[0].mxu0
  %537 = vdwg.mxu0
  %538 = vmatprep.subr.mxu0 0.0
  %539 = vmatpush1.msra.mxu0 %v520
  %540 = vmatprep.subr.mxu0 0.0
  %541 = vmatpush1.msra.mxu0 %v525
  %542 = vmatprep.subr.mxu0 0.0
  %543 = vmatpush1.msra.mxu0 %v530
  %544 = vmatprep.subr.mxu0 0.0
  %545 = vmatpush1.msra.mxu0 %v535
  %546 = vmatprep.subr.mxu0 0.0
  %547 = vmatpush1.msra.mxu0 0.0
  %548 = vmatprep.subr.mxu0 0.0
  %549 = vmatpush1.msra.mxu0 0.0
  %550 = vmatprep.subr.mxu0 0.0
  %551 = vmatpush1.msra.mxu0 0.0
  %552 = vmatprep.subr.mxu0 0.0
  %553 = vmatpush1.msra.mxu0 0.0
  %554 = vmatprep.subr.mxu0 0.0
  %555 = vmatpush1.msra.mxu0 0.0
  %556 = vmatprep.subr.mxu0 0.0
  %557 = vmatpush1.msra.mxu0 0.0
  %558 = vmatprep.subr.mxu0 0.0
  %559 = vmatpush1.msra.mxu0 0.0
  %560 = vmatprep.subr.mxu0 0.0
  %561 = vmatpush1.msra.mxu0 0.0
  %562 = vmatprep.subr.mxu0 0.0
  %563 = vmatpush1.msra.mxu0 0.0
  %564 = vmatprep.subr.mxu0 0.0
  %565 = vmatpush1.msra.mxu0 0.0
  %566 = vmatprep.subr.mxu0 0.0
  %567 = vmatpush1.msra.mxu0 0.0
  %568 = vmatprep.subr.mxu0 0.0
  %569 = vmatpush1.msra.mxu0 0.0
  %570 = vmatprep.subr.mxu0 0.0
  %571 = vmatpush1.msra.mxu0 0.0
  %572 = vmatprep.subr.mxu0 0.0
  %573 = vmatpush1.msra.mxu0 0.0
  %574 = vmatprep.subr.mxu0 0.0
  %575 = vmatpush1.msra.mxu0 0.0
  %576 = vmatprep.subr.mxu0 0.0
  %577 = vmatpush1.msra.mxu0 0.0
  %578 = vmatprep.subr.mxu0 0.0
  %579 = vmatpush1.msra.mxu0 0.0
  %580 = vmatprep.subr.mxu0 0.0
  %581 = vmatpush1.msra.mxu0 0.0
  %582 = vmatprep.subr.mxu0 0.0
  %583 = vmatpush1.msra.mxu0 0.0
  %584 = vmatprep.subr.mxu0 0.0
  %585 = vmatpush1.msra.mxu0 0.0
  %586 = vmatprep.subr.mxu0 0.0
  %587 = vmatpush1.msra.mxu0 0.0
  %588 = vmatprep.subr.mxu0 0.0
  %589 = vmatpush1.msra.mxu0 0.0
  %590 = vmatprep.subr.mxu0 0.0
  %591 = vmatpush1.msra.mxu0 0.0
  %592 = vmatprep.subr.mxu0 0.0
  %593 = vmatpush1.msra.mxu0 0.0
  %594 = vmatprep.subr.mxu0 0.0
  %595 = vmatpush1.msra.mxu0 0.0
  %596 = vmatprep.subr.mxu0 0.0
  %597 = vmatpush1.msra.mxu0 0.0
  %598 = vmatprep.subr.mxu0 0.0
  %599 = vmatpush1.msra.mxu0 0.0
  %600 = vmatprep.subr.mxu0 0.0
  %601 = vmatpush1.msra.mxu0 0.0
  %602 = vmatprep.mubr.f32.mxu0 0.0
  %603 = vmatmul.mubr.f32.gmra.mrb[0].mxu0 %v86
  %v604 = vpop.f32.mrb[0].mxu0
  %v605 = vadd.f32 0.0, %v604
  %v606 = vpop.f32.mrb[0].mxu0
  %607 = vmatprep.mubr.f32.mxu0 0.0
  %608 = vmatmul.mubr.f32.gmra.mrb[0].mxu0 %v89
  %v609 = vpop.f32.mrb[0].mxu0
  %v610 = vadd.f32 0.0, %v609
  %v611 = vpop.f32.mrb[0].mxu0
  %612 = vmatprep.mubr.f32.mxu0 0.0
  %613 = vmatmul.mubr.f32.gmra.mrb[0].mxu0 %v92
  %v614 = vpop.f32.mrb[0].mxu0
  %v615 = vadd.f32 0.0, %v614
  %v616 = vpop.f32.mrb[0].mxu0
  %617 = vmatprep.mubr.f32.mxu0 0.0
  %618 = vmatmul.mubr.f32.gmra.mrb[0].mxu0 %v95
  %v619 = vpop.f32.mrb[0].mxu0
  %v620 = vadd.f32 0.0, %v619
  %v621 = vpop.f32.mrb[0].mxu0
  %622 = vdwg.mxu0
  %v623 = vmul.f32 %v605, 2.0
  %v624 = vmul.f32 %v610, 2.0
  %v625 = vmul.f32 %v615, 2.0
  %v626 = vmul.f32 %v620, 2.0
  %v627 = vsub.f32 %v623, %v449
  %v628 = vsub.f32 %v624, %v450
  %v629 = vsub.f32 %v625, %v451
  %v630 = vsub.f32 %v626, %v452
  %635 = vrot.lane.b32.xlu0 %v449, 2
  %v636 = vpop.permute.xlu0 %635
  %637 = vrot.lane.b32.xlu0 %v450, 2
  %v638 = vpop.permute.xlu0 %637
  %639 = vrot.lane.b32.xlu0 %v451, 2
  %v640 = vpop.permute.xlu0 %639
  %641 = vrot.lane.b32.xlu0 %v452, 2
  %v642 = vpop.permute.xlu0 %641
  %v647 = vsel %vm79, %v80, %v636
  %v648 = vsel %vm79, %v81, %v638
  %v649 = vsel %vm79, %v82, %v640
  %v650 = vsel %vm79, %v83, %v642
  %655 = vrot.lane.b32.xlu0 %v520, 2
  %v656 = vpop.permute.xlu0 %655
  %657 = vrot.lane.b32.xlu0 %v525, 2
  %v658 = vpop.permute.xlu0 %657
  %659 = vrot.lane.b32.xlu0 %v530, 2
  %v660 = vpop.permute.xlu0 %659
  %661 = vrot.lane.b32.xlu0 %v535, 2
  %v662 = vpop.permute.xlu0 %661
  %v667 = vsel %vm79, %v164, %v656
  %v668 = vsel %vm79, %v169, %v658
  %v669 = vsel %vm79, %v174, %v660
  %v670 = vsel %vm79, %v179, %v662
  %675 = vrot.lane.b32.xlu0 %v627, 2
  %v676 = vpop.permute.xlu0 %675
  %677 = vrot.lane.b32.xlu0 %v628, 2
  %v678 = vpop.permute.xlu0 %677
  %679 = vrot.lane.b32.xlu0 %v629, 2
  %v680 = vpop.permute.xlu0 %679
  %681 = vrot.lane.b32.xlu0 %v630, 2
  %v682 = vpop.permute.xlu0 %681
  %v687 = vsel %vm79, %v271, %v676
  %v688 = vsel %vm79, %v272, %v678
  %v689 = vsel %vm79, %v273, %v680
  %v690 = vsel %vm79, %v274, %v682
  %695 = vrot.lane.b32.xlu0 %v667, 34
  %v696 = vpop.permute.xlu0 %695
  %697 = vrot.lane.b32.xlu0 %v668, 34
  %v698 = vpop.permute.xlu0 %697
  %699 = vrot.lane.b32.xlu0 %v669, 34
  %v700 = vpop.permute.xlu0 %699
  %701 = vrot.lane.b32.xlu0 %v670, 34
  %v702 = vpop.permute.xlu0 %701
  %711 = vrot.lane.b32.xlu0 %v687, 68
  %v712 = vpop.permute.xlu0 %711
  %713 = vrot.lane.b32.xlu0 %v688, 68
  %v714 = vpop.permute.xlu0 %713
  %715 = vrot.lane.b32.xlu0 %v689, 68
  %v716 = vpop.permute.xlu0 %715
  %717 = vrot.lane.b32.xlu0 %v690, 68
  %v718 = vpop.permute.xlu0 %717
  %v723 = vsel %vm307, %v647, %v696
  %v724 = vsel %vm307, %v648, %v698
  %v725 = vsel %vm307, %v649, %v700
  %v726 = vsel %vm307, %v650, %v702
  %v727 = vsel %vm312, %v723, %v712
  %v728 = vsel %vm312, %v724, %v714
  %v729 = vsel %vm312, %v725, %v716
  %v730 = vsel %vm312, %v726, %v718
  %v732 = vlaneseq
  %v733 = vshrl.u32 %v732, 7
  %v734 = vsub.s32 0, %v733
  %v735 = vrot.slane %v78, %v734
  %v738 = vsel %vm323, %v727, 0
  %v741 = vsel %vm323, %v728, 0
  %v744 = vsel %vm323, %v729, 0
  %v747 = vsel %vm323, %v730, 0
  %v750 = vsel %vm336, %v77, 0
  %752 = vmatprep.subr.mxu0 0.0
  %753 = vmatpush1.msra.mxu0 %v65
  %754 = vmatprep.subr.mxu0 0.0
  %755 = vmatpush1.msra.mxu0 %v66
  %756 = vmatprep.subr.mxu0 0.0
  %757 = vmatpush1.msra.mxu0 %v67
  %758 = vmatprep.subr.mxu0 0.0
  %759 = vmatpush1.msra.mxu0 %v68
  %760 = vmatprep.subr.mxu0 0.0
  %761 = vmatpush1.msra.mxu0 %v69
  %762 = vmatprep.subr.mxu0 0.0
  %763 = vmatpush1.msra.mxu0 %v70
  %764 = vmatprep.subr.mxu0 0.0
  %765 = vmatpush1.msra.mxu0 %v71
  %766 = vmatprep.subr.mxu0 0.0
  %767 = vmatpush1.msra.mxu0 %v72
  %768 = vmatprep.subr.mxu0 0.0
  %769 = vmatpush1.msra.mxu0 %v73
  %770 = vmatprep.subr.mxu0 0.0
  %771 = vmatpush1.msra.mxu0 %v74
  %772 = vmatprep.subr.mxu0 0.0
  %773 = vmatpush1.msra.mxu0 %v75
  %774 = vmatprep.subr.mxu0 0.0
  %775 = vmatpush1.msra.mxu0 %v76
  %776 = vmatprep.subr.mxu0 0.0
  %777 = vmatpush1.msra.mxu0 %v750
  %778 = vmatprep.subr.mxu0 0.0
  %779 = vmatpush1.msra.mxu0 0.0
  %780 = vmatprep.subr.mxu0 0.0
  %781 = vmatpush1.msra.mxu0 0.0
  %782 = vmatprep.subr.mxu0 0.0
  %783 = vmatpush1.msra.mxu0 0.0
  %784 = vmatprep.subr.mxu0 0.0
  %785 = vmatpush1.msra.mxu0 0.0
  %786 = vmatprep.subr.mxu0 0.0
  %787 = vmatpush1.msra.mxu0 0.0
  %788 = vmatprep.subr.mxu0 0.0
  %789 = vmatpush1.msra.mxu0 0.0
  %790 = vmatprep.subr.mxu0 0.0
  %791 = vmatpush1.msra.mxu0 0.0
  %792 = vmatprep.subr.mxu0 0.0
  %793 = vmatpush1.msra.mxu0 0.0
  %794 = vmatprep.subr.mxu0 0.0
  %795 = vmatpush1.msra.mxu0 0.0
  %796 = vmatprep.subr.mxu0 0.0
  %797 = vmatpush1.msra.mxu0 0.0
  %798 = vmatprep.subr.mxu0 0.0
  %799 = vmatpush1.msra.mxu0 0.0
  %800 = vmatprep.subr.mxu0 0.0
  %801 = vmatpush1.msra.mxu0 0.0
  %802 = vmatprep.subr.mxu0 0.0
  %803 = vmatpush1.msra.mxu0 0.0
  %804 = vmatprep.subr.mxu0 0.0
  %805 = vmatpush1.msra.mxu0 0.0
  %806 = vmatprep.subr.mxu0 0.0
  %807 = vmatpush1.msra.mxu0 0.0
  %808 = vmatprep.subr.mxu0 0.0
  %809 = vmatpush1.msra.mxu0 0.0
  %810 = vmatprep.subr.mxu0 0.0
  %811 = vmatpush1.msra.mxu0 0.0
  %812 = vmatprep.subr.mxu0 0.0
  %813 = vmatpush1.msra.mxu0 0.0
  %814 = vmatprep.subr.mxu0 0.0
  %815 = vmatpush1.msra.mxu0 0.0
  %816 = vmatprep.mubr.f32.mxu0 0.0
  %817 = vmatmul.mubr.f32.gmra.mrb[0].mxu0 %v738
  %v818 = vpop.f32.mrb[0].mxu0
  %v819 = vadd.f32 %v735, %v818
  %v820 = vpop.f32.mrb[0].mxu0
  %821 = vmatprep.mubr.f32.mxu0 0.0
  %822 = vmatmul.mubr.f32.gmra.mrb[0].mxu0 %v741
  %v823 = vpop.f32.mrb[0].mxu0
  %v824 = vadd.f32 %v735, %v823
  %v825 = vpop.f32.mrb[0].mxu0
  %826 = vmatprep.mubr.f32.mxu0 0.0
  %827 = vmatmul.mubr.f32.gmra.mrb[0].mxu0 %v744
  %v828 = vpop.f32.mrb[0].mxu0
  %v829 = vadd.f32 %v735, %v828
  %v830 = vpop.f32.mrb[0].mxu0
  %831 = vmatprep.mubr.f32.mxu0 0.0
  %832 = vmatmul.mubr.f32.gmra.mrb[0].mxu0 %v747
  %v833 = vpop.f32.mrb[0].mxu0
  %v834 = vadd.f32 %v735, %v833
  %v835 = vpop.f32.mrb[0].mxu0
  %836 = vdwg.mxu0
  %v837 = vtanh.pop %v819
  %v838 = vtanh.pop %v824
  %v839 = vtanh.pop %v829
  %v840 = vtanh.pop %v834
  %v841 = vsub.f32 1.0, %v442
  %v842 = vsub.f32 1.0, %v444
  %v843 = vsub.f32 1.0, %v446
  %v844 = vsub.f32 1.0, %v448
  %849 = vrot.lane.b32.xlu0 %v837, 32
  %v850 = vpop.permute.xlu0 %849
  %851 = vrot.lane.b32.xlu0 %v838, 32
  %v852 = vpop.permute.xlu0 %851
  %853 = vrot.lane.b32.xlu0 %v839, 32
  %v854 = vpop.permute.xlu0 %853
  %855 = vrot.lane.b32.xlu0 %v840, 32
  %v856 = vpop.permute.xlu0 %855
  %v861 = vmul.f32 %v841, %v850
  %v862 = vmul.f32 %v842, %v852
  %v863 = vmul.f32 %v843, %v854
  %v864 = vmul.f32 %v844, %v856
  %v865 = vadd.f32 %v449, %v861
  %v866 = vadd.f32 %v450, %v862
  %v867 = vadd.f32 %v451, %v863
  %v868 = vadd.f32 %v452, %v864
  %s869 = scalar_lea.vmem %s0, 32
  %v870 = vld [vmem:[%s869] sm:$0xff]
  %v871 = vld [vmem:[%s869 + $0x8] sm:$0xff]
  %v872 = vld [vmem:[%s869 + $0x10] sm:$0xff]
  %v873 = vld [vmem:[%s869 + $0x18] sm:$0xff]
  %878 = vrot.lane.b32.xlu0 %v865, 98
  %v879 = vpop.permute.xlu0 %878
  %880 = vrot.lane.b32.xlu0 %v866, 98
  %v881 = vpop.permute.xlu0 %880
  %882 = vrot.lane.b32.xlu0 %v867, 98
  %v883 = vpop.permute.xlu0 %882
  %884 = vrot.lane.b32.xlu0 %v868, 98
  %v885 = vpop.permute.xlu0 %884
  %v890 = vsel %vm79, %v870, %v879
  %v891 = vsel %vm79, %v871, %v881
  %v892 = vsel %vm79, %v872, %v883
  %v893 = vsel %vm79, %v873, %v885
  %894 = vmatprep.subr.mxu0 0.0
  %895 = vmatpush1.msra.mxu0 %v890
  %896 = vmatprep.subr.mxu0 0.0
  %897 = vmatpush1.msra.mxu0 %v891
  %898 = vmatprep.subr.mxu0 0.0
  %899 = vmatpush1.msra.mxu0 %v892
  %900 = vmatprep.subr.mxu0 0.0
  %901 = vmatpush1.msra.mxu0 %v893
  %902 = vmatprep.subr.mxu0 0.0
  %903 = vmatpush1.msra.mxu0 0.0
  %904 = vmatprep.subr.mxu0 0.0
  %905 = vmatpush1.msra.mxu0 0.0
  %906 = vmatprep.subr.mxu0 0.0
  %907 = vmatpush1.msra.mxu0 0.0
  %908 = vmatprep.subr.mxu0 0.0
  %909 = vmatpush1.msra.mxu0 0.0
  %910 = vmatprep.subr.mxu0 0.0
  %911 = vmatpush1.msra.mxu0 0.0
  %912 = vmatprep.subr.mxu0 0.0
  %913 = vmatpush1.msra.mxu0 0.0
  %914 = vmatprep.subr.mxu0 0.0
  %915 = vmatpush1.msra.mxu0 0.0
  %916 = vmatprep.subr.mxu0 0.0
  %917 = vmatpush1.msra.mxu0 0.0
  %918 = vmatprep.subr.mxu0 0.0
  %919 = vmatpush1.msra.mxu0 0.0
  %920 = vmatprep.subr.mxu0 0.0
  %921 = vmatpush1.msra.mxu0 0.0
  %922 = vmatprep.subr.mxu0 0.0
  %923 = vmatpush1.msra.mxu0 0.0
  %924 = vmatprep.subr.mxu0 0.0
  %925 = vmatpush1.msra.mxu0 0.0
  %926 = vmatprep.subr.mxu0 0.0
  %927 = vmatpush1.msra.mxu0 0.0
  %928 = vmatprep.subr.mxu0 0.0
  %929 = vmatpush1.msra.mxu0 0.0
  %930 = vmatprep.subr.mxu0 0.0
  %931 = vmatpush1.msra.mxu0 0.0
  %932 = vmatprep.subr.mxu0 0.0
  %933 = vmatpush1.msra.mxu0 0.0
  %934 = vmatprep.subr.mxu0 0.0
  %935 = vmatpush1.msra.mxu0 0.0
  %936 = vmatprep.subr.mxu0 0.0
  %937 = vmatpush1.msra.mxu0 0.0
  %938 = vmatprep.subr.mxu0 0.0
  %939 = vmatpush1.msra.mxu0 0.0
  %940 = vmatprep.subr.mxu0 0.0
  %941 = vmatpush1.msra.mxu0 0.0
  %942 = vmatprep.subr.mxu0 0.0
  %943 = vmatpush1.msra.mxu0 0.0
  %944 = vmatprep.subr.mxu0 0.0
  %945 = vmatpush1.msra.mxu0 0.0
  %946 = vmatprep.subr.mxu0 0.0
  %947 = vmatpush1.msra.mxu0 0.0
  %948 = vmatprep.subr.mxu0 0.0
  %949 = vmatpush1.msra.mxu0 0.0
  %950 = vmatprep.subr.mxu0 0.0
  %951 = vmatpush1.msra.mxu0 0.0
  %952 = vmatprep.subr.mxu0 0.0
  %953 = vmatpush1.msra.mxu0 0.0
  %954 = vmatprep.subr.mxu0 0.0
  %955 = vmatpush1.msra.mxu0 0.0
  %956 = vmatprep.subr.mxu0 0.0
  %957 = vmatpush1.msra.mxu0 0.0
  %958 = vmatprep.mubr.f32.mxu0 0.0
  %959 = vmatmul.mubr.f32.gmra.mrb[0].mxu0 %v86
  %v960 = vpop.f32.mrb[0].mxu0
  %v961 = vadd.f32 0.0, %v960
  %v962 = vpop.f32.mrb[0].mxu0
  %963 = vmatprep.mubr.f32.mxu0 0.0
  %964 = vmatmul.mubr.f32.gmra.mrb[0].mxu0 %v89
  %v965 = vpop.f32.mrb[0].mxu0
  %v966 = vadd.f32 0.0, %v965
  %v967 = vpop.f32.mrb[0].mxu0
  %968 = vmatprep.mubr.f32.mxu0 0.0
  %969 = vmatmul.mubr.f32.gmra.mrb[0].mxu0 %v92
  %v970 = vpop.f32.mrb[0].mxu0
  %v971 = vadd.f32 0.0, %v970
  %v972 = vpop.f32.mrb[0].mxu0
  %973 = vmatprep.mubr.f32.mxu0 0.0
  %974 = vmatmul.mubr.f32.gmra.mrb[0].mxu0 %v95
  %v975 = vpop.f32.mrb[0].mxu0
  %v976 = vadd.f32 0.0, %v975
  %v977 = vpop.f32.mrb[0].mxu0
  %978 = vdwg.mxu0
  %979 = vmatprep.subr.mxu0 0.0
  %980 = vmatpush1.msra.mxu0 %v961
  %981 = vmatprep.subr.mxu0 0.0
  %982 = vmatpush1.msra.mxu0 %v966
  %983 = vmatprep.subr.mxu0 0.0
  %984 = vmatpush1.msra.mxu0 %v971
  %985 = vmatprep.subr.mxu0 0.0
  %986 = vmatpush1.msra.mxu0 %v976
  %987 = vmatprep.subr.mxu0 0.0
  %988 = vmatpush1.msra.mxu0 0.0
  %989 = vmatprep.subr.mxu0 0.0
  %990 = vmatpush1.msra.mxu0 0.0
  %991 = vmatprep.subr.mxu0 0.0
  %992 = vmatpush1.msra.mxu0 0.0
  %993 = vmatprep.subr.mxu0 0.0
  %994 = vmatpush1.msra.mxu0 0.0
  %995 = vmatprep.subr.mxu0 0.0
  %996 = vmatpush1.msra.mxu0 0.0
  %997 = vmatprep.subr.mxu0 0.0
  %998 = vmatpush1.msra.mxu0 0.0
  %999 = vmatprep.subr.mxu0 0.0
  %1000 = vmatpush1.msra.mxu0 0.0
  %1001 = vmatprep.subr.mxu0 0.0
  %1002 = vmatpush1.msra.mxu0 0.0
  %1003 = vmatprep.subr.mxu0 0.0
  %1004 = vmatpush1.msra.mxu0 0.0
  %1005 = vmatprep.subr.mxu0 0.0
  %1006 = vmatpush1.msra.mxu0 0.0
  %1007 = vmatprep.subr.mxu0 0.0
  %1008 = vmatpush1.msra.mxu0 0.0
  %1009 = vmatprep.subr.mxu0 0.0
  %1010 = vmatpush1.msra.mxu0 0.0
  %1011 = vmatprep.subr.mxu0 0.0
  %1012 = vmatpush1.msra.mxu0 0.0
  %1013 = vmatprep.subr.mxu0 0.0
  %1014 = vmatpush1.msra.mxu0 0.0
  %1015 = vmatprep.subr.mxu0 0.0
  %1016 = vmatpush1.msra.mxu0 0.0
  %1017 = vmatprep.subr.mxu0 0.0
  %1018 = vmatpush1.msra.mxu0 0.0
  %1019 = vmatprep.subr.mxu0 0.0
  %1020 = vmatpush1.msra.mxu0 0.0
  %1021 = vmatprep.subr.mxu0 0.0
  %1022 = vmatpush1.msra.mxu0 0.0
  %1023 = vmatprep.subr.mxu0 0.0
  %1024 = vmatpush1.msra.mxu0 0.0
  %1025 = vmatprep.subr.mxu0 0.0
  %1026 = vmatpush1.msra.mxu0 0.0
  %1027 = vmatprep.subr.mxu0 0.0
  %1028 = vmatpush1.msra.mxu0 0.0
  %1029 = vmatprep.subr.mxu0 0.0
  %1030 = vmatpush1.msra.mxu0 0.0
  %1031 = vmatprep.subr.mxu0 0.0
  %1032 = vmatpush1.msra.mxu0 0.0
  %1033 = vmatprep.subr.mxu0 0.0
  %1034 = vmatpush1.msra.mxu0 0.0
  %1035 = vmatprep.subr.mxu0 0.0
  %1036 = vmatpush1.msra.mxu0 0.0
  %1037 = vmatprep.subr.mxu0 0.0
  %1038 = vmatpush1.msra.mxu0 0.0
  %1039 = vmatprep.subr.mxu0 0.0
  %1040 = vmatpush1.msra.mxu0 0.0
  %1041 = vmatprep.subr.mxu0 0.0
  %1042 = vmatpush1.msra.mxu0 0.0
  %1043 = vmatprep.mubr.f32.mxu0 0.0
  %1044 = vmatmul.mubr.f32.gmra.mrb[0].mxu0 %v86
  %v1045 = vpop.f32.mrb[0].mxu0
  %v1046 = vadd.f32 0.0, %v1045
  %v1047 = vpop.f32.mrb[0].mxu0
  %1048 = vmatprep.mubr.f32.mxu0 0.0
  %1049 = vmatmul.mubr.f32.gmra.mrb[0].mxu0 %v89
  %v1050 = vpop.f32.mrb[0].mxu0
  %v1051 = vadd.f32 0.0, %v1050
  %v1052 = vpop.f32.mrb[0].mxu0
  %1053 = vmatprep.mubr.f32.mxu0 0.0
  %1054 = vmatmul.mubr.f32.gmra.mrb[0].mxu0 %v92
  %v1055 = vpop.f32.mrb[0].mxu0
  %v1056 = vadd.f32 0.0, %v1055
  %v1057 = vpop.f32.mrb[0].mxu0
  %1058 = vmatprep.mubr.f32.mxu0 0.0
  %1059 = vmatmul.mubr.f32.gmra.mrb[0].mxu0 %v95
  %v1060 = vpop.f32.mrb[0].mxu0
  %v1061 = vadd.f32 0.0, %v1060
  %v1062 = vpop.f32.mrb[0].mxu0
  %1063 = vdwg.mxu0
  %v1064 = vmul.f32 %v1046, 2.0
  %v1065 = vmul.f32 %v1051, 2.0
  %v1066 = vmul.f32 %v1056, 2.0
  %v1067 = vmul.f32 %v1061, 2.0
  %v1068 = vsub.f32 %v1064, %v890
  %v1069 = vsub.f32 %v1065, %v891
  %v1070 = vsub.f32 %v1066, %v892
  %v1071 = vsub.f32 %v1067, %v893
  %1076 = vrot.lane.b32.xlu0 %v961, 34
  %v1077 = vpop.permute.xlu0 %1076
  %1078 = vrot.lane.b32.xlu0 %v966, 34
  %v1079 = vpop.permute.xlu0 %1078
  %1080 = vrot.lane.b32.xlu0 %v971, 34
  %v1081 = vpop.permute.xlu0 %1080
  %1082 = vrot.lane.b32.xlu0 %v976, 34
  %v1083 = vpop.permute.xlu0 %1082
  %1092 = vrot.lane.b32.xlu0 %v1068, 68
  %v1093 = vpop.permute.xlu0 %1092
  %1094 = vrot.lane.b32.xlu0 %v1069, 68
  %v1095 = vpop.permute.xlu0 %1094
  %1096 = vrot.lane.b32.xlu0 %v1070, 68
  %v1097 = vpop.permute.xlu0 %1096
  %1098 = vrot.lane.b32.xlu0 %v1071, 68
  %v1099 = vpop.permute.xlu0 %1098
  %v1104 = vsel %vm307, %v890, %v1077
  %v1105 = vsel %vm307, %v891, %v1079
  %v1106 = vsel %vm307, %v892, %v1081
  %v1107 = vsel %vm307, %v893, %v1083
  %v1108 = vsel %vm312, %v1104, %v1093
  %v1109 = vsel %vm312, %v1105, %v1095
  %v1110 = vsel %vm312, %v1106, %v1097
  %v1111 = vsel %vm312, %v1107, %v1099
  %v1113 = vsel %vm323, %v1108, 0
  %v1116 = vsel %vm323, %v1109, 0
  %v1119 = vsel %vm323, %v1110, 0
  %v1122 = vsel %vm323, %v1111, 0
  %1124 = vmatprep.subr.mxu0 0.0
  %1125 = vmatpush1.msra.mxu0 %v51
  %1126 = vmatprep.subr.mxu0 0.0
  %1127 = vmatpush1.msra.mxu0 %v52
  %1128 = vmatprep.subr.mxu0 0.0
  %1129 = vmatpush1.msra.mxu0 %v53
  %1130 = vmatprep.subr.mxu0 0.0
  %1131 = vmatpush1.msra.mxu0 %v54
  %1132 = vmatprep.subr.mxu0 0.0
  %1133 = vmatpush1.msra.mxu0 %v55
  %1134 = vmatprep.subr.mxu0 0.0
  %1135 = vmatpush1.msra.mxu0 %v56
  %1136 = vmatprep.subr.mxu0 0.0
  %1137 = vmatpush1.msra.mxu0 %v57
  %1138 = vmatprep.subr.mxu0 0.0
  %1139 = vmatpush1.msra.mxu0 %v58
  %1140 = vmatprep.subr.mxu0 0.0
  %1141 = vmatpush1.msra.mxu0 %v59
  %1142 = vmatprep.subr.mxu0 0.0
  %1143 = vmatpush1.msra.mxu0 %v60
  %1144 = vmatprep.subr.mxu0 0.0
  %1145 = vmatpush1.msra.mxu0 %v61
  %1146 = vmatprep.subr.mxu0 0.0
  %1147 = vmatpush1.msra.mxu0 %v62
  %1148 = vmatprep.subr.mxu0 0.0
  %1149 = vmatpush1.msra.mxu0 %v338
  %1150 = vmatprep.subr.mxu0 0.0
  %1151 = vmatpush1.msra.mxu0 0.0
  %1152 = vmatprep.subr.mxu0 0.0
  %1153 = vmatpush1.msra.mxu0 0.0
  %1154 = vmatprep.subr.mxu0 0.0
  %1155 = vmatpush1.msra.mxu0 0.0
  %1156 = vmatprep.subr.mxu0 0.0
  %1157 = vmatpush1.msra.mxu0 0.0
  %1158 = vmatprep.subr.mxu0 0.0
  %1159 = vmatpush1.msra.mxu0 0.0
  %1160 = vmatprep.subr.mxu0 0.0
  %1161 = vmatpush1.msra.mxu0 0.0
  %1162 = vmatprep.subr.mxu0 0.0
  %1163 = vmatpush1.msra.mxu0 0.0
  %1164 = vmatprep.subr.mxu0 0.0
  %1165 = vmatpush1.msra.mxu0 0.0
  %1166 = vmatprep.subr.mxu0 0.0
  %1167 = vmatpush1.msra.mxu0 0.0
  %1168 = vmatprep.subr.mxu0 0.0
  %1169 = vmatpush1.msra.mxu0 0.0
  %1170 = vmatprep.subr.mxu0 0.0
  %1171 = vmatpush1.msra.mxu0 0.0
  %1172 = vmatprep.subr.mxu0 0.0
  %1173 = vmatpush1.msra.mxu0 0.0
  %1174 = vmatprep.subr.mxu0 0.0
  %1175 = vmatpush1.msra.mxu0 0.0
  %1176 = vmatprep.subr.mxu0 0.0
  %1177 = vmatpush1.msra.mxu0 0.0
  %1178 = vmatprep.subr.mxu0 0.0
  %1179 = vmatpush1.msra.mxu0 0.0
  %1180 = vmatprep.subr.mxu0 0.0
  %1181 = vmatpush1.msra.mxu0 0.0
  %1182 = vmatprep.subr.mxu0 0.0
  %1183 = vmatpush1.msra.mxu0 0.0
  %1184 = vmatprep.subr.mxu0 0.0
  %1185 = vmatpush1.msra.mxu0 0.0
  %1186 = vmatprep.subr.mxu0 0.0
  %1187 = vmatpush1.msra.mxu0 0.0
  %1188 = vmatprep.mubr.f32.mxu0 0.0
  %1189 = vmatmul.mubr.f32.gmra.mrb[0].mxu0 %v1113
  %v1190 = vpop.f32.mrb[0].mxu0
  %v1191 = vadd.f32 %v321, %v1190
  %v1192 = vpop.f32.mrb[0].mxu0
  %1193 = vmatprep.mubr.f32.mxu0 0.0
  %1194 = vmatmul.mubr.f32.gmra.mrb[0].mxu0 %v1116
  %v1195 = vpop.f32.mrb[0].mxu0
  %v1196 = vadd.f32 %v321, %v1195
  %v1197 = vpop.f32.mrb[0].mxu0
  %1198 = vmatprep.mubr.f32.mxu0 0.0
  %1199 = vmatmul.mubr.f32.gmra.mrb[0].mxu0 %v1119
  %v1200 = vpop.f32.mrb[0].mxu0
  %v1201 = vadd.f32 %v321, %v1200
  %v1202 = vpop.f32.mrb[0].mxu0
  %1203 = vmatprep.mubr.f32.mxu0 0.0
  %1204 = vmatmul.mubr.f32.gmra.mrb[0].mxu0 %v1122
  %v1205 = vpop.f32.mrb[0].mxu0
  %v1206 = vadd.f32 %v321, %v1205
  %v1207 = vpop.f32.mrb[0].mxu0
  %1208 = vdwg.mxu0
  %v1209 = vxor.u32 %v1191, 2147483648
  %v1210 = vxor.u32 %v1196, 2147483648
  %v1211 = vxor.u32 %v1201, 2147483648
  %v1212 = vxor.u32 %v1206, 2147483648
  %v1213 = vmul.f32 %v1209, 1.442695
  %v1214 = vpow.pop %v1213
  %v1215 = vmul.f32 %v1210, 1.442695
  %v1216 = vpow.pop %v1215
  %v1217 = vmul.f32 %v1211, 1.442695
  %v1218 = vpow.pop %v1217
  %v1219 = vmul.f32 %v1212, 1.442695
  %v1220 = vpow.pop %v1219
  %v1221 = vadd.f32 %v1214, 1.0
  %v1222 = vadd.f32 %v1216, 1.0
  %v1223 = vadd.f32 %v1218, 1.0
  %v1224 = vadd.f32 %v1220, 1.0
  %v1225 = vrcp.pop %v1221
  %v1226 = vmul.f32 1.0, %v1225
  %v1227 = vrcp.pop %v1222
  %v1228 = vmul.f32 1.0, %v1227
  %v1229 = vrcp.pop %v1223
  %v1230 = vmul.f32 1.0, %v1229
  %v1231 = vrcp.pop %v1224
  %v1232 = vmul.f32 1.0, %v1231
  %1233 = vrot.lane.b32.xlu0 %v865, 96
  %v1234 = vpop.permute.xlu0 %1233
  %1235 = vrot.lane.b32.xlu0 %v866, 96
  %v1236 = vpop.permute.xlu0 %1235
  %1237 = vrot.lane.b32.xlu0 %v867, 96
  %v1238 = vpop.permute.xlu0 %1237
  %1239 = vrot.lane.b32.xlu0 %v868, 96
  %v1240 = vpop.permute.xlu0 %1239
  %v1245 = vmul.f32 %v1226, %v1234
  %v1246 = vmul.f32 %v1228, %v1236
  %v1247 = vmul.f32 %v1230, %v1238
  %v1248 = vmul.f32 %v1232, %v1240
  %1249 = vmatprep.subr.mxu0 0.0
  %1250 = vmatpush1.msra.mxu0 %v1245
  %1251 = vmatprep.subr.mxu0 0.0
  %1252 = vmatpush1.msra.mxu0 %v1246
  %1253 = vmatprep.subr.mxu0 0.0
  %1254 = vmatpush1.msra.mxu0 %v1247
  %1255 = vmatprep.subr.mxu0 0.0
  %1256 = vmatpush1.msra.mxu0 %v1248
  %1257 = vmatprep.subr.mxu0 0.0
  %1258 = vmatpush1.msra.mxu0 0.0
  %1259 = vmatprep.subr.mxu0 0.0
  %1260 = vmatpush1.msra.mxu0 0.0
  %1261 = vmatprep.subr.mxu0 0.0
  %1262 = vmatpush1.msra.mxu0 0.0
  %1263 = vmatprep.subr.mxu0 0.0
  %1264 = vmatpush1.msra.mxu0 0.0
  %1265 = vmatprep.subr.mxu0 0.0
  %1266 = vmatpush1.msra.mxu0 0.0
  %1267 = vmatprep.subr.mxu0 0.0
  %1268 = vmatpush1.msra.mxu0 0.0
  %1269 = vmatprep.subr.mxu0 0.0
  %1270 = vmatpush1.msra.mxu0 0.0
  %1271 = vmatprep.subr.mxu0 0.0
  %1272 = vmatpush1.msra.mxu0 0.0
  %1273 = vmatprep.subr.mxu0 0.0
  %1274 = vmatpush1.msra.mxu0 0.0
  %1275 = vmatprep.subr.mxu0 0.0
  %1276 = vmatpush1.msra.mxu0 0.0
  %1277 = vmatprep.subr.mxu0 0.0
  %1278 = vmatpush1.msra.mxu0 0.0
  %1279 = vmatprep.subr.mxu0 0.0
  %1280 = vmatpush1.msra.mxu0 0.0
  %1281 = vmatprep.subr.mxu0 0.0
  %1282 = vmatpush1.msra.mxu0 0.0
  %1283 = vmatprep.subr.mxu0 0.0
  %1284 = vmatpush1.msra.mxu0 0.0
  %1285 = vmatprep.subr.mxu0 0.0
  %1286 = vmatpush1.msra.mxu0 0.0
  %1287 = vmatprep.subr.mxu0 0.0
  %1288 = vmatpush1.msra.mxu0 0.0
  %1289 = vmatprep.subr.mxu0 0.0
  %1290 = vmatpush1.msra.mxu0 0.0
  %1291 = vmatprep.subr.mxu0 0.0
  %1292 = vmatpush1.msra.mxu0 0.0
  %1293 = vmatprep.subr.mxu0 0.0
  %1294 = vmatpush1.msra.mxu0 0.0
  %1295 = vmatprep.subr.mxu0 0.0
  %1296 = vmatpush1.msra.mxu0 0.0
  %1297 = vmatprep.subr.mxu0 0.0
  %1298 = vmatpush1.msra.mxu0 0.0
  %1299 = vmatprep.subr.mxu0 0.0
  %1300 = vmatpush1.msra.mxu0 0.0
  %1301 = vmatprep.subr.mxu0 0.0
  %1302 = vmatpush1.msra.mxu0 0.0
  %1303 = vmatprep.subr.mxu0 0.0
  %1304 = vmatpush1.msra.mxu0 0.0
  %1305 = vmatprep.subr.mxu0 0.0
  %1306 = vmatpush1.msra.mxu0 0.0
  %1307 = vmatprep.subr.mxu0 0.0
  %1308 = vmatpush1.msra.mxu0 0.0
  %1309 = vmatprep.subr.mxu0 0.0
  %1310 = vmatpush1.msra.mxu0 0.0
  %1311 = vmatprep.subr.mxu0 0.0
  %1312 = vmatpush1.msra.mxu0 0.0
  %1313 = vmatprep.mubr.f32.mxu0 0.0
  %1314 = vmatmul.mubr.f32.gmra.mrb[0].mxu0 %v86
  %v1315 = vpop.f32.mrb[0].mxu0
  %v1316 = vadd.f32 0.0, %v1315
  %v1317 = vpop.f32.mrb[0].mxu0
  %1318 = vmatprep.mubr.f32.mxu0 0.0
  %1319 = vmatmul.mubr.f32.gmra.mrb[0].mxu0 %v89
  %v1320 = vpop.f32.mrb[0].mxu0
  %v1321 = vadd.f32 0.0, %v1320
  %v1322 = vpop.f32.mrb[0].mxu0
  %1323 = vmatprep.mubr.f32.mxu0 0.0
  %1324 = vmatmul.mubr.f32.gmra.mrb[0].mxu0 %v92
  %v1325 = vpop.f32.mrb[0].mxu0
  %v1326 = vadd.f32 0.0, %v1325
  %v1327 = vpop.f32.mrb[0].mxu0
  %1328 = vmatprep.mubr.f32.mxu0 0.0
  %1329 = vmatmul.mubr.f32.gmra.mrb[0].mxu0 %v95
  %v1330 = vpop.f32.mrb[0].mxu0
  %v1331 = vadd.f32 0.0, %v1330
  %v1332 = vpop.f32.mrb[0].mxu0
  %1333 = vdwg.mxu0
  %1334 = vmatprep.subr.mxu0 0.0
  %1335 = vmatpush1.msra.mxu0 %v1316
  %1336 = vmatprep.subr.mxu0 0.0
  %1337 = vmatpush1.msra.mxu0 %v1321
  %1338 = vmatprep.subr.mxu0 0.0
  %1339 = vmatpush1.msra.mxu0 %v1326
  %1340 = vmatprep.subr.mxu0 0.0
  %1341 = vmatpush1.msra.mxu0 %v1331
  %1342 = vmatprep.subr.mxu0 0.0
  %1343 = vmatpush1.msra.mxu0 0.0
  %1344 = vmatprep.subr.mxu0 0.0
  %1345 = vmatpush1.msra.mxu0 0.0
  %1346 = vmatprep.subr.mxu0 0.0
  %1347 = vmatpush1.msra.mxu0 0.0
  %1348 = vmatprep.subr.mxu0 0.0
  %1349 = vmatpush1.msra.mxu0 0.0
  %1350 = vmatprep.subr.mxu0 0.0
  %1351 = vmatpush1.msra.mxu0 0.0
  %1352 = vmatprep.subr.mxu0 0.0
  %1353 = vmatpush1.msra.mxu0 0.0
  %1354 = vmatprep.subr.mxu0 0.0
  %1355 = vmatpush1.msra.mxu0 0.0
  %1356 = vmatprep.subr.mxu0 0.0
  %1357 = vmatpush1.msra.mxu0 0.0
  %1358 = vmatprep.subr.mxu0 0.0
  %1359 = vmatpush1.msra.mxu0 0.0
  %1360 = vmatprep.subr.mxu0 0.0
  %1361 = vmatpush1.msra.mxu0 0.0
  %1362 = vmatprep.subr.mxu0 0.0
  %1363 = vmatpush1.msra.mxu0 0.0
  %1364 = vmatprep.subr.mxu0 0.0
  %1365 = vmatpush1.msra.mxu0 0.0
  %1366 = vmatprep.subr.mxu0 0.0
  %1367 = vmatpush1.msra.mxu0 0.0
  %1368 = vmatprep.subr.mxu0 0.0
  %1369 = vmatpush1.msra.mxu0 0.0
  %1370 = vmatprep.subr.mxu0 0.0
  %1371 = vmatpush1.msra.mxu0 0.0
  %1372 = vmatprep.subr.mxu0 0.0
  %1373 = vmatpush1.msra.mxu0 0.0
  %1374 = vmatprep.subr.mxu0 0.0
  %1375 = vmatpush1.msra.mxu0 0.0
  %1376 = vmatprep.subr.mxu0 0.0
  %1377 = vmatpush1.msra.mxu0 0.0
  %1378 = vmatprep.subr.mxu0 0.0
  %1379 = vmatpush1.msra.mxu0 0.0
  %1380 = vmatprep.subr.mxu0 0.0
  %1381 = vmatpush1.msra.mxu0 0.0
  %1382 = vmatprep.subr.mxu0 0.0
  %1383 = vmatpush1.msra.mxu0 0.0
  %1384 = vmatprep.subr.mxu0 0.0
  %1385 = vmatpush1.msra.mxu0 0.0
  %1386 = vmatprep.subr.mxu0 0.0
  %1387 = vmatpush1.msra.mxu0 0.0
  %1388 = vmatprep.subr.mxu0 0.0
  %1389 = vmatpush1.msra.mxu0 0.0
  %1390 = vmatprep.subr.mxu0 0.0
  %1391 = vmatpush1.msra.mxu0 0.0
  %1392 = vmatprep.subr.mxu0 0.0
  %1393 = vmatpush1.msra.mxu0 0.0
  %1394 = vmatprep.subr.mxu0 0.0
  %1395 = vmatpush1.msra.mxu0 0.0
  %1396 = vmatprep.subr.mxu0 0.0
  %1397 = vmatpush1.msra.mxu0 0.0
  %1398 = vmatprep.mubr.f32.mxu0 0.0
  %1399 = vmatmul.mubr.f32.gmra.mrb[0].mxu0 %v86
  %v1400 = vpop.f32.mrb[0].mxu0
  %v1401 = vadd.f32 0.0, %v1400
  %v1402 = vpop.f32.mrb[0].mxu0
  %1403 = vmatprep.mubr.f32.mxu0 0.0
  %1404 = vmatmul.mubr.f32.gmra.mrb[0].mxu0 %v89
  %v1405 = vpop.f32.mrb[0].mxu0
  %v1406 = vadd.f32 0.0, %v1405
  %v1407 = vpop.f32.mrb[0].mxu0
  %1408 = vmatprep.mubr.f32.mxu0 0.0
  %1409 = vmatmul.mubr.f32.gmra.mrb[0].mxu0 %v92
  %v1410 = vpop.f32.mrb[0].mxu0
  %v1411 = vadd.f32 0.0, %v1410
  %v1412 = vpop.f32.mrb[0].mxu0
  %1413 = vmatprep.mubr.f32.mxu0 0.0
  %1414 = vmatmul.mubr.f32.gmra.mrb[0].mxu0 %v95
  %v1415 = vpop.f32.mrb[0].mxu0
  %v1416 = vadd.f32 0.0, %v1415
  %v1417 = vpop.f32.mrb[0].mxu0
  %1418 = vdwg.mxu0
  %v1419 = vmul.f32 %v1401, 2.0
  %v1420 = vmul.f32 %v1406, 2.0
  %v1421 = vmul.f32 %v1411, 2.0
  %v1422 = vmul.f32 %v1416, 2.0
  %v1423 = vsub.f32 %v1419, %v1245
  %v1424 = vsub.f32 %v1420, %v1246
  %v1425 = vsub.f32 %v1421, %v1247
  %v1426 = vsub.f32 %v1422, %v1248
  %1431 = vrot.lane.b32.xlu0 %v1245, 2
  %v1432 = vpop.permute.xlu0 %1431
  %1433 = vrot.lane.b32.xlu0 %v1246, 2
  %v1434 = vpop.permute.xlu0 %1433
  %1435 = vrot.lane.b32.xlu0 %v1247, 2
  %v1436 = vpop.permute.xlu0 %1435
  %1437 = vrot.lane.b32.xlu0 %v1248, 2
  %v1438 = vpop.permute.xlu0 %1437
  %v1443 = vsel %vm79, %v890, %v1432
  %v1444 = vsel %vm79, %v891, %v1434
  %v1445 = vsel %vm79, %v892, %v1436
  %v1446 = vsel %vm79, %v893, %v1438
  %1451 = vrot.lane.b32.xlu0 %v1316, 2
  %v1452 = vpop.permute.xlu0 %1451
  %1453 = vrot.lane.b32.xlu0 %v1321, 2
  %v1454 = vpop.permute.xlu0 %1453
  %1455 = vrot.lane.b32.xlu0 %v1326, 2
  %v1456 = vpop.permute.xlu0 %1455
  %1457 = vrot.lane.b32.xlu0 %v1331, 2
  %v1458 = vpop.permute.xlu0 %1457
  %v1463 = vsel %vm79, %v961, %v1452
  %v1464 = vsel %vm79, %v966, %v1454
  %v1465 = vsel %vm79, %v971, %v1456
  %v1466 = vsel %vm79, %v976, %v1458
  %1471 = vrot.lane.b32.xlu0 %v1423, 2
  %v1472 = vpop.permute.xlu0 %1471
  %1473 = vrot.lane.b32.xlu0 %v1424, 2
  %v1474 = vpop.permute.xlu0 %1473
  %1475 = vrot.lane.b32.xlu0 %v1425, 2
  %v1476 = vpop.permute.xlu0 %1475
  %1477 = vrot.lane.b32.xlu0 %v1426, 2
  %v1478 = vpop.permute.xlu0 %1477
  %v1483 = vsel %vm79, %v1068, %v1472
  %v1484 = vsel %vm79, %v1069, %v1474
  %v1485 = vsel %vm79, %v1070, %v1476
  %v1486 = vsel %vm79, %v1071, %v1478
  %1491 = vrot.lane.b32.xlu0 %v1463, 34
  %v1492 = vpop.permute.xlu0 %1491
  %1493 = vrot.lane.b32.xlu0 %v1464, 34
  %v1494 = vpop.permute.xlu0 %1493
  %1495 = vrot.lane.b32.xlu0 %v1465, 34
  %v1496 = vpop.permute.xlu0 %1495
  %1497 = vrot.lane.b32.xlu0 %v1466, 34
  %v1498 = vpop.permute.xlu0 %1497
  %1507 = vrot.lane.b32.xlu0 %v1483, 68
  %v1508 = vpop.permute.xlu0 %1507
  %1509 = vrot.lane.b32.xlu0 %v1484, 68
  %v1510 = vpop.permute.xlu0 %1509
  %1511 = vrot.lane.b32.xlu0 %v1485, 68
  %v1512 = vpop.permute.xlu0 %1511
  %1513 = vrot.lane.b32.xlu0 %v1486, 68
  %v1514 = vpop.permute.xlu0 %1513
  %v1519 = vsel %vm307, %v1443, %v1492
  %v1520 = vsel %vm307, %v1444, %v1494
  %v1521 = vsel %vm307, %v1445, %v1496
  %v1522 = vsel %vm307, %v1446, %v1498
  %v1523 = vsel %vm312, %v1519, %v1508
  %v1524 = vsel %vm312, %v1520, %v1510
  %v1525 = vsel %vm312, %v1521, %v1512
  %v1526 = vsel %vm312, %v1522, %v1514
  %v1528 = vsel %vm323, %v1523, 0
  %v1531 = vsel %vm323, %v1524, 0
  %v1534 = vsel %vm323, %v1525, 0
  %v1537 = vsel %vm323, %v1526, 0
  %1539 = vmatprep.subr.mxu0 0.0
  %1540 = vmatpush1.msra.mxu0 %v65
  %1541 = vmatprep.subr.mxu0 0.0
  %1542 = vmatpush1.msra.mxu0 %v66
  %1543 = vmatprep.subr.mxu0 0.0
  %1544 = vmatpush1.msra.mxu0 %v67
  %1545 = vmatprep.subr.mxu0 0.0
  %1546 = vmatpush1.msra.mxu0 %v68
  %1547 = vmatprep.subr.mxu0 0.0
  %1548 = vmatpush1.msra.mxu0 %v69
  %1549 = vmatprep.subr.mxu0 0.0
  %1550 = vmatpush1.msra.mxu0 %v70
  %1551 = vmatprep.subr.mxu0 0.0
  %1552 = vmatpush1.msra.mxu0 %v71
  %1553 = vmatprep.subr.mxu0 0.0
  %1554 = vmatpush1.msra.mxu0 %v72
  %1555 = vmatprep.subr.mxu0 0.0
  %1556 = vmatpush1.msra.mxu0 %v73
  %1557 = vmatprep.subr.mxu0 0.0
  %1558 = vmatpush1.msra.mxu0 %v74
  %1559 = vmatprep.subr.mxu0 0.0
  %1560 = vmatpush1.msra.mxu0 %v75
  %1561 = vmatprep.subr.mxu0 0.0
  %1562 = vmatpush1.msra.mxu0 %v76
  %1563 = vmatprep.subr.mxu0 0.0
  %1564 = vmatpush1.msra.mxu0 %v750
  %1565 = vmatprep.subr.mxu0 0.0
  %1566 = vmatpush1.msra.mxu0 0.0
  %1567 = vmatprep.subr.mxu0 0.0
  %1568 = vmatpush1.msra.mxu0 0.0
  %1569 = vmatprep.subr.mxu0 0.0
  %1570 = vmatpush1.msra.mxu0 0.0
  %1571 = vmatprep.subr.mxu0 0.0
  %1572 = vmatpush1.msra.mxu0 0.0
  %1573 = vmatprep.subr.mxu0 0.0
  %1574 = vmatpush1.msra.mxu0 0.0
  %1575 = vmatprep.subr.mxu0 0.0
  %1576 = vmatpush1.msra.mxu0 0.0
  %1577 = vmatprep.subr.mxu0 0.0
  %1578 = vmatpush1.msra.mxu0 0.0
  %1579 = vmatprep.subr.mxu0 0.0
  %1580 = vmatpush1.msra.mxu0 0.0
  %1581 = vmatprep.subr.mxu0 0.0
  %1582 = vmatpush1.msra.mxu0 0.0
  %1583 = vmatprep.subr.mxu0 0.0
  %1584 = vmatpush1.msra.mxu0 0.0
  %1585 = vmatprep.subr.mxu0 0.0
  %1586 = vmatpush1.msra.mxu0 0.0
  %1587 = vmatprep.subr.mxu0 0.0
  %1588 = vmatpush1.msra.mxu0 0.0
  %1589 = vmatprep.subr.mxu0 0.0
  %1590 = vmatpush1.msra.mxu0 0.0
  %1591 = vmatprep.subr.mxu0 0.0
  %1592 = vmatpush1.msra.mxu0 0.0
  %1593 = vmatprep.subr.mxu0 0.0
  %1594 = vmatpush1.msra.mxu0 0.0
  %1595 = vmatprep.subr.mxu0 0.0
  %1596 = vmatpush1.msra.mxu0 0.0
  %1597 = vmatprep.subr.mxu0 0.0
  %1598 = vmatpush1.msra.mxu0 0.0
  %1599 = vmatprep.subr.mxu0 0.0
  %1600 = vmatpush1.msra.mxu0 0.0
  %1601 = vmatprep.subr.mxu0 0.0
  %1602 = vmatpush1.msra.mxu0 0.0
  %1603 = vmatprep.mubr.f32.mxu0 0.0
  %1604 = vmatmul.mubr.f32.gmra.mrb[0].mxu0 %v1528
  %v1605 = vpop.f32.mrb[0].mxu0
  %v1606 = vadd.f32 %v735, %v1605
  %v1607 = vpop.f32.mrb[0].mxu0
  %1608 = vmatprep.mubr.f32.mxu0 0.0
  %1609 = vmatmul.mubr.f32.gmra.mrb[0].mxu0 %v1531
  %v1610 = vpop.f32.mrb[0].mxu0
  %v1611 = vadd.f32 %v735, %v1610
  %v1612 = vpop.f32.mrb[0].mxu0
  %1613 = vmatprep.mubr.f32.mxu0 0.0
  %1614 = vmatmul.mubr.f32.gmra.mrb[0].mxu0 %v1534
  %v1615 = vpop.f32.mrb[0].mxu0
  %v1616 = vadd.f32 %v735, %v1615
  %v1617 = vpop.f32.mrb[0].mxu0
  %1618 = vmatprep.mubr.f32.mxu0 0.0
  %1619 = vmatmul.mubr.f32.gmra.mrb[0].mxu0 %v1537
  %v1620 = vpop.f32.mrb[0].mxu0
  %v1621 = vadd.f32 %v735, %v1620
  %v1622 = vpop.f32.mrb[0].mxu0
  %1623 = vdwg.mxu0
  %v1624 = vtanh.pop %v1606
  %v1625 = vtanh.pop %v1611
  %v1626 = vtanh.pop %v1616
  %v1627 = vtanh.pop %v1621
  %v1628 = vmul.f32 %v1226, %v865
  %v1629 = vmul.f32 %v1228, %v866
  %v1630 = vmul.f32 %v1230, %v867
  %v1631 = vmul.f32 %v1232, %v868
  %v1632 = vsub.f32 1.0, %v1226
  %v1633 = vsub.f32 1.0, %v1228
  %v1634 = vsub.f32 1.0, %v1230
  %v1635 = vsub.f32 1.0, %v1232
  %1640 = vrot.lane.b32.xlu0 %v1624, 32
  %v1641 = vpop.permute.xlu0 %1640
  %1642 = vrot.lane.b32.xlu0 %v1625, 32
  %v1643 = vpop.permute.xlu0 %1642
  %1644 = vrot.lane.b32.xlu0 %v1626, 32
  %v1645 = vpop.permute.xlu0 %1644
  %1646 = vrot.lane.b32.xlu0 %v1627, 32
  %v1647 = vpop.permute.xlu0 %1646
  %v1652 = vmul.f32 %v1632, %v1641
  %v1653 = vmul.f32 %v1633, %v1643
  %v1654 = vmul.f32 %v1634, %v1645
  %v1655 = vmul.f32 %v1635, %v1647
  %v1656 = vadd.f32 %v1628, %v1652
  %v1657 = vadd.f32 %v1629, %v1653
  %v1658 = vadd.f32 %v1630, %v1654
  %v1659 = vadd.f32 %v1631, %v1655
  %s1660 = scalar_lea.vmem %s0, 64
  %v1661 = vld [vmem:[%s1660] sm:$0xff]
  %v1662 = vld [vmem:[%s1660 + $0x8] sm:$0xff]
  %v1663 = vld [vmem:[%s1660 + $0x10] sm:$0xff]
  %v1664 = vld [vmem:[%s1660 + $0x18] sm:$0xff]
  %1669 = vrot.lane.b32.xlu0 %v1656, 98
  %v1670 = vpop.permute.xlu0 %1669
  %1671 = vrot.lane.b32.xlu0 %v1657, 98
  %v1672 = vpop.permute.xlu0 %1671
  %1673 = vrot.lane.b32.xlu0 %v1658, 98
  %v1674 = vpop.permute.xlu0 %1673
  %1675 = vrot.lane.b32.xlu0 %v1659, 98
  %v1676 = vpop.permute.xlu0 %1675
  %v1681 = vsel %vm79, %v1661, %v1670
  %v1682 = vsel %vm79, %v1662, %v1672
  %v1683 = vsel %vm79, %v1663, %v1674
  %v1684 = vsel %vm79, %v1664, %v1676
  %1685 = vmatprep.subr.mxu0 0.0
  %1686 = vmatpush1.msra.mxu0 %v1681
  %1687 = vmatprep.subr.mxu0 0.0
  %1688 = vmatpush1.msra.mxu0 %v1682
  %1689 = vmatprep.subr.mxu0 0.0
  %1690 = vmatpush1.msra.mxu0 %v1683
  %1691 = vmatprep.subr.mxu0 0.0
  %1692 = vmatpush1.msra.mxu0 %v1684
  %1693 = vmatprep.subr.mxu0 0.0
  %1694 = vmatpush1.msra.mxu0 0.0
  %1695 = vmatprep.subr.mxu0 0.0
  %1696 = vmatpush1.msra.mxu0 0.0
  %1697 = vmatprep.subr.mxu0 0.0
  %1698 = vmatpush1.msra.mxu0 0.0
  %1699 = vmatprep.subr.mxu0 0.0
  %1700 = vmatpush1.msra.mxu0 0.0
  %1701 = vmatprep.subr.mxu0 0.0
  %1702 = vmatpush1.msra.mxu0 0.0
  %1703 = vmatprep.subr.mxu0 0.0
  %1704 = vmatpush1.msra.mxu0 0.0
  %1705 = vmatprep.subr.mxu0 0.0
  %1706 = vmatpush1.msra.mxu0 0.0
  %1707 = vmatprep.subr.mxu0 0.0
  %1708 = vmatpush1.msra.mxu0 0.0
  %1709 = vmatprep.subr.mxu0 0.0
  %1710 = vmatpush1.msra.mxu0 0.0
  %1711 = vmatprep.subr.mxu0 0.0
  %1712 = vmatpush1.msra.mxu0 0.0
  %1713 = vmatprep.subr.mxu0 0.0
  %1714 = vmatpush1.msra.mxu0 0.0
  %1715 = vmatprep.subr.mxu0 0.0
  %1716 = vmatpush1.msra.mxu0 0.0
  %1717 = vmatprep.subr.mxu0 0.0
  %1718 = vmatpush1.msra.mxu0 0.0
  %1719 = vmatprep.subr.mxu0 0.0
  %1720 = vmatpush1.msra.mxu0 0.0
  %1721 = vmatprep.subr.mxu0 0.0
  %1722 = vmatpush1.msra.mxu0 0.0
  %1723 = vmatprep.subr.mxu0 0.0
  %1724 = vmatpush1.msra.mxu0 0.0
  %1725 = vmatprep.subr.mxu0 0.0
  %1726 = vmatpush1.msra.mxu0 0.0
  %1727 = vmatprep.subr.mxu0 0.0
  %1728 = vmatpush1.msra.mxu0 0.0
  %1729 = vmatprep.subr.mxu0 0.0
  %1730 = vmatpush1.msra.mxu0 0.0
  %1731 = vmatprep.subr.mxu0 0.0
  %1732 = vmatpush1.msra.mxu0 0.0
  %1733 = vmatprep.subr.mxu0 0.0
  %1734 = vmatpush1.msra.mxu0 0.0
  %1735 = vmatprep.subr.mxu0 0.0
  %1736 = vmatpush1.msra.mxu0 0.0
  %1737 = vmatprep.subr.mxu0 0.0
  %1738 = vmatpush1.msra.mxu0 0.0
  %1739 = vmatprep.subr.mxu0 0.0
  %1740 = vmatpush1.msra.mxu0 0.0
  %1741 = vmatprep.subr.mxu0 0.0
  %1742 = vmatpush1.msra.mxu0 0.0
  %1743 = vmatprep.subr.mxu0 0.0
  %1744 = vmatpush1.msra.mxu0 0.0
  %1745 = vmatprep.subr.mxu0 0.0
  %1746 = vmatpush1.msra.mxu0 0.0
  %1747 = vmatprep.subr.mxu0 0.0
  %1748 = vmatpush1.msra.mxu0 0.0
  %1749 = vmatprep.mubr.f32.mxu0 0.0
  %1750 = vmatmul.mubr.f32.gmra.mrb[0].mxu0 %v86
  %v1751 = vpop.f32.mrb[0].mxu0
  %v1752 = vadd.f32 0.0, %v1751
  %v1753 = vpop.f32.mrb[0].mxu0
  %1754 = vmatprep.mubr.f32.mxu0 0.0
  %1755 = vmatmul.mubr.f32.gmra.mrb[0].mxu0 %v89
  %v1756 = vpop.f32.mrb[0].mxu0
  %v1757 = vadd.f32 0.0, %v1756
  %v1758 = vpop.f32.mrb[0].mxu0
  %1759 = vmatprep.mubr.f32.mxu0 0.0
  %1760 = vmatmul.mubr.f32.gmra.mrb[0].mxu0 %v92
  %v1761 = vpop.f32.mrb[0].mxu0
  %v1762 = vadd.f32 0.0, %v1761
  %v1763 = vpop.f32.mrb[0].mxu0
  %1764 = vmatprep.mubr.f32.mxu0 0.0
  %1765 = vmatmul.mubr.f32.gmra.mrb[0].mxu0 %v95
  %v1766 = vpop.f32.mrb[0].mxu0
  %v1767 = vadd.f32 0.0, %v1766
  %v1768 = vpop.f32.mrb[0].mxu0
  %1769 = vdwg.mxu0
  %1770 = vmatprep.subr.mxu0 0.0
  %1771 = vmatpush1.msra.mxu0 %v1752
  %1772 = vmatprep.subr.mxu0 0.0
  %1773 = vmatpush1.msra.mxu0 %v1757
  %1774 = vmatprep.subr.mxu0 0.0
  %1775 = vmatpush1.msra.mxu0 %v1762
  %1776 = vmatprep.subr.mxu0 0.0
  %1777 = vmatpush1.msra.mxu0 %v1767
  %1778 = vmatprep.subr.mxu0 0.0
  %1779 = vmatpush1.msra.mxu0 0.0
  %1780 = vmatprep.subr.mxu0 0.0
  %1781 = vmatpush1.msra.mxu0 0.0
  %1782 = vmatprep.subr.mxu0 0.0
  %1783 = vmatpush1.msra.mxu0 0.0
  %1784 = vmatprep.subr.mxu0 0.0
  %1785 = vmatpush1.msra.mxu0 0.0
  %1786 = vmatprep.subr.mxu0 0.0
  %1787 = vmatpush1.msra.mxu0 0.0
  %1788 = vmatprep.subr.mxu0 0.0
  %1789 = vmatpush1.msra.mxu0 0.0
  %1790 = vmatprep.subr.mxu0 0.0
  %1791 = vmatpush1.msra.mxu0 0.0
  %1792 = vmatprep.subr.mxu0 0.0
  %1793 = vmatpush1.msra.mxu0 0.0
  %1794 = vmatprep.subr.mxu0 0.0
  %1795 = vmatpush1.msra.mxu0 0.0
  %1796 = vmatprep.subr.mxu0 0.0
  %1797 = vmatpush1.msra.mxu0 0.0
  %1798 = vmatprep.subr.mxu0 0.0
  %1799 = vmatpush1.msra.mxu0 0.0
  %1800 = vmatprep.subr.mxu0 0.0
  %1801 = vmatpush1.msra.mxu0 0.0
  %1802 = vmatprep.subr.mxu0 0.0
  %1803 = vmatpush1.msra.mxu0 0.0
  %1804 = vmatprep.subr.mxu0 0.0
  %1805 = vmatpush1.msra.mxu0 0.0
  %1806 = vmatprep.subr.mxu0 0.0
  %1807 = vmatpush1.msra.mxu0 0.0
  %1808 = vmatprep.subr.mxu0 0.0
  %1809 = vmatpush1.msra.mxu0 0.0
  %1810 = vmatprep.subr.mxu0 0.0
  %1811 = vmatpush1.msra.mxu0 0.0
  %1812 = vmatprep.subr.mxu0 0.0
  %1813 = vmatpush1.msra.mxu0 0.0
  %1814 = vmatprep.subr.mxu0 0.0
  %1815 = vmatpush1.msra.mxu0 0.0
  %1816 = vmatprep.subr.mxu0 0.0
  %1817 = vmatpush1.msra.mxu0 0.0
  %1818 = vmatprep.subr.mxu0 0.0
  %1819 = vmatpush1.msra.mxu0 0.0
  %1820 = vmatprep.subr.mxu0 0.0
  %1821 = vmatpush1.msra.mxu0 0.0
  %1822 = vmatprep.subr.mxu0 0.0
  %1823 = vmatpush1.msra.mxu0 0.0
  %1824 = vmatprep.subr.mxu0 0.0
  %1825 = vmatpush1.msra.mxu0 0.0
  %1826 = vmatprep.subr.mxu0 0.0
  %1827 = vmatpush1.msra.mxu0 0.0
  %1828 = vmatprep.subr.mxu0 0.0
  %1829 = vmatpush1.msra.mxu0 0.0
  %1830 = vmatprep.subr.mxu0 0.0
  %1831 = vmatpush1.msra.mxu0 0.0
  %1832 = vmatprep.subr.mxu0 0.0
  %1833 = vmatpush1.msra.mxu0 0.0
  %1834 = vmatprep.mubr.f32.mxu0 0.0
  %1835 = vmatmul.mubr.f32.gmra.mrb[0].mxu0 %v86
  %v1836 = vpop.f32.mrb[0].mxu0
  %v1837 = vadd.f32 0.0, %v1836
  %v1838 = vpop.f32.mrb[0].mxu0
  %1839 = vmatprep.mubr.f32.mxu0 0.0
  %1840 = vmatmul.mubr.f32.gmra.mrb[0].mxu0 %v89
  %v1841 = vpop.f32.mrb[0].mxu0
  %v1842 = vadd.f32 0.0, %v1841
  %v1843 = vpop.f32.mrb[0].mxu0
  %1844 = vmatprep.mubr.f32.mxu0 0.0
  %1845 = vmatmul.mubr.f32.gmra.mrb[0].mxu0 %v92
  %v1846 = vpop.f32.mrb[0].mxu0
  %v1847 = vadd.f32 0.0, %v1846
  %v1848 = vpop.f32.mrb[0].mxu0
  %1849 = vmatprep.mubr.f32.mxu0 0.0
  %1850 = vmatmul.mubr.f32.gmra.mrb[0].mxu0 %v95
  %v1851 = vpop.f32.mrb[0].mxu0
  %v1852 = vadd.f32 0.0, %v1851
  %v1853 = vpop.f32.mrb[0].mxu0
  %1854 = vdwg.mxu0
  %v1855 = vmul.f32 %v1837, 2.0
  %v1856 = vmul.f32 %v1842, 2.0
  %v1857 = vmul.f32 %v1847, 2.0
  %v1858 = vmul.f32 %v1852, 2.0
  %v1859 = vsub.f32 %v1855, %v1681
  %v1860 = vsub.f32 %v1856, %v1682
  %v1861 = vsub.f32 %v1857, %v1683
  %v1862 = vsub.f32 %v1858, %v1684
  %1867 = vrot.lane.b32.xlu0 %v1752, 34
  %v1868 = vpop.permute.xlu0 %1867
  %1869 = vrot.lane.b32.xlu0 %v1757, 34
  %v1870 = vpop.permute.xlu0 %1869
  %1871 = vrot.lane.b32.xlu0 %v1762, 34
  %v1872 = vpop.permute.xlu0 %1871
  %1873 = vrot.lane.b32.xlu0 %v1767, 34
  %v1874 = vpop.permute.xlu0 %1873
  %1883 = vrot.lane.b32.xlu0 %v1859, 68
  %v1884 = vpop.permute.xlu0 %1883
  %1885 = vrot.lane.b32.xlu0 %v1860, 68
  %v1886 = vpop.permute.xlu0 %1885
  %1887 = vrot.lane.b32.xlu0 %v1861, 68
  %v1888 = vpop.permute.xlu0 %1887
  %1889 = vrot.lane.b32.xlu0 %v1862, 68
  %v1890 = vpop.permute.xlu0 %1889
  %v1895 = vsel %vm307, %v1681, %v1868
  %v1896 = vsel %vm307, %v1682, %v1870
  %v1897 = vsel %vm307, %v1683, %v1872
  %v1898 = vsel %vm307, %v1684, %v1874
  %v1899 = vsel %vm312, %v1895, %v1884
  %v1900 = vsel %vm312, %v1896, %v1886
  %v1901 = vsel %vm312, %v1897, %v1888
  %v1902 = vsel %vm312, %v1898, %v1890
  %v1904 = vsel %vm323, %v1899, 0
  %v1907 = vsel %vm323, %v1900, 0
  %v1910 = vsel %vm323, %v1901, 0
  %v1913 = vsel %vm323, %v1902, 0
  %1915 = vmatprep.subr.mxu0 0.0
  %1916 = vmatpush1.msra.mxu0 %v51
  %1917 = vmatprep.subr.mxu0 0.0
  %1918 = vmatpush1.msra.mxu0 %v52
  %1919 = vmatprep.subr.mxu0 0.0
  %1920 = vmatpush1.msra.mxu0 %v53
  %1921 = vmatprep.subr.mxu0 0.0
  %1922 = vmatpush1.msra.mxu0 %v54
  %1923 = vmatprep.subr.mxu0 0.0
  %1924 = vmatpush1.msra.mxu0 %v55
  %1925 = vmatprep.subr.mxu0 0.0
  %1926 = vmatpush1.msra.mxu0 %v56
  %1927 = vmatprep.subr.mxu0 0.0
  %1928 = vmatpush1.msra.mxu0 %v57
  %1929 = vmatprep.subr.mxu0 0.0
  %1930 = vmatpush1.msra.mxu0 %v58
  %1931 = vmatprep.subr.mxu0 0.0
  %1932 = vmatpush1.msra.mxu0 %v59
  %1933 = vmatprep.subr.mxu0 0.0
  %1934 = vmatpush1.msra.mxu0 %v60
  %1935 = vmatprep.subr.mxu0 0.0
  %1936 = vmatpush1.msra.mxu0 %v61
  %1937 = vmatprep.subr.mxu0 0.0
  %1938 = vmatpush1.msra.mxu0 %v62
  %1939 = vmatprep.subr.mxu0 0.0
  %1940 = vmatpush1.msra.mxu0 %v338
  %1941 = vmatprep.subr.mxu0 0.0
  %1942 = vmatpush1.msra.mxu0 0.0
  %1943 = vmatprep.subr.mxu0 0.0
  %1944 = vmatpush1.msra.mxu0 0.0
  %1945 = vmatprep.subr.mxu0 0.0
  %1946 = vmatpush1.msra.mxu0 0.0
  %1947 = vmatprep.subr.mxu0 0.0
  %1948 = vmatpush1.msra.mxu0 0.0
  %1949 = vmatprep.subr.mxu0 0.0
  %1950 = vmatpush1.msra.mxu0 0.0
  %1951 = vmatprep.subr.mxu0 0.0
  %1952 = vmatpush1.msra.mxu0 0.0
  %1953 = vmatprep.subr.mxu0 0.0
  %1954 = vmatpush1.msra.mxu0 0.0
  %1955 = vmatprep.subr.mxu0 0.0
  %1956 = vmatpush1.msra.mxu0 0.0
  %1957 = vmatprep.subr.mxu0 0.0
  %1958 = vmatpush1.msra.mxu0 0.0
  %1959 = vmatprep.subr.mxu0 0.0
  %1960 = vmatpush1.msra.mxu0 0.0
  %1961 = vmatprep.subr.mxu0 0.0
  %1962 = vmatpush1.msra.mxu0 0.0
  %1963 = vmatprep.subr.mxu0 0.0
  %1964 = vmatpush1.msra.mxu0 0.0
  %1965 = vmatprep.subr.mxu0 0.0
  %1966 = vmatpush1.msra.mxu0 0.0
  %1967 = vmatprep.subr.mxu0 0.0
  %1968 = vmatpush1.msra.mxu0 0.0
  %1969 = vmatprep.subr.mxu0 0.0
  %1970 = vmatpush1.msra.mxu0 0.0
  %1971 = vmatprep.subr.mxu0 0.0
  %1972 = vmatpush1.msra.mxu0 0.0
  %1973 = vmatprep.subr.mxu0 0.0
  %1974 = vmatpush1.msra.mxu0 0.0
  %1975 = vmatprep.subr.mxu0 0.0
  %1976 = vmatpush1.msra.mxu0 0.0
  %1977 = vmatprep.subr.mxu0 0.0
  %1978 = vmatpush1.msra.mxu0 0.0
  %1979 = vmatprep.mubr.f32.mxu0 0.0
  %1980 = vmatmul.mubr.f32.gmra.mrb[0].mxu0 %v1904
  %v1981 = vpop.f32.mrb[0].mxu0
  %v1982 = vadd.f32 %v321, %v1981
  %v1983 = vpop.f32.mrb[0].mxu0
  %1984 = vmatprep.mubr.f32.mxu0 0.0
  %1985 = vmatmul.mubr.f32.gmra.mrb[0].mxu0 %v1907
  %v1986 = vpop.f32.mrb[0].mxu0
  %v1987 = vadd.f32 %v321, %v1986
  %v1988 = vpop.f32.mrb[0].mxu0
  %1989 = vmatprep.mubr.f32.mxu0 0.0
  %1990 = vmatmul.mubr.f32.gmra.mrb[0].mxu0 %v1910
  %v1991 = vpop.f32.mrb[0].mxu0
  %v1992 = vadd.f32 %v321, %v1991
  %v1993 = vpop.f32.mrb[0].mxu0
  %1994 = vmatprep.mubr.f32.mxu0 0.0
  %1995 = vmatmul.mubr.f32.gmra.mrb[0].mxu0 %v1913
  %v1996 = vpop.f32.mrb[0].mxu0
  %v1997 = vadd.f32 %v321, %v1996
  %v1998 = vpop.f32.mrb[0].mxu0
  %1999 = vdwg.mxu0
  %v2000 = vxor.u32 %v1982, 2147483648
  %v2001 = vxor.u32 %v1987, 2147483648
  %v2002 = vxor.u32 %v1992, 2147483648
  %v2003 = vxor.u32 %v1997, 2147483648
  %v2004 = vmul.f32 %v2000, 1.442695
  %v2005 = vpow.pop %v2004
  %v2006 = vmul.f32 %v2001, 1.442695
  %v2007 = vpow.pop %v2006
  %v2008 = vmul.f32 %v2002, 1.442695
  %v2009 = vpow.pop %v2008
  %v2010 = vmul.f32 %v2003, 1.442695
  %v2011 = vpow.pop %v2010
  %v2012 = vadd.f32 %v2005, 1.0
  %v2013 = vadd.f32 %v2007, 1.0
  %v2014 = vadd.f32 %v2009, 1.0
  %v2015 = vadd.f32 %v2011, 1.0
  %v2016 = vrcp.pop %v2012
  %v2017 = vmul.f32 1.0, %v2016
  %v2018 = vrcp.pop %v2013
  %v2019 = vmul.f32 1.0, %v2018
  %v2020 = vrcp.pop %v2014
  %v2021 = vmul.f32 1.0, %v2020
  %v2022 = vrcp.pop %v2015
  %v2023 = vmul.f32 1.0, %v2022
  %2024 = vrot.lane.b32.xlu0 %v1656, 96
  %v2025 = vpop.permute.xlu0 %2024
  %2026 = vrot.lane.b32.xlu0 %v1657, 96
  %v2027 = vpop.permute.xlu0 %2026
  %2028 = vrot.lane.b32.xlu0 %v1658, 96
  %v2029 = vpop.permute.xlu0 %2028
  %2030 = vrot.lane.b32.xlu0 %v1659, 96
  %v2031 = vpop.permute.xlu0 %2030
  %v2036 = vmul.f32 %v2017, %v2025
  %v2037 = vmul.f32 %v2019, %v2027
  %v2038 = vmul.f32 %v2021, %v2029
  %v2039 = vmul.f32 %v2023, %v2031
  %2040 = vmatprep.subr.mxu0 0.0
  %2041 = vmatpush1.msra.mxu0 %v2036
  %2042 = vmatprep.subr.mxu0 0.0
  %2043 = vmatpush1.msra.mxu0 %v2037
  %2044 = vmatprep.subr.mxu0 0.0
  %2045 = vmatpush1.msra.mxu0 %v2038
  %2046 = vmatprep.subr.mxu0 0.0
  %2047 = vmatpush1.msra.mxu0 %v2039
  %2048 = vmatprep.subr.mxu0 0.0
  %2049 = vmatpush1.msra.mxu0 0.0
  %2050 = vmatprep.subr.mxu0 0.0
  %2051 = vmatpush1.msra.mxu0 0.0
  %2052 = vmatprep.subr.mxu0 0.0
  %2053 = vmatpush1.msra.mxu0 0.0
  %2054 = vmatprep.subr.mxu0 0.0
  %2055 = vmatpush1.msra.mxu0 0.0
  %2056 = vmatprep.subr.mxu0 0.0
  %2057 = vmatpush1.msra.mxu0 0.0
  %2058 = vmatprep.subr.mxu0 0.0
  %2059 = vmatpush1.msra.mxu0 0.0
  %2060 = vmatprep.subr.mxu0 0.0
  %2061 = vmatpush1.msra.mxu0 0.0
  %2062 = vmatprep.subr.mxu0 0.0
  %2063 = vmatpush1.msra.mxu0 0.0
  %2064 = vmatprep.subr.mxu0 0.0
  %2065 = vmatpush1.msra.mxu0 0.0
  %2066 = vmatprep.subr.mxu0 0.0
  %2067 = vmatpush1.msra.mxu0 0.0
  %2068 = vmatprep.subr.mxu0 0.0
  %2069 = vmatpush1.msra.mxu0 0.0
  %2070 = vmatprep.subr.mxu0 0.0
  %2071 = vmatpush1.msra.mxu0 0.0
  %2072 = vmatprep.subr.mxu0 0.0
  %2073 = vmatpush1.msra.mxu0 0.0
  %2074 = vmatprep.subr.mxu0 0.0
  %2075 = vmatpush1.msra.mxu0 0.0
  %2076 = vmatprep.subr.mxu0 0.0
  %2077 = vmatpush1.msra.mxu0 0.0
  %2078 = vmatprep.subr.mxu0 0.0
  %2079 = vmatpush1.msra.mxu0 0.0
  %2080 = vmatprep.subr.mxu0 0.0
  %2081 = vmatpush1.msra.mxu0 0.0
  %2082 = vmatprep.subr.mxu0 0.0
  %2083 = vmatpush1.msra.mxu0 0.0
  %2084 = vmatprep.subr.mxu0 0.0
  %2085 = vmatpush1.msra.mxu0 0.0
  %2086 = vmatprep.subr.mxu0 0.0
  %2087 = vmatpush1.msra.mxu0 0.0
  %2088 = vmatprep.subr.mxu0 0.0
  %2089 = vmatpush1.msra.mxu0 0.0
  %2090 = vmatprep.subr.mxu0 0.0
  %2091 = vmatpush1.msra.mxu0 0.0
  %2092 = vmatprep.subr.mxu0 0.0
  %2093 = vmatpush1.msra.mxu0 0.0
  %2094 = vmatprep.subr.mxu0 0.0
  %2095 = vmatpush1.msra.mxu0 0.0
  %2096 = vmatprep.subr.mxu0 0.0
  %2097 = vmatpush1.msra.mxu0 0.0
  %2098 = vmatprep.subr.mxu0 0.0
  %2099 = vmatpush1.msra.mxu0 0.0
  %2100 = vmatprep.subr.mxu0 0.0
  %2101 = vmatpush1.msra.mxu0 0.0
  %2102 = vmatprep.subr.mxu0 0.0
  %2103 = vmatpush1.msra.mxu0 0.0
  %2104 = vmatprep.mubr.f32.mxu0 0.0
  %2105 = vmatmul.mubr.f32.gmra.mrb[0].mxu0 %v86
  %v2106 = vpop.f32.mrb[0].mxu0
  %v2107 = vadd.f32 0.0, %v2106
  %v2108 = vpop.f32.mrb[0].mxu0
  %2109 = vmatprep.mubr.f32.mxu0 0.0
  %2110 = vmatmul.mubr.f32.gmra.mrb[0].mxu0 %v89
  %v2111 = vpop.f32.mrb[0].mxu0
  %v2112 = vadd.f32 0.0, %v2111
  %v2113 = vpop.f32.mrb[0].mxu0
  %2114 = vmatprep.mubr.f32.mxu0 0.0
  %2115 = vmatmul.mubr.f32.gmra.mrb[0].mxu0 %v92
  %v2116 = vpop.f32.mrb[0].mxu0
  %v2117 = vadd.f32 0.0, %v2116
  %v2118 = vpop.f32.mrb[0].mxu0
  %2119 = vmatprep.mubr.f32.mxu0 0.0
  %2120 = vmatmul.mubr.f32.gmra.mrb[0].mxu0 %v95
  %v2121 = vpop.f32.mrb[0].mxu0
  %v2122 = vadd.f32 0.0, %v2121
  %v2123 = vpop.f32.mrb[0].mxu0
  %2124 = vdwg.mxu0
  %2125 = vmatprep.subr.mxu0 0.0
  %2126 = vmatpush1.msra.mxu0 %v2107
  %2127 = vmatprep.subr.mxu0 0.0
  %2128 = vmatpush1.msra.mxu0 %v2112
  %2129 = vmatprep.subr.mxu0 0.0
  %2130 = vmatpush1.msra.mxu0 %v2117
  %2131 = vmatprep.subr.mxu0 0.0
  %2132 = vmatpush1.msra.mxu0 %v2122
  %2133 = vmatprep.subr.mxu0 0.0
  %2134 = vmatpush1.msra.mxu0 0.0
  %2135 = vmatprep.subr.mxu0 0.0
  %2136 = vmatpush1.msra.mxu0 0.0
  %2137 = vmatprep.subr.mxu0 0.0
  %2138 = vmatpush1.msra.mxu0 0.0
  %2139 = vmatprep.subr.mxu0 0.0
  %2140 = vmatpush1.msra.mxu0 0.0
  %2141 = vmatprep.subr.mxu0 0.0
  %2142 = vmatpush1.msra.mxu0 0.0
  %2143 = vmatprep.subr.mxu0 0.0
  %2144 = vmatpush1.msra.mxu0 0.0
  %2145 = vmatprep.subr.mxu0 0.0
  %2146 = vmatpush1.msra.mxu0 0.0
  %2147 = vmatprep.subr.mxu0 0.0
  %2148 = vmatpush1.msra.mxu0 0.0
  %2149 = vmatprep.subr.mxu0 0.0
  %2150 = vmatpush1.msra.mxu0 0.0
  %2151 = vmatprep.subr.mxu0 0.0
  %2152 = vmatpush1.msra.mxu0 0.0
  %2153 = vmatprep.subr.mxu0 0.0
  %2154 = vmatpush1.msra.mxu0 0.0
  %2155 = vmatprep.subr.mxu0 0.0
  %2156 = vmatpush1.msra.mxu0 0.0
  %2157 = vmatprep.subr.mxu0 0.0
  %2158 = vmatpush1.msra.mxu0 0.0
  %2159 = vmatprep.subr.mxu0 0.0
  %2160 = vmatpush1.msra.mxu0 0.0
  %2161 = vmatprep.subr.mxu0 0.0
  %2162 = vmatpush1.msra.mxu0 0.0
  %2163 = vmatprep.subr.mxu0 0.0
  %2164 = vmatpush1.msra.mxu0 0.0
  %2165 = vmatprep.subr.mxu0 0.0
  %2166 = vmatpush1.msra.mxu0 0.0
  %2167 = vmatprep.subr.mxu0 0.0
  %2168 = vmatpush1.msra.mxu0 0.0
  %2169 = vmatprep.subr.mxu0 0.0
  %2170 = vmatpush1.msra.mxu0 0.0
  %2171 = vmatprep.subr.mxu0 0.0
  %2172 = vmatpush1.msra.mxu0 0.0
  %2173 = vmatprep.subr.mxu0 0.0
  %2174 = vmatpush1.msra.mxu0 0.0
  %2175 = vmatprep.subr.mxu0 0.0
  %2176 = vmatpush1.msra.mxu0 0.0
  %2177 = vmatprep.subr.mxu0 0.0
  %2178 = vmatpush1.msra.mxu0 0.0
  %2179 = vmatprep.subr.mxu0 0.0
  %2180 = vmatpush1.msra.mxu0 0.0
  %2181 = vmatprep.subr.mxu0 0.0
  %2182 = vmatpush1.msra.mxu0 0.0
  %2183 = vmatprep.subr.mxu0 0.0
  %2184 = vmatpush1.msra.mxu0 0.0
  %2185 = vmatprep.subr.mxu0 0.0
  %2186 = vmatpush1.msra.mxu0 0.0
  %2187 = vmatprep.subr.mxu0 0.0
  %2188 = vmatpush1.msra.mxu0 0.0
  %2189 = vmatprep.mubr.f32.mxu0 0.0
  %2190 = vmatmul.mubr.f32.gmra.mrb[0].mxu0 %v86
  %v2191 = vpop.f32.mrb[0].mxu0
  %v2192 = vadd.f32 0.0, %v2191
  %v2193 = vpop.f32.mrb[0].mxu0
  %2194 = vmatprep.mubr.f32.mxu0 0.0
  %2195 = vmatmul.mubr.f32.gmra.mrb[0].mxu0 %v89
  %v2196 = vpop.f32.mrb[0].mxu0
  %v2197 = vadd.f32 0.0, %v2196
  %v2198 = vpop.f32.mrb[0].mxu0
  %2199 = vmatprep.mubr.f32.mxu0 0.0
  %2200 = vmatmul.mubr.f32.gmra.mrb[0].mxu0 %v92
  %v2201 = vpop.f32.mrb[0].mxu0
  %v2202 = vadd.f32 0.0, %v2201
  %v2203 = vpop.f32.mrb[0].mxu0
  %2204 = vmatprep.mubr.f32.mxu0 0.0
  %2205 = vmatmul.mubr.f32.gmra.mrb[0].mxu0 %v95
  %v2206 = vpop.f32.mrb[0].mxu0
  %v2207 = vadd.f32 0.0, %v2206
  %v2208 = vpop.f32.mrb[0].mxu0
  %2209 = vdwg.mxu0
  %v2210 = vmul.f32 %v2192, 2.0
  %v2211 = vmul.f32 %v2197, 2.0
  %v2212 = vmul.f32 %v2202, 2.0
  %v2213 = vmul.f32 %v2207, 2.0
  %v2214 = vsub.f32 %v2210, %v2036
  %v2215 = vsub.f32 %v2211, %v2037
  %v2216 = vsub.f32 %v2212, %v2038
  %v2217 = vsub.f32 %v2213, %v2039
  %2222 = vrot.lane.b32.xlu0 %v2036, 2
  %v2223 = vpop.permute.xlu0 %2222
  %2224 = vrot.lane.b32.xlu0 %v2037, 2
  %v2225 = vpop.permute.xlu0 %2224
  %2226 = vrot.lane.b32.xlu0 %v2038, 2
  %v2227 = vpop.permute.xlu0 %2226
  %2228 = vrot.lane.b32.xlu0 %v2039, 2
  %v2229 = vpop.permute.xlu0 %2228
  %v2234 = vsel %vm79, %v1681, %v2223
  %v2235 = vsel %vm79, %v1682, %v2225
  %v2236 = vsel %vm79, %v1683, %v2227
  %v2237 = vsel %vm79, %v1684, %v2229
  %2242 = vrot.lane.b32.xlu0 %v2107, 2
  %v2243 = vpop.permute.xlu0 %2242
  %2244 = vrot.lane.b32.xlu0 %v2112, 2
  %v2245 = vpop.permute.xlu0 %2244
  %2246 = vrot.lane.b32.xlu0 %v2117, 2
  %v2247 = vpop.permute.xlu0 %2246
  %2248 = vrot.lane.b32.xlu0 %v2122, 2
  %v2249 = vpop.permute.xlu0 %2248
  %v2254 = vsel %vm79, %v1752, %v2243
  %v2255 = vsel %vm79, %v1757, %v2245
  %v2256 = vsel %vm79, %v1762, %v2247
  %v2257 = vsel %vm79, %v1767, %v2249
  %2262 = vrot.lane.b32.xlu0 %v2214, 2
  %v2263 = vpop.permute.xlu0 %2262
  %2264 = vrot.lane.b32.xlu0 %v2215, 2
  %v2265 = vpop.permute.xlu0 %2264
  %2266 = vrot.lane.b32.xlu0 %v2216, 2
  %v2267 = vpop.permute.xlu0 %2266
  %2268 = vrot.lane.b32.xlu0 %v2217, 2
  %v2269 = vpop.permute.xlu0 %2268
  %v2274 = vsel %vm79, %v1859, %v2263
  %v2275 = vsel %vm79, %v1860, %v2265
  %v2276 = vsel %vm79, %v1861, %v2267
  %v2277 = vsel %vm79, %v1862, %v2269
  %2282 = vrot.lane.b32.xlu0 %v2254, 34
  %v2283 = vpop.permute.xlu0 %2282
  %2284 = vrot.lane.b32.xlu0 %v2255, 34
  %v2285 = vpop.permute.xlu0 %2284
  %2286 = vrot.lane.b32.xlu0 %v2256, 34
  %v2287 = vpop.permute.xlu0 %2286
  %2288 = vrot.lane.b32.xlu0 %v2257, 34
  %v2289 = vpop.permute.xlu0 %2288
  %2298 = vrot.lane.b32.xlu0 %v2274, 68
  %v2299 = vpop.permute.xlu0 %2298
  %2300 = vrot.lane.b32.xlu0 %v2275, 68
  %v2301 = vpop.permute.xlu0 %2300
  %2302 = vrot.lane.b32.xlu0 %v2276, 68
  %v2303 = vpop.permute.xlu0 %2302
  %2304 = vrot.lane.b32.xlu0 %v2277, 68
  %v2305 = vpop.permute.xlu0 %2304
  %v2310 = vsel %vm307, %v2234, %v2283
  %v2311 = vsel %vm307, %v2235, %v2285
  %v2312 = vsel %vm307, %v2236, %v2287
  %v2313 = vsel %vm307, %v2237, %v2289
  %v2314 = vsel %vm312, %v2310, %v2299
  %v2315 = vsel %vm312, %v2311, %v2301
  %v2316 = vsel %vm312, %v2312, %v2303
  %v2317 = vsel %vm312, %v2313, %v2305
  %v2319 = vsel %vm323, %v2314, 0
  %v2322 = vsel %vm323, %v2315, 0
  %v2325 = vsel %vm323, %v2316, 0
  %v2328 = vsel %vm323, %v2317, 0
  %2330 = vmatprep.subr.mxu0 0.0
  %2331 = vmatpush1.msra.mxu0 %v65
  %2332 = vmatprep.subr.mxu0 0.0
  %2333 = vmatpush1.msra.mxu0 %v66
  %2334 = vmatprep.subr.mxu0 0.0
  %2335 = vmatpush1.msra.mxu0 %v67
  %2336 = vmatprep.subr.mxu0 0.0
  %2337 = vmatpush1.msra.mxu0 %v68
  %2338 = vmatprep.subr.mxu0 0.0
  %2339 = vmatpush1.msra.mxu0 %v69
  %2340 = vmatprep.subr.mxu0 0.0
  %2341 = vmatpush1.msra.mxu0 %v70
  %2342 = vmatprep.subr.mxu0 0.0
  %2343 = vmatpush1.msra.mxu0 %v71
  %2344 = vmatprep.subr.mxu0 0.0
  %2345 = vmatpush1.msra.mxu0 %v72
  %2346 = vmatprep.subr.mxu0 0.0
  %2347 = vmatpush1.msra.mxu0 %v73
  %2348 = vmatprep.subr.mxu0 0.0
  %2349 = vmatpush1.msra.mxu0 %v74
  %2350 = vmatprep.subr.mxu0 0.0
  %2351 = vmatpush1.msra.mxu0 %v75
  %2352 = vmatprep.subr.mxu0 0.0
  %2353 = vmatpush1.msra.mxu0 %v76
  %2354 = vmatprep.subr.mxu0 0.0
  %2355 = vmatpush1.msra.mxu0 %v750
  %2356 = vmatprep.subr.mxu0 0.0
  %2357 = vmatpush1.msra.mxu0 0.0
  %2358 = vmatprep.subr.mxu0 0.0
  %2359 = vmatpush1.msra.mxu0 0.0
  %2360 = vmatprep.subr.mxu0 0.0
  %2361 = vmatpush1.msra.mxu0 0.0
  %2362 = vmatprep.subr.mxu0 0.0
  %2363 = vmatpush1.msra.mxu0 0.0
  %2364 = vmatprep.subr.mxu0 0.0
  %2365 = vmatpush1.msra.mxu0 0.0
  %2366 = vmatprep.subr.mxu0 0.0
  %2367 = vmatpush1.msra.mxu0 0.0
  %2368 = vmatprep.subr.mxu0 0.0
  %2369 = vmatpush1.msra.mxu0 0.0
  %2370 = vmatprep.subr.mxu0 0.0
  %2371 = vmatpush1.msra.mxu0 0.0
  %2372 = vmatprep.subr.mxu0 0.0
  %2373 = vmatpush1.msra.mxu0 0.0
  %2374 = vmatprep.subr.mxu0 0.0
  %2375 = vmatpush1.msra.mxu0 0.0
  %2376 = vmatprep.subr.mxu0 0.0
  %2377 = vmatpush1.msra.mxu0 0.0
  %2378 = vmatprep.subr.mxu0 0.0
  %2379 = vmatpush1.msra.mxu0 0.0
  %2380 = vmatprep.subr.mxu0 0.0
  %2381 = vmatpush1.msra.mxu0 0.0
  %2382 = vmatprep.subr.mxu0 0.0
  %2383 = vmatpush1.msra.mxu0 0.0
  %2384 = vmatprep.subr.mxu0 0.0
  %2385 = vmatpush1.msra.mxu0 0.0
  %2386 = vmatprep.subr.mxu0 0.0
  %2387 = vmatpush1.msra.mxu0 0.0
  %2388 = vmatprep.subr.mxu0 0.0
  %2389 = vmatpush1.msra.mxu0 0.0
  %2390 = vmatprep.subr.mxu0 0.0
  %2391 = vmatpush1.msra.mxu0 0.0
  %2392 = vmatprep.subr.mxu0 0.0
  %2393 = vmatpush1.msra.mxu0 0.0
  %2394 = vmatprep.mubr.f32.mxu0 0.0
  %2395 = vmatmul.mubr.f32.gmra.mrb[0].mxu0 %v2319
  %v2396 = vpop.f32.mrb[0].mxu0
  %v2397 = vadd.f32 %v735, %v2396
  %v2398 = vpop.f32.mrb[0].mxu0
  %2399 = vmatprep.mubr.f32.mxu0 0.0
  %2400 = vmatmul.mubr.f32.gmra.mrb[0].mxu0 %v2322
  %v2401 = vpop.f32.mrb[0].mxu0
  %v2402 = vadd.f32 %v735, %v2401
  %v2403 = vpop.f32.mrb[0].mxu0
  %2404 = vmatprep.mubr.f32.mxu0 0.0
  %2405 = vmatmul.mubr.f32.gmra.mrb[0].mxu0 %v2325
  %v2406 = vpop.f32.mrb[0].mxu0
  %v2407 = vadd.f32 %v735, %v2406
  %v2408 = vpop.f32.mrb[0].mxu0
  %2409 = vmatprep.mubr.f32.mxu0 0.0
  %2410 = vmatmul.mubr.f32.gmra.mrb[0].mxu0 %v2328
  %v2411 = vpop.f32.mrb[0].mxu0
  %v2412 = vadd.f32 %v735, %v2411
  %v2413 = vpop.f32.mrb[0].mxu0
  %2414 = vdwg.mxu0
  %v2415 = vtanh.pop %v2397
  %v2416 = vtanh.pop %v2402
  %v2417 = vtanh.pop %v2407
  %v2418 = vtanh.pop %v2412
  %v2419 = vmul.f32 %v2017, %v1656
  %v2420 = vmul.f32 %v2019, %v1657
  %v2421 = vmul.f32 %v2021, %v1658
  %v2422 = vmul.f32 %v2023, %v1659
  %v2423 = vsub.f32 1.0, %v2017
  %v2424 = vsub.f32 1.0, %v2019
  %v2425 = vsub.f32 1.0, %v2021
  %v2426 = vsub.f32 1.0, %v2023
  %2431 = vrot.lane.b32.xlu0 %v2415, 32
  %v2432 = vpop.permute.xlu0 %2431
  %2433 = vrot.lane.b32.xlu0 %v2416, 32
  %v2434 = vpop.permute.xlu0 %2433
  %2435 = vrot.lane.b32.xlu0 %v2417, 32
  %v2436 = vpop.permute.xlu0 %2435
  %2437 = vrot.lane.b32.xlu0 %v2418, 32
  %v2438 = vpop.permute.xlu0 %2437
  %v2443 = vmul.f32 %v2423, %v2432
  %v2444 = vmul.f32 %v2424, %v2434
  %v2445 = vmul.f32 %v2425, %v2436
  %v2446 = vmul.f32 %v2426, %v2438
  %v2447 = vadd.f32 %v2419, %v2443
  %v2448 = vadd.f32 %v2420, %v2444
  %v2449 = vadd.f32 %v2421, %v2445
  %v2450 = vadd.f32 %v2422, %v2446
  %s2451 = scalar_lea.vmem %s0, 96
  %v2452 = vld [vmem:[%s2451] sm:$0xff]
  %v2453 = vld [vmem:[%s2451 + $0x8] sm:$0xff]
  %v2454 = vld [vmem:[%s2451 + $0x10] sm:$0xff]
  %v2455 = vld [vmem:[%s2451 + $0x18] sm:$0xff]
  %2460 = vrot.lane.b32.xlu0 %v2447, 98
  %v2461 = vpop.permute.xlu0 %2460
  %2462 = vrot.lane.b32.xlu0 %v2448, 98
  %v2463 = vpop.permute.xlu0 %2462
  %2464 = vrot.lane.b32.xlu0 %v2449, 98
  %v2465 = vpop.permute.xlu0 %2464
  %2466 = vrot.lane.b32.xlu0 %v2450, 98
  %v2467 = vpop.permute.xlu0 %2466
  %v2472 = vsel %vm79, %v2452, %v2461
  %v2473 = vsel %vm79, %v2453, %v2463
  %v2474 = vsel %vm79, %v2454, %v2465
  %v2475 = vsel %vm79, %v2455, %v2467
  %2476 = vmatprep.subr.mxu0 0.0
  %2477 = vmatpush1.msra.mxu0 %v2472
  %2478 = vmatprep.subr.mxu0 0.0
  %2479 = vmatpush1.msra.mxu0 %v2473
  %2480 = vmatprep.subr.mxu0 0.0
  %2481 = vmatpush1.msra.mxu0 %v2474
  %2482 = vmatprep.subr.mxu0 0.0
  %2483 = vmatpush1.msra.mxu0 %v2475
  %2484 = vmatprep.subr.mxu0 0.0
  %2485 = vmatpush1.msra.mxu0 0.0
  %2486 = vmatprep.subr.mxu0 0.0
  %2487 = vmatpush1.msra.mxu0 0.0
  %2488 = vmatprep.subr.mxu0 0.0
  %2489 = vmatpush1.msra.mxu0 0.0
  %2490 = vmatprep.subr.mxu0 0.0
  %2491 = vmatpush1.msra.mxu0 0.0
  %2492 = vmatprep.subr.mxu0 0.0
  %2493 = vmatpush1.msra.mxu0 0.0
  %2494 = vmatprep.subr.mxu0 0.0
  %2495 = vmatpush1.msra.mxu0 0.0
  %2496 = vmatprep.subr.mxu0 0.0
  %2497 = vmatpush1.msra.mxu0 0.0
  %2498 = vmatprep.subr.mxu0 0.0
  %2499 = vmatpush1.msra.mxu0 0.0
  %2500 = vmatprep.subr.mxu0 0.0
  %2501 = vmatpush1.msra.mxu0 0.0
  %2502 = vmatprep.subr.mxu0 0.0
  %2503 = vmatpush1.msra.mxu0 0.0
  %2504 = vmatprep.subr.mxu0 0.0
  %2505 = vmatpush1.msra.mxu0 0.0
  %2506 = vmatprep.subr.mxu0 0.0
  %2507 = vmatpush1.msra.mxu0 0.0
  %2508 = vmatprep.subr.mxu0 0.0
  %2509 = vmatpush1.msra.mxu0 0.0
  %2510 = vmatprep.subr.mxu0 0.0
  %2511 = vmatpush1.msra.mxu0 0.0
  %2512 = vmatprep.subr.mxu0 0.0
  %2513 = vmatpush1.msra.mxu0 0.0
  %2514 = vmatprep.subr.mxu0 0.0
  %2515 = vmatpush1.msra.mxu0 0.0
  %2516 = vmatprep.subr.mxu0 0.0
  %2517 = vmatpush1.msra.mxu0 0.0
  %2518 = vmatprep.subr.mxu0 0.0
  %2519 = vmatpush1.msra.mxu0 0.0
  %2520 = vmatprep.subr.mxu0 0.0
  %2521 = vmatpush1.msra.mxu0 0.0
  %2522 = vmatprep.subr.mxu0 0.0
  %2523 = vmatpush1.msra.mxu0 0.0
  %2524 = vmatprep.subr.mxu0 0.0
  %2525 = vmatpush1.msra.mxu0 0.0
  %2526 = vmatprep.subr.mxu0 0.0
  %2527 = vmatpush1.msra.mxu0 0.0
  %2528 = vmatprep.subr.mxu0 0.0
  %2529 = vmatpush1.msra.mxu0 0.0
  %2530 = vmatprep.subr.mxu0 0.0
  %2531 = vmatpush1.msra.mxu0 0.0
  %2532 = vmatprep.subr.mxu0 0.0
  %2533 = vmatpush1.msra.mxu0 0.0
  %2534 = vmatprep.subr.mxu0 0.0
  %2535 = vmatpush1.msra.mxu0 0.0
  %2536 = vmatprep.subr.mxu0 0.0
  %2537 = vmatpush1.msra.mxu0 0.0
  %2538 = vmatprep.subr.mxu0 0.0
  %2539 = vmatpush1.msra.mxu0 0.0
  %2540 = vmatprep.mubr.f32.mxu0 0.0
  %2541 = vmatmul.mubr.f32.gmra.mrb[0].mxu0 %v86
  %v2542 = vpop.f32.mrb[0].mxu0
  %v2543 = vadd.f32 0.0, %v2542
  %v2544 = vpop.f32.mrb[0].mxu0
  %2545 = vmatprep.mubr.f32.mxu0 0.0
  %2546 = vmatmul.mubr.f32.gmra.mrb[0].mxu0 %v89
  %v2547 = vpop.f32.mrb[0].mxu0
  %v2548 = vadd.f32 0.0, %v2547
  %v2549 = vpop.f32.mrb[0].mxu0
  %2550 = vmatprep.mubr.f32.mxu0 0.0
  %2551 = vmatmul.mubr.f32.gmra.mrb[0].mxu0 %v92
  %v2552 = vpop.f32.mrb[0].mxu0
  %v2553 = vadd.f32 0.0, %v2552
  %v2554 = vpop.f32.mrb[0].mxu0
  %2555 = vmatprep.mubr.f32.mxu0 0.0
  %2556 = vmatmul.mubr.f32.gmra.mrb[0].mxu0 %v95
  %v2557 = vpop.f32.mrb[0].mxu0
  %v2558 = vadd.f32 0.0, %v2557
  %v2559 = vpop.f32.mrb[0].mxu0
  %2560 = vdwg.mxu0
  %2561 = vmatprep.subr.mxu0 0.0
  %2562 = vmatpush1.msra.mxu0 %v2543
  %2563 = vmatprep.subr.mxu0 0.0
  %2564 = vmatpush1.msra.mxu0 %v2548
  %2565 = vmatprep.subr.mxu0 0.0
  %2566 = vmatpush1.msra.mxu0 %v2553
  %2567 = vmatprep.subr.mxu0 0.0
  %2568 = vmatpush1.msra.mxu0 %v2558
  %2569 = vmatprep.subr.mxu0 0.0
  %2570 = vmatpush1.msra.mxu0 0.0
  %2571 = vmatprep.subr.mxu0 0.0
  %2572 = vmatpush1.msra.mxu0 0.0
  %2573 = vmatprep.subr.mxu0 0.0
  %2574 = vmatpush1.msra.mxu0 0.0
  %2575 = vmatprep.subr.mxu0 0.0
  %2576 = vmatpush1.msra.mxu0 0.0
  %2577 = vmatprep.subr.mxu0 0.0
  %2578 = vmatpush1.msra.mxu0 0.0
  %2579 = vmatprep.subr.mxu0 0.0
  %2580 = vmatpush1.msra.mxu0 0.0
  %2581 = vmatprep.subr.mxu0 0.0
  %2582 = vmatpush1.msra.mxu0 0.0
  %2583 = vmatprep.subr.mxu0 0.0
  %2584 = vmatpush1.msra.mxu0 0.0
  %2585 = vmatprep.subr.mxu0 0.0
  %2586 = vmatpush1.msra.mxu0 0.0
  %2587 = vmatprep.subr.mxu0 0.0
  %2588 = vmatpush1.msra.mxu0 0.0
  %2589 = vmatprep.subr.mxu0 0.0
  %2590 = vmatpush1.msra.mxu0 0.0
  %2591 = vmatprep.subr.mxu0 0.0
  %2592 = vmatpush1.msra.mxu0 0.0
  %2593 = vmatprep.subr.mxu0 0.0
  %2594 = vmatpush1.msra.mxu0 0.0
  %2595 = vmatprep.subr.mxu0 0.0
  %2596 = vmatpush1.msra.mxu0 0.0
  %2597 = vmatprep.subr.mxu0 0.0
  %2598 = vmatpush1.msra.mxu0 0.0
  %2599 = vmatprep.subr.mxu0 0.0
  %2600 = vmatpush1.msra.mxu0 0.0
  %2601 = vmatprep.subr.mxu0 0.0
  %2602 = vmatpush1.msra.mxu0 0.0
  %2603 = vmatprep.subr.mxu0 0.0
  %2604 = vmatpush1.msra.mxu0 0.0
  %2605 = vmatprep.subr.mxu0 0.0
  %2606 = vmatpush1.msra.mxu0 0.0
  %2607 = vmatprep.subr.mxu0 0.0
  %2608 = vmatpush1.msra.mxu0 0.0
  %2609 = vmatprep.subr.mxu0 0.0
  %2610 = vmatpush1.msra.mxu0 0.0
  %2611 = vmatprep.subr.mxu0 0.0
  %2612 = vmatpush1.msra.mxu0 0.0
  %2613 = vmatprep.subr.mxu0 0.0
  %2614 = vmatpush1.msra.mxu0 0.0
  %2615 = vmatprep.subr.mxu0 0.0
  %2616 = vmatpush1.msra.mxu0 0.0
  %2617 = vmatprep.subr.mxu0 0.0
  %2618 = vmatpush1.msra.mxu0 0.0
  %2619 = vmatprep.subr.mxu0 0.0
  %2620 = vmatpush1.msra.mxu0 0.0
  %2621 = vmatprep.subr.mxu0 0.0
  %2622 = vmatpush1.msra.mxu0 0.0
  %2623 = vmatprep.subr.mxu0 0.0
  %2624 = vmatpush1.msra.mxu0 0.0
  %2625 = vmatprep.mubr.f32.mxu0 0.0
  %2626 = vmatmul.mubr.f32.gmra.mrb[0].mxu0 %v86
  %v2627 = vpop.f32.mrb[0].mxu0
  %v2628 = vadd.f32 0.0, %v2627
  %v2629 = vpop.f32.mrb[0].mxu0
  %2630 = vmatprep.mubr.f32.mxu0 0.0
  %2631 = vmatmul.mubr.f32.gmra.mrb[0].mxu0 %v89
  %v2632 = vpop.f32.mrb[0].mxu0
  %v2633 = vadd.f32 0.0, %v2632
  %v2634 = vpop.f32.mrb[0].mxu0
  %2635 = vmatprep.mubr.f32.mxu0 0.0
  %2636 = vmatmul.mubr.f32.gmra.mrb[0].mxu0 %v92
  %v2637 = vpop.f32.mrb[0].mxu0
  %v2638 = vadd.f32 0.0, %v2637
  %v2639 = vpop.f32.mrb[0].mxu0
  %2640 = vmatprep.mubr.f32.mxu0 0.0
  %2641 = vmatmul.mubr.f32.gmra.mrb[0].mxu0 %v95
  %v2642 = vpop.f32.mrb[0].mxu0
  %v2643 = vadd.f32 0.0, %v2642
  %v2644 = vpop.f32.mrb[0].mxu0
  %2645 = vdwg.mxu0
  %v2646 = vmul.f32 %v2628, 2.0
  %v2647 = vmul.f32 %v2633, 2.0
  %v2648 = vmul.f32 %v2638, 2.0
  %v2649 = vmul.f32 %v2643, 2.0
  %v2650 = vsub.f32 %v2646, %v2472
  %v2651 = vsub.f32 %v2647, %v2473
  %v2652 = vsub.f32 %v2648, %v2474
  %v2653 = vsub.f32 %v2649, %v2475
  %2658 = vrot.lane.b32.xlu0 %v2543, 34
  %v2659 = vpop.permute.xlu0 %2658
  %2660 = vrot.lane.b32.xlu0 %v2548, 34
  %v2661 = vpop.permute.xlu0 %2660
  %2662 = vrot.lane.b32.xlu0 %v2553, 34
  %v2663 = vpop.permute.xlu0 %2662
  %2664 = vrot.lane.b32.xlu0 %v2558, 34
  %v2665 = vpop.permute.xlu0 %2664
  %2674 = vrot.lane.b32.xlu0 %v2650, 68
  %v2675 = vpop.permute.xlu0 %2674
  %2676 = vrot.lane.b32.xlu0 %v2651, 68
  %v2677 = vpop.permute.xlu0 %2676
  %2678 = vrot.lane.b32.xlu0 %v2652, 68
  %v2679 = vpop.permute.xlu0 %2678
  %2680 = vrot.lane.b32.xlu0 %v2653, 68
  %v2681 = vpop.permute.xlu0 %2680
  %v2686 = vsel %vm307, %v2472, %v2659
  %v2687 = vsel %vm307, %v2473, %v2661
  %v2688 = vsel %vm307, %v2474, %v2663
  %v2689 = vsel %vm307, %v2475, %v2665
  %v2690 = vsel %vm312, %v2686, %v2675
  %v2691 = vsel %vm312, %v2687, %v2677
  %v2692 = vsel %vm312, %v2688, %v2679
  %v2693 = vsel %vm312, %v2689, %v2681
  %v2695 = vsel %vm323, %v2690, 0
  %v2698 = vsel %vm323, %v2691, 0
  %v2701 = vsel %vm323, %v2692, 0
  %v2704 = vsel %vm323, %v2693, 0
  %2706 = vmatprep.subr.mxu0 0.0
  %2707 = vmatpush1.msra.mxu0 %v51
  %2708 = vmatprep.subr.mxu0 0.0
  %2709 = vmatpush1.msra.mxu0 %v52
  %2710 = vmatprep.subr.mxu0 0.0
  %2711 = vmatpush1.msra.mxu0 %v53
  %2712 = vmatprep.subr.mxu0 0.0
  %2713 = vmatpush1.msra.mxu0 %v54
  %2714 = vmatprep.subr.mxu0 0.0
  %2715 = vmatpush1.msra.mxu0 %v55
  %2716 = vmatprep.subr.mxu0 0.0
  %2717 = vmatpush1.msra.mxu0 %v56
  %2718 = vmatprep.subr.mxu0 0.0
  %2719 = vmatpush1.msra.mxu0 %v57
  %2720 = vmatprep.subr.mxu0 0.0
  %2721 = vmatpush1.msra.mxu0 %v58
  %2722 = vmatprep.subr.mxu0 0.0
  %2723 = vmatpush1.msra.mxu0 %v59
  %2724 = vmatprep.subr.mxu0 0.0
  %2725 = vmatpush1.msra.mxu0 %v60
  %2726 = vmatprep.subr.mxu0 0.0
  %2727 = vmatpush1.msra.mxu0 %v61
  %2728 = vmatprep.subr.mxu0 0.0
  %2729 = vmatpush1.msra.mxu0 %v62
  %2730 = vmatprep.subr.mxu0 0.0
  %2731 = vmatpush1.msra.mxu0 %v338
  %2732 = vmatprep.subr.mxu0 0.0
  %2733 = vmatpush1.msra.mxu0 0.0
  %2734 = vmatprep.subr.mxu0 0.0
  %2735 = vmatpush1.msra.mxu0 0.0
  %2736 = vmatprep.subr.mxu0 0.0
  %2737 = vmatpush1.msra.mxu0 0.0
  %2738 = vmatprep.subr.mxu0 0.0
  %2739 = vmatpush1.msra.mxu0 0.0
  %2740 = vmatprep.subr.mxu0 0.0
  %2741 = vmatpush1.msra.mxu0 0.0
  %2742 = vmatprep.subr.mxu0 0.0
  %2743 = vmatpush1.msra.mxu0 0.0
  %2744 = vmatprep.subr.mxu0 0.0
  %2745 = vmatpush1.msra.mxu0 0.0
  %2746 = vmatprep.subr.mxu0 0.0
  %2747 = vmatpush1.msra.mxu0 0.0
  %2748 = vmatprep.subr.mxu0 0.0
  %2749 = vmatpush1.msra.mxu0 0.0
  %2750 = vmatprep.subr.mxu0 0.0
  %2751 = vmatpush1.msra.mxu0 0.0
  %2752 = vmatprep.subr.mxu0 0.0
  %2753 = vmatpush1.msra.mxu0 0.0
  %2754 = vmatprep.subr.mxu0 0.0
  %2755 = vmatpush1.msra.mxu0 0.0
  %2756 = vmatprep.subr.mxu0 0.0
  %2757 = vmatpush1.msra.mxu0 0.0
  %2758 = vmatprep.subr.mxu0 0.0
  %2759 = vmatpush1.msra.mxu0 0.0
  %2760 = vmatprep.subr.mxu0 0.0
  %2761 = vmatpush1.msra.mxu0 0.0
  %2762 = vmatprep.subr.mxu0 0.0
  %2763 = vmatpush1.msra.mxu0 0.0
  %2764 = vmatprep.subr.mxu0 0.0
  %2765 = vmatpush1.msra.mxu0 0.0
  %2766 = vmatprep.subr.mxu0 0.0
  %2767 = vmatpush1.msra.mxu0 0.0
  %2768 = vmatprep.subr.mxu0 0.0
  %2769 = vmatpush1.msra.mxu0 0.0
  %2770 = vmatprep.mubr.f32.mxu0 0.0
  %2771 = vmatmul.mubr.f32.gmra.mrb[0].mxu0 %v2695
  %v2772 = vpop.f32.mrb[0].mxu0
  %v2773 = vadd.f32 %v321, %v2772
  %v2774 = vpop.f32.mrb[0].mxu0
  %2775 = vmatprep.mubr.f32.mxu0 0.0
  %2776 = vmatmul.mubr.f32.gmra.mrb[0].mxu0 %v2698
  %v2777 = vpop.f32.mrb[0].mxu0
  %v2778 = vadd.f32 %v321, %v2777
  %v2779 = vpop.f32.mrb[0].mxu0
  %2780 = vmatprep.mubr.f32.mxu0 0.0
  %2781 = vmatmul.mubr.f32.gmra.mrb[0].mxu0 %v2701
  %v2782 = vpop.f32.mrb[0].mxu0
  %v2783 = vadd.f32 %v321, %v2782
  %v2784 = vpop.f32.mrb[0].mxu0
  %2785 = vmatprep.mubr.f32.mxu0 0.0
  %2786 = vmatmul.mubr.f32.gmra.mrb[0].mxu0 %v2704
  %v2787 = vpop.f32.mrb[0].mxu0
  %v2788 = vadd.f32 %v321, %v2787
  %v2789 = vpop.f32.mrb[0].mxu0
  %2790 = vdwg.mxu0
  %v2791 = vxor.u32 %v2773, 2147483648
  %v2792 = vxor.u32 %v2778, 2147483648
  %v2793 = vxor.u32 %v2783, 2147483648
  %v2794 = vxor.u32 %v2788, 2147483648
  %v2795 = vmul.f32 %v2791, 1.442695
  %v2796 = vpow.pop %v2795
  %v2797 = vmul.f32 %v2792, 1.442695
  %v2798 = vpow.pop %v2797
  %v2799 = vmul.f32 %v2793, 1.442695
  %v2800 = vpow.pop %v2799
  %v2801 = vmul.f32 %v2794, 1.442695
  %v2802 = vpow.pop %v2801
  %v2803 = vadd.f32 %v2796, 1.0
  %v2804 = vadd.f32 %v2798, 1.0
  %v2805 = vadd.f32 %v2800, 1.0
  %v2806 = vadd.f32 %v2802, 1.0
  %v2807 = vrcp.pop %v2803
  %v2808 = vmul.f32 1.0, %v2807
  %v2809 = vrcp.pop %v2804
  %v2810 = vmul.f32 1.0, %v2809
  %v2811 = vrcp.pop %v2805
  %v2812 = vmul.f32 1.0, %v2811
  %v2813 = vrcp.pop %v2806
  %v2814 = vmul.f32 1.0, %v2813
  %2815 = vrot.lane.b32.xlu0 %v2447, 96
  %v2816 = vpop.permute.xlu0 %2815
  %2817 = vrot.lane.b32.xlu0 %v2448, 96
  %v2818 = vpop.permute.xlu0 %2817
  %2819 = vrot.lane.b32.xlu0 %v2449, 96
  %v2820 = vpop.permute.xlu0 %2819
  %2821 = vrot.lane.b32.xlu0 %v2450, 96
  %v2822 = vpop.permute.xlu0 %2821
  %v2827 = vmul.f32 %v2808, %v2816
  %v2828 = vmul.f32 %v2810, %v2818
  %v2829 = vmul.f32 %v2812, %v2820
  %v2830 = vmul.f32 %v2814, %v2822
  %2831 = vmatprep.subr.mxu0 0.0
  %2832 = vmatpush1.msra.mxu0 %v2827
  %2833 = vmatprep.subr.mxu0 0.0
  %2834 = vmatpush1.msra.mxu0 %v2828
  %2835 = vmatprep.subr.mxu0 0.0
  %2836 = vmatpush1.msra.mxu0 %v2829
  %2837 = vmatprep.subr.mxu0 0.0
  %2838 = vmatpush1.msra.mxu0 %v2830
  %2839 = vmatprep.subr.mxu0 0.0
  %2840 = vmatpush1.msra.mxu0 0.0
  %2841 = vmatprep.subr.mxu0 0.0
  %2842 = vmatpush1.msra.mxu0 0.0
  %2843 = vmatprep.subr.mxu0 0.0
  %2844 = vmatpush1.msra.mxu0 0.0
  %2845 = vmatprep.subr.mxu0 0.0
  %2846 = vmatpush1.msra.mxu0 0.0
  %2847 = vmatprep.subr.mxu0 0.0
  %2848 = vmatpush1.msra.mxu0 0.0
  %2849 = vmatprep.subr.mxu0 0.0
  %2850 = vmatpush1.msra.mxu0 0.0
  %2851 = vmatprep.subr.mxu0 0.0
  %2852 = vmatpush1.msra.mxu0 0.0
  %2853 = vmatprep.subr.mxu0 0.0
  %2854 = vmatpush1.msra.mxu0 0.0
  %2855 = vmatprep.subr.mxu0 0.0
  %2856 = vmatpush1.msra.mxu0 0.0
  %2857 = vmatprep.subr.mxu0 0.0
  %2858 = vmatpush1.msra.mxu0 0.0
  %2859 = vmatprep.subr.mxu0 0.0
  %2860 = vmatpush1.msra.mxu0 0.0
  %2861 = vmatprep.subr.mxu0 0.0
  %2862 = vmatpush1.msra.mxu0 0.0
  %2863 = vmatprep.subr.mxu0 0.0
  %2864 = vmatpush1.msra.mxu0 0.0
  %2865 = vmatprep.subr.mxu0 0.0
  %2866 = vmatpush1.msra.mxu0 0.0
  %2867 = vmatprep.subr.mxu0 0.0
  %2868 = vmatpush1.msra.mxu0 0.0
  %2869 = vmatprep.subr.mxu0 0.0
  %2870 = vmatpush1.msra.mxu0 0.0
  %2871 = vmatprep.subr.mxu0 0.0
  %2872 = vmatpush1.msra.mxu0 0.0
  %2873 = vmatprep.subr.mxu0 0.0
  %2874 = vmatpush1.msra.mxu0 0.0
  %2875 = vmatprep.subr.mxu0 0.0
  %2876 = vmatpush1.msra.mxu0 0.0
  %2877 = vmatprep.subr.mxu0 0.0
  %2878 = vmatpush1.msra.mxu0 0.0
  %2879 = vmatprep.subr.mxu0 0.0
  %2880 = vmatpush1.msra.mxu0 0.0
  %2881 = vmatprep.subr.mxu0 0.0
  %2882 = vmatpush1.msra.mxu0 0.0
  %2883 = vmatprep.subr.mxu0 0.0
  %2884 = vmatpush1.msra.mxu0 0.0
  %2885 = vmatprep.subr.mxu0 0.0
  %2886 = vmatpush1.msra.mxu0 0.0
  %2887 = vmatprep.subr.mxu0 0.0
  %2888 = vmatpush1.msra.mxu0 0.0
  %2889 = vmatprep.subr.mxu0 0.0
  %2890 = vmatpush1.msra.mxu0 0.0
  %2891 = vmatprep.subr.mxu0 0.0
  %2892 = vmatpush1.msra.mxu0 0.0
  %2893 = vmatprep.subr.mxu0 0.0
  %2894 = vmatpush1.msra.mxu0 0.0
  %2895 = vmatprep.mubr.f32.mxu0 0.0
  %2896 = vmatmul.mubr.f32.gmra.mrb[0].mxu0 %v86
  %v2897 = vpop.f32.mrb[0].mxu0
  %v2898 = vadd.f32 0.0, %v2897
  %v2899 = vpop.f32.mrb[0].mxu0
  %2900 = vmatprep.mubr.f32.mxu0 0.0
  %2901 = vmatmul.mubr.f32.gmra.mrb[0].mxu0 %v89
  %v2902 = vpop.f32.mrb[0].mxu0
  %v2903 = vadd.f32 0.0, %v2902
  %v2904 = vpop.f32.mrb[0].mxu0
  %2905 = vmatprep.mubr.f32.mxu0 0.0
  %2906 = vmatmul.mubr.f32.gmra.mrb[0].mxu0 %v92
  %v2907 = vpop.f32.mrb[0].mxu0
  %v2908 = vadd.f32 0.0, %v2907
  %v2909 = vpop.f32.mrb[0].mxu0
  %2910 = vmatprep.mubr.f32.mxu0 0.0
  %2911 = vmatmul.mubr.f32.gmra.mrb[0].mxu0 %v95
  %v2912 = vpop.f32.mrb[0].mxu0
  %v2913 = vadd.f32 0.0, %v2912
  %v2914 = vpop.f32.mrb[0].mxu0
  %2915 = vdwg.mxu0
  %2916 = vmatprep.subr.mxu0 0.0
  %2917 = vmatpush1.msra.mxu0 %v2898
  %2918 = vmatprep.subr.mxu0 0.0
  %2919 = vmatpush1.msra.mxu0 %v2903
  %2920 = vmatprep.subr.mxu0 0.0
  %2921 = vmatpush1.msra.mxu0 %v2908
  %2922 = vmatprep.subr.mxu0 0.0
  %2923 = vmatpush1.msra.mxu0 %v2913
  %2924 = vmatprep.subr.mxu0 0.0
  %2925 = vmatpush1.msra.mxu0 0.0
  %2926 = vmatprep.subr.mxu0 0.0
  %2927 = vmatpush1.msra.mxu0 0.0
  %2928 = vmatprep.subr.mxu0 0.0
  %2929 = vmatpush1.msra.mxu0 0.0
  %2930 = vmatprep.subr.mxu0 0.0
  %2931 = vmatpush1.msra.mxu0 0.0
  %2932 = vmatprep.subr.mxu0 0.0
  %2933 = vmatpush1.msra.mxu0 0.0
  %2934 = vmatprep.subr.mxu0 0.0
  %2935 = vmatpush1.msra.mxu0 0.0
  %2936 = vmatprep.subr.mxu0 0.0
  %2937 = vmatpush1.msra.mxu0 0.0
  %2938 = vmatprep.subr.mxu0 0.0
  %2939 = vmatpush1.msra.mxu0 0.0
  %2940 = vmatprep.subr.mxu0 0.0
  %2941 = vmatpush1.msra.mxu0 0.0
  %2942 = vmatprep.subr.mxu0 0.0
  %2943 = vmatpush1.msra.mxu0 0.0
  %2944 = vmatprep.subr.mxu0 0.0
  %2945 = vmatpush1.msra.mxu0 0.0
  %2946 = vmatprep.subr.mxu0 0.0
  %2947 = vmatpush1.msra.mxu0 0.0
  %2948 = vmatprep.subr.mxu0 0.0
  %2949 = vmatpush1.msra.mxu0 0.0
  %2950 = vmatprep.subr.mxu0 0.0
  %2951 = vmatpush1.msra.mxu0 0.0
  %2952 = vmatprep.subr.mxu0 0.0
  %2953 = vmatpush1.msra.mxu0 0.0
  %2954 = vmatprep.subr.mxu0 0.0
  %2955 = vmatpush1.msra.mxu0 0.0
  %2956 = vmatprep.subr.mxu0 0.0
  %2957 = vmatpush1.msra.mxu0 0.0
  %2958 = vmatprep.subr.mxu0 0.0
  %2959 = vmatpush1.msra.mxu0 0.0
  %2960 = vmatprep.subr.mxu0 0.0
  %2961 = vmatpush1.msra.mxu0 0.0
  %2962 = vmatprep.subr.mxu0 0.0
  %2963 = vmatpush1.msra.mxu0 0.0
  %2964 = vmatprep.subr.mxu0 0.0
  %2965 = vmatpush1.msra.mxu0 0.0
  %2966 = vmatprep.subr.mxu0 0.0
  %2967 = vmatpush1.msra.mxu0 0.0
  %2968 = vmatprep.subr.mxu0 0.0
  %2969 = vmatpush1.msra.mxu0 0.0
  %2970 = vmatprep.subr.mxu0 0.0
  %2971 = vmatpush1.msra.mxu0 0.0
  %2972 = vmatprep.subr.mxu0 0.0
  %2973 = vmatpush1.msra.mxu0 0.0
  %2974 = vmatprep.subr.mxu0 0.0
  %2975 = vmatpush1.msra.mxu0 0.0
  %2976 = vmatprep.subr.mxu0 0.0
  %2977 = vmatpush1.msra.mxu0 0.0
  %2978 = vmatprep.subr.mxu0 0.0
  %2979 = vmatpush1.msra.mxu0 0.0
  %2980 = vmatprep.mubr.f32.mxu0 0.0
  %2981 = vmatmul.mubr.f32.gmra.mrb[0].mxu0 %v86
  %v2982 = vpop.f32.mrb[0].mxu0
  %v2983 = vadd.f32 0.0, %v2982
  %v2984 = vpop.f32.mrb[0].mxu0
  %2985 = vmatprep.mubr.f32.mxu0 0.0
  %2986 = vmatmul.mubr.f32.gmra.mrb[0].mxu0 %v89
  %v2987 = vpop.f32.mrb[0].mxu0
  %v2988 = vadd.f32 0.0, %v2987
  %v2989 = vpop.f32.mrb[0].mxu0
  %2990 = vmatprep.mubr.f32.mxu0 0.0
  %2991 = vmatmul.mubr.f32.gmra.mrb[0].mxu0 %v92
  %v2992 = vpop.f32.mrb[0].mxu0
  %v2993 = vadd.f32 0.0, %v2992
  %v2994 = vpop.f32.mrb[0].mxu0
  %2995 = vmatprep.mubr.f32.mxu0 0.0
  %2996 = vmatmul.mubr.f32.gmra.mrb[0].mxu0 %v95
  %v2997 = vpop.f32.mrb[0].mxu0
  %v2998 = vadd.f32 0.0, %v2997
  %v2999 = vpop.f32.mrb[0].mxu0
  %3000 = vdwg.mxu0
  %v3001 = vmul.f32 %v2983, 2.0
  %v3002 = vmul.f32 %v2988, 2.0
  %v3003 = vmul.f32 %v2993, 2.0
  %v3004 = vmul.f32 %v2998, 2.0
  %v3005 = vsub.f32 %v3001, %v2827
  %v3006 = vsub.f32 %v3002, %v2828
  %v3007 = vsub.f32 %v3003, %v2829
  %v3008 = vsub.f32 %v3004, %v2830
  %3013 = vrot.lane.b32.xlu0 %v2827, 2
  %v3014 = vpop.permute.xlu0 %3013
  %3015 = vrot.lane.b32.xlu0 %v2828, 2
  %v3016 = vpop.permute.xlu0 %3015
  %3017 = vrot.lane.b32.xlu0 %v2829, 2
  %v3018 = vpop.permute.xlu0 %3017
  %3019 = vrot.lane.b32.xlu0 %v2830, 2
  %v3020 = vpop.permute.xlu0 %3019
  %v3025 = vsel %vm79, %v2472, %v3014
  %v3026 = vsel %vm79, %v2473, %v3016
  %v3027 = vsel %vm79, %v2474, %v3018
  %v3028 = vsel %vm79, %v2475, %v3020
  %3033 = vrot.lane.b32.xlu0 %v2898, 2
  %v3034 = vpop.permute.xlu0 %3033
  %3035 = vrot.lane.b32.xlu0 %v2903, 2
  %v3036 = vpop.permute.xlu0 %3035
  %3037 = vrot.lane.b32.xlu0 %v2908, 2
  %v3038 = vpop.permute.xlu0 %3037
  %3039 = vrot.lane.b32.xlu0 %v2913, 2
  %v3040 = vpop.permute.xlu0 %3039
  %v3045 = vsel %vm79, %v2543, %v3034
  %v3046 = vsel %vm79, %v2548, %v3036
  %v3047 = vsel %vm79, %v2553, %v3038
  %v3048 = vsel %vm79, %v2558, %v3040
  %3053 = vrot.lane.b32.xlu0 %v3005, 2
  %v3054 = vpop.permute.xlu0 %3053
  %3055 = vrot.lane.b32.xlu0 %v3006, 2
  %v3056 = vpop.permute.xlu0 %3055
  %3057 = vrot.lane.b32.xlu0 %v3007, 2
  %v3058 = vpop.permute.xlu0 %3057
  %3059 = vrot.lane.b32.xlu0 %v3008, 2
  %v3060 = vpop.permute.xlu0 %3059
  %v3065 = vsel %vm79, %v2650, %v3054
  %v3066 = vsel %vm79, %v2651, %v3056
  %v3067 = vsel %vm79, %v2652, %v3058
  %v3068 = vsel %vm79, %v2653, %v3060
  %3073 = vrot.lane.b32.xlu0 %v3045, 34
  %v3074 = vpop.permute.xlu0 %3073
  %3075 = vrot.lane.b32.xlu0 %v3046, 34
  %v3076 = vpop.permute.xlu0 %3075
  %3077 = vrot.lane.b32.xlu0 %v3047, 34
  %v3078 = vpop.permute.xlu0 %3077
  %3079 = vrot.lane.b32.xlu0 %v3048, 34
  %v3080 = vpop.permute.xlu0 %3079
  %3089 = vrot.lane.b32.xlu0 %v3065, 68
  %v3090 = vpop.permute.xlu0 %3089
  %3091 = vrot.lane.b32.xlu0 %v3066, 68
  %v3092 = vpop.permute.xlu0 %3091
  %3093 = vrot.lane.b32.xlu0 %v3067, 68
  %v3094 = vpop.permute.xlu0 %3093
  %3095 = vrot.lane.b32.xlu0 %v3068, 68
  %v3096 = vpop.permute.xlu0 %3095
  %v3101 = vsel %vm307, %v3025, %v3074
  %v3102 = vsel %vm307, %v3026, %v3076
  %v3103 = vsel %vm307, %v3027, %v3078
  %v3104 = vsel %vm307, %v3028, %v3080
  %v3105 = vsel %vm312, %v3101, %v3090
  %v3106 = vsel %vm312, %v3102, %v3092
  %v3107 = vsel %vm312, %v3103, %v3094
  %v3108 = vsel %vm312, %v3104, %v3096
  %v3110 = vsel %vm323, %v3105, 0
  %v3113 = vsel %vm323, %v3106, 0
  %v3116 = vsel %vm323, %v3107, 0
  %v3119 = vsel %vm323, %v3108, 0
  %3121 = vmatprep.subr.mxu0 0.0
  %3122 = vmatpush1.msra.mxu0 %v65
  %3123 = vmatprep.subr.mxu0 0.0
  %3124 = vmatpush1.msra.mxu0 %v66
  %3125 = vmatprep.subr.mxu0 0.0
  %3126 = vmatpush1.msra.mxu0 %v67
  %3127 = vmatprep.subr.mxu0 0.0
  %3128 = vmatpush1.msra.mxu0 %v68
  %3129 = vmatprep.subr.mxu0 0.0
  %3130 = vmatpush1.msra.mxu0 %v69
  %3131 = vmatprep.subr.mxu0 0.0
  %3132 = vmatpush1.msra.mxu0 %v70
  %3133 = vmatprep.subr.mxu0 0.0
  %3134 = vmatpush1.msra.mxu0 %v71
  %3135 = vmatprep.subr.mxu0 0.0
  %3136 = vmatpush1.msra.mxu0 %v72
  %3137 = vmatprep.subr.mxu0 0.0
  %3138 = vmatpush1.msra.mxu0 %v73
  %3139 = vmatprep.subr.mxu0 0.0
  %3140 = vmatpush1.msra.mxu0 %v74
  %3141 = vmatprep.subr.mxu0 0.0
  %3142 = vmatpush1.msra.mxu0 %v75
  %3143 = vmatprep.subr.mxu0 0.0
  %3144 = vmatpush1.msra.mxu0 %v76
  %3145 = vmatprep.subr.mxu0 0.0
  %3146 = vmatpush1.msra.mxu0 %v750
  %3147 = vmatprep.subr.mxu0 0.0
  %3148 = vmatpush1.msra.mxu0 0.0
  %3149 = vmatprep.subr.mxu0 0.0
  %3150 = vmatpush1.msra.mxu0 0.0
  %3151 = vmatprep.subr.mxu0 0.0
  %3152 = vmatpush1.msra.mxu0 0.0
  %3153 = vmatprep.subr.mxu0 0.0
  %3154 = vmatpush1.msra.mxu0 0.0
  %3155 = vmatprep.subr.mxu0 0.0
  %3156 = vmatpush1.msra.mxu0 0.0
  %3157 = vmatprep.subr.mxu0 0.0
  %3158 = vmatpush1.msra.mxu0 0.0
  %3159 = vmatprep.subr.mxu0 0.0
  %3160 = vmatpush1.msra.mxu0 0.0
  %3161 = vmatprep.subr.mxu0 0.0
  %3162 = vmatpush1.msra.mxu0 0.0
  %3163 = vmatprep.subr.mxu0 0.0
  %3164 = vmatpush1.msra.mxu0 0.0
  %3165 = vmatprep.subr.mxu0 0.0
  %3166 = vmatpush1.msra.mxu0 0.0
  %3167 = vmatprep.subr.mxu0 0.0
  %3168 = vmatpush1.msra.mxu0 0.0
  %3169 = vmatprep.subr.mxu0 0.0
  %3170 = vmatpush1.msra.mxu0 0.0
  %3171 = vmatprep.subr.mxu0 0.0
  %3172 = vmatpush1.msra.mxu0 0.0
  %3173 = vmatprep.subr.mxu0 0.0
  %3174 = vmatpush1.msra.mxu0 0.0
  %3175 = vmatprep.subr.mxu0 0.0
  %3176 = vmatpush1.msra.mxu0 0.0
  %3177 = vmatprep.subr.mxu0 0.0
  %3178 = vmatpush1.msra.mxu0 0.0
  %3179 = vmatprep.subr.mxu0 0.0
  %3180 = vmatpush1.msra.mxu0 0.0
  %3181 = vmatprep.subr.mxu0 0.0
  %3182 = vmatpush1.msra.mxu0 0.0
  %3183 = vmatprep.subr.mxu0 0.0
  %3184 = vmatpush1.msra.mxu0 0.0
  %3185 = vmatprep.mubr.f32.mxu0 0.0
  %3186 = vmatmul.mubr.f32.gmra.mrb[0].mxu0 %v3110
  %v3187 = vpop.f32.mrb[0].mxu0
  %v3188 = vadd.f32 %v735, %v3187
  %v3189 = vpop.f32.mrb[0].mxu0
  %3190 = vmatprep.mubr.f32.mxu0 0.0
  %3191 = vmatmul.mubr.f32.gmra.mrb[0].mxu0 %v3113
  %v3192 = vpop.f32.mrb[0].mxu0
  %v3193 = vadd.f32 %v735, %v3192
  %v3194 = vpop.f32.mrb[0].mxu0
  %3195 = vmatprep.mubr.f32.mxu0 0.0
  %3196 = vmatmul.mubr.f32.gmra.mrb[0].mxu0 %v3116
  %v3197 = vpop.f32.mrb[0].mxu0
  %v3198 = vadd.f32 %v735, %v3197
  %v3199 = vpop.f32.mrb[0].mxu0
  %3200 = vmatprep.mubr.f32.mxu0 0.0
  %3201 = vmatmul.mubr.f32.gmra.mrb[0].mxu0 %v3119
  %v3202 = vpop.f32.mrb[0].mxu0
  %v3203 = vadd.f32 %v735, %v3202
  %v3204 = vpop.f32.mrb[0].mxu0
  %3205 = vdwg.mxu0
  %v3206 = vtanh.pop %v3188
  %v3207 = vtanh.pop %v3193
  %v3208 = vtanh.pop %v3198
  %v3209 = vtanh.pop %v3203
  %v3210 = vmul.f32 %v2808, %v2447
  %v3211 = vmul.f32 %v2810, %v2448
  %v3212 = vmul.f32 %v2812, %v2449
  %v3213 = vmul.f32 %v2814, %v2450
  %v3214 = vsub.f32 1.0, %v2808
  %v3215 = vsub.f32 1.0, %v2810
  %v3216 = vsub.f32 1.0, %v2812
  %v3217 = vsub.f32 1.0, %v2814
  %3222 = vrot.lane.b32.xlu0 %v3206, 32
  %v3223 = vpop.permute.xlu0 %3222
  %3224 = vrot.lane.b32.xlu0 %v3207, 32
  %v3225 = vpop.permute.xlu0 %3224
  %3226 = vrot.lane.b32.xlu0 %v3208, 32
  %v3227 = vpop.permute.xlu0 %3226
  %3228 = vrot.lane.b32.xlu0 %v3209, 32
  %v3229 = vpop.permute.xlu0 %3228
  %v3234 = vmul.f32 %v3214, %v3223
  %v3235 = vmul.f32 %v3215, %v3225
  %v3236 = vmul.f32 %v3216, %v3227
  %v3237 = vmul.f32 %v3217, %v3229
  %v3238 = vadd.f32 %v3210, %v3234
  %v3239 = vadd.f32 %v3211, %v3235
  %v3240 = vadd.f32 %v3212, %v3236
  %v3241 = vadd.f32 %v3213, %v3237
  %s3242 = scalar_lea.vmem %s0, 128
  %v3243 = vld [vmem:[%s3242] sm:$0xff]
  %v3244 = vld [vmem:[%s3242 + $0x8] sm:$0xff]
  %v3245 = vld [vmem:[%s3242 + $0x10] sm:$0xff]
  %v3246 = vld [vmem:[%s3242 + $0x18] sm:$0xff]
  %3251 = vrot.lane.b32.xlu0 %v3238, 98
  %v3252 = vpop.permute.xlu0 %3251
  %3253 = vrot.lane.b32.xlu0 %v3239, 98
  %v3254 = vpop.permute.xlu0 %3253
  %3255 = vrot.lane.b32.xlu0 %v3240, 98
  %v3256 = vpop.permute.xlu0 %3255
  %3257 = vrot.lane.b32.xlu0 %v3241, 98
  %v3258 = vpop.permute.xlu0 %3257
  %v3263 = vsel %vm79, %v3243, %v3252
  %v3264 = vsel %vm79, %v3244, %v3254
  %v3265 = vsel %vm79, %v3245, %v3256
  %v3266 = vsel %vm79, %v3246, %v3258
  %3267 = vmatprep.subr.mxu0 0.0
  %3268 = vmatpush1.msra.mxu0 %v3263
  %3269 = vmatprep.subr.mxu0 0.0
  %3270 = vmatpush1.msra.mxu0 %v3264
  %3271 = vmatprep.subr.mxu0 0.0
  %3272 = vmatpush1.msra.mxu0 %v3265
  %3273 = vmatprep.subr.mxu0 0.0
  %3274 = vmatpush1.msra.mxu0 %v3266
  %3275 = vmatprep.subr.mxu0 0.0
  %3276 = vmatpush1.msra.mxu0 0.0
  %3277 = vmatprep.subr.mxu0 0.0
  %3278 = vmatpush1.msra.mxu0 0.0
  %3279 = vmatprep.subr.mxu0 0.0
  %3280 = vmatpush1.msra.mxu0 0.0
  %3281 = vmatprep.subr.mxu0 0.0
  %3282 = vmatpush1.msra.mxu0 0.0
  %3283 = vmatprep.subr.mxu0 0.0
  %3284 = vmatpush1.msra.mxu0 0.0
  %3285 = vmatprep.subr.mxu0 0.0
  %3286 = vmatpush1.msra.mxu0 0.0
  %3287 = vmatprep.subr.mxu0 0.0
  %3288 = vmatpush1.msra.mxu0 0.0
  %3289 = vmatprep.subr.mxu0 0.0
  %3290 = vmatpush1.msra.mxu0 0.0
  %3291 = vmatprep.subr.mxu0 0.0
  %3292 = vmatpush1.msra.mxu0 0.0
  %3293 = vmatprep.subr.mxu0 0.0
  %3294 = vmatpush1.msra.mxu0 0.0
  %3295 = vmatprep.subr.mxu0 0.0
  %3296 = vmatpush1.msra.mxu0 0.0
  %3297 = vmatprep.subr.mxu0 0.0
  %3298 = vmatpush1.msra.mxu0 0.0
  %3299 = vmatprep.subr.mxu0 0.0
  %3300 = vmatpush1.msra.mxu0 0.0
  %3301 = vmatprep.subr.mxu0 0.0
  %3302 = vmatpush1.msra.mxu0 0.0
  %3303 = vmatprep.subr.mxu0 0.0
  %3304 = vmatpush1.msra.mxu0 0.0
  %3305 = vmatprep.subr.mxu0 0.0
  %3306 = vmatpush1.msra.mxu0 0.0
  %3307 = vmatprep.subr.mxu0 0.0
  %3308 = vmatpush1.msra.mxu0 0.0
  %3309 = vmatprep.subr.mxu0 0.0
  %3310 = vmatpush1.msra.mxu0 0.0
  %3311 = vmatprep.subr.mxu0 0.0
  %3312 = vmatpush1.msra.mxu0 0.0
  %3313 = vmatprep.subr.mxu0 0.0
  %3314 = vmatpush1.msra.mxu0 0.0
  %3315 = vmatprep.subr.mxu0 0.0
  %3316 = vmatpush1.msra.mxu0 0.0
  %3317 = vmatprep.subr.mxu0 0.0
  %3318 = vmatpush1.msra.mxu0 0.0
  %3319 = vmatprep.subr.mxu0 0.0
  %3320 = vmatpush1.msra.mxu0 0.0
  %3321 = vmatprep.subr.mxu0 0.0
  %3322 = vmatpush1.msra.mxu0 0.0
  %3323 = vmatprep.subr.mxu0 0.0
  %3324 = vmatpush1.msra.mxu0 0.0
  %3325 = vmatprep.subr.mxu0 0.0
  %3326 = vmatpush1.msra.mxu0 0.0
  %3327 = vmatprep.subr.mxu0 0.0
  %3328 = vmatpush1.msra.mxu0 0.0
  %3329 = vmatprep.subr.mxu0 0.0
  %3330 = vmatpush1.msra.mxu0 0.0
  %3331 = vmatprep.mubr.f32.mxu0 0.0
  %3332 = vmatmul.mubr.f32.gmra.mrb[0].mxu0 %v86
  %v3333 = vpop.f32.mrb[0].mxu0
  %v3334 = vadd.f32 0.0, %v3333
  %v3335 = vpop.f32.mrb[0].mxu0
  %3336 = vmatprep.mubr.f32.mxu0 0.0
  %3337 = vmatmul.mubr.f32.gmra.mrb[0].mxu0 %v89
  %v3338 = vpop.f32.mrb[0].mxu0
  %v3339 = vadd.f32 0.0, %v3338
  %v3340 = vpop.f32.mrb[0].mxu0
  %3341 = vmatprep.mubr.f32.mxu0 0.0
  %3342 = vmatmul.mubr.f32.gmra.mrb[0].mxu0 %v92
  %v3343 = vpop.f32.mrb[0].mxu0
  %v3344 = vadd.f32 0.0, %v3343
  %v3345 = vpop.f32.mrb[0].mxu0
  %3346 = vmatprep.mubr.f32.mxu0 0.0
  %3347 = vmatmul.mubr.f32.gmra.mrb[0].mxu0 %v95
  %v3348 = vpop.f32.mrb[0].mxu0
  %v3349 = vadd.f32 0.0, %v3348
  %v3350 = vpop.f32.mrb[0].mxu0
  %3351 = vdwg.mxu0
  %3352 = vmatprep.subr.mxu0 0.0
  %3353 = vmatpush1.msra.mxu0 %v3334
  %3354 = vmatprep.subr.mxu0 0.0
  %3355 = vmatpush1.msra.mxu0 %v3339
  %3356 = vmatprep.subr.mxu0 0.0
  %3357 = vmatpush1.msra.mxu0 %v3344
  %3358 = vmatprep.subr.mxu0 0.0
  %3359 = vmatpush1.msra.mxu0 %v3349
  %3360 = vmatprep.subr.mxu0 0.0
  %3361 = vmatpush1.msra.mxu0 0.0
  %3362 = vmatprep.subr.mxu0 0.0
  %3363 = vmatpush1.msra.mxu0 0.0
  %3364 = vmatprep.subr.mxu0 0.0
  %3365 = vmatpush1.msra.mxu0 0.0
  %3366 = vmatprep.subr.mxu0 0.0
  %3367 = vmatpush1.msra.mxu0 0.0
  %3368 = vmatprep.subr.mxu0 0.0
  %3369 = vmatpush1.msra.mxu0 0.0
  %3370 = vmatprep.subr.mxu0 0.0
  %3371 = vmatpush1.msra.mxu0 0.0
  %3372 = vmatprep.subr.mxu0 0.0
  %3373 = vmatpush1.msra.mxu0 0.0
  %3374 = vmatprep.subr.mxu0 0.0
  %3375 = vmatpush1.msra.mxu0 0.0
  %3376 = vmatprep.subr.mxu0 0.0
  %3377 = vmatpush1.msra.mxu0 0.0
  %3378 = vmatprep.subr.mxu0 0.0
  %3379 = vmatpush1.msra.mxu0 0.0
  %3380 = vmatprep.subr.mxu0 0.0
  %3381 = vmatpush1.msra.mxu0 0.0
  %3382 = vmatprep.subr.mxu0 0.0
  %3383 = vmatpush1.msra.mxu0 0.0
  %3384 = vmatprep.subr.mxu0 0.0
  %3385 = vmatpush1.msra.mxu0 0.0
  %3386 = vmatprep.subr.mxu0 0.0
  %3387 = vmatpush1.msra.mxu0 0.0
  %3388 = vmatprep.subr.mxu0 0.0
  %3389 = vmatpush1.msra.mxu0 0.0
  %3390 = vmatprep.subr.mxu0 0.0
  %3391 = vmatpush1.msra.mxu0 0.0
  %3392 = vmatprep.subr.mxu0 0.0
  %3393 = vmatpush1.msra.mxu0 0.0
  %3394 = vmatprep.subr.mxu0 0.0
  %3395 = vmatpush1.msra.mxu0 0.0
  %3396 = vmatprep.subr.mxu0 0.0
  %3397 = vmatpush1.msra.mxu0 0.0
  %3398 = vmatprep.subr.mxu0 0.0
  %3399 = vmatpush1.msra.mxu0 0.0
  %3400 = vmatprep.subr.mxu0 0.0
  %3401 = vmatpush1.msra.mxu0 0.0
  %3402 = vmatprep.subr.mxu0 0.0
  %3403 = vmatpush1.msra.mxu0 0.0
  %3404 = vmatprep.subr.mxu0 0.0
  %3405 = vmatpush1.msra.mxu0 0.0
  %3406 = vmatprep.subr.mxu0 0.0
  %3407 = vmatpush1.msra.mxu0 0.0
  %3408 = vmatprep.subr.mxu0 0.0
  %3409 = vmatpush1.msra.mxu0 0.0
  %3410 = vmatprep.subr.mxu0 0.0
  %3411 = vmatpush1.msra.mxu0 0.0
  %3412 = vmatprep.subr.mxu0 0.0
  %3413 = vmatpush1.msra.mxu0 0.0
  %3414 = vmatprep.subr.mxu0 0.0
  %3415 = vmatpush1.msra.mxu0 0.0
  %3416 = vmatprep.mubr.f32.mxu0 0.0
  %3417 = vmatmul.mubr.f32.gmra.mrb[0].mxu0 %v86
  %v3418 = vpop.f32.mrb[0].mxu0
  %v3419 = vadd.f32 0.0, %v3418
  %v3420 = vpop.f32.mrb[0].mxu0
  %3421 = vmatprep.mubr.f32.mxu0 0.0
  %3422 = vmatmul.mubr.f32.gmra.mrb[0].mxu0 %v89
  %v3423 = vpop.f32.mrb[0].mxu0
  %v3424 = vadd.f32 0.0, %v3423
  %v3425 = vpop.f32.mrb[0].mxu0
  %3426 = vmatprep.mubr.f32.mxu0 0.0
  %3427 = vmatmul.mubr.f32.gmra.mrb[0].mxu0 %v92
  %v3428 = vpop.f32.mrb[0].mxu0
  %v3429 = vadd.f32 0.0, %v3428
  %v3430 = vpop.f32.mrb[0].mxu0
  %3431 = vmatprep.mubr.f32.mxu0 0.0
  %3432 = vmatmul.mubr.f32.gmra.mrb[0].mxu0 %v95
  %v3433 = vpop.f32.mrb[0].mxu0
  %v3434 = vadd.f32 0.0, %v3433
  %v3435 = vpop.f32.mrb[0].mxu0
  %3436 = vdwg.mxu0
  %v3437 = vmul.f32 %v3419, 2.0
  %v3438 = vmul.f32 %v3424, 2.0
  %v3439 = vmul.f32 %v3429, 2.0
  %v3440 = vmul.f32 %v3434, 2.0
  %v3441 = vsub.f32 %v3437, %v3263
  %v3442 = vsub.f32 %v3438, %v3264
  %v3443 = vsub.f32 %v3439, %v3265
  %v3444 = vsub.f32 %v3440, %v3266
  %3449 = vrot.lane.b32.xlu0 %v3334, 34
  %v3450 = vpop.permute.xlu0 %3449
  %3451 = vrot.lane.b32.xlu0 %v3339, 34
  %v3452 = vpop.permute.xlu0 %3451
  %3453 = vrot.lane.b32.xlu0 %v3344, 34
  %v3454 = vpop.permute.xlu0 %3453
  %3455 = vrot.lane.b32.xlu0 %v3349, 34
  %v3456 = vpop.permute.xlu0 %3455
  %3465 = vrot.lane.b32.xlu0 %v3441, 68
  %v3466 = vpop.permute.xlu0 %3465
  %3467 = vrot.lane.b32.xlu0 %v3442, 68
  %v3468 = vpop.permute.xlu0 %3467
  %3469 = vrot.lane.b32.xlu0 %v3443, 68
  %v3470 = vpop.permute.xlu0 %3469
  %3471 = vrot.lane.b32.xlu0 %v3444, 68
  %v3472 = vpop.permute.xlu0 %3471
  %v3477 = vsel %vm307, %v3263, %v3450
  %v3478 = vsel %vm307, %v3264, %v3452
  %v3479 = vsel %vm307, %v3265, %v3454
  %v3480 = vsel %vm307, %v3266, %v3456
  %v3481 = vsel %vm312, %v3477, %v3466
  %v3482 = vsel %vm312, %v3478, %v3468
  %v3483 = vsel %vm312, %v3479, %v3470
  %v3484 = vsel %vm312, %v3480, %v3472
  %v3486 = vsel %vm323, %v3481, 0
  %v3489 = vsel %vm323, %v3482, 0
  %v3492 = vsel %vm323, %v3483, 0
  %v3495 = vsel %vm323, %v3484, 0
  %3497 = vmatprep.subr.mxu0 0.0
  %3498 = vmatpush1.msra.mxu0 %v51
  %3499 = vmatprep.subr.mxu0 0.0
  %3500 = vmatpush1.msra.mxu0 %v52
  %3501 = vmatprep.subr.mxu0 0.0
  %3502 = vmatpush1.msra.mxu0 %v53
  %3503 = vmatprep.subr.mxu0 0.0
  %3504 = vmatpush1.msra.mxu0 %v54
  %3505 = vmatprep.subr.mxu0 0.0
  %3506 = vmatpush1.msra.mxu0 %v55
  %3507 = vmatprep.subr.mxu0 0.0
  %3508 = vmatpush1.msra.mxu0 %v56
  %3509 = vmatprep.subr.mxu0 0.0
  %3510 = vmatpush1.msra.mxu0 %v57
  %3511 = vmatprep.subr.mxu0 0.0
  %3512 = vmatpush1.msra.mxu0 %v58
  %3513 = vmatprep.subr.mxu0 0.0
  %3514 = vmatpush1.msra.mxu0 %v59
  %3515 = vmatprep.subr.mxu0 0.0
  %3516 = vmatpush1.msra.mxu0 %v60
  %3517 = vmatprep.subr.mxu0 0.0
  %3518 = vmatpush1.msra.mxu0 %v61
  %3519 = vmatprep.subr.mxu0 0.0
  %3520 = vmatpush1.msra.mxu0 %v62
  %3521 = vmatprep.subr.mxu0 0.0
  %3522 = vmatpush1.msra.mxu0 %v338
  %3523 = vmatprep.subr.mxu0 0.0
  %3524 = vmatpush1.msra.mxu0 0.0
  %3525 = vmatprep.subr.mxu0 0.0
  %3526 = vmatpush1.msra.mxu0 0.0
  %3527 = vmatprep.subr.mxu0 0.0
  %3528 = vmatpush1.msra.mxu0 0.0
  %3529 = vmatprep.subr.mxu0 0.0
  %3530 = vmatpush1.msra.mxu0 0.0
  %3531 = vmatprep.subr.mxu0 0.0
  %3532 = vmatpush1.msra.mxu0 0.0
  %3533 = vmatprep.subr.mxu0 0.0
  %3534 = vmatpush1.msra.mxu0 0.0
  %3535 = vmatprep.subr.mxu0 0.0
  %3536 = vmatpush1.msra.mxu0 0.0
  %3537 = vmatprep.subr.mxu0 0.0
  %3538 = vmatpush1.msra.mxu0 0.0
  %3539 = vmatprep.subr.mxu0 0.0
  %3540 = vmatpush1.msra.mxu0 0.0
  %3541 = vmatprep.subr.mxu0 0.0
  %3542 = vmatpush1.msra.mxu0 0.0
  %3543 = vmatprep.subr.mxu0 0.0
  %3544 = vmatpush1.msra.mxu0 0.0
  %3545 = vmatprep.subr.mxu0 0.0
  %3546 = vmatpush1.msra.mxu0 0.0
  %3547 = vmatprep.subr.mxu0 0.0
  %3548 = vmatpush1.msra.mxu0 0.0
  %3549 = vmatprep.subr.mxu0 0.0
  %3550 = vmatpush1.msra.mxu0 0.0
  %3551 = vmatprep.subr.mxu0 0.0
  %3552 = vmatpush1.msra.mxu0 0.0
  %3553 = vmatprep.subr.mxu0 0.0
  %3554 = vmatpush1.msra.mxu0 0.0
  %3555 = vmatprep.subr.mxu0 0.0
  %3556 = vmatpush1.msra.mxu0 0.0
  %3557 = vmatprep.subr.mxu0 0.0
  %3558 = vmatpush1.msra.mxu0 0.0
  %3559 = vmatprep.subr.mxu0 0.0
  %3560 = vmatpush1.msra.mxu0 0.0
  %3561 = vmatprep.mubr.f32.mxu0 0.0
  %3562 = vmatmul.mubr.f32.gmra.mrb[0].mxu0 %v3486
  %v3563 = vpop.f32.mrb[0].mxu0
  %v3564 = vadd.f32 %v321, %v3563
  %v3565 = vpop.f32.mrb[0].mxu0
  %3566 = vmatprep.mubr.f32.mxu0 0.0
  %3567 = vmatmul.mubr.f32.gmra.mrb[0].mxu0 %v3489
  %v3568 = vpop.f32.mrb[0].mxu0
  %v3569 = vadd.f32 %v321, %v3568
  %v3570 = vpop.f32.mrb[0].mxu0
  %3571 = vmatprep.mubr.f32.mxu0 0.0
  %3572 = vmatmul.mubr.f32.gmra.mrb[0].mxu0 %v3492
  %v3573 = vpop.f32.mrb[0].mxu0
  %v3574 = vadd.f32 %v321, %v3573
  %v3575 = vpop.f32.mrb[0].mxu0
  %3576 = vmatprep.mubr.f32.mxu0 0.0
  %3577 = vmatmul.mubr.f32.gmra.mrb[0].mxu0 %v3495
  %v3578 = vpop.f32.mrb[0].mxu0
  %v3579 = vadd.f32 %v321, %v3578
  %v3580 = vpop.f32.mrb[0].mxu0
  %3581 = vdwg.mxu0
  %v3582 = vxor.u32 %v3564, 2147483648
  %v3583 = vxor.u32 %v3569, 2147483648
  %v3584 = vxor.u32 %v3574, 2147483648
  %v3585 = vxor.u32 %v3579, 2147483648
  %v3586 = vmul.f32 %v3582, 1.442695
  %v3587 = vpow.pop %v3586
  %v3588 = vmul.f32 %v3583, 1.442695
  %v3589 = vpow.pop %v3588
  %v3590 = vmul.f32 %v3584, 1.442695
  %v3591 = vpow.pop %v3590
  %v3592 = vmul.f32 %v3585, 1.442695
  %v3593 = vpow.pop %v3592
  %v3594 = vadd.f32 %v3587, 1.0
  %v3595 = vadd.f32 %v3589, 1.0
  %v3596 = vadd.f32 %v3591, 1.0
  %v3597 = vadd.f32 %v3593, 1.0
  %v3598 = vrcp.pop %v3594
  %v3599 = vmul.f32 1.0, %v3598
  %v3600 = vrcp.pop %v3595
  %v3601 = vmul.f32 1.0, %v3600
  %v3602 = vrcp.pop %v3596
  %v3603 = vmul.f32 1.0, %v3602
  %v3604 = vrcp.pop %v3597
  %v3605 = vmul.f32 1.0, %v3604
  %3606 = vrot.lane.b32.xlu0 %v3238, 96
  %v3607 = vpop.permute.xlu0 %3606
  %3608 = vrot.lane.b32.xlu0 %v3239, 96
  %v3609 = vpop.permute.xlu0 %3608
  %3610 = vrot.lane.b32.xlu0 %v3240, 96
  %v3611 = vpop.permute.xlu0 %3610
  %3612 = vrot.lane.b32.xlu0 %v3241, 96
  %v3613 = vpop.permute.xlu0 %3612
  %v3618 = vmul.f32 %v3599, %v3607
  %v3619 = vmul.f32 %v3601, %v3609
  %v3620 = vmul.f32 %v3603, %v3611
  %v3621 = vmul.f32 %v3605, %v3613
  %3622 = vmatprep.subr.mxu0 0.0
  %3623 = vmatpush1.msra.mxu0 %v3618
  %3624 = vmatprep.subr.mxu0 0.0
  %3625 = vmatpush1.msra.mxu0 %v3619
  %3626 = vmatprep.subr.mxu0 0.0
  %3627 = vmatpush1.msra.mxu0 %v3620
  %3628 = vmatprep.subr.mxu0 0.0
  %3629 = vmatpush1.msra.mxu0 %v3621
  %3630 = vmatprep.subr.mxu0 0.0
  %3631 = vmatpush1.msra.mxu0 0.0
  %3632 = vmatprep.subr.mxu0 0.0
  %3633 = vmatpush1.msra.mxu0 0.0
  %3634 = vmatprep.subr.mxu0 0.0
  %3635 = vmatpush1.msra.mxu0 0.0
  %3636 = vmatprep.subr.mxu0 0.0
  %3637 = vmatpush1.msra.mxu0 0.0
  %3638 = vmatprep.subr.mxu0 0.0
  %3639 = vmatpush1.msra.mxu0 0.0
  %3640 = vmatprep.subr.mxu0 0.0
  %3641 = vmatpush1.msra.mxu0 0.0
  %3642 = vmatprep.subr.mxu0 0.0
  %3643 = vmatpush1.msra.mxu0 0.0
  %3644 = vmatprep.subr.mxu0 0.0
  %3645 = vmatpush1.msra.mxu0 0.0
  %3646 = vmatprep.subr.mxu0 0.0
  %3647 = vmatpush1.msra.mxu0 0.0
  %3648 = vmatprep.subr.mxu0 0.0
  %3649 = vmatpush1.msra.mxu0 0.0
  %3650 = vmatprep.subr.mxu0 0.0
  %3651 = vmatpush1.msra.mxu0 0.0
  %3652 = vmatprep.subr.mxu0 0.0
  %3653 = vmatpush1.msra.mxu0 0.0
  %3654 = vmatprep.subr.mxu0 0.0
  %3655 = vmatpush1.msra.mxu0 0.0
  %3656 = vmatprep.subr.mxu0 0.0
  %3657 = vmatpush1.msra.mxu0 0.0
  %3658 = vmatprep.subr.mxu0 0.0
  %3659 = vmatpush1.msra.mxu0 0.0
  %3660 = vmatprep.subr.mxu0 0.0
  %3661 = vmatpush1.msra.mxu0 0.0
  %3662 = vmatprep.subr.mxu0 0.0
  %3663 = vmatpush1.msra.mxu0 0.0
  %3664 = vmatprep.subr.mxu0 0.0
  %3665 = vmatpush1.msra.mxu0 0.0
  %3666 = vmatprep.subr.mxu0 0.0
  %3667 = vmatpush1.msra.mxu0 0.0
  %3668 = vmatprep.subr.mxu0 0.0
  %3669 = vmatpush1.msra.mxu0 0.0
  %3670 = vmatprep.subr.mxu0 0.0
  %3671 = vmatpush1.msra.mxu0 0.0
  %3672 = vmatprep.subr.mxu0 0.0
  %3673 = vmatpush1.msra.mxu0 0.0
  %3674 = vmatprep.subr.mxu0 0.0
  %3675 = vmatpush1.msra.mxu0 0.0
  %3676 = vmatprep.subr.mxu0 0.0
  %3677 = vmatpush1.msra.mxu0 0.0
  %3678 = vmatprep.subr.mxu0 0.0
  %3679 = vmatpush1.msra.mxu0 0.0
  %3680 = vmatprep.subr.mxu0 0.0
  %3681 = vmatpush1.msra.mxu0 0.0
  %3682 = vmatprep.subr.mxu0 0.0
  %3683 = vmatpush1.msra.mxu0 0.0
  %3684 = vmatprep.subr.mxu0 0.0
  %3685 = vmatpush1.msra.mxu0 0.0
  %3686 = vmatprep.mubr.f32.mxu0 0.0
  %3687 = vmatmul.mubr.f32.gmra.mrb[0].mxu0 %v86
  %v3688 = vpop.f32.mrb[0].mxu0
  %v3689 = vadd.f32 0.0, %v3688
  %v3690 = vpop.f32.mrb[0].mxu0
  %3691 = vmatprep.mubr.f32.mxu0 0.0
  %3692 = vmatmul.mubr.f32.gmra.mrb[0].mxu0 %v89
  %v3693 = vpop.f32.mrb[0].mxu0
  %v3694 = vadd.f32 0.0, %v3693
  %v3695 = vpop.f32.mrb[0].mxu0
  %3696 = vmatprep.mubr.f32.mxu0 0.0
  %3697 = vmatmul.mubr.f32.gmra.mrb[0].mxu0 %v92
  %v3698 = vpop.f32.mrb[0].mxu0
  %v3699 = vadd.f32 0.0, %v3698
  %v3700 = vpop.f32.mrb[0].mxu0
  %3701 = vmatprep.mubr.f32.mxu0 0.0
  %3702 = vmatmul.mubr.f32.gmra.mrb[0].mxu0 %v95
  %v3703 = vpop.f32.mrb[0].mxu0
  %v3704 = vadd.f32 0.0, %v3703
  %v3705 = vpop.f32.mrb[0].mxu0
  %3706 = vdwg.mxu0
  %3707 = vmatprep.subr.mxu0 0.0
  %3708 = vmatpush1.msra.mxu0 %v3689
  %3709 = vmatprep.subr.mxu0 0.0
  %3710 = vmatpush1.msra.mxu0 %v3694
  %3711 = vmatprep.subr.mxu0 0.0
  %3712 = vmatpush1.msra.mxu0 %v3699
  %3713 = vmatprep.subr.mxu0 0.0
  %3714 = vmatpush1.msra.mxu0 %v3704
  %3715 = vmatprep.subr.mxu0 0.0
  %3716 = vmatpush1.msra.mxu0 0.0
  %3717 = vmatprep.subr.mxu0 0.0
  %3718 = vmatpush1.msra.mxu0 0.0
  %3719 = vmatprep.subr.mxu0 0.0
  %3720 = vmatpush1.msra.mxu0 0.0
  %3721 = vmatprep.subr.mxu0 0.0
  %3722 = vmatpush1.msra.mxu0 0.0
  %3723 = vmatprep.subr.mxu0 0.0
  %3724 = vmatpush1.msra.mxu0 0.0
  %3725 = vmatprep.subr.mxu0 0.0
  %3726 = vmatpush1.msra.mxu0 0.0
  %3727 = vmatprep.subr.mxu0 0.0
  %3728 = vmatpush1.msra.mxu0 0.0
  %3729 = vmatprep.subr.mxu0 0.0
  %3730 = vmatpush1.msra.mxu0 0.0
  %3731 = vmatprep.subr.mxu0 0.0
  %3732 = vmatpush1.msra.mxu0 0.0
  %3733 = vmatprep.subr.mxu0 0.0
  %3734 = vmatpush1.msra.mxu0 0.0
  %3735 = vmatprep.subr.mxu0 0.0
  %3736 = vmatpush1.msra.mxu0 0.0
  %3737 = vmatprep.subr.mxu0 0.0
  %3738 = vmatpush1.msra.mxu0 0.0
  %3739 = vmatprep.subr.mxu0 0.0
  %3740 = vmatpush1.msra.mxu0 0.0
  %3741 = vmatprep.subr.mxu0 0.0
  %3742 = vmatpush1.msra.mxu0 0.0
  %3743 = vmatprep.subr.mxu0 0.0
  %3744 = vmatpush1.msra.mxu0 0.0
  %3745 = vmatprep.subr.mxu0 0.0
  %3746 = vmatpush1.msra.mxu0 0.0
  %3747 = vmatprep.subr.mxu0 0.0
  %3748 = vmatpush1.msra.mxu0 0.0
  %3749 = vmatprep.subr.mxu0 0.0
  %3750 = vmatpush1.msra.mxu0 0.0
  %3751 = vmatprep.subr.mxu0 0.0
  %3752 = vmatpush1.msra.mxu0 0.0
  %3753 = vmatprep.subr.mxu0 0.0
  %3754 = vmatpush1.msra.mxu0 0.0
  %3755 = vmatprep.subr.mxu0 0.0
  %3756 = vmatpush1.msra.mxu0 0.0
  %3757 = vmatprep.subr.mxu0 0.0
  %3758 = vmatpush1.msra.mxu0 0.0
  %3759 = vmatprep.subr.mxu0 0.0
  %3760 = vmatpush1.msra.mxu0 0.0
  %3761 = vmatprep.subr.mxu0 0.0
  %3762 = vmatpush1.msra.mxu0 0.0
  %3763 = vmatprep.subr.mxu0 0.0
  %3764 = vmatpush1.msra.mxu0 0.0
  %3765 = vmatprep.subr.mxu0 0.0
  %3766 = vmatpush1.msra.mxu0 0.0
  %3767 = vmatprep.subr.mxu0 0.0
  %3768 = vmatpush1.msra.mxu0 0.0
  %3769 = vmatprep.subr.mxu0 0.0
  %3770 = vmatpush1.msra.mxu0 0.0
  %3771 = vmatprep.mubr.f32.mxu0 0.0
  %3772 = vmatmul.mubr.f32.gmra.mrb[0].mxu0 %v86
  %v3773 = vpop.f32.mrb[0].mxu0
  %v3774 = vadd.f32 0.0, %v3773
  %v3775 = vpop.f32.mrb[0].mxu0
  %3776 = vmatprep.mubr.f32.mxu0 0.0
  %3777 = vmatmul.mubr.f32.gmra.mrb[0].mxu0 %v89
  %v3778 = vpop.f32.mrb[0].mxu0
  %v3779 = vadd.f32 0.0, %v3778
  %v3780 = vpop.f32.mrb[0].mxu0
  %3781 = vmatprep.mubr.f32.mxu0 0.0
  %3782 = vmatmul.mubr.f32.gmra.mrb[0].mxu0 %v92
  %v3783 = vpop.f32.mrb[0].mxu0
  %v3784 = vadd.f32 0.0, %v3783
  %v3785 = vpop.f32.mrb[0].mxu0
  %3786 = vmatprep.mubr.f32.mxu0 0.0
  %3787 = vmatmul.mubr.f32.gmra.mrb[0].mxu0 %v95
  %v3788 = vpop.f32.mrb[0].mxu0
  %v3789 = vadd.f32 0.0, %v3788
  %v3790 = vpop.f32.mrb[0].mxu0
  %3791 = vdwg.mxu0
  %v3792 = vmul.f32 %v3774, 2.0
  %v3793 = vmul.f32 %v3779, 2.0
  %v3794 = vmul.f32 %v3784, 2.0
  %v3795 = vmul.f32 %v3789, 2.0
  %v3796 = vsub.f32 %v3792, %v3618
  %v3797 = vsub.f32 %v3793, %v3619
  %v3798 = vsub.f32 %v3794, %v3620
  %v3799 = vsub.f32 %v3795, %v3621
  %3804 = vrot.lane.b32.xlu0 %v3618, 2
  %v3805 = vpop.permute.xlu0 %3804
  %3806 = vrot.lane.b32.xlu0 %v3619, 2
  %v3807 = vpop.permute.xlu0 %3806
  %3808 = vrot.lane.b32.xlu0 %v3620, 2
  %v3809 = vpop.permute.xlu0 %3808
  %3810 = vrot.lane.b32.xlu0 %v3621, 2
  %v3811 = vpop.permute.xlu0 %3810
  %v3816 = vsel %vm79, %v3263, %v3805
  %v3817 = vsel %vm79, %v3264, %v3807
  %v3818 = vsel %vm79, %v3265, %v3809
  %v3819 = vsel %vm79, %v3266, %v3811
  %3824 = vrot.lane.b32.xlu0 %v3689, 2
  %v3825 = vpop.permute.xlu0 %3824
  %3826 = vrot.lane.b32.xlu0 %v3694, 2
  %v3827 = vpop.permute.xlu0 %3826
  %3828 = vrot.lane.b32.xlu0 %v3699, 2
  %v3829 = vpop.permute.xlu0 %3828
  %3830 = vrot.lane.b32.xlu0 %v3704, 2
  %v3831 = vpop.permute.xlu0 %3830
  %v3836 = vsel %vm79, %v3334, %v3825
  %v3837 = vsel %vm79, %v3339, %v3827
  %v3838 = vsel %vm79, %v3344, %v3829
  %v3839 = vsel %vm79, %v3349, %v3831
  %3844 = vrot.lane.b32.xlu0 %v3796, 2
  %v3845 = vpop.permute.xlu0 %3844
  %3846 = vrot.lane.b32.xlu0 %v3797, 2
  %v3847 = vpop.permute.xlu0 %3846
  %3848 = vrot.lane.b32.xlu0 %v3798, 2
  %v3849 = vpop.permute.xlu0 %3848
  %3850 = vrot.lane.b32.xlu0 %v3799, 2
  %v3851 = vpop.permute.xlu0 %3850
  %v3856 = vsel %vm79, %v3441, %v3845
  %v3857 = vsel %vm79, %v3442, %v3847
  %v3858 = vsel %vm79, %v3443, %v3849
  %v3859 = vsel %vm79, %v3444, %v3851
  %3864 = vrot.lane.b32.xlu0 %v3836, 34
  %v3865 = vpop.permute.xlu0 %3864
  %3866 = vrot.lane.b32.xlu0 %v3837, 34
  %v3867 = vpop.permute.xlu0 %3866
  %3868 = vrot.lane.b32.xlu0 %v3838, 34
  %v3869 = vpop.permute.xlu0 %3868
  %3870 = vrot.lane.b32.xlu0 %v3839, 34
  %v3871 = vpop.permute.xlu0 %3870
  %3880 = vrot.lane.b32.xlu0 %v3856, 68
  %v3881 = vpop.permute.xlu0 %3880
  %3882 = vrot.lane.b32.xlu0 %v3857, 68
  %v3883 = vpop.permute.xlu0 %3882
  %3884 = vrot.lane.b32.xlu0 %v3858, 68
  %v3885 = vpop.permute.xlu0 %3884
  %3886 = vrot.lane.b32.xlu0 %v3859, 68
  %v3887 = vpop.permute.xlu0 %3886
  %v3892 = vsel %vm307, %v3816, %v3865
  %v3893 = vsel %vm307, %v3817, %v3867
  %v3894 = vsel %vm307, %v3818, %v3869
  %v3895 = vsel %vm307, %v3819, %v3871
  %v3896 = vsel %vm312, %v3892, %v3881
  %v3897 = vsel %vm312, %v3893, %v3883
  %v3898 = vsel %vm312, %v3894, %v3885
  %v3899 = vsel %vm312, %v3895, %v3887
  %v3901 = vsel %vm323, %v3896, 0
  %v3904 = vsel %vm323, %v3897, 0
  %v3907 = vsel %vm323, %v3898, 0
  %v3910 = vsel %vm323, %v3899, 0
  %3912 = vmatprep.subr.mxu0 0.0
  %3913 = vmatpush1.msra.mxu0 %v65
  %3914 = vmatprep.subr.mxu0 0.0
  %3915 = vmatpush1.msra.mxu0 %v66
  %3916 = vmatprep.subr.mxu0 0.0
  %3917 = vmatpush1.msra.mxu0 %v67
  %3918 = vmatprep.subr.mxu0 0.0
  %3919 = vmatpush1.msra.mxu0 %v68
  %3920 = vmatprep.subr.mxu0 0.0
  %3921 = vmatpush1.msra.mxu0 %v69
  %3922 = vmatprep.subr.mxu0 0.0
  %3923 = vmatpush1.msra.mxu0 %v70
  %3924 = vmatprep.subr.mxu0 0.0
  %3925 = vmatpush1.msra.mxu0 %v71
  %3926 = vmatprep.subr.mxu0 0.0
  %3927 = vmatpush1.msra.mxu0 %v72
  %3928 = vmatprep.subr.mxu0 0.0
  %3929 = vmatpush1.msra.mxu0 %v73
  %3930 = vmatprep.subr.mxu0 0.0
  %3931 = vmatpush1.msra.mxu0 %v74
  %3932 = vmatprep.subr.mxu0 0.0
  %3933 = vmatpush1.msra.mxu0 %v75
  %3934 = vmatprep.subr.mxu0 0.0
  %3935 = vmatpush1.msra.mxu0 %v76
  %3936 = vmatprep.subr.mxu0 0.0
  %3937 = vmatpush1.msra.mxu0 %v750
  %3938 = vmatprep.subr.mxu0 0.0
  %3939 = vmatpush1.msra.mxu0 0.0
  %3940 = vmatprep.subr.mxu0 0.0
  %3941 = vmatpush1.msra.mxu0 0.0
  %3942 = vmatprep.subr.mxu0 0.0
  %3943 = vmatpush1.msra.mxu0 0.0
  %3944 = vmatprep.subr.mxu0 0.0
  %3945 = vmatpush1.msra.mxu0 0.0
  %3946 = vmatprep.subr.mxu0 0.0
  %3947 = vmatpush1.msra.mxu0 0.0
  %3948 = vmatprep.subr.mxu0 0.0
  %3949 = vmatpush1.msra.mxu0 0.0
  %3950 = vmatprep.subr.mxu0 0.0
  %3951 = vmatpush1.msra.mxu0 0.0
  %3952 = vmatprep.subr.mxu0 0.0
  %3953 = vmatpush1.msra.mxu0 0.0
  %3954 = vmatprep.subr.mxu0 0.0
  %3955 = vmatpush1.msra.mxu0 0.0
  %3956 = vmatprep.subr.mxu0 0.0
  %3957 = vmatpush1.msra.mxu0 0.0
  %3958 = vmatprep.subr.mxu0 0.0
  %3959 = vmatpush1.msra.mxu0 0.0
  %3960 = vmatprep.subr.mxu0 0.0
  %3961 = vmatpush1.msra.mxu0 0.0
  %3962 = vmatprep.subr.mxu0 0.0
  %3963 = vmatpush1.msra.mxu0 0.0
  %3964 = vmatprep.subr.mxu0 0.0
  %3965 = vmatpush1.msra.mxu0 0.0
  %3966 = vmatprep.subr.mxu0 0.0
  %3967 = vmatpush1.msra.mxu0 0.0
  %3968 = vmatprep.subr.mxu0 0.0
  %3969 = vmatpush1.msra.mxu0 0.0
  %3970 = vmatprep.subr.mxu0 0.0
  %3971 = vmatpush1.msra.mxu0 0.0
  %3972 = vmatprep.subr.mxu0 0.0
  %3973 = vmatpush1.msra.mxu0 0.0
  %3974 = vmatprep.subr.mxu0 0.0
  %3975 = vmatpush1.msra.mxu0 0.0
  %3976 = vmatprep.mubr.f32.mxu0 0.0
  %3977 = vmatmul.mubr.f32.gmra.mrb[0].mxu0 %v3901
  %v3978 = vpop.f32.mrb[0].mxu0
  %v3979 = vadd.f32 %v735, %v3978
  %v3980 = vpop.f32.mrb[0].mxu0
  %3981 = vmatprep.mubr.f32.mxu0 0.0
  %3982 = vmatmul.mubr.f32.gmra.mrb[0].mxu0 %v3904
  %v3983 = vpop.f32.mrb[0].mxu0
  %v3984 = vadd.f32 %v735, %v3983
  %v3985 = vpop.f32.mrb[0].mxu0
  %3986 = vmatprep.mubr.f32.mxu0 0.0
  %3987 = vmatmul.mubr.f32.gmra.mrb[0].mxu0 %v3907
  %v3988 = vpop.f32.mrb[0].mxu0
  %v3989 = vadd.f32 %v735, %v3988
  %v3990 = vpop.f32.mrb[0].mxu0
  %3991 = vmatprep.mubr.f32.mxu0 0.0
  %3992 = vmatmul.mubr.f32.gmra.mrb[0].mxu0 %v3910
  %v3993 = vpop.f32.mrb[0].mxu0
  %v3994 = vadd.f32 %v735, %v3993
  %v3995 = vpop.f32.mrb[0].mxu0
  %3996 = vdwg.mxu0
  %v3997 = vtanh.pop %v3979
  %v3998 = vtanh.pop %v3984
  %v3999 = vtanh.pop %v3989
  %v4000 = vtanh.pop %v3994
  %v4001 = vmul.f32 %v3599, %v3238
  %v4002 = vmul.f32 %v3601, %v3239
  %v4003 = vmul.f32 %v3603, %v3240
  %v4004 = vmul.f32 %v3605, %v3241
  %v4005 = vsub.f32 1.0, %v3599
  %v4006 = vsub.f32 1.0, %v3601
  %v4007 = vsub.f32 1.0, %v3603
  %v4008 = vsub.f32 1.0, %v3605
  %4013 = vrot.lane.b32.xlu0 %v3997, 32
  %v4014 = vpop.permute.xlu0 %4013
  %4015 = vrot.lane.b32.xlu0 %v3998, 32
  %v4016 = vpop.permute.xlu0 %4015
  %4017 = vrot.lane.b32.xlu0 %v3999, 32
  %v4018 = vpop.permute.xlu0 %4017
  %4019 = vrot.lane.b32.xlu0 %v4000, 32
  %v4020 = vpop.permute.xlu0 %4019
  %v4025 = vmul.f32 %v4005, %v4014
  %v4026 = vmul.f32 %v4006, %v4016
  %v4027 = vmul.f32 %v4007, %v4018
  %v4028 = vmul.f32 %v4008, %v4020
  %v4029 = vadd.f32 %v4001, %v4025
  %v4030 = vadd.f32 %v4002, %v4026
  %v4031 = vadd.f32 %v4003, %v4027
  %v4032 = vadd.f32 %v4004, %v4028
  %s4033 = scalar_lea.vmem %s0, 160
  %v4034 = vld [vmem:[%s4033] sm:$0xff]
  %v4035 = vld [vmem:[%s4033 + $0x8] sm:$0xff]
  %v4036 = vld [vmem:[%s4033 + $0x10] sm:$0xff]
  %v4037 = vld [vmem:[%s4033 + $0x18] sm:$0xff]
  %4042 = vrot.lane.b32.xlu0 %v4029, 98
  %v4043 = vpop.permute.xlu0 %4042
  %4044 = vrot.lane.b32.xlu0 %v4030, 98
  %v4045 = vpop.permute.xlu0 %4044
  %4046 = vrot.lane.b32.xlu0 %v4031, 98
  %v4047 = vpop.permute.xlu0 %4046
  %4048 = vrot.lane.b32.xlu0 %v4032, 98
  %v4049 = vpop.permute.xlu0 %4048
  %v4054 = vsel %vm79, %v4034, %v4043
  %v4055 = vsel %vm79, %v4035, %v4045
  %v4056 = vsel %vm79, %v4036, %v4047
  %v4057 = vsel %vm79, %v4037, %v4049
  %4058 = vmatprep.subr.mxu0 0.0
  %4059 = vmatpush1.msra.mxu0 %v4054
  %4060 = vmatprep.subr.mxu0 0.0
  %4061 = vmatpush1.msra.mxu0 %v4055
  %4062 = vmatprep.subr.mxu0 0.0
  %4063 = vmatpush1.msra.mxu0 %v4056
  %4064 = vmatprep.subr.mxu0 0.0
  %4065 = vmatpush1.msra.mxu0 %v4057
  %4066 = vmatprep.subr.mxu0 0.0
  %4067 = vmatpush1.msra.mxu0 0.0
  %4068 = vmatprep.subr.mxu0 0.0
  %4069 = vmatpush1.msra.mxu0 0.0
  %4070 = vmatprep.subr.mxu0 0.0
  %4071 = vmatpush1.msra.mxu0 0.0
  %4072 = vmatprep.subr.mxu0 0.0
  %4073 = vmatpush1.msra.mxu0 0.0
  %4074 = vmatprep.subr.mxu0 0.0
  %4075 = vmatpush1.msra.mxu0 0.0
  %4076 = vmatprep.subr.mxu0 0.0
  %4077 = vmatpush1.msra.mxu0 0.0
  %4078 = vmatprep.subr.mxu0 0.0
  %4079 = vmatpush1.msra.mxu0 0.0
  %4080 = vmatprep.subr.mxu0 0.0
  %4081 = vmatpush1.msra.mxu0 0.0
  %4082 = vmatprep.subr.mxu0 0.0
  %4083 = vmatpush1.msra.mxu0 0.0
  %4084 = vmatprep.subr.mxu0 0.0
  %4085 = vmatpush1.msra.mxu0 0.0
  %4086 = vmatprep.subr.mxu0 0.0
  %4087 = vmatpush1.msra.mxu0 0.0
  %4088 = vmatprep.subr.mxu0 0.0
  %4089 = vmatpush1.msra.mxu0 0.0
  %4090 = vmatprep.subr.mxu0 0.0
  %4091 = vmatpush1.msra.mxu0 0.0
  %4092 = vmatprep.subr.mxu0 0.0
  %4093 = vmatpush1.msra.mxu0 0.0
  %4094 = vmatprep.subr.mxu0 0.0
  %4095 = vmatpush1.msra.mxu0 0.0
  %4096 = vmatprep.subr.mxu0 0.0
  %4097 = vmatpush1.msra.mxu0 0.0
  %4098 = vmatprep.subr.mxu0 0.0
  %4099 = vmatpush1.msra.mxu0 0.0
  %4100 = vmatprep.subr.mxu0 0.0
  %4101 = vmatpush1.msra.mxu0 0.0
  %4102 = vmatprep.subr.mxu0 0.0
  %4103 = vmatpush1.msra.mxu0 0.0
  %4104 = vmatprep.subr.mxu0 0.0
  %4105 = vmatpush1.msra.mxu0 0.0
  %4106 = vmatprep.subr.mxu0 0.0
  %4107 = vmatpush1.msra.mxu0 0.0
  %4108 = vmatprep.subr.mxu0 0.0
  %4109 = vmatpush1.msra.mxu0 0.0
  %4110 = vmatprep.subr.mxu0 0.0
  %4111 = vmatpush1.msra.mxu0 0.0
  %4112 = vmatprep.subr.mxu0 0.0
  %4113 = vmatpush1.msra.mxu0 0.0
  %4114 = vmatprep.subr.mxu0 0.0
  %4115 = vmatpush1.msra.mxu0 0.0
  %4116 = vmatprep.subr.mxu0 0.0
  %4117 = vmatpush1.msra.mxu0 0.0
  %4118 = vmatprep.subr.mxu0 0.0
  %4119 = vmatpush1.msra.mxu0 0.0
  %4120 = vmatprep.subr.mxu0 0.0
  %4121 = vmatpush1.msra.mxu0 0.0
  %4122 = vmatprep.mubr.f32.mxu0 0.0
  %4123 = vmatmul.mubr.f32.gmra.mrb[0].mxu0 %v86
  %v4124 = vpop.f32.mrb[0].mxu0
  %v4125 = vadd.f32 0.0, %v4124
  %v4126 = vpop.f32.mrb[0].mxu0
  %4127 = vmatprep.mubr.f32.mxu0 0.0
  %4128 = vmatmul.mubr.f32.gmra.mrb[0].mxu0 %v89
  %v4129 = vpop.f32.mrb[0].mxu0
  %v4130 = vadd.f32 0.0, %v4129
  %v4131 = vpop.f32.mrb[0].mxu0
  %4132 = vmatprep.mubr.f32.mxu0 0.0
  %4133 = vmatmul.mubr.f32.gmra.mrb[0].mxu0 %v92
  %v4134 = vpop.f32.mrb[0].mxu0
  %v4135 = vadd.f32 0.0, %v4134
  %v4136 = vpop.f32.mrb[0].mxu0
  %4137 = vmatprep.mubr.f32.mxu0 0.0
  %4138 = vmatmul.mubr.f32.gmra.mrb[0].mxu0 %v95
  %v4139 = vpop.f32.mrb[0].mxu0
  %v4140 = vadd.f32 0.0, %v4139
  %v4141 = vpop.f32.mrb[0].mxu0
  %4142 = vdwg.mxu0
  %4143 = vmatprep.subr.mxu0 0.0
  %4144 = vmatpush1.msra.mxu0 %v4125
  %4145 = vmatprep.subr.mxu0 0.0
  %4146 = vmatpush1.msra.mxu0 %v4130
  %4147 = vmatprep.subr.mxu0 0.0
  %4148 = vmatpush1.msra.mxu0 %v4135
  %4149 = vmatprep.subr.mxu0 0.0
  %4150 = vmatpush1.msra.mxu0 %v4140
  %4151 = vmatprep.subr.mxu0 0.0
  %4152 = vmatpush1.msra.mxu0 0.0
  %4153 = vmatprep.subr.mxu0 0.0
  %4154 = vmatpush1.msra.mxu0 0.0
  %4155 = vmatprep.subr.mxu0 0.0
  %4156 = vmatpush1.msra.mxu0 0.0
  %4157 = vmatprep.subr.mxu0 0.0
  %4158 = vmatpush1.msra.mxu0 0.0
  %4159 = vmatprep.subr.mxu0 0.0
  %4160 = vmatpush1.msra.mxu0 0.0
  %4161 = vmatprep.subr.mxu0 0.0
  %4162 = vmatpush1.msra.mxu0 0.0
  %4163 = vmatprep.subr.mxu0 0.0
  %4164 = vmatpush1.msra.mxu0 0.0
  %4165 = vmatprep.subr.mxu0 0.0
  %4166 = vmatpush1.msra.mxu0 0.0
  %4167 = vmatprep.subr.mxu0 0.0
  %4168 = vmatpush1.msra.mxu0 0.0
  %4169 = vmatprep.subr.mxu0 0.0
  %4170 = vmatpush1.msra.mxu0 0.0
  %4171 = vmatprep.subr.mxu0 0.0
  %4172 = vmatpush1.msra.mxu0 0.0
  %4173 = vmatprep.subr.mxu0 0.0
  %4174 = vmatpush1.msra.mxu0 0.0
  %4175 = vmatprep.subr.mxu0 0.0
  %4176 = vmatpush1.msra.mxu0 0.0
  %4177 = vmatprep.subr.mxu0 0.0
  %4178 = vmatpush1.msra.mxu0 0.0
  %4179 = vmatprep.subr.mxu0 0.0
  %4180 = vmatpush1.msra.mxu0 0.0
  %4181 = vmatprep.subr.mxu0 0.0
  %4182 = vmatpush1.msra.mxu0 0.0
  %4183 = vmatprep.subr.mxu0 0.0
  %4184 = vmatpush1.msra.mxu0 0.0
  %4185 = vmatprep.subr.mxu0 0.0
  %4186 = vmatpush1.msra.mxu0 0.0
  %4187 = vmatprep.subr.mxu0 0.0
  %4188 = vmatpush1.msra.mxu0 0.0
  %4189 = vmatprep.subr.mxu0 0.0
  %4190 = vmatpush1.msra.mxu0 0.0
  %4191 = vmatprep.subr.mxu0 0.0
  %4192 = vmatpush1.msra.mxu0 0.0
  %4193 = vmatprep.subr.mxu0 0.0
  %4194 = vmatpush1.msra.mxu0 0.0
  %4195 = vmatprep.subr.mxu0 0.0
  %4196 = vmatpush1.msra.mxu0 0.0
  %4197 = vmatprep.subr.mxu0 0.0
  %4198 = vmatpush1.msra.mxu0 0.0
  %4199 = vmatprep.subr.mxu0 0.0
  %4200 = vmatpush1.msra.mxu0 0.0
  %4201 = vmatprep.subr.mxu0 0.0
  %4202 = vmatpush1.msra.mxu0 0.0
  %4203 = vmatprep.subr.mxu0 0.0
  %4204 = vmatpush1.msra.mxu0 0.0
  %4205 = vmatprep.subr.mxu0 0.0
  %4206 = vmatpush1.msra.mxu0 0.0
  %4207 = vmatprep.mubr.f32.mxu0 0.0
  %4208 = vmatmul.mubr.f32.gmra.mrb[0].mxu0 %v86
  %v4209 = vpop.f32.mrb[0].mxu0
  %v4210 = vadd.f32 0.0, %v4209
  %v4211 = vpop.f32.mrb[0].mxu0
  %4212 = vmatprep.mubr.f32.mxu0 0.0
  %4213 = vmatmul.mubr.f32.gmra.mrb[0].mxu0 %v89
  %v4214 = vpop.f32.mrb[0].mxu0
  %v4215 = vadd.f32 0.0, %v4214
  %v4216 = vpop.f32.mrb[0].mxu0
  %4217 = vmatprep.mubr.f32.mxu0 0.0
  %4218 = vmatmul.mubr.f32.gmra.mrb[0].mxu0 %v92
  %v4219 = vpop.f32.mrb[0].mxu0
  %v4220 = vadd.f32 0.0, %v4219
  %v4221 = vpop.f32.mrb[0].mxu0
  %4222 = vmatprep.mubr.f32.mxu0 0.0
  %4223 = vmatmul.mubr.f32.gmra.mrb[0].mxu0 %v95
  %v4224 = vpop.f32.mrb[0].mxu0
  %v4225 = vadd.f32 0.0, %v4224
  %v4226 = vpop.f32.mrb[0].mxu0
  %4227 = vdwg.mxu0
  %v4228 = vmul.f32 %v4210, 2.0
  %v4229 = vmul.f32 %v4215, 2.0
  %v4230 = vmul.f32 %v4220, 2.0
  %v4231 = vmul.f32 %v4225, 2.0
  %v4232 = vsub.f32 %v4228, %v4054
  %v4233 = vsub.f32 %v4229, %v4055
  %v4234 = vsub.f32 %v4230, %v4056
  %v4235 = vsub.f32 %v4231, %v4057
  %4240 = vrot.lane.b32.xlu0 %v4125, 34
  %v4241 = vpop.permute.xlu0 %4240
  %4242 = vrot.lane.b32.xlu0 %v4130, 34
  %v4243 = vpop.permute.xlu0 %4242
  %4244 = vrot.lane.b32.xlu0 %v4135, 34
  %v4245 = vpop.permute.xlu0 %4244
  %4246 = vrot.lane.b32.xlu0 %v4140, 34
  %v4247 = vpop.permute.xlu0 %4246
  %4256 = vrot.lane.b32.xlu0 %v4232, 68
  %v4257 = vpop.permute.xlu0 %4256
  %4258 = vrot.lane.b32.xlu0 %v4233, 68
  %v4259 = vpop.permute.xlu0 %4258
  %4260 = vrot.lane.b32.xlu0 %v4234, 68
  %v4261 = vpop.permute.xlu0 %4260
  %4262 = vrot.lane.b32.xlu0 %v4235, 68
  %v4263 = vpop.permute.xlu0 %4262
  %v4268 = vsel %vm307, %v4054, %v4241
  %v4269 = vsel %vm307, %v4055, %v4243
  %v4270 = vsel %vm307, %v4056, %v4245
  %v4271 = vsel %vm307, %v4057, %v4247
  %v4272 = vsel %vm312, %v4268, %v4257
  %v4273 = vsel %vm312, %v4269, %v4259
  %v4274 = vsel %vm312, %v4270, %v4261
  %v4275 = vsel %vm312, %v4271, %v4263
  %v4277 = vsel %vm323, %v4272, 0
  %v4280 = vsel %vm323, %v4273, 0
  %v4283 = vsel %vm323, %v4274, 0
  %v4286 = vsel %vm323, %v4275, 0
  %4288 = vmatprep.subr.mxu0 0.0
  %4289 = vmatpush1.msra.mxu0 %v51
  %4290 = vmatprep.subr.mxu0 0.0
  %4291 = vmatpush1.msra.mxu0 %v52
  %4292 = vmatprep.subr.mxu0 0.0
  %4293 = vmatpush1.msra.mxu0 %v53
  %4294 = vmatprep.subr.mxu0 0.0
  %4295 = vmatpush1.msra.mxu0 %v54
  %4296 = vmatprep.subr.mxu0 0.0
  %4297 = vmatpush1.msra.mxu0 %v55
  %4298 = vmatprep.subr.mxu0 0.0
  %4299 = vmatpush1.msra.mxu0 %v56
  %4300 = vmatprep.subr.mxu0 0.0
  %4301 = vmatpush1.msra.mxu0 %v57
  %4302 = vmatprep.subr.mxu0 0.0
  %4303 = vmatpush1.msra.mxu0 %v58
  %4304 = vmatprep.subr.mxu0 0.0
  %4305 = vmatpush1.msra.mxu0 %v59
  %4306 = vmatprep.subr.mxu0 0.0
  %4307 = vmatpush1.msra.mxu0 %v60
  %4308 = vmatprep.subr.mxu0 0.0
  %4309 = vmatpush1.msra.mxu0 %v61
  %4310 = vmatprep.subr.mxu0 0.0
  %4311 = vmatpush1.msra.mxu0 %v62
  %4312 = vmatprep.subr.mxu0 0.0
  %4313 = vmatpush1.msra.mxu0 %v338
  %4314 = vmatprep.subr.mxu0 0.0
  %4315 = vmatpush1.msra.mxu0 0.0
  %4316 = vmatprep.subr.mxu0 0.0
  %4317 = vmatpush1.msra.mxu0 0.0
  %4318 = vmatprep.subr.mxu0 0.0
  %4319 = vmatpush1.msra.mxu0 0.0
  %4320 = vmatprep.subr.mxu0 0.0
  %4321 = vmatpush1.msra.mxu0 0.0
  %4322 = vmatprep.subr.mxu0 0.0
  %4323 = vmatpush1.msra.mxu0 0.0
  %4324 = vmatprep.subr.mxu0 0.0
  %4325 = vmatpush1.msra.mxu0 0.0
  %4326 = vmatprep.subr.mxu0 0.0
  %4327 = vmatpush1.msra.mxu0 0.0
  %4328 = vmatprep.subr.mxu0 0.0
  %4329 = vmatpush1.msra.mxu0 0.0
  %4330 = vmatprep.subr.mxu0 0.0
  %4331 = vmatpush1.msra.mxu0 0.0
  %4332 = vmatprep.subr.mxu0 0.0
  %4333 = vmatpush1.msra.mxu0 0.0
  %4334 = vmatprep.subr.mxu0 0.0
  %4335 = vmatpush1.msra.mxu0 0.0
  %4336 = vmatprep.subr.mxu0 0.0
  %4337 = vmatpush1.msra.mxu0 0.0
  %4338 = vmatprep.subr.mxu0 0.0
  %4339 = vmatpush1.msra.mxu0 0.0
  %4340 = vmatprep.subr.mxu0 0.0
  %4341 = vmatpush1.msra.mxu0 0.0
  %4342 = vmatprep.subr.mxu0 0.0
  %4343 = vmatpush1.msra.mxu0 0.0
  %4344 = vmatprep.subr.mxu0 0.0
  %4345 = vmatpush1.msra.mxu0 0.0
  %4346 = vmatprep.subr.mxu0 0.0
  %4347 = vmatpush1.msra.mxu0 0.0
  %4348 = vmatprep.subr.mxu0 0.0
  %4349 = vmatpush1.msra.mxu0 0.0
  %4350 = vmatprep.subr.mxu0 0.0
  %4351 = vmatpush1.msra.mxu0 0.0
  %4352 = vmatprep.mubr.f32.mxu0 0.0
  %4353 = vmatmul.mubr.f32.gmra.mrb[0].mxu0 %v4277
  %v4354 = vpop.f32.mrb[0].mxu0
  %v4355 = vadd.f32 %v321, %v4354
  %v4356 = vpop.f32.mrb[0].mxu0
  %4357 = vmatprep.mubr.f32.mxu0 0.0
  %4358 = vmatmul.mubr.f32.gmra.mrb[0].mxu0 %v4280
  %v4359 = vpop.f32.mrb[0].mxu0
  %v4360 = vadd.f32 %v321, %v4359
  %v4361 = vpop.f32.mrb[0].mxu0
  %4362 = vmatprep.mubr.f32.mxu0 0.0
  %4363 = vmatmul.mubr.f32.gmra.mrb[0].mxu0 %v4283
  %v4364 = vpop.f32.mrb[0].mxu0
  %v4365 = vadd.f32 %v321, %v4364
  %v4366 = vpop.f32.mrb[0].mxu0
  %4367 = vmatprep.mubr.f32.mxu0 0.0
  %4368 = vmatmul.mubr.f32.gmra.mrb[0].mxu0 %v4286
  %v4369 = vpop.f32.mrb[0].mxu0
  %v4370 = vadd.f32 %v321, %v4369
  %v4371 = vpop.f32.mrb[0].mxu0
  %4372 = vdwg.mxu0
  %v4373 = vxor.u32 %v4355, 2147483648
  %v4374 = vxor.u32 %v4360, 2147483648
  %v4375 = vxor.u32 %v4365, 2147483648
  %v4376 = vxor.u32 %v4370, 2147483648
  %v4377 = vmul.f32 %v4373, 1.442695
  %v4378 = vpow.pop %v4377
  %v4379 = vmul.f32 %v4374, 1.442695
  %v4380 = vpow.pop %v4379
  %v4381 = vmul.f32 %v4375, 1.442695
  %v4382 = vpow.pop %v4381
  %v4383 = vmul.f32 %v4376, 1.442695
  %v4384 = vpow.pop %v4383
  %v4385 = vadd.f32 %v4378, 1.0
  %v4386 = vadd.f32 %v4380, 1.0
  %v4387 = vadd.f32 %v4382, 1.0
  %v4388 = vadd.f32 %v4384, 1.0
  %v4389 = vrcp.pop %v4385
  %v4390 = vmul.f32 1.0, %v4389
  %v4391 = vrcp.pop %v4386
  %v4392 = vmul.f32 1.0, %v4391
  %v4393 = vrcp.pop %v4387
  %v4394 = vmul.f32 1.0, %v4393
  %v4395 = vrcp.pop %v4388
  %v4396 = vmul.f32 1.0, %v4395
  %4397 = vrot.lane.b32.xlu0 %v4029, 96
  %v4398 = vpop.permute.xlu0 %4397
  %4399 = vrot.lane.b32.xlu0 %v4030, 96
  %v4400 = vpop.permute.xlu0 %4399
  %4401 = vrot.lane.b32.xlu0 %v4031, 96
  %v4402 = vpop.permute.xlu0 %4401
  %4403 = vrot.lane.b32.xlu0 %v4032, 96
  %v4404 = vpop.permute.xlu0 %4403
  %v4409 = vmul.f32 %v4390, %v4398
  %v4410 = vmul.f32 %v4392, %v4400
  %v4411 = vmul.f32 %v4394, %v4402
  %v4412 = vmul.f32 %v4396, %v4404
  %4413 = vmatprep.subr.mxu0 0.0
  %4414 = vmatpush1.msra.mxu0 %v4409
  %4415 = vmatprep.subr.mxu0 0.0
  %4416 = vmatpush1.msra.mxu0 %v4410
  %4417 = vmatprep.subr.mxu0 0.0
  %4418 = vmatpush1.msra.mxu0 %v4411
  %4419 = vmatprep.subr.mxu0 0.0
  %4420 = vmatpush1.msra.mxu0 %v4412
  %4421 = vmatprep.subr.mxu0 0.0
  %4422 = vmatpush1.msra.mxu0 0.0
  %4423 = vmatprep.subr.mxu0 0.0
  %4424 = vmatpush1.msra.mxu0 0.0
  %4425 = vmatprep.subr.mxu0 0.0
  %4426 = vmatpush1.msra.mxu0 0.0
  %4427 = vmatprep.subr.mxu0 0.0
  %4428 = vmatpush1.msra.mxu0 0.0
  %4429 = vmatprep.subr.mxu0 0.0
  %4430 = vmatpush1.msra.mxu0 0.0
  %4431 = vmatprep.subr.mxu0 0.0
  %4432 = vmatpush1.msra.mxu0 0.0
  %4433 = vmatprep.subr.mxu0 0.0
  %4434 = vmatpush1.msra.mxu0 0.0
  %4435 = vmatprep.subr.mxu0 0.0
  %4436 = vmatpush1.msra.mxu0 0.0
  %4437 = vmatprep.subr.mxu0 0.0
  %4438 = vmatpush1.msra.mxu0 0.0
  %4439 = vmatprep.subr.mxu0 0.0
  %4440 = vmatpush1.msra.mxu0 0.0
  %4441 = vmatprep.subr.mxu0 0.0
  %4442 = vmatpush1.msra.mxu0 0.0
  %4443 = vmatprep.subr.mxu0 0.0
  %4444 = vmatpush1.msra.mxu0 0.0
  %4445 = vmatprep.subr.mxu0 0.0
  %4446 = vmatpush1.msra.mxu0 0.0
  %4447 = vmatprep.subr.mxu0 0.0
  %4448 = vmatpush1.msra.mxu0 0.0
  %4449 = vmatprep.subr.mxu0 0.0
  %4450 = vmatpush1.msra.mxu0 0.0
  %4451 = vmatprep.subr.mxu0 0.0
  %4452 = vmatpush1.msra.mxu0 0.0
  %4453 = vmatprep.subr.mxu0 0.0
  %4454 = vmatpush1.msra.mxu0 0.0
  %4455 = vmatprep.subr.mxu0 0.0
  %4456 = vmatpush1.msra.mxu0 0.0
  %4457 = vmatprep.subr.mxu0 0.0
  %4458 = vmatpush1.msra.mxu0 0.0
  %4459 = vmatprep.subr.mxu0 0.0
  %4460 = vmatpush1.msra.mxu0 0.0
  %4461 = vmatprep.subr.mxu0 0.0
  %4462 = vmatpush1.msra.mxu0 0.0
  %4463 = vmatprep.subr.mxu0 0.0
  %4464 = vmatpush1.msra.mxu0 0.0
  %4465 = vmatprep.subr.mxu0 0.0
  %4466 = vmatpush1.msra.mxu0 0.0
  %4467 = vmatprep.subr.mxu0 0.0
  %4468 = vmatpush1.msra.mxu0 0.0
  %4469 = vmatprep.subr.mxu0 0.0
  %4470 = vmatpush1.msra.mxu0 0.0
  %4471 = vmatprep.subr.mxu0 0.0
  %4472 = vmatpush1.msra.mxu0 0.0
  %4473 = vmatprep.subr.mxu0 0.0
  %4474 = vmatpush1.msra.mxu0 0.0
  %4475 = vmatprep.subr.mxu0 0.0
  %4476 = vmatpush1.msra.mxu0 0.0
  %4477 = vmatprep.mubr.f32.mxu0 0.0
  %4478 = vmatmul.mubr.f32.gmra.mrb[0].mxu0 %v86
  %v4479 = vpop.f32.mrb[0].mxu0
  %v4480 = vadd.f32 0.0, %v4479
  %v4481 = vpop.f32.mrb[0].mxu0
  %4482 = vmatprep.mubr.f32.mxu0 0.0
  %4483 = vmatmul.mubr.f32.gmra.mrb[0].mxu0 %v89
  %v4484 = vpop.f32.mrb[0].mxu0
  %v4485 = vadd.f32 0.0, %v4484
  %v4486 = vpop.f32.mrb[0].mxu0
  %4487 = vmatprep.mubr.f32.mxu0 0.0
  %4488 = vmatmul.mubr.f32.gmra.mrb[0].mxu0 %v92
  %v4489 = vpop.f32.mrb[0].mxu0
  %v4490 = vadd.f32 0.0, %v4489
  %v4491 = vpop.f32.mrb[0].mxu0
  %4492 = vmatprep.mubr.f32.mxu0 0.0
  %4493 = vmatmul.mubr.f32.gmra.mrb[0].mxu0 %v95
  %v4494 = vpop.f32.mrb[0].mxu0
  %v4495 = vadd.f32 0.0, %v4494
  %v4496 = vpop.f32.mrb[0].mxu0
  %4497 = vdwg.mxu0
  %4498 = vmatprep.subr.mxu0 0.0
  %4499 = vmatpush1.msra.mxu0 %v4480
  %4500 = vmatprep.subr.mxu0 0.0
  %4501 = vmatpush1.msra.mxu0 %v4485
  %4502 = vmatprep.subr.mxu0 0.0
  %4503 = vmatpush1.msra.mxu0 %v4490
  %4504 = vmatprep.subr.mxu0 0.0
  %4505 = vmatpush1.msra.mxu0 %v4495
  %4506 = vmatprep.subr.mxu0 0.0
  %4507 = vmatpush1.msra.mxu0 0.0
  %4508 = vmatprep.subr.mxu0 0.0
  %4509 = vmatpush1.msra.mxu0 0.0
  %4510 = vmatprep.subr.mxu0 0.0
  %4511 = vmatpush1.msra.mxu0 0.0
  %4512 = vmatprep.subr.mxu0 0.0
  %4513 = vmatpush1.msra.mxu0 0.0
  %4514 = vmatprep.subr.mxu0 0.0
  %4515 = vmatpush1.msra.mxu0 0.0
  %4516 = vmatprep.subr.mxu0 0.0
  %4517 = vmatpush1.msra.mxu0 0.0
  %4518 = vmatprep.subr.mxu0 0.0
  %4519 = vmatpush1.msra.mxu0 0.0
  %4520 = vmatprep.subr.mxu0 0.0
  %4521 = vmatpush1.msra.mxu0 0.0
  %4522 = vmatprep.subr.mxu0 0.0
  %4523 = vmatpush1.msra.mxu0 0.0
  %4524 = vmatprep.subr.mxu0 0.0
  %4525 = vmatpush1.msra.mxu0 0.0
  %4526 = vmatprep.subr.mxu0 0.0
  %4527 = vmatpush1.msra.mxu0 0.0
  %4528 = vmatprep.subr.mxu0 0.0
  %4529 = vmatpush1.msra.mxu0 0.0
  %4530 = vmatprep.subr.mxu0 0.0
  %4531 = vmatpush1.msra.mxu0 0.0
  %4532 = vmatprep.subr.mxu0 0.0
  %4533 = vmatpush1.msra.mxu0 0.0
  %4534 = vmatprep.subr.mxu0 0.0
  %4535 = vmatpush1.msra.mxu0 0.0
  %4536 = vmatprep.subr.mxu0 0.0
  %4537 = vmatpush1.msra.mxu0 0.0
  %4538 = vmatprep.subr.mxu0 0.0
  %4539 = vmatpush1.msra.mxu0 0.0
  %4540 = vmatprep.subr.mxu0 0.0
  %4541 = vmatpush1.msra.mxu0 0.0
  %4542 = vmatprep.subr.mxu0 0.0
  %4543 = vmatpush1.msra.mxu0 0.0
  %4544 = vmatprep.subr.mxu0 0.0
  %4545 = vmatpush1.msra.mxu0 0.0
  %4546 = vmatprep.subr.mxu0 0.0
  %4547 = vmatpush1.msra.mxu0 0.0
  %4548 = vmatprep.subr.mxu0 0.0
  %4549 = vmatpush1.msra.mxu0 0.0
  %4550 = vmatprep.subr.mxu0 0.0
  %4551 = vmatpush1.msra.mxu0 0.0
  %4552 = vmatprep.subr.mxu0 0.0
  %4553 = vmatpush1.msra.mxu0 0.0
  %4554 = vmatprep.subr.mxu0 0.0
  %4555 = vmatpush1.msra.mxu0 0.0
  %4556 = vmatprep.subr.mxu0 0.0
  %4557 = vmatpush1.msra.mxu0 0.0
  %4558 = vmatprep.subr.mxu0 0.0
  %4559 = vmatpush1.msra.mxu0 0.0
  %4560 = vmatprep.subr.mxu0 0.0
  %4561 = vmatpush1.msra.mxu0 0.0
  %4562 = vmatprep.mubr.f32.mxu0 0.0
  %4563 = vmatmul.mubr.f32.gmra.mrb[0].mxu0 %v86
  %v4564 = vpop.f32.mrb[0].mxu0
  %v4565 = vadd.f32 0.0, %v4564
  %v4566 = vpop.f32.mrb[0].mxu0
  %4567 = vmatprep.mubr.f32.mxu0 0.0
  %4568 = vmatmul.mubr.f32.gmra.mrb[0].mxu0 %v89
  %v4569 = vpop.f32.mrb[0].mxu0
  %v4570 = vadd.f32 0.0, %v4569
  %v4571 = vpop.f32.mrb[0].mxu0
  %4572 = vmatprep.mubr.f32.mxu0 0.0
  %4573 = vmatmul.mubr.f32.gmra.mrb[0].mxu0 %v92
  %v4574 = vpop.f32.mrb[0].mxu0
  %v4575 = vadd.f32 0.0, %v4574
  %v4576 = vpop.f32.mrb[0].mxu0
  %4577 = vmatprep.mubr.f32.mxu0 0.0
  %4578 = vmatmul.mubr.f32.gmra.mrb[0].mxu0 %v95
  %v4579 = vpop.f32.mrb[0].mxu0
  %v4580 = vadd.f32 0.0, %v4579
  %v4581 = vpop.f32.mrb[0].mxu0
  %4582 = vdwg.mxu0
  %v4583 = vmul.f32 %v4565, 2.0
  %v4584 = vmul.f32 %v4570, 2.0
  %v4585 = vmul.f32 %v4575, 2.0
  %v4586 = vmul.f32 %v4580, 2.0
  %v4587 = vsub.f32 %v4583, %v4409
  %v4588 = vsub.f32 %v4584, %v4410
  %v4589 = vsub.f32 %v4585, %v4411
  %v4590 = vsub.f32 %v4586, %v4412
  %4595 = vrot.lane.b32.xlu0 %v4409, 2
  %v4596 = vpop.permute.xlu0 %4595
  %4597 = vrot.lane.b32.xlu0 %v4410, 2
  %v4598 = vpop.permute.xlu0 %4597
  %4599 = vrot.lane.b32.xlu0 %v4411, 2
  %v4600 = vpop.permute.xlu0 %4599
  %4601 = vrot.lane.b32.xlu0 %v4412, 2
  %v4602 = vpop.permute.xlu0 %4601
  %v4607 = vsel %vm79, %v4054, %v4596
  %v4608 = vsel %vm79, %v4055, %v4598
  %v4609 = vsel %vm79, %v4056, %v4600
  %v4610 = vsel %vm79, %v4057, %v4602
  %4615 = vrot.lane.b32.xlu0 %v4480, 2
  %v4616 = vpop.permute.xlu0 %4615
  %4617 = vrot.lane.b32.xlu0 %v4485, 2
  %v4618 = vpop.permute.xlu0 %4617
  %4619 = vrot.lane.b32.xlu0 %v4490, 2
  %v4620 = vpop.permute.xlu0 %4619
  %4621 = vrot.lane.b32.xlu0 %v4495, 2
  %v4622 = vpop.permute.xlu0 %4621
  %v4627 = vsel %vm79, %v4125, %v4616
  %v4628 = vsel %vm79, %v4130, %v4618
  %v4629 = vsel %vm79, %v4135, %v4620
  %v4630 = vsel %vm79, %v4140, %v4622
  %4635 = vrot.lane.b32.xlu0 %v4587, 2
  %v4636 = vpop.permute.xlu0 %4635
  %4637 = vrot.lane.b32.xlu0 %v4588, 2
  %v4638 = vpop.permute.xlu0 %4637
  %4639 = vrot.lane.b32.xlu0 %v4589, 2
  %v4640 = vpop.permute.xlu0 %4639
  %4641 = vrot.lane.b32.xlu0 %v4590, 2
  %v4642 = vpop.permute.xlu0 %4641
  %v4647 = vsel %vm79, %v4232, %v4636
  %v4648 = vsel %vm79, %v4233, %v4638
  %v4649 = vsel %vm79, %v4234, %v4640
  %v4650 = vsel %vm79, %v4235, %v4642
  %4655 = vrot.lane.b32.xlu0 %v4627, 34
  %v4656 = vpop.permute.xlu0 %4655
  %4657 = vrot.lane.b32.xlu0 %v4628, 34
  %v4658 = vpop.permute.xlu0 %4657
  %4659 = vrot.lane.b32.xlu0 %v4629, 34
  %v4660 = vpop.permute.xlu0 %4659
  %4661 = vrot.lane.b32.xlu0 %v4630, 34
  %v4662 = vpop.permute.xlu0 %4661
  %4671 = vrot.lane.b32.xlu0 %v4647, 68
  %v4672 = vpop.permute.xlu0 %4671
  %4673 = vrot.lane.b32.xlu0 %v4648, 68
  %v4674 = vpop.permute.xlu0 %4673
  %4675 = vrot.lane.b32.xlu0 %v4649, 68
  %v4676 = vpop.permute.xlu0 %4675
  %4677 = vrot.lane.b32.xlu0 %v4650, 68
  %v4678 = vpop.permute.xlu0 %4677
  %v4683 = vsel %vm307, %v4607, %v4656
  %v4684 = vsel %vm307, %v4608, %v4658
  %v4685 = vsel %vm307, %v4609, %v4660
  %v4686 = vsel %vm307, %v4610, %v4662
  %v4687 = vsel %vm312, %v4683, %v4672
  %v4688 = vsel %vm312, %v4684, %v4674
  %v4689 = vsel %vm312, %v4685, %v4676
  %v4690 = vsel %vm312, %v4686, %v4678
  %v4692 = vsel %vm323, %v4687, 0
  %v4695 = vsel %vm323, %v4688, 0
  %v4698 = vsel %vm323, %v4689, 0
  %v4701 = vsel %vm323, %v4690, 0
  %4703 = vmatprep.subr.mxu0 0.0
  %4704 = vmatpush1.msra.mxu0 %v65
  %4705 = vmatprep.subr.mxu0 0.0
  %4706 = vmatpush1.msra.mxu0 %v66
  %4707 = vmatprep.subr.mxu0 0.0
  %4708 = vmatpush1.msra.mxu0 %v67
  %4709 = vmatprep.subr.mxu0 0.0
  %4710 = vmatpush1.msra.mxu0 %v68
  %4711 = vmatprep.subr.mxu0 0.0
  %4712 = vmatpush1.msra.mxu0 %v69
  %4713 = vmatprep.subr.mxu0 0.0
  %4714 = vmatpush1.msra.mxu0 %v70
  %4715 = vmatprep.subr.mxu0 0.0
  %4716 = vmatpush1.msra.mxu0 %v71
  %4717 = vmatprep.subr.mxu0 0.0
  %4718 = vmatpush1.msra.mxu0 %v72
  %4719 = vmatprep.subr.mxu0 0.0
  %4720 = vmatpush1.msra.mxu0 %v73
  %4721 = vmatprep.subr.mxu0 0.0
  %4722 = vmatpush1.msra.mxu0 %v74
  %4723 = vmatprep.subr.mxu0 0.0
  %4724 = vmatpush1.msra.mxu0 %v75
  %4725 = vmatprep.subr.mxu0 0.0
  %4726 = vmatpush1.msra.mxu0 %v76
  %4727 = vmatprep.subr.mxu0 0.0
  %4728 = vmatpush1.msra.mxu0 %v750
  %4729 = vmatprep.subr.mxu0 0.0
  %4730 = vmatpush1.msra.mxu0 0.0
  %4731 = vmatprep.subr.mxu0 0.0
  %4732 = vmatpush1.msra.mxu0 0.0
  %4733 = vmatprep.subr.mxu0 0.0
  %4734 = vmatpush1.msra.mxu0 0.0
  %4735 = vmatprep.subr.mxu0 0.0
  %4736 = vmatpush1.msra.mxu0 0.0
  %4737 = vmatprep.subr.mxu0 0.0
  %4738 = vmatpush1.msra.mxu0 0.0
  %4739 = vmatprep.subr.mxu0 0.0
  %4740 = vmatpush1.msra.mxu0 0.0
  %4741 = vmatprep.subr.mxu0 0.0
  %4742 = vmatpush1.msra.mxu0 0.0
  %4743 = vmatprep.subr.mxu0 0.0
  %4744 = vmatpush1.msra.mxu0 0.0
  %4745 = vmatprep.subr.mxu0 0.0
  %4746 = vmatpush1.msra.mxu0 0.0
  %4747 = vmatprep.subr.mxu0 0.0
  %4748 = vmatpush1.msra.mxu0 0.0
  %4749 = vmatprep.subr.mxu0 0.0
  %4750 = vmatpush1.msra.mxu0 0.0
  %4751 = vmatprep.subr.mxu0 0.0
  %4752 = vmatpush1.msra.mxu0 0.0
  %4753 = vmatprep.subr.mxu0 0.0
  %4754 = vmatpush1.msra.mxu0 0.0
  %4755 = vmatprep.subr.mxu0 0.0
  %4756 = vmatpush1.msra.mxu0 0.0
  %4757 = vmatprep.subr.mxu0 0.0
  %4758 = vmatpush1.msra.mxu0 0.0
  %4759 = vmatprep.subr.mxu0 0.0
  %4760 = vmatpush1.msra.mxu0 0.0
  %4761 = vmatprep.subr.mxu0 0.0
  %4762 = vmatpush1.msra.mxu0 0.0
  %4763 = vmatprep.subr.mxu0 0.0
  %4764 = vmatpush1.msra.mxu0 0.0
  %4765 = vmatprep.subr.mxu0 0.0
  %4766 = vmatpush1.msra.mxu0 0.0
  %4767 = vmatprep.mubr.f32.mxu0 0.0
  %4768 = vmatmul.mubr.f32.gmra.mrb[0].mxu0 %v4692
  %v4769 = vpop.f32.mrb[0].mxu0
  %v4770 = vadd.f32 %v735, %v4769
  %v4771 = vpop.f32.mrb[0].mxu0
  %4772 = vmatprep.mubr.f32.mxu0 0.0
  %4773 = vmatmul.mubr.f32.gmra.mrb[0].mxu0 %v4695
  %v4774 = vpop.f32.mrb[0].mxu0
  %v4775 = vadd.f32 %v735, %v4774
  %v4776 = vpop.f32.mrb[0].mxu0
  %4777 = vmatprep.mubr.f32.mxu0 0.0
  %4778 = vmatmul.mubr.f32.gmra.mrb[0].mxu0 %v4698
  %v4779 = vpop.f32.mrb[0].mxu0
  %v4780 = vadd.f32 %v735, %v4779
  %v4781 = vpop.f32.mrb[0].mxu0
  %4782 = vmatprep.mubr.f32.mxu0 0.0
  %4783 = vmatmul.mubr.f32.gmra.mrb[0].mxu0 %v4701
  %v4784 = vpop.f32.mrb[0].mxu0
  %v4785 = vadd.f32 %v735, %v4784
  %v4786 = vpop.f32.mrb[0].mxu0
  %4787 = vdwg.mxu0
  %v4788 = vtanh.pop %v4770
  %v4789 = vtanh.pop %v4775
  %v4790 = vtanh.pop %v4780
  %v4791 = vtanh.pop %v4785
  %v4792 = vmul.f32 %v4390, %v4029
  %v4793 = vmul.f32 %v4392, %v4030
  %v4794 = vmul.f32 %v4394, %v4031
  %v4795 = vmul.f32 %v4396, %v4032
  %v4796 = vsub.f32 1.0, %v4390
  %v4797 = vsub.f32 1.0, %v4392
  %v4798 = vsub.f32 1.0, %v4394
  %v4799 = vsub.f32 1.0, %v4396
  %4804 = vrot.lane.b32.xlu0 %v4788, 32
  %v4805 = vpop.permute.xlu0 %4804
  %4806 = vrot.lane.b32.xlu0 %v4789, 32
  %v4807 = vpop.permute.xlu0 %4806
  %4808 = vrot.lane.b32.xlu0 %v4790, 32
  %v4809 = vpop.permute.xlu0 %4808
  %4810 = vrot.lane.b32.xlu0 %v4791, 32
  %v4811 = vpop.permute.xlu0 %4810
  %v4816 = vmul.f32 %v4796, %v4805
  %v4817 = vmul.f32 %v4797, %v4807
  %v4818 = vmul.f32 %v4798, %v4809
  %v4819 = vmul.f32 %v4799, %v4811
  %v4820 = vadd.f32 %v4792, %v4816
  %v4821 = vadd.f32 %v4793, %v4817
  %v4822 = vadd.f32 %v4794, %v4818
  %v4823 = vadd.f32 %v4795, %v4819
  %s4824 = scalar_lea.vmem %s0, 192
  %v4825 = vld [vmem:[%s4824] sm:$0xff]
  %v4826 = vld [vmem:[%s4824 + $0x8] sm:$0xff]
  %v4827 = vld [vmem:[%s4824 + $0x10] sm:$0xff]
  %v4828 = vld [vmem:[%s4824 + $0x18] sm:$0xff]
  %4833 = vrot.lane.b32.xlu0 %v4820, 98
  %v4834 = vpop.permute.xlu0 %4833
  %4835 = vrot.lane.b32.xlu0 %v4821, 98
  %v4836 = vpop.permute.xlu0 %4835
  %4837 = vrot.lane.b32.xlu0 %v4822, 98
  %v4838 = vpop.permute.xlu0 %4837
  %4839 = vrot.lane.b32.xlu0 %v4823, 98
  %v4840 = vpop.permute.xlu0 %4839
  %v4845 = vsel %vm79, %v4825, %v4834
  %v4846 = vsel %vm79, %v4826, %v4836
  %v4847 = vsel %vm79, %v4827, %v4838
  %v4848 = vsel %vm79, %v4828, %v4840
  %4849 = vmatprep.subr.mxu0 0.0
  %4850 = vmatpush1.msra.mxu0 %v4845
  %4851 = vmatprep.subr.mxu0 0.0
  %4852 = vmatpush1.msra.mxu0 %v4846
  %4853 = vmatprep.subr.mxu0 0.0
  %4854 = vmatpush1.msra.mxu0 %v4847
  %4855 = vmatprep.subr.mxu0 0.0
  %4856 = vmatpush1.msra.mxu0 %v4848
  %4857 = vmatprep.subr.mxu0 0.0
  %4858 = vmatpush1.msra.mxu0 0.0
  %4859 = vmatprep.subr.mxu0 0.0
  %4860 = vmatpush1.msra.mxu0 0.0
  %4861 = vmatprep.subr.mxu0 0.0
  %4862 = vmatpush1.msra.mxu0 0.0
  %4863 = vmatprep.subr.mxu0 0.0
  %4864 = vmatpush1.msra.mxu0 0.0
  %4865 = vmatprep.subr.mxu0 0.0
  %4866 = vmatpush1.msra.mxu0 0.0
  %4867 = vmatprep.subr.mxu0 0.0
  %4868 = vmatpush1.msra.mxu0 0.0
  %4869 = vmatprep.subr.mxu0 0.0
  %4870 = vmatpush1.msra.mxu0 0.0
  %4871 = vmatprep.subr.mxu0 0.0
  %4872 = vmatpush1.msra.mxu0 0.0
  %4873 = vmatprep.subr.mxu0 0.0
  %4874 = vmatpush1.msra.mxu0 0.0
  %4875 = vmatprep.subr.mxu0 0.0
  %4876 = vmatpush1.msra.mxu0 0.0
  %4877 = vmatprep.subr.mxu0 0.0
  %4878 = vmatpush1.msra.mxu0 0.0
  %4879 = vmatprep.subr.mxu0 0.0
  %4880 = vmatpush1.msra.mxu0 0.0
  %4881 = vmatprep.subr.mxu0 0.0
  %4882 = vmatpush1.msra.mxu0 0.0
  %4883 = vmatprep.subr.mxu0 0.0
  %4884 = vmatpush1.msra.mxu0 0.0
  %4885 = vmatprep.subr.mxu0 0.0
  %4886 = vmatpush1.msra.mxu0 0.0
  %4887 = vmatprep.subr.mxu0 0.0
  %4888 = vmatpush1.msra.mxu0 0.0
  %4889 = vmatprep.subr.mxu0 0.0
  %4890 = vmatpush1.msra.mxu0 0.0
  %4891 = vmatprep.subr.mxu0 0.0
  %4892 = vmatpush1.msra.mxu0 0.0
  %4893 = vmatprep.subr.mxu0 0.0
  %4894 = vmatpush1.msra.mxu0 0.0
  %4895 = vmatprep.subr.mxu0 0.0
  %4896 = vmatpush1.msra.mxu0 0.0
  %4897 = vmatprep.subr.mxu0 0.0
  %4898 = vmatpush1.msra.mxu0 0.0
  %4899 = vmatprep.subr.mxu0 0.0
  %4900 = vmatpush1.msra.mxu0 0.0
  %4901 = vmatprep.subr.mxu0 0.0
  %4902 = vmatpush1.msra.mxu0 0.0
  %4903 = vmatprep.subr.mxu0 0.0
  %4904 = vmatpush1.msra.mxu0 0.0
  %4905 = vmatprep.subr.mxu0 0.0
  %4906 = vmatpush1.msra.mxu0 0.0
  %4907 = vmatprep.subr.mxu0 0.0
  %4908 = vmatpush1.msra.mxu0 0.0
  %4909 = vmatprep.subr.mxu0 0.0
  %4910 = vmatpush1.msra.mxu0 0.0
  %4911 = vmatprep.subr.mxu0 0.0
  %4912 = vmatpush1.msra.mxu0 0.0
  %4913 = vmatprep.mubr.f32.mxu0 0.0
  %4914 = vmatmul.mubr.f32.gmra.mrb[0].mxu0 %v86
  %v4915 = vpop.f32.mrb[0].mxu0
  %v4916 = vadd.f32 0.0, %v4915
  %v4917 = vpop.f32.mrb[0].mxu0
  %4918 = vmatprep.mubr.f32.mxu0 0.0
  %4919 = vmatmul.mubr.f32.gmra.mrb[0].mxu0 %v89
  %v4920 = vpop.f32.mrb[0].mxu0
  %v4921 = vadd.f32 0.0, %v4920
  %v4922 = vpop.f32.mrb[0].mxu0
  %4923 = vmatprep.mubr.f32.mxu0 0.0
  %4924 = vmatmul.mubr.f32.gmra.mrb[0].mxu0 %v92
  %v4925 = vpop.f32.mrb[0].mxu0
  %v4926 = vadd.f32 0.0, %v4925
  %v4927 = vpop.f32.mrb[0].mxu0
  %4928 = vmatprep.mubr.f32.mxu0 0.0
  %4929 = vmatmul.mubr.f32.gmra.mrb[0].mxu0 %v95
  %v4930 = vpop.f32.mrb[0].mxu0
  %v4931 = vadd.f32 0.0, %v4930
  %v4932 = vpop.f32.mrb[0].mxu0
  %4933 = vdwg.mxu0
  %4934 = vmatprep.subr.mxu0 0.0
  %4935 = vmatpush1.msra.mxu0 %v4916
  %4936 = vmatprep.subr.mxu0 0.0
  %4937 = vmatpush1.msra.mxu0 %v4921
  %4938 = vmatprep.subr.mxu0 0.0
  %4939 = vmatpush1.msra.mxu0 %v4926
  %4940 = vmatprep.subr.mxu0 0.0
  %4941 = vmatpush1.msra.mxu0 %v4931
  %4942 = vmatprep.subr.mxu0 0.0
  %4943 = vmatpush1.msra.mxu0 0.0
  %4944 = vmatprep.subr.mxu0 0.0
  %4945 = vmatpush1.msra.mxu0 0.0
  %4946 = vmatprep.subr.mxu0 0.0
  %4947 = vmatpush1.msra.mxu0 0.0
  %4948 = vmatprep.subr.mxu0 0.0
  %4949 = vmatpush1.msra.mxu0 0.0
  %4950 = vmatprep.subr.mxu0 0.0
  %4951 = vmatpush1.msra.mxu0 0.0
  %4952 = vmatprep.subr.mxu0 0.0
  %4953 = vmatpush1.msra.mxu0 0.0
  %4954 = vmatprep.subr.mxu0 0.0
  %4955 = vmatpush1.msra.mxu0 0.0
  %4956 = vmatprep.subr.mxu0 0.0
  %4957 = vmatpush1.msra.mxu0 0.0
  %4958 = vmatprep.subr.mxu0 0.0
  %4959 = vmatpush1.msra.mxu0 0.0
  %4960 = vmatprep.subr.mxu0 0.0
  %4961 = vmatpush1.msra.mxu0 0.0
  %4962 = vmatprep.subr.mxu0 0.0
  %4963 = vmatpush1.msra.mxu0 0.0
  %4964 = vmatprep.subr.mxu0 0.0
  %4965 = vmatpush1.msra.mxu0 0.0
  %4966 = vmatprep.subr.mxu0 0.0
  %4967 = vmatpush1.msra.mxu0 0.0
  %4968 = vmatprep.subr.mxu0 0.0
  %4969 = vmatpush1.msra.mxu0 0.0
  %4970 = vmatprep.subr.mxu0 0.0
  %4971 = vmatpush1.msra.mxu0 0.0
  %4972 = vmatprep.subr.mxu0 0.0
  %4973 = vmatpush1.msra.mxu0 0.0
  %4974 = vmatprep.subr.mxu0 0.0
  %4975 = vmatpush1.msra.mxu0 0.0
  %4976 = vmatprep.subr.mxu0 0.0
  %4977 = vmatpush1.msra.mxu0 0.0
  %4978 = vmatprep.subr.mxu0 0.0
  %4979 = vmatpush1.msra.mxu0 0.0
  %4980 = vmatprep.subr.mxu0 0.0
  %4981 = vmatpush1.msra.mxu0 0.0
  %4982 = vmatprep.subr.mxu0 0.0
  %4983 = vmatpush1.msra.mxu0 0.0
  %4984 = vmatprep.subr.mxu0 0.0
  %4985 = vmatpush1.msra.mxu0 0.0
  %4986 = vmatprep.subr.mxu0 0.0
  %4987 = vmatpush1.msra.mxu0 0.0
  %4988 = vmatprep.subr.mxu0 0.0
  %4989 = vmatpush1.msra.mxu0 0.0
  %4990 = vmatprep.subr.mxu0 0.0
  %4991 = vmatpush1.msra.mxu0 0.0
  %4992 = vmatprep.subr.mxu0 0.0
  %4993 = vmatpush1.msra.mxu0 0.0
  %4994 = vmatprep.subr.mxu0 0.0
  %4995 = vmatpush1.msra.mxu0 0.0
  %4996 = vmatprep.subr.mxu0 0.0
  %4997 = vmatpush1.msra.mxu0 0.0
  %4998 = vmatprep.mubr.f32.mxu0 0.0
  %4999 = vmatmul.mubr.f32.gmra.mrb[0].mxu0 %v86
  %v5000 = vpop.f32.mrb[0].mxu0
  %v5001 = vadd.f32 0.0, %v5000
  %v5002 = vpop.f32.mrb[0].mxu0
  %5003 = vmatprep.mubr.f32.mxu0 0.0
  %5004 = vmatmul.mubr.f32.gmra.mrb[0].mxu0 %v89
  %v5005 = vpop.f32.mrb[0].mxu0
  %v5006 = vadd.f32 0.0, %v5005
  %v5007 = vpop.f32.mrb[0].mxu0
  %5008 = vmatprep.mubr.f32.mxu0 0.0
  %5009 = vmatmul.mubr.f32.gmra.mrb[0].mxu0 %v92
  %v5010 = vpop.f32.mrb[0].mxu0
  %v5011 = vadd.f32 0.0, %v5010
  %v5012 = vpop.f32.mrb[0].mxu0
  %5013 = vmatprep.mubr.f32.mxu0 0.0
  %5014 = vmatmul.mubr.f32.gmra.mrb[0].mxu0 %v95
  %v5015 = vpop.f32.mrb[0].mxu0
  %v5016 = vadd.f32 0.0, %v5015
  %v5017 = vpop.f32.mrb[0].mxu0
  %5018 = vdwg.mxu0
  %v5019 = vmul.f32 %v5001, 2.0
  %v5020 = vmul.f32 %v5006, 2.0
  %v5021 = vmul.f32 %v5011, 2.0
  %v5022 = vmul.f32 %v5016, 2.0
  %v5023 = vsub.f32 %v5019, %v4845
  %v5024 = vsub.f32 %v5020, %v4846
  %v5025 = vsub.f32 %v5021, %v4847
  %v5026 = vsub.f32 %v5022, %v4848
  %5031 = vrot.lane.b32.xlu0 %v4916, 34
  %v5032 = vpop.permute.xlu0 %5031
  %5033 = vrot.lane.b32.xlu0 %v4921, 34
  %v5034 = vpop.permute.xlu0 %5033
  %5035 = vrot.lane.b32.xlu0 %v4926, 34
  %v5036 = vpop.permute.xlu0 %5035
  %5037 = vrot.lane.b32.xlu0 %v4931, 34
  %v5038 = vpop.permute.xlu0 %5037
  %5047 = vrot.lane.b32.xlu0 %v5023, 68
  %v5048 = vpop.permute.xlu0 %5047
  %5049 = vrot.lane.b32.xlu0 %v5024, 68
  %v5050 = vpop.permute.xlu0 %5049
  %5051 = vrot.lane.b32.xlu0 %v5025, 68
  %v5052 = vpop.permute.xlu0 %5051
  %5053 = vrot.lane.b32.xlu0 %v5026, 68
  %v5054 = vpop.permute.xlu0 %5053
  %v5059 = vsel %vm307, %v4845, %v5032
  %v5060 = vsel %vm307, %v4846, %v5034
  %v5061 = vsel %vm307, %v4847, %v5036
  %v5062 = vsel %vm307, %v4848, %v5038
  %v5063 = vsel %vm312, %v5059, %v5048
  %v5064 = vsel %vm312, %v5060, %v5050
  %v5065 = vsel %vm312, %v5061, %v5052
  %v5066 = vsel %vm312, %v5062, %v5054
  %v5068 = vsel %vm323, %v5063, 0
  %v5071 = vsel %vm323, %v5064, 0
  %v5074 = vsel %vm323, %v5065, 0
  %v5077 = vsel %vm323, %v5066, 0
  %5079 = vmatprep.subr.mxu0 0.0
  %5080 = vmatpush1.msra.mxu0 %v51
  %5081 = vmatprep.subr.mxu0 0.0
  %5082 = vmatpush1.msra.mxu0 %v52
  %5083 = vmatprep.subr.mxu0 0.0
  %5084 = vmatpush1.msra.mxu0 %v53
  %5085 = vmatprep.subr.mxu0 0.0
  %5086 = vmatpush1.msra.mxu0 %v54
  %5087 = vmatprep.subr.mxu0 0.0
  %5088 = vmatpush1.msra.mxu0 %v55
  %5089 = vmatprep.subr.mxu0 0.0
  %5090 = vmatpush1.msra.mxu0 %v56
  %5091 = vmatprep.subr.mxu0 0.0
  %5092 = vmatpush1.msra.mxu0 %v57
  %5093 = vmatprep.subr.mxu0 0.0
  %5094 = vmatpush1.msra.mxu0 %v58
  %5095 = vmatprep.subr.mxu0 0.0
  %5096 = vmatpush1.msra.mxu0 %v59
  %5097 = vmatprep.subr.mxu0 0.0
  %5098 = vmatpush1.msra.mxu0 %v60
  %5099 = vmatprep.subr.mxu0 0.0
  %5100 = vmatpush1.msra.mxu0 %v61
  %5101 = vmatprep.subr.mxu0 0.0
  %5102 = vmatpush1.msra.mxu0 %v62
  %5103 = vmatprep.subr.mxu0 0.0
  %5104 = vmatpush1.msra.mxu0 %v338
  %5105 = vmatprep.subr.mxu0 0.0
  %5106 = vmatpush1.msra.mxu0 0.0
  %5107 = vmatprep.subr.mxu0 0.0
  %5108 = vmatpush1.msra.mxu0 0.0
  %5109 = vmatprep.subr.mxu0 0.0
  %5110 = vmatpush1.msra.mxu0 0.0
  %5111 = vmatprep.subr.mxu0 0.0
  %5112 = vmatpush1.msra.mxu0 0.0
  %5113 = vmatprep.subr.mxu0 0.0
  %5114 = vmatpush1.msra.mxu0 0.0
  %5115 = vmatprep.subr.mxu0 0.0
  %5116 = vmatpush1.msra.mxu0 0.0
  %5117 = vmatprep.subr.mxu0 0.0
  %5118 = vmatpush1.msra.mxu0 0.0
  %5119 = vmatprep.subr.mxu0 0.0
  %5120 = vmatpush1.msra.mxu0 0.0
  %5121 = vmatprep.subr.mxu0 0.0
  %5122 = vmatpush1.msra.mxu0 0.0
  %5123 = vmatprep.subr.mxu0 0.0
  %5124 = vmatpush1.msra.mxu0 0.0
  %5125 = vmatprep.subr.mxu0 0.0
  %5126 = vmatpush1.msra.mxu0 0.0
  %5127 = vmatprep.subr.mxu0 0.0
  %5128 = vmatpush1.msra.mxu0 0.0
  %5129 = vmatprep.subr.mxu0 0.0
  %5130 = vmatpush1.msra.mxu0 0.0
  %5131 = vmatprep.subr.mxu0 0.0
  %5132 = vmatpush1.msra.mxu0 0.0
  %5133 = vmatprep.subr.mxu0 0.0
  %5134 = vmatpush1.msra.mxu0 0.0
  %5135 = vmatprep.subr.mxu0 0.0
  %5136 = vmatpush1.msra.mxu0 0.0
  %5137 = vmatprep.subr.mxu0 0.0
  %5138 = vmatpush1.msra.mxu0 0.0
  %5139 = vmatprep.subr.mxu0 0.0
  %5140 = vmatpush1.msra.mxu0 0.0
  %5141 = vmatprep.subr.mxu0 0.0
  %5142 = vmatpush1.msra.mxu0 0.0
  %5143 = vmatprep.mubr.f32.mxu0 0.0
  %5144 = vmatmul.mubr.f32.gmra.mrb[0].mxu0 %v5068
  %v5145 = vpop.f32.mrb[0].mxu0
  %v5146 = vadd.f32 %v321, %v5145
  %v5147 = vpop.f32.mrb[0].mxu0
  %5148 = vmatprep.mubr.f32.mxu0 0.0
  %5149 = vmatmul.mubr.f32.gmra.mrb[0].mxu0 %v5071
  %v5150 = vpop.f32.mrb[0].mxu0
  %v5151 = vadd.f32 %v321, %v5150
  %v5152 = vpop.f32.mrb[0].mxu0
  %5153 = vmatprep.mubr.f32.mxu0 0.0
  %5154 = vmatmul.mubr.f32.gmra.mrb[0].mxu0 %v5074
  %v5155 = vpop.f32.mrb[0].mxu0
  %v5156 = vadd.f32 %v321, %v5155
  %v5157 = vpop.f32.mrb[0].mxu0
  %5158 = vmatprep.mubr.f32.mxu0 0.0
  %5159 = vmatmul.mubr.f32.gmra.mrb[0].mxu0 %v5077
  %v5160 = vpop.f32.mrb[0].mxu0
  %v5161 = vadd.f32 %v321, %v5160
  %v5162 = vpop.f32.mrb[0].mxu0
  %5163 = vdwg.mxu0
  %v5164 = vxor.u32 %v5146, 2147483648
  %v5165 = vxor.u32 %v5151, 2147483648
  %v5166 = vxor.u32 %v5156, 2147483648
  %v5167 = vxor.u32 %v5161, 2147483648
  %v5168 = vmul.f32 %v5164, 1.442695
  %v5169 = vpow.pop %v5168
  %v5170 = vmul.f32 %v5165, 1.442695
  %v5171 = vpow.pop %v5170
  %v5172 = vmul.f32 %v5166, 1.442695
  %v5173 = vpow.pop %v5172
  %v5174 = vmul.f32 %v5167, 1.442695
  %v5175 = vpow.pop %v5174
  %v5176 = vadd.f32 %v5169, 1.0
  %v5177 = vadd.f32 %v5171, 1.0
  %v5178 = vadd.f32 %v5173, 1.0
  %v5179 = vadd.f32 %v5175, 1.0
  %v5180 = vrcp.pop %v5176
  %v5181 = vmul.f32 1.0, %v5180
  %v5182 = vrcp.pop %v5177
  %v5183 = vmul.f32 1.0, %v5182
  %v5184 = vrcp.pop %v5178
  %v5185 = vmul.f32 1.0, %v5184
  %v5186 = vrcp.pop %v5179
  %v5187 = vmul.f32 1.0, %v5186
  %5188 = vrot.lane.b32.xlu0 %v4820, 96
  %v5189 = vpop.permute.xlu0 %5188
  %5190 = vrot.lane.b32.xlu0 %v4821, 96
  %v5191 = vpop.permute.xlu0 %5190
  %5192 = vrot.lane.b32.xlu0 %v4822, 96
  %v5193 = vpop.permute.xlu0 %5192
  %5194 = vrot.lane.b32.xlu0 %v4823, 96
  %v5195 = vpop.permute.xlu0 %5194
  %v5200 = vmul.f32 %v5181, %v5189
  %v5201 = vmul.f32 %v5183, %v5191
  %v5202 = vmul.f32 %v5185, %v5193
  %v5203 = vmul.f32 %v5187, %v5195
  %5204 = vmatprep.subr.mxu0 0.0
  %5205 = vmatpush1.msra.mxu0 %v5200
  %5206 = vmatprep.subr.mxu0 0.0
  %5207 = vmatpush1.msra.mxu0 %v5201
  %5208 = vmatprep.subr.mxu0 0.0
  %5209 = vmatpush1.msra.mxu0 %v5202
  %5210 = vmatprep.subr.mxu0 0.0
  %5211 = vmatpush1.msra.mxu0 %v5203
  %5212 = vmatprep.subr.mxu0 0.0
  %5213 = vmatpush1.msra.mxu0 0.0
  %5214 = vmatprep.subr.mxu0 0.0
  %5215 = vmatpush1.msra.mxu0 0.0
  %5216 = vmatprep.subr.mxu0 0.0
  %5217 = vmatpush1.msra.mxu0 0.0
  %5218 = vmatprep.subr.mxu0 0.0
  %5219 = vmatpush1.msra.mxu0 0.0
  %5220 = vmatprep.subr.mxu0 0.0
  %5221 = vmatpush1.msra.mxu0 0.0
  %5222 = vmatprep.subr.mxu0 0.0
  %5223 = vmatpush1.msra.mxu0 0.0
  %5224 = vmatprep.subr.mxu0 0.0
  %5225 = vmatpush1.msra.mxu0 0.0
  %5226 = vmatprep.subr.mxu0 0.0
  %5227 = vmatpush1.msra.mxu0 0.0
  %5228 = vmatprep.subr.mxu0 0.0
  %5229 = vmatpush1.msra.mxu0 0.0
  %5230 = vmatprep.subr.mxu0 0.0
  %5231 = vmatpush1.msra.mxu0 0.0
  %5232 = vmatprep.subr.mxu0 0.0
  %5233 = vmatpush1.msra.mxu0 0.0
  %5234 = vmatprep.subr.mxu0 0.0
  %5235 = vmatpush1.msra.mxu0 0.0
  %5236 = vmatprep.subr.mxu0 0.0
  %5237 = vmatpush1.msra.mxu0 0.0
  %5238 = vmatprep.subr.mxu0 0.0
  %5239 = vmatpush1.msra.mxu0 0.0
  %5240 = vmatprep.subr.mxu0 0.0
  %5241 = vmatpush1.msra.mxu0 0.0
  %5242 = vmatprep.subr.mxu0 0.0
  %5243 = vmatpush1.msra.mxu0 0.0
  %5244 = vmatprep.subr.mxu0 0.0
  %5245 = vmatpush1.msra.mxu0 0.0
  %5246 = vmatprep.subr.mxu0 0.0
  %5247 = vmatpush1.msra.mxu0 0.0
  %5248 = vmatprep.subr.mxu0 0.0
  %5249 = vmatpush1.msra.mxu0 0.0
  %5250 = vmatprep.subr.mxu0 0.0
  %5251 = vmatpush1.msra.mxu0 0.0
  %5252 = vmatprep.subr.mxu0 0.0
  %5253 = vmatpush1.msra.mxu0 0.0
  %5254 = vmatprep.subr.mxu0 0.0
  %5255 = vmatpush1.msra.mxu0 0.0
  %5256 = vmatprep.subr.mxu0 0.0
  %5257 = vmatpush1.msra.mxu0 0.0
  %5258 = vmatprep.subr.mxu0 0.0
  %5259 = vmatpush1.msra.mxu0 0.0
  %5260 = vmatprep.subr.mxu0 0.0
  %5261 = vmatpush1.msra.mxu0 0.0
  %5262 = vmatprep.subr.mxu0 0.0
  %5263 = vmatpush1.msra.mxu0 0.0
  %5264 = vmatprep.subr.mxu0 0.0
  %5265 = vmatpush1.msra.mxu0 0.0
  %5266 = vmatprep.subr.mxu0 0.0
  %5267 = vmatpush1.msra.mxu0 0.0
  %5268 = vmatprep.mubr.f32.mxu0 0.0
  %5269 = vmatmul.mubr.f32.gmra.mrb[0].mxu0 %v86
  %v5270 = vpop.f32.mrb[0].mxu0
  %v5271 = vadd.f32 0.0, %v5270
  %v5272 = vpop.f32.mrb[0].mxu0
  %5273 = vmatprep.mubr.f32.mxu0 0.0
  %5274 = vmatmul.mubr.f32.gmra.mrb[0].mxu0 %v89
  %v5275 = vpop.f32.mrb[0].mxu0
  %v5276 = vadd.f32 0.0, %v5275
  %v5277 = vpop.f32.mrb[0].mxu0
  %5278 = vmatprep.mubr.f32.mxu0 0.0
  %5279 = vmatmul.mubr.f32.gmra.mrb[0].mxu0 %v92
  %v5280 = vpop.f32.mrb[0].mxu0
  %v5281 = vadd.f32 0.0, %v5280
  %v5282 = vpop.f32.mrb[0].mxu0
  %5283 = vmatprep.mubr.f32.mxu0 0.0
  %5284 = vmatmul.mubr.f32.gmra.mrb[0].mxu0 %v95
  %v5285 = vpop.f32.mrb[0].mxu0
  %v5286 = vadd.f32 0.0, %v5285
  %v5287 = vpop.f32.mrb[0].mxu0
  %5288 = vdwg.mxu0
  %5289 = vmatprep.subr.mxu0 0.0
  %5290 = vmatpush1.msra.mxu0 %v5271
  %5291 = vmatprep.subr.mxu0 0.0
  %5292 = vmatpush1.msra.mxu0 %v5276
  %5293 = vmatprep.subr.mxu0 0.0
  %5294 = vmatpush1.msra.mxu0 %v5281
  %5295 = vmatprep.subr.mxu0 0.0
  %5296 = vmatpush1.msra.mxu0 %v5286
  %5297 = vmatprep.subr.mxu0 0.0
  %5298 = vmatpush1.msra.mxu0 0.0
  %5299 = vmatprep.subr.mxu0 0.0
  %5300 = vmatpush1.msra.mxu0 0.0
  %5301 = vmatprep.subr.mxu0 0.0
  %5302 = vmatpush1.msra.mxu0 0.0
  %5303 = vmatprep.subr.mxu0 0.0
  %5304 = vmatpush1.msra.mxu0 0.0
  %5305 = vmatprep.subr.mxu0 0.0
  %5306 = vmatpush1.msra.mxu0 0.0
  %5307 = vmatprep.subr.mxu0 0.0
  %5308 = vmatpush1.msra.mxu0 0.0
  %5309 = vmatprep.subr.mxu0 0.0
  %5310 = vmatpush1.msra.mxu0 0.0
  %5311 = vmatprep.subr.mxu0 0.0
  %5312 = vmatpush1.msra.mxu0 0.0
  %5313 = vmatprep.subr.mxu0 0.0
  %5314 = vmatpush1.msra.mxu0 0.0
  %5315 = vmatprep.subr.mxu0 0.0
  %5316 = vmatpush1.msra.mxu0 0.0
  %5317 = vmatprep.subr.mxu0 0.0
  %5318 = vmatpush1.msra.mxu0 0.0
  %5319 = vmatprep.subr.mxu0 0.0
  %5320 = vmatpush1.msra.mxu0 0.0
  %5321 = vmatprep.subr.mxu0 0.0
  %5322 = vmatpush1.msra.mxu0 0.0
  %5323 = vmatprep.subr.mxu0 0.0
  %5324 = vmatpush1.msra.mxu0 0.0
  %5325 = vmatprep.subr.mxu0 0.0
  %5326 = vmatpush1.msra.mxu0 0.0
  %5327 = vmatprep.subr.mxu0 0.0
  %5328 = vmatpush1.msra.mxu0 0.0
  %5329 = vmatprep.subr.mxu0 0.0
  %5330 = vmatpush1.msra.mxu0 0.0
  %5331 = vmatprep.subr.mxu0 0.0
  %5332 = vmatpush1.msra.mxu0 0.0
  %5333 = vmatprep.subr.mxu0 0.0
  %5334 = vmatpush1.msra.mxu0 0.0
  %5335 = vmatprep.subr.mxu0 0.0
  %5336 = vmatpush1.msra.mxu0 0.0
  %5337 = vmatprep.subr.mxu0 0.0
  %5338 = vmatpush1.msra.mxu0 0.0
  %5339 = vmatprep.subr.mxu0 0.0
  %5340 = vmatpush1.msra.mxu0 0.0
  %5341 = vmatprep.subr.mxu0 0.0
  %5342 = vmatpush1.msra.mxu0 0.0
  %5343 = vmatprep.subr.mxu0 0.0
  %5344 = vmatpush1.msra.mxu0 0.0
  %5345 = vmatprep.subr.mxu0 0.0
  %5346 = vmatpush1.msra.mxu0 0.0
  %5347 = vmatprep.subr.mxu0 0.0
  %5348 = vmatpush1.msra.mxu0 0.0
  %5349 = vmatprep.subr.mxu0 0.0
  %5350 = vmatpush1.msra.mxu0 0.0
  %5351 = vmatprep.subr.mxu0 0.0
  %5352 = vmatpush1.msra.mxu0 0.0
  %5353 = vmatprep.mubr.f32.mxu0 0.0
  %5354 = vmatmul.mubr.f32.gmra.mrb[0].mxu0 %v86
  %v5355 = vpop.f32.mrb[0].mxu0
  %v5356 = vadd.f32 0.0, %v5355
  %v5357 = vpop.f32.mrb[0].mxu0
  %5358 = vmatprep.mubr.f32.mxu0 0.0
  %5359 = vmatmul.mubr.f32.gmra.mrb[0].mxu0 %v89
  %v5360 = vpop.f32.mrb[0].mxu0
  %v5361 = vadd.f32 0.0, %v5360
  %v5362 = vpop.f32.mrb[0].mxu0
  %5363 = vmatprep.mubr.f32.mxu0 0.0
  %5364 = vmatmul.mubr.f32.gmra.mrb[0].mxu0 %v92
  %v5365 = vpop.f32.mrb[0].mxu0
  %v5366 = vadd.f32 0.0, %v5365
  %v5367 = vpop.f32.mrb[0].mxu0
  %5368 = vmatprep.mubr.f32.mxu0 0.0
  %5369 = vmatmul.mubr.f32.gmra.mrb[0].mxu0 %v95
  %v5370 = vpop.f32.mrb[0].mxu0
  %v5371 = vadd.f32 0.0, %v5370
  %v5372 = vpop.f32.mrb[0].mxu0
  %5373 = vdwg.mxu0
  %v5374 = vmul.f32 %v5356, 2.0
  %v5375 = vmul.f32 %v5361, 2.0
  %v5376 = vmul.f32 %v5366, 2.0
  %v5377 = vmul.f32 %v5371, 2.0
  %v5378 = vsub.f32 %v5374, %v5200
  %v5379 = vsub.f32 %v5375, %v5201
  %v5380 = vsub.f32 %v5376, %v5202
  %v5381 = vsub.f32 %v5377, %v5203
  %5386 = vrot.lane.b32.xlu0 %v5200, 2
  %v5387 = vpop.permute.xlu0 %5386
  %5388 = vrot.lane.b32.xlu0 %v5201, 2
  %v5389 = vpop.permute.xlu0 %5388
  %5390 = vrot.lane.b32.xlu0 %v5202, 2
  %v5391 = vpop.permute.xlu0 %5390
  %5392 = vrot.lane.b32.xlu0 %v5203, 2
  %v5393 = vpop.permute.xlu0 %5392
  %v5398 = vsel %vm79, %v4845, %v5387
  %v5399 = vsel %vm79, %v4846, %v5389
  %v5400 = vsel %vm79, %v4847, %v5391
  %v5401 = vsel %vm79, %v4848, %v5393
  %5406 = vrot.lane.b32.xlu0 %v5271, 2
  %v5407 = vpop.permute.xlu0 %5406
  %5408 = vrot.lane.b32.xlu0 %v5276, 2
  %v5409 = vpop.permute.xlu0 %5408
  %5410 = vrot.lane.b32.xlu0 %v5281, 2
  %v5411 = vpop.permute.xlu0 %5410
  %5412 = vrot.lane.b32.xlu0 %v5286, 2
  %v5413 = vpop.permute.xlu0 %5412
  %v5418 = vsel %vm79, %v4916, %v5407
  %v5419 = vsel %vm79, %v4921, %v5409
  %v5420 = vsel %vm79, %v4926, %v5411
  %v5421 = vsel %vm79, %v4931, %v5413
  %5426 = vrot.lane.b32.xlu0 %v5378, 2
  %v5427 = vpop.permute.xlu0 %5426
  %5428 = vrot.lane.b32.xlu0 %v5379, 2
  %v5429 = vpop.permute.xlu0 %5428
  %5430 = vrot.lane.b32.xlu0 %v5380, 2
  %v5431 = vpop.permute.xlu0 %5430
  %5432 = vrot.lane.b32.xlu0 %v5381, 2
  %v5433 = vpop.permute.xlu0 %5432
  %v5438 = vsel %vm79, %v5023, %v5427
  %v5439 = vsel %vm79, %v5024, %v5429
  %v5440 = vsel %vm79, %v5025, %v5431
  %v5441 = vsel %vm79, %v5026, %v5433
  %5446 = vrot.lane.b32.xlu0 %v5418, 34
  %v5447 = vpop.permute.xlu0 %5446
  %5448 = vrot.lane.b32.xlu0 %v5419, 34
  %v5449 = vpop.permute.xlu0 %5448
  %5450 = vrot.lane.b32.xlu0 %v5420, 34
  %v5451 = vpop.permute.xlu0 %5450
  %5452 = vrot.lane.b32.xlu0 %v5421, 34
  %v5453 = vpop.permute.xlu0 %5452
  %5462 = vrot.lane.b32.xlu0 %v5438, 68
  %v5463 = vpop.permute.xlu0 %5462
  %5464 = vrot.lane.b32.xlu0 %v5439, 68
  %v5465 = vpop.permute.xlu0 %5464
  %5466 = vrot.lane.b32.xlu0 %v5440, 68
  %v5467 = vpop.permute.xlu0 %5466
  %5468 = vrot.lane.b32.xlu0 %v5441, 68
  %v5469 = vpop.permute.xlu0 %5468
  %v5474 = vsel %vm307, %v5398, %v5447
  %v5475 = vsel %vm307, %v5399, %v5449
  %v5476 = vsel %vm307, %v5400, %v5451
  %v5477 = vsel %vm307, %v5401, %v5453
  %v5478 = vsel %vm312, %v5474, %v5463
  %v5479 = vsel %vm312, %v5475, %v5465
  %v5480 = vsel %vm312, %v5476, %v5467
  %v5481 = vsel %vm312, %v5477, %v5469
  %v5483 = vsel %vm323, %v5478, 0
  %v5486 = vsel %vm323, %v5479, 0
  %v5489 = vsel %vm323, %v5480, 0
  %v5492 = vsel %vm323, %v5481, 0
  %5494 = vmatprep.subr.mxu0 0.0
  %5495 = vmatpush1.msra.mxu0 %v65
  %5496 = vmatprep.subr.mxu0 0.0
  %5497 = vmatpush1.msra.mxu0 %v66
  %5498 = vmatprep.subr.mxu0 0.0
  %5499 = vmatpush1.msra.mxu0 %v67
  %5500 = vmatprep.subr.mxu0 0.0
  %5501 = vmatpush1.msra.mxu0 %v68
  %5502 = vmatprep.subr.mxu0 0.0
  %5503 = vmatpush1.msra.mxu0 %v69
  %5504 = vmatprep.subr.mxu0 0.0
  %5505 = vmatpush1.msra.mxu0 %v70
  %5506 = vmatprep.subr.mxu0 0.0
  %5507 = vmatpush1.msra.mxu0 %v71
  %5508 = vmatprep.subr.mxu0 0.0
  %5509 = vmatpush1.msra.mxu0 %v72
  %5510 = vmatprep.subr.mxu0 0.0
  %5511 = vmatpush1.msra.mxu0 %v73
  %5512 = vmatprep.subr.mxu0 0.0
  %5513 = vmatpush1.msra.mxu0 %v74
  %5514 = vmatprep.subr.mxu0 0.0
  %5515 = vmatpush1.msra.mxu0 %v75
  %5516 = vmatprep.subr.mxu0 0.0
  %5517 = vmatpush1.msra.mxu0 %v76
  %5518 = vmatprep.subr.mxu0 0.0
  %5519 = vmatpush1.msra.mxu0 %v750
  %5520 = vmatprep.subr.mxu0 0.0
  %5521 = vmatpush1.msra.mxu0 0.0
  %5522 = vmatprep.subr.mxu0 0.0
  %5523 = vmatpush1.msra.mxu0 0.0
  %5524 = vmatprep.subr.mxu0 0.0
  %5525 = vmatpush1.msra.mxu0 0.0
  %5526 = vmatprep.subr.mxu0 0.0
  %5527 = vmatpush1.msra.mxu0 0.0
  %5528 = vmatprep.subr.mxu0 0.0
  %5529 = vmatpush1.msra.mxu0 0.0
  %5530 = vmatprep.subr.mxu0 0.0
  %5531 = vmatpush1.msra.mxu0 0.0
  %5532 = vmatprep.subr.mxu0 0.0
  %5533 = vmatpush1.msra.mxu0 0.0
  %5534 = vmatprep.subr.mxu0 0.0
  %5535 = vmatpush1.msra.mxu0 0.0
  %5536 = vmatprep.subr.mxu0 0.0
  %5537 = vmatpush1.msra.mxu0 0.0
  %5538 = vmatprep.subr.mxu0 0.0
  %5539 = vmatpush1.msra.mxu0 0.0
  %5540 = vmatprep.subr.mxu0 0.0
  %5541 = vmatpush1.msra.mxu0 0.0
  %5542 = vmatprep.subr.mxu0 0.0
  %5543 = vmatpush1.msra.mxu0 0.0
  %5544 = vmatprep.subr.mxu0 0.0
  %5545 = vmatpush1.msra.mxu0 0.0
  %5546 = vmatprep.subr.mxu0 0.0
  %5547 = vmatpush1.msra.mxu0 0.0
  %5548 = vmatprep.subr.mxu0 0.0
  %5549 = vmatpush1.msra.mxu0 0.0
  %5550 = vmatprep.subr.mxu0 0.0
  %5551 = vmatpush1.msra.mxu0 0.0
  %5552 = vmatprep.subr.mxu0 0.0
  %5553 = vmatpush1.msra.mxu0 0.0
  %5554 = vmatprep.subr.mxu0 0.0
  %5555 = vmatpush1.msra.mxu0 0.0
  %5556 = vmatprep.subr.mxu0 0.0
  %5557 = vmatpush1.msra.mxu0 0.0
  %5558 = vmatprep.mubr.f32.mxu0 0.0
  %5559 = vmatmul.mubr.f32.gmra.mrb[0].mxu0 %v5483
  %v5560 = vpop.f32.mrb[0].mxu0
  %v5561 = vadd.f32 %v735, %v5560
  %v5562 = vpop.f32.mrb[0].mxu0
  %5563 = vmatprep.mubr.f32.mxu0 0.0
  %5564 = vmatmul.mubr.f32.gmra.mrb[0].mxu0 %v5486
  %v5565 = vpop.f32.mrb[0].mxu0
  %v5566 = vadd.f32 %v735, %v5565
  %v5567 = vpop.f32.mrb[0].mxu0
  %5568 = vmatprep.mubr.f32.mxu0 0.0
  %5569 = vmatmul.mubr.f32.gmra.mrb[0].mxu0 %v5489
  %v5570 = vpop.f32.mrb[0].mxu0
  %v5571 = vadd.f32 %v735, %v5570
  %v5572 = vpop.f32.mrb[0].mxu0
  %5573 = vmatprep.mubr.f32.mxu0 0.0
  %5574 = vmatmul.mubr.f32.gmra.mrb[0].mxu0 %v5492
  %v5575 = vpop.f32.mrb[0].mxu0
  %v5576 = vadd.f32 %v735, %v5575
  %v5577 = vpop.f32.mrb[0].mxu0
  %5578 = vdwg.mxu0
  %v5579 = vtanh.pop %v5561
  %v5580 = vtanh.pop %v5566
  %v5581 = vtanh.pop %v5571
  %v5582 = vtanh.pop %v5576
  %v5583 = vmul.f32 %v5181, %v4820
  %v5584 = vmul.f32 %v5183, %v4821
  %v5585 = vmul.f32 %v5185, %v4822
  %v5586 = vmul.f32 %v5187, %v4823
  %v5587 = vsub.f32 1.0, %v5181
  %v5588 = vsub.f32 1.0, %v5183
  %v5589 = vsub.f32 1.0, %v5185
  %v5590 = vsub.f32 1.0, %v5187
  %5595 = vrot.lane.b32.xlu0 %v5579, 32
  %v5596 = vpop.permute.xlu0 %5595
  %5597 = vrot.lane.b32.xlu0 %v5580, 32
  %v5598 = vpop.permute.xlu0 %5597
  %5599 = vrot.lane.b32.xlu0 %v5581, 32
  %v5600 = vpop.permute.xlu0 %5599
  %5601 = vrot.lane.b32.xlu0 %v5582, 32
  %v5602 = vpop.permute.xlu0 %5601
  %v5607 = vmul.f32 %v5587, %v5596
  %v5608 = vmul.f32 %v5588, %v5598
  %v5609 = vmul.f32 %v5589, %v5600
  %v5610 = vmul.f32 %v5590, %v5602
  %v5611 = vadd.f32 %v5583, %v5607
  %v5612 = vadd.f32 %v5584, %v5608
  %v5613 = vadd.f32 %v5585, %v5609
  %v5614 = vadd.f32 %v5586, %v5610
  %s5615 = scalar_lea.vmem %s0, 224
  %v5616 = vld [vmem:[%s5615] sm:$0xff]
  %v5617 = vld [vmem:[%s5615 + $0x8] sm:$0xff]
  %v5618 = vld [vmem:[%s5615 + $0x10] sm:$0xff]
  %v5619 = vld [vmem:[%s5615 + $0x18] sm:$0xff]
  %5624 = vrot.lane.b32.xlu0 %v5611, 98
  %v5625 = vpop.permute.xlu0 %5624
  %5626 = vrot.lane.b32.xlu0 %v5612, 98
  %v5627 = vpop.permute.xlu0 %5626
  %5628 = vrot.lane.b32.xlu0 %v5613, 98
  %v5629 = vpop.permute.xlu0 %5628
  %5630 = vrot.lane.b32.xlu0 %v5614, 98
  %v5631 = vpop.permute.xlu0 %5630
  %v5636 = vsel %vm79, %v5616, %v5625
  %v5637 = vsel %vm79, %v5617, %v5627
  %v5638 = vsel %vm79, %v5618, %v5629
  %v5639 = vsel %vm79, %v5619, %v5631
  %5640 = vmatprep.subr.mxu0 0.0
  %5641 = vmatpush1.msra.mxu0 %v5636
  %5642 = vmatprep.subr.mxu0 0.0
  %5643 = vmatpush1.msra.mxu0 %v5637
  %5644 = vmatprep.subr.mxu0 0.0
  %5645 = vmatpush1.msra.mxu0 %v5638
  %5646 = vmatprep.subr.mxu0 0.0
  %5647 = vmatpush1.msra.mxu0 %v5639
  %5648 = vmatprep.subr.mxu0 0.0
  %5649 = vmatpush1.msra.mxu0 0.0
  %5650 = vmatprep.subr.mxu0 0.0
  %5651 = vmatpush1.msra.mxu0 0.0
  %5652 = vmatprep.subr.mxu0 0.0
  %5653 = vmatpush1.msra.mxu0 0.0
  %5654 = vmatprep.subr.mxu0 0.0
  %5655 = vmatpush1.msra.mxu0 0.0
  %5656 = vmatprep.subr.mxu0 0.0
  %5657 = vmatpush1.msra.mxu0 0.0
  %5658 = vmatprep.subr.mxu0 0.0
  %5659 = vmatpush1.msra.mxu0 0.0
  %5660 = vmatprep.subr.mxu0 0.0
  %5661 = vmatpush1.msra.mxu0 0.0
  %5662 = vmatprep.subr.mxu0 0.0
  %5663 = vmatpush1.msra.mxu0 0.0
  %5664 = vmatprep.subr.mxu0 0.0
  %5665 = vmatpush1.msra.mxu0 0.0
  %5666 = vmatprep.subr.mxu0 0.0
  %5667 = vmatpush1.msra.mxu0 0.0
  %5668 = vmatprep.subr.mxu0 0.0
  %5669 = vmatpush1.msra.mxu0 0.0
  %5670 = vmatprep.subr.mxu0 0.0
  %5671 = vmatpush1.msra.mxu0 0.0
  %5672 = vmatprep.subr.mxu0 0.0
  %5673 = vmatpush1.msra.mxu0 0.0
  %5674 = vmatprep.subr.mxu0 0.0
  %5675 = vmatpush1.msra.mxu0 0.0
  %5676 = vmatprep.subr.mxu0 0.0
  %5677 = vmatpush1.msra.mxu0 0.0
  %5678 = vmatprep.subr.mxu0 0.0
  %5679 = vmatpush1.msra.mxu0 0.0
  %5680 = vmatprep.subr.mxu0 0.0
  %5681 = vmatpush1.msra.mxu0 0.0
  %5682 = vmatprep.subr.mxu0 0.0
  %5683 = vmatpush1.msra.mxu0 0.0
  %5684 = vmatprep.subr.mxu0 0.0
  %5685 = vmatpush1.msra.mxu0 0.0
  %5686 = vmatprep.subr.mxu0 0.0
  %5687 = vmatpush1.msra.mxu0 0.0
  %5688 = vmatprep.subr.mxu0 0.0
  %5689 = vmatpush1.msra.mxu0 0.0
  %5690 = vmatprep.subr.mxu0 0.0
  %5691 = vmatpush1.msra.mxu0 0.0
  %5692 = vmatprep.subr.mxu0 0.0
  %5693 = vmatpush1.msra.mxu0 0.0
  %5694 = vmatprep.subr.mxu0 0.0
  %5695 = vmatpush1.msra.mxu0 0.0
  %5696 = vmatprep.subr.mxu0 0.0
  %5697 = vmatpush1.msra.mxu0 0.0
  %5698 = vmatprep.subr.mxu0 0.0
  %5699 = vmatpush1.msra.mxu0 0.0
  %5700 = vmatprep.subr.mxu0 0.0
  %5701 = vmatpush1.msra.mxu0 0.0
  %5702 = vmatprep.subr.mxu0 0.0
  %5703 = vmatpush1.msra.mxu0 0.0
  %5704 = vmatprep.mubr.f32.mxu0 0.0
  %5705 = vmatmul.mubr.f32.gmra.mrb[0].mxu0 %v86
  %v5706 = vpop.f32.mrb[0].mxu0
  %v5707 = vadd.f32 0.0, %v5706
  %v5708 = vpop.f32.mrb[0].mxu0
  %5709 = vmatprep.mubr.f32.mxu0 0.0
  %5710 = vmatmul.mubr.f32.gmra.mrb[0].mxu0 %v89
  %v5711 = vpop.f32.mrb[0].mxu0
  %v5712 = vadd.f32 0.0, %v5711
  %v5713 = vpop.f32.mrb[0].mxu0
  %5714 = vmatprep.mubr.f32.mxu0 0.0
  %5715 = vmatmul.mubr.f32.gmra.mrb[0].mxu0 %v92
  %v5716 = vpop.f32.mrb[0].mxu0
  %v5717 = vadd.f32 0.0, %v5716
  %v5718 = vpop.f32.mrb[0].mxu0
  %5719 = vmatprep.mubr.f32.mxu0 0.0
  %5720 = vmatmul.mubr.f32.gmra.mrb[0].mxu0 %v95
  %v5721 = vpop.f32.mrb[0].mxu0
  %v5722 = vadd.f32 0.0, %v5721
  %v5723 = vpop.f32.mrb[0].mxu0
  %5724 = vdwg.mxu0
  %5725 = vmatprep.subr.mxu0 0.0
  %5726 = vmatpush1.msra.mxu0 %v5707
  %5727 = vmatprep.subr.mxu0 0.0
  %5728 = vmatpush1.msra.mxu0 %v5712
  %5729 = vmatprep.subr.mxu0 0.0
  %5730 = vmatpush1.msra.mxu0 %v5717
  %5731 = vmatprep.subr.mxu0 0.0
  %5732 = vmatpush1.msra.mxu0 %v5722
  %5733 = vmatprep.subr.mxu0 0.0
  %5734 = vmatpush1.msra.mxu0 0.0
  %5735 = vmatprep.subr.mxu0 0.0
  %5736 = vmatpush1.msra.mxu0 0.0
  %5737 = vmatprep.subr.mxu0 0.0
  %5738 = vmatpush1.msra.mxu0 0.0
  %5739 = vmatprep.subr.mxu0 0.0
  %5740 = vmatpush1.msra.mxu0 0.0
  %5741 = vmatprep.subr.mxu0 0.0
  %5742 = vmatpush1.msra.mxu0 0.0
  %5743 = vmatprep.subr.mxu0 0.0
  %5744 = vmatpush1.msra.mxu0 0.0
  %5745 = vmatprep.subr.mxu0 0.0
  %5746 = vmatpush1.msra.mxu0 0.0
  %5747 = vmatprep.subr.mxu0 0.0
  %5748 = vmatpush1.msra.mxu0 0.0
  %5749 = vmatprep.subr.mxu0 0.0
  %5750 = vmatpush1.msra.mxu0 0.0
  %5751 = vmatprep.subr.mxu0 0.0
  %5752 = vmatpush1.msra.mxu0 0.0
  %5753 = vmatprep.subr.mxu0 0.0
  %5754 = vmatpush1.msra.mxu0 0.0
  %5755 = vmatprep.subr.mxu0 0.0
  %5756 = vmatpush1.msra.mxu0 0.0
  %5757 = vmatprep.subr.mxu0 0.0
  %5758 = vmatpush1.msra.mxu0 0.0
  %5759 = vmatprep.subr.mxu0 0.0
  %5760 = vmatpush1.msra.mxu0 0.0
  %5761 = vmatprep.subr.mxu0 0.0
  %5762 = vmatpush1.msra.mxu0 0.0
  %5763 = vmatprep.subr.mxu0 0.0
  %5764 = vmatpush1.msra.mxu0 0.0
  %5765 = vmatprep.subr.mxu0 0.0
  %5766 = vmatpush1.msra.mxu0 0.0
  %5767 = vmatprep.subr.mxu0 0.0
  %5768 = vmatpush1.msra.mxu0 0.0
  %5769 = vmatprep.subr.mxu0 0.0
  %5770 = vmatpush1.msra.mxu0 0.0
  %5771 = vmatprep.subr.mxu0 0.0
  %5772 = vmatpush1.msra.mxu0 0.0
  %5773 = vmatprep.subr.mxu0 0.0
  %5774 = vmatpush1.msra.mxu0 0.0
  %5775 = vmatprep.subr.mxu0 0.0
  %5776 = vmatpush1.msra.mxu0 0.0
  %5777 = vmatprep.subr.mxu0 0.0
  %5778 = vmatpush1.msra.mxu0 0.0
  %5779 = vmatprep.subr.mxu0 0.0
  %5780 = vmatpush1.msra.mxu0 0.0
  %5781 = vmatprep.subr.mxu0 0.0
  %5782 = vmatpush1.msra.mxu0 0.0
  %5783 = vmatprep.subr.mxu0 0.0
  %5784 = vmatpush1.msra.mxu0 0.0
  %5785 = vmatprep.subr.mxu0 0.0
  %5786 = vmatpush1.msra.mxu0 0.0
  %5787 = vmatprep.subr.mxu0 0.0
  %5788 = vmatpush1.msra.mxu0 0.0
  %5789 = vmatprep.mubr.f32.mxu0 0.0
  %5790 = vmatmul.mubr.f32.gmra.mrb[0].mxu0 %v86
  %v5791 = vpop.f32.mrb[0].mxu0
  %v5792 = vadd.f32 0.0, %v5791
  %v5793 = vpop.f32.mrb[0].mxu0
  %5794 = vmatprep.mubr.f32.mxu0 0.0
  %5795 = vmatmul.mubr.f32.gmra.mrb[0].mxu0 %v89
  %v5796 = vpop.f32.mrb[0].mxu0
  %v5797 = vadd.f32 0.0, %v5796
  %v5798 = vpop.f32.mrb[0].mxu0
  %5799 = vmatprep.mubr.f32.mxu0 0.0
  %5800 = vmatmul.mubr.f32.gmra.mrb[0].mxu0 %v92
  %v5801 = vpop.f32.mrb[0].mxu0
  %v5802 = vadd.f32 0.0, %v5801
  %v5803 = vpop.f32.mrb[0].mxu0
  %5804 = vmatprep.mubr.f32.mxu0 0.0
  %5805 = vmatmul.mubr.f32.gmra.mrb[0].mxu0 %v95
  %v5806 = vpop.f32.mrb[0].mxu0
  %v5807 = vadd.f32 0.0, %v5806
  %v5808 = vpop.f32.mrb[0].mxu0
  %5809 = vdwg.mxu0
  %v5810 = vmul.f32 %v5792, 2.0
  %v5811 = vmul.f32 %v5797, 2.0
  %v5812 = vmul.f32 %v5802, 2.0
  %v5813 = vmul.f32 %v5807, 2.0
  %v5814 = vsub.f32 %v5810, %v5636
  %v5815 = vsub.f32 %v5811, %v5637
  %v5816 = vsub.f32 %v5812, %v5638
  %v5817 = vsub.f32 %v5813, %v5639
  %5822 = vrot.lane.b32.xlu0 %v5707, 34
  %v5823 = vpop.permute.xlu0 %5822
  %5824 = vrot.lane.b32.xlu0 %v5712, 34
  %v5825 = vpop.permute.xlu0 %5824
  %5826 = vrot.lane.b32.xlu0 %v5717, 34
  %v5827 = vpop.permute.xlu0 %5826
  %5828 = vrot.lane.b32.xlu0 %v5722, 34
  %v5829 = vpop.permute.xlu0 %5828
  %5838 = vrot.lane.b32.xlu0 %v5814, 68
  %v5839 = vpop.permute.xlu0 %5838
  %5840 = vrot.lane.b32.xlu0 %v5815, 68
  %v5841 = vpop.permute.xlu0 %5840
  %5842 = vrot.lane.b32.xlu0 %v5816, 68
  %v5843 = vpop.permute.xlu0 %5842
  %5844 = vrot.lane.b32.xlu0 %v5817, 68
  %v5845 = vpop.permute.xlu0 %5844
  %v5850 = vsel %vm307, %v5636, %v5823
  %v5851 = vsel %vm307, %v5637, %v5825
  %v5852 = vsel %vm307, %v5638, %v5827
  %v5853 = vsel %vm307, %v5639, %v5829
  %v5854 = vsel %vm312, %v5850, %v5839
  %v5855 = vsel %vm312, %v5851, %v5841
  %v5856 = vsel %vm312, %v5852, %v5843
  %v5857 = vsel %vm312, %v5853, %v5845
  %v5859 = vsel %vm323, %v5854, 0
  %v5862 = vsel %vm323, %v5855, 0
  %v5865 = vsel %vm323, %v5856, 0
  %v5868 = vsel %vm323, %v5857, 0
  %5870 = vmatprep.subr.mxu0 0.0
  %5871 = vmatpush1.msra.mxu0 %v51
  %5872 = vmatprep.subr.mxu0 0.0
  %5873 = vmatpush1.msra.mxu0 %v52
  %5874 = vmatprep.subr.mxu0 0.0
  %5875 = vmatpush1.msra.mxu0 %v53
  %5876 = vmatprep.subr.mxu0 0.0
  %5877 = vmatpush1.msra.mxu0 %v54
  %5878 = vmatprep.subr.mxu0 0.0
  %5879 = vmatpush1.msra.mxu0 %v55
  %5880 = vmatprep.subr.mxu0 0.0
  %5881 = vmatpush1.msra.mxu0 %v56
  %5882 = vmatprep.subr.mxu0 0.0
  %5883 = vmatpush1.msra.mxu0 %v57
  %5884 = vmatprep.subr.mxu0 0.0
  %5885 = vmatpush1.msra.mxu0 %v58
  %5886 = vmatprep.subr.mxu0 0.0
  %5887 = vmatpush1.msra.mxu0 %v59
  %5888 = vmatprep.subr.mxu0 0.0
  %5889 = vmatpush1.msra.mxu0 %v60
  %5890 = vmatprep.subr.mxu0 0.0
  %5891 = vmatpush1.msra.mxu0 %v61
  %5892 = vmatprep.subr.mxu0 0.0
  %5893 = vmatpush1.msra.mxu0 %v62
  %5894 = vmatprep.subr.mxu0 0.0
  %5895 = vmatpush1.msra.mxu0 %v338
  %5896 = vmatprep.subr.mxu0 0.0
  %5897 = vmatpush1.msra.mxu0 0.0
  %5898 = vmatprep.subr.mxu0 0.0
  %5899 = vmatpush1.msra.mxu0 0.0
  %5900 = vmatprep.subr.mxu0 0.0
  %5901 = vmatpush1.msra.mxu0 0.0
  %5902 = vmatprep.subr.mxu0 0.0
  %5903 = vmatpush1.msra.mxu0 0.0
  %5904 = vmatprep.subr.mxu0 0.0
  %5905 = vmatpush1.msra.mxu0 0.0
  %5906 = vmatprep.subr.mxu0 0.0
  %5907 = vmatpush1.msra.mxu0 0.0
  %5908 = vmatprep.subr.mxu0 0.0
  %5909 = vmatpush1.msra.mxu0 0.0
  %5910 = vmatprep.subr.mxu0 0.0
  %5911 = vmatpush1.msra.mxu0 0.0
  %5912 = vmatprep.subr.mxu0 0.0
  %5913 = vmatpush1.msra.mxu0 0.0
  %5914 = vmatprep.subr.mxu0 0.0
  %5915 = vmatpush1.msra.mxu0 0.0
  %5916 = vmatprep.subr.mxu0 0.0
  %5917 = vmatpush1.msra.mxu0 0.0
  %5918 = vmatprep.subr.mxu0 0.0
  %5919 = vmatpush1.msra.mxu0 0.0
  %5920 = vmatprep.subr.mxu0 0.0
  %5921 = vmatpush1.msra.mxu0 0.0
  %5922 = vmatprep.subr.mxu0 0.0
  %5923 = vmatpush1.msra.mxu0 0.0
  %5924 = vmatprep.subr.mxu0 0.0
  %5925 = vmatpush1.msra.mxu0 0.0
  %5926 = vmatprep.subr.mxu0 0.0
  %5927 = vmatpush1.msra.mxu0 0.0
  %5928 = vmatprep.subr.mxu0 0.0
  %5929 = vmatpush1.msra.mxu0 0.0
  %5930 = vmatprep.subr.mxu0 0.0
  %5931 = vmatpush1.msra.mxu0 0.0
  %5932 = vmatprep.subr.mxu0 0.0
  %5933 = vmatpush1.msra.mxu0 0.0
  %5934 = vmatprep.mubr.f32.mxu0 0.0
  %5935 = vmatmul.mubr.f32.gmra.mrb[0].mxu0 %v5859
  %v5936 = vpop.f32.mrb[0].mxu0
  %v5937 = vadd.f32 %v321, %v5936
  %v5938 = vpop.f32.mrb[0].mxu0
  %5939 = vmatprep.mubr.f32.mxu0 0.0
  %5940 = vmatmul.mubr.f32.gmra.mrb[0].mxu0 %v5862
  %v5941 = vpop.f32.mrb[0].mxu0
  %v5942 = vadd.f32 %v321, %v5941
  %v5943 = vpop.f32.mrb[0].mxu0
  %5944 = vmatprep.mubr.f32.mxu0 0.0
  %5945 = vmatmul.mubr.f32.gmra.mrb[0].mxu0 %v5865
  %v5946 = vpop.f32.mrb[0].mxu0
  %v5947 = vadd.f32 %v321, %v5946
  %v5948 = vpop.f32.mrb[0].mxu0
  %5949 = vmatprep.mubr.f32.mxu0 0.0
  %5950 = vmatmul.mubr.f32.gmra.mrb[0].mxu0 %v5868
  %v5951 = vpop.f32.mrb[0].mxu0
  %v5952 = vadd.f32 %v321, %v5951
  %v5953 = vpop.f32.mrb[0].mxu0
  %5954 = vdwg.mxu0
  %v5955 = vxor.u32 %v5937, 2147483648
  %v5956 = vxor.u32 %v5942, 2147483648
  %v5957 = vxor.u32 %v5947, 2147483648
  %v5958 = vxor.u32 %v5952, 2147483648
  %v5959 = vmul.f32 %v5955, 1.442695
  %v5960 = vpow.pop %v5959
  %v5961 = vmul.f32 %v5956, 1.442695
  %v5962 = vpow.pop %v5961
  %v5963 = vmul.f32 %v5957, 1.442695
  %v5964 = vpow.pop %v5963
  %v5965 = vmul.f32 %v5958, 1.442695
  %v5966 = vpow.pop %v5965
  %v5967 = vadd.f32 %v5960, 1.0
  %v5968 = vadd.f32 %v5962, 1.0
  %v5969 = vadd.f32 %v5964, 1.0
  %v5970 = vadd.f32 %v5966, 1.0
  %v5971 = vrcp.pop %v5967
  %v5972 = vmul.f32 1.0, %v5971
  %v5973 = vrcp.pop %v5968
  %v5974 = vmul.f32 1.0, %v5973
  %v5975 = vrcp.pop %v5969
  %v5976 = vmul.f32 1.0, %v5975
  %v5977 = vrcp.pop %v5970
  %v5978 = vmul.f32 1.0, %v5977
  %5979 = vrot.lane.b32.xlu0 %v5611, 96
  %v5980 = vpop.permute.xlu0 %5979
  %5981 = vrot.lane.b32.xlu0 %v5612, 96
  %v5982 = vpop.permute.xlu0 %5981
  %5983 = vrot.lane.b32.xlu0 %v5613, 96
  %v5984 = vpop.permute.xlu0 %5983
  %5985 = vrot.lane.b32.xlu0 %v5614, 96
  %v5986 = vpop.permute.xlu0 %5985
  %v5991 = vmul.f32 %v5972, %v5980
  %v5992 = vmul.f32 %v5974, %v5982
  %v5993 = vmul.f32 %v5976, %v5984
  %v5994 = vmul.f32 %v5978, %v5986
  %5995 = vmatprep.subr.mxu0 0.0
  %5996 = vmatpush1.msra.mxu0 %v5991
  %5997 = vmatprep.subr.mxu0 0.0
  %5998 = vmatpush1.msra.mxu0 %v5992
  %5999 = vmatprep.subr.mxu0 0.0
  %6000 = vmatpush1.msra.mxu0 %v5993
  %6001 = vmatprep.subr.mxu0 0.0
  %6002 = vmatpush1.msra.mxu0 %v5994
  %6003 = vmatprep.subr.mxu0 0.0
  %6004 = vmatpush1.msra.mxu0 0.0
  %6005 = vmatprep.subr.mxu0 0.0
  %6006 = vmatpush1.msra.mxu0 0.0
  %6007 = vmatprep.subr.mxu0 0.0
  %6008 = vmatpush1.msra.mxu0 0.0
  %6009 = vmatprep.subr.mxu0 0.0
  %6010 = vmatpush1.msra.mxu0 0.0
  %6011 = vmatprep.subr.mxu0 0.0
  %6012 = vmatpush1.msra.mxu0 0.0
  %6013 = vmatprep.subr.mxu0 0.0
  %6014 = vmatpush1.msra.mxu0 0.0
  %6015 = vmatprep.subr.mxu0 0.0
  %6016 = vmatpush1.msra.mxu0 0.0
  %6017 = vmatprep.subr.mxu0 0.0
  %6018 = vmatpush1.msra.mxu0 0.0
  %6019 = vmatprep.subr.mxu0 0.0
  %6020 = vmatpush1.msra.mxu0 0.0
  %6021 = vmatprep.subr.mxu0 0.0
  %6022 = vmatpush1.msra.mxu0 0.0
  %6023 = vmatprep.subr.mxu0 0.0
  %6024 = vmatpush1.msra.mxu0 0.0
  %6025 = vmatprep.subr.mxu0 0.0
  %6026 = vmatpush1.msra.mxu0 0.0
  %6027 = vmatprep.subr.mxu0 0.0
  %6028 = vmatpush1.msra.mxu0 0.0
  %6029 = vmatprep.subr.mxu0 0.0
  %6030 = vmatpush1.msra.mxu0 0.0
  %6031 = vmatprep.subr.mxu0 0.0
  %6032 = vmatpush1.msra.mxu0 0.0
  %6033 = vmatprep.subr.mxu0 0.0
  %6034 = vmatpush1.msra.mxu0 0.0
  %6035 = vmatprep.subr.mxu0 0.0
  %6036 = vmatpush1.msra.mxu0 0.0
  %6037 = vmatprep.subr.mxu0 0.0
  %6038 = vmatpush1.msra.mxu0 0.0
  %6039 = vmatprep.subr.mxu0 0.0
  %6040 = vmatpush1.msra.mxu0 0.0
  %6041 = vmatprep.subr.mxu0 0.0
  %6042 = vmatpush1.msra.mxu0 0.0
  %6043 = vmatprep.subr.mxu0 0.0
  %6044 = vmatpush1.msra.mxu0 0.0
  %6045 = vmatprep.subr.mxu0 0.0
  %6046 = vmatpush1.msra.mxu0 0.0
  %6047 = vmatprep.subr.mxu0 0.0
  %6048 = vmatpush1.msra.mxu0 0.0
  %6049 = vmatprep.subr.mxu0 0.0
  %6050 = vmatpush1.msra.mxu0 0.0
  %6051 = vmatprep.subr.mxu0 0.0
  %6052 = vmatpush1.msra.mxu0 0.0
  %6053 = vmatprep.subr.mxu0 0.0
  %6054 = vmatpush1.msra.mxu0 0.0
  %6055 = vmatprep.subr.mxu0 0.0
  %6056 = vmatpush1.msra.mxu0 0.0
  %6057 = vmatprep.subr.mxu0 0.0
  %6058 = vmatpush1.msra.mxu0 0.0
  %6059 = vmatprep.mubr.f32.mxu0 0.0
  %6060 = vmatmul.mubr.f32.gmra.mrb[0].mxu0 %v86
  %v6061 = vpop.f32.mrb[0].mxu0
  %v6062 = vadd.f32 0.0, %v6061
  %v6063 = vpop.f32.mrb[0].mxu0
  %6064 = vmatprep.mubr.f32.mxu0 0.0
  %6065 = vmatmul.mubr.f32.gmra.mrb[0].mxu0 %v89
  %v6066 = vpop.f32.mrb[0].mxu0
  %v6067 = vadd.f32 0.0, %v6066
  %v6068 = vpop.f32.mrb[0].mxu0
  %6069 = vmatprep.mubr.f32.mxu0 0.0
  %6070 = vmatmul.mubr.f32.gmra.mrb[0].mxu0 %v92
  %v6071 = vpop.f32.mrb[0].mxu0
  %v6072 = vadd.f32 0.0, %v6071
  %v6073 = vpop.f32.mrb[0].mxu0
  %6074 = vmatprep.mubr.f32.mxu0 0.0
  %6075 = vmatmul.mubr.f32.gmra.mrb[0].mxu0 %v95
  %v6076 = vpop.f32.mrb[0].mxu0
  %v6077 = vadd.f32 0.0, %v6076
  %v6078 = vpop.f32.mrb[0].mxu0
  %6079 = vdwg.mxu0
  %6080 = vmatprep.subr.mxu0 0.0
  %6081 = vmatpush1.msra.mxu0 %v6062
  %6082 = vmatprep.subr.mxu0 0.0
  %6083 = vmatpush1.msra.mxu0 %v6067
  %6084 = vmatprep.subr.mxu0 0.0
  %6085 = vmatpush1.msra.mxu0 %v6072
  %6086 = vmatprep.subr.mxu0 0.0
  %6087 = vmatpush1.msra.mxu0 %v6077
  %6088 = vmatprep.subr.mxu0 0.0
  %6089 = vmatpush1.msra.mxu0 0.0
  %6090 = vmatprep.subr.mxu0 0.0
  %6091 = vmatpush1.msra.mxu0 0.0
  %6092 = vmatprep.subr.mxu0 0.0
  %6093 = vmatpush1.msra.mxu0 0.0
  %6094 = vmatprep.subr.mxu0 0.0
  %6095 = vmatpush1.msra.mxu0 0.0
  %6096 = vmatprep.subr.mxu0 0.0
  %6097 = vmatpush1.msra.mxu0 0.0
  %6098 = vmatprep.subr.mxu0 0.0
  %6099 = vmatpush1.msra.mxu0 0.0
  %6100 = vmatprep.subr.mxu0 0.0
  %6101 = vmatpush1.msra.mxu0 0.0
  %6102 = vmatprep.subr.mxu0 0.0
  %6103 = vmatpush1.msra.mxu0 0.0
  %6104 = vmatprep.subr.mxu0 0.0
  %6105 = vmatpush1.msra.mxu0 0.0
  %6106 = vmatprep.subr.mxu0 0.0
  %6107 = vmatpush1.msra.mxu0 0.0
  %6108 = vmatprep.subr.mxu0 0.0
  %6109 = vmatpush1.msra.mxu0 0.0
  %6110 = vmatprep.subr.mxu0 0.0
  %6111 = vmatpush1.msra.mxu0 0.0
  %6112 = vmatprep.subr.mxu0 0.0
  %6113 = vmatpush1.msra.mxu0 0.0
  %6114 = vmatprep.subr.mxu0 0.0
  %6115 = vmatpush1.msra.mxu0 0.0
  %6116 = vmatprep.subr.mxu0 0.0
  %6117 = vmatpush1.msra.mxu0 0.0
  %6118 = vmatprep.subr.mxu0 0.0
  %6119 = vmatpush1.msra.mxu0 0.0
  %6120 = vmatprep.subr.mxu0 0.0
  %6121 = vmatpush1.msra.mxu0 0.0
  %6122 = vmatprep.subr.mxu0 0.0
  %6123 = vmatpush1.msra.mxu0 0.0
  %6124 = vmatprep.subr.mxu0 0.0
  %6125 = vmatpush1.msra.mxu0 0.0
  %6126 = vmatprep.subr.mxu0 0.0
  %6127 = vmatpush1.msra.mxu0 0.0
  %6128 = vmatprep.subr.mxu0 0.0
  %6129 = vmatpush1.msra.mxu0 0.0
  %6130 = vmatprep.subr.mxu0 0.0
  %6131 = vmatpush1.msra.mxu0 0.0
  %6132 = vmatprep.subr.mxu0 0.0
  %6133 = vmatpush1.msra.mxu0 0.0
  %6134 = vmatprep.subr.mxu0 0.0
  %6135 = vmatpush1.msra.mxu0 0.0
  %6136 = vmatprep.subr.mxu0 0.0
  %6137 = vmatpush1.msra.mxu0 0.0
  %6138 = vmatprep.subr.mxu0 0.0
  %6139 = vmatpush1.msra.mxu0 0.0
  %6140 = vmatprep.subr.mxu0 0.0
  %6141 = vmatpush1.msra.mxu0 0.0
  %6142 = vmatprep.subr.mxu0 0.0
  %6143 = vmatpush1.msra.mxu0 0.0
  %6144 = vmatprep.mubr.f32.mxu0 0.0
  %6145 = vmatmul.mubr.f32.gmra.mrb[0].mxu0 %v86
  %v6146 = vpop.f32.mrb[0].mxu0
  %v6147 = vadd.f32 0.0, %v6146
  %v6148 = vpop.f32.mrb[0].mxu0
  %6149 = vmatprep.mubr.f32.mxu0 0.0
  %6150 = vmatmul.mubr.f32.gmra.mrb[0].mxu0 %v89
  %v6151 = vpop.f32.mrb[0].mxu0
  %v6152 = vadd.f32 0.0, %v6151
  %v6153 = vpop.f32.mrb[0].mxu0
  %6154 = vmatprep.mubr.f32.mxu0 0.0
  %6155 = vmatmul.mubr.f32.gmra.mrb[0].mxu0 %v92
  %v6156 = vpop.f32.mrb[0].mxu0
  %v6157 = vadd.f32 0.0, %v6156
  %v6158 = vpop.f32.mrb[0].mxu0
  %6159 = vmatprep.mubr.f32.mxu0 0.0
  %6160 = vmatmul.mubr.f32.gmra.mrb[0].mxu0 %v95
  %v6161 = vpop.f32.mrb[0].mxu0
  %v6162 = vadd.f32 0.0, %v6161
  %v6163 = vpop.f32.mrb[0].mxu0
  %6164 = vdwg.mxu0
  %v6165 = vmul.f32 %v6147, 2.0
  %v6166 = vmul.f32 %v6152, 2.0
  %v6167 = vmul.f32 %v6157, 2.0
  %v6168 = vmul.f32 %v6162, 2.0
  %v6169 = vsub.f32 %v6165, %v5991
  %v6170 = vsub.f32 %v6166, %v5992
  %v6171 = vsub.f32 %v6167, %v5993
  %v6172 = vsub.f32 %v6168, %v5994
  %6177 = vrot.lane.b32.xlu0 %v5991, 2
  %v6178 = vpop.permute.xlu0 %6177
  %6179 = vrot.lane.b32.xlu0 %v5992, 2
  %v6180 = vpop.permute.xlu0 %6179
  %6181 = vrot.lane.b32.xlu0 %v5993, 2
  %v6182 = vpop.permute.xlu0 %6181
  %6183 = vrot.lane.b32.xlu0 %v5994, 2
  %v6184 = vpop.permute.xlu0 %6183
  %v6189 = vsel %vm79, %v5636, %v6178
  %v6190 = vsel %vm79, %v5637, %v6180
  %v6191 = vsel %vm79, %v5638, %v6182
  %v6192 = vsel %vm79, %v5639, %v6184
  %6197 = vrot.lane.b32.xlu0 %v6062, 2
  %v6198 = vpop.permute.xlu0 %6197
  %6199 = vrot.lane.b32.xlu0 %v6067, 2
  %v6200 = vpop.permute.xlu0 %6199
  %6201 = vrot.lane.b32.xlu0 %v6072, 2
  %v6202 = vpop.permute.xlu0 %6201
  %6203 = vrot.lane.b32.xlu0 %v6077, 2
  %v6204 = vpop.permute.xlu0 %6203
  %v6209 = vsel %vm79, %v5707, %v6198
  %v6210 = vsel %vm79, %v5712, %v6200
  %v6211 = vsel %vm79, %v5717, %v6202
  %v6212 = vsel %vm79, %v5722, %v6204
  %6217 = vrot.lane.b32.xlu0 %v6169, 2
  %v6218 = vpop.permute.xlu0 %6217
  %6219 = vrot.lane.b32.xlu0 %v6170, 2
  %v6220 = vpop.permute.xlu0 %6219
  %6221 = vrot.lane.b32.xlu0 %v6171, 2
  %v6222 = vpop.permute.xlu0 %6221
  %6223 = vrot.lane.b32.xlu0 %v6172, 2
  %v6224 = vpop.permute.xlu0 %6223
  %v6229 = vsel %vm79, %v5814, %v6218
  %v6230 = vsel %vm79, %v5815, %v6220
  %v6231 = vsel %vm79, %v5816, %v6222
  %v6232 = vsel %vm79, %v5817, %v6224
  %6237 = vrot.lane.b32.xlu0 %v6209, 34
  %v6238 = vpop.permute.xlu0 %6237
  %6239 = vrot.lane.b32.xlu0 %v6210, 34
  %v6240 = vpop.permute.xlu0 %6239
  %6241 = vrot.lane.b32.xlu0 %v6211, 34
  %v6242 = vpop.permute.xlu0 %6241
  %6243 = vrot.lane.b32.xlu0 %v6212, 34
  %v6244 = vpop.permute.xlu0 %6243
  %6253 = vrot.lane.b32.xlu0 %v6229, 68
  %v6254 = vpop.permute.xlu0 %6253
  %6255 = vrot.lane.b32.xlu0 %v6230, 68
  %v6256 = vpop.permute.xlu0 %6255
  %6257 = vrot.lane.b32.xlu0 %v6231, 68
  %v6258 = vpop.permute.xlu0 %6257
  %6259 = vrot.lane.b32.xlu0 %v6232, 68
  %v6260 = vpop.permute.xlu0 %6259
  %v6265 = vsel %vm307, %v6189, %v6238
  %v6266 = vsel %vm307, %v6190, %v6240
  %v6267 = vsel %vm307, %v6191, %v6242
  %v6268 = vsel %vm307, %v6192, %v6244
  %v6269 = vsel %vm312, %v6265, %v6254
  %v6270 = vsel %vm312, %v6266, %v6256
  %v6271 = vsel %vm312, %v6267, %v6258
  %v6272 = vsel %vm312, %v6268, %v6260
  %v6274 = vsel %vm323, %v6269, 0
  %v6277 = vsel %vm323, %v6270, 0
  %v6280 = vsel %vm323, %v6271, 0
  %v6283 = vsel %vm323, %v6272, 0
  %6285 = vmatprep.subr.mxu0 0.0
  %6286 = vmatpush1.msra.mxu0 %v65
  %6287 = vmatprep.subr.mxu0 0.0
  %6288 = vmatpush1.msra.mxu0 %v66
  %6289 = vmatprep.subr.mxu0 0.0
  %6290 = vmatpush1.msra.mxu0 %v67
  %6291 = vmatprep.subr.mxu0 0.0
  %6292 = vmatpush1.msra.mxu0 %v68
  %6293 = vmatprep.subr.mxu0 0.0
  %6294 = vmatpush1.msra.mxu0 %v69
  %6295 = vmatprep.subr.mxu0 0.0
  %6296 = vmatpush1.msra.mxu0 %v70
  %6297 = vmatprep.subr.mxu0 0.0
  %6298 = vmatpush1.msra.mxu0 %v71
  %6299 = vmatprep.subr.mxu0 0.0
  %6300 = vmatpush1.msra.mxu0 %v72
  %6301 = vmatprep.subr.mxu0 0.0
  %6302 = vmatpush1.msra.mxu0 %v73
  %6303 = vmatprep.subr.mxu0 0.0
  %6304 = vmatpush1.msra.mxu0 %v74
  %6305 = vmatprep.subr.mxu0 0.0
  %6306 = vmatpush1.msra.mxu0 %v75
  %6307 = vmatprep.subr.mxu0 0.0
  %6308 = vmatpush1.msra.mxu0 %v76
  %6309 = vmatprep.subr.mxu0 0.0
  %6310 = vmatpush1.msra.mxu0 %v750
  %6311 = vmatprep.subr.mxu0 0.0
  %6312 = vmatpush1.msra.mxu0 0.0
  %6313 = vmatprep.subr.mxu0 0.0
  %6314 = vmatpush1.msra.mxu0 0.0
  %6315 = vmatprep.subr.mxu0 0.0
  %6316 = vmatpush1.msra.mxu0 0.0
  %6317 = vmatprep.subr.mxu0 0.0
  %6318 = vmatpush1.msra.mxu0 0.0
  %6319 = vmatprep.subr.mxu0 0.0
  %6320 = vmatpush1.msra.mxu0 0.0
  %6321 = vmatprep.subr.mxu0 0.0
  %6322 = vmatpush1.msra.mxu0 0.0
  %6323 = vmatprep.subr.mxu0 0.0
  %6324 = vmatpush1.msra.mxu0 0.0
  %6325 = vmatprep.subr.mxu0 0.0
  %6326 = vmatpush1.msra.mxu0 0.0
  %6327 = vmatprep.subr.mxu0 0.0
  %6328 = vmatpush1.msra.mxu0 0.0
  %6329 = vmatprep.subr.mxu0 0.0
  %6330 = vmatpush1.msra.mxu0 0.0
  %6331 = vmatprep.subr.mxu0 0.0
  %6332 = vmatpush1.msra.mxu0 0.0
  %6333 = vmatprep.subr.mxu0 0.0
  %6334 = vmatpush1.msra.mxu0 0.0
  %6335 = vmatprep.subr.mxu0 0.0
  %6336 = vmatpush1.msra.mxu0 0.0
  %6337 = vmatprep.subr.mxu0 0.0
  %6338 = vmatpush1.msra.mxu0 0.0
  %6339 = vmatprep.subr.mxu0 0.0
  %6340 = vmatpush1.msra.mxu0 0.0
  %6341 = vmatprep.subr.mxu0 0.0
  %6342 = vmatpush1.msra.mxu0 0.0
  %6343 = vmatprep.subr.mxu0 0.0
  %6344 = vmatpush1.msra.mxu0 0.0
  %6345 = vmatprep.subr.mxu0 0.0
  %6346 = vmatpush1.msra.mxu0 0.0
  %6347 = vmatprep.subr.mxu0 0.0
  %6348 = vmatpush1.msra.mxu0 0.0
  %6349 = vmatprep.mubr.f32.mxu0 0.0
  %6350 = vmatmul.mubr.f32.gmra.mrb[0].mxu0 %v6274
  %v6351 = vpop.f32.mrb[0].mxu0
  %v6352 = vadd.f32 %v735, %v6351
  %v6353 = vpop.f32.mrb[0].mxu0
  %6354 = vmatprep.mubr.f32.mxu0 0.0
  %6355 = vmatmul.mubr.f32.gmra.mrb[0].mxu0 %v6277
  %v6356 = vpop.f32.mrb[0].mxu0
  %v6357 = vadd.f32 %v735, %v6356
  %v6358 = vpop.f32.mrb[0].mxu0
  %6359 = vmatprep.mubr.f32.mxu0 0.0
  %6360 = vmatmul.mubr.f32.gmra.mrb[0].mxu0 %v6280
  %v6361 = vpop.f32.mrb[0].mxu0
  %v6362 = vadd.f32 %v735, %v6361
  %v6363 = vpop.f32.mrb[0].mxu0
  %6364 = vmatprep.mubr.f32.mxu0 0.0
  %6365 = vmatmul.mubr.f32.gmra.mrb[0].mxu0 %v6283
  %v6366 = vpop.f32.mrb[0].mxu0
  %v6367 = vadd.f32 %v735, %v6366
  %v6368 = vpop.f32.mrb[0].mxu0
  %6369 = vdwg.mxu0
  %v6370 = vtanh.pop %v6352
  %v6371 = vtanh.pop %v6357
  %v6372 = vtanh.pop %v6362
  %v6373 = vtanh.pop %v6367
  %v6374 = vmul.f32 %v5972, %v5611
  %v6375 = vmul.f32 %v5974, %v5612
  %v6376 = vmul.f32 %v5976, %v5613
  %v6377 = vmul.f32 %v5978, %v5614
  %v6378 = vsub.f32 1.0, %v5972
  %v6379 = vsub.f32 1.0, %v5974
  %v6380 = vsub.f32 1.0, %v5976
  %v6381 = vsub.f32 1.0, %v5978
  %6386 = vrot.lane.b32.xlu0 %v6370, 32
  %v6387 = vpop.permute.xlu0 %6386
  %6388 = vrot.lane.b32.xlu0 %v6371, 32
  %v6389 = vpop.permute.xlu0 %6388
  %6390 = vrot.lane.b32.xlu0 %v6372, 32
  %v6391 = vpop.permute.xlu0 %6390
  %6392 = vrot.lane.b32.xlu0 %v6373, 32
  %v6393 = vpop.permute.xlu0 %6392
  %v6398 = vmul.f32 %v6378, %v6387
  %v6399 = vmul.f32 %v6379, %v6389
  %v6400 = vmul.f32 %v6380, %v6391
  %v6401 = vmul.f32 %v6381, %v6393
  %v6402 = vadd.f32 %v6374, %v6398
  %v6403 = vadd.f32 %v6375, %v6399
  %v6404 = vadd.f32 %v6376, %v6400
  %v6405 = vadd.f32 %v6377, %v6401
  %v6406 = vld [vmem:[%s6] sm:$0xff]
  %v6407 = vld [vmem:[%s6 + $0x8] sm:$0xff]
  %v6408 = vld [vmem:[%s6 + $0x10] sm:$0xff]
  %v6409 = vld [vmem:[%s6 + $0x18] sm:$0xff]
  %v6410 = vld [vmem:[%s6 + $0x20] sm:$0xff]
  %v6411 = vld [vmem:[%s6 + $0x28] sm:$0xff]
  %v6412 = vld [vmem:[%s6 + $0x30] sm:$0xff]
  %v6413 = vld [vmem:[%s6 + $0x38] sm:$0xff]
  %v6414 = vld [vmem:[%s6 + $0x40] sm:$0xff]
  %v6415 = vld [vmem:[%s6 + $0x48] sm:$0xff]
  %v6416 = vld [vmem:[%s6 + $0x50] sm:$0xff]
  %v6417 = vld [vmem:[%s6 + $0x58] sm:$0xff]
  %v6418 = vld [vmem:[%s6 + $0x60] sm:$0x7]
  %v6419 = vld [vmem:[%s7] sm:$0x1]
  %v6420 = vld [vmem:[%s8] sm:$0xff]
  %v6421 = vld [vmem:[%s8 + $0x8] sm:$0xff]
  %v6422 = vld [vmem:[%s8 + $0x10] sm:$0xff]
  %v6423 = vld [vmem:[%s8 + $0x18] sm:$0xff]
  %v6424 = vld [vmem:[%s8 + $0x20] sm:$0xff]
  %v6425 = vld [vmem:[%s8 + $0x28] sm:$0xff]
  %v6426 = vld [vmem:[%s8 + $0x30] sm:$0xff]
  %v6427 = vld [vmem:[%s8 + $0x38] sm:$0xff]
  %v6428 = vld [vmem:[%s8 + $0x40] sm:$0xff]
  %v6429 = vld [vmem:[%s8 + $0x48] sm:$0xff]
  %v6430 = vld [vmem:[%s8 + $0x50] sm:$0xff]
  %v6431 = vld [vmem:[%s8 + $0x58] sm:$0xff]
  %v6432 = vld [vmem:[%s8 + $0x60] sm:$0x7]
  %v6433 = vld [vmem:[%s9] sm:$0x1]
  %6438 = vrot.lane.b32.xlu0 %v6402, 97
  %v6439 = vpop.permute.xlu0 %6438
  %6440 = vrot.lane.b32.xlu0 %v6403, 97
  %v6441 = vpop.permute.xlu0 %6440
  %6442 = vrot.lane.b32.xlu0 %v6404, 97
  %v6443 = vpop.permute.xlu0 %6442
  %6444 = vrot.lane.b32.xlu0 %v6405, 97
  %v6445 = vpop.permute.xlu0 %6444
  %vm6450 = vcmask 7168
  %v6451 = vsel %vm6450, 0.0, %v6439
  %v6452 = vsel %vm6450, 0.0, %v6441
  %v6453 = vsel %vm6450, 0.0, %v6443
  %v6454 = vsel %vm6450, 0.0, %v6445
  %6455 = vmatprep.subr.mxu0 0.0
  %6456 = vmatpush1.msra.mxu0 %v6451
  %6457 = vmatprep.subr.mxu0 0.0
  %6458 = vmatpush1.msra.mxu0 %v6452
  %6459 = vmatprep.subr.mxu0 0.0
  %6460 = vmatpush1.msra.mxu0 %v6453
  %6461 = vmatprep.subr.mxu0 0.0
  %6462 = vmatpush1.msra.mxu0 %v6454
  %6463 = vmatprep.subr.mxu0 0.0
  %6464 = vmatpush1.msra.mxu0 0.0
  %6465 = vmatprep.subr.mxu0 0.0
  %6466 = vmatpush1.msra.mxu0 0.0
  %6467 = vmatprep.subr.mxu0 0.0
  %6468 = vmatpush1.msra.mxu0 0.0
  %6469 = vmatprep.subr.mxu0 0.0
  %6470 = vmatpush1.msra.mxu0 0.0
  %6471 = vmatprep.subr.mxu0 0.0
  %6472 = vmatpush1.msra.mxu0 0.0
  %6473 = vmatprep.subr.mxu0 0.0
  %6474 = vmatpush1.msra.mxu0 0.0
  %6475 = vmatprep.subr.mxu0 0.0
  %6476 = vmatpush1.msra.mxu0 0.0
  %6477 = vmatprep.subr.mxu0 0.0
  %6478 = vmatpush1.msra.mxu0 0.0
  %6479 = vmatprep.subr.mxu0 0.0
  %6480 = vmatpush1.msra.mxu0 0.0
  %6481 = vmatprep.subr.mxu0 0.0
  %6482 = vmatpush1.msra.mxu0 0.0
  %6483 = vmatprep.subr.mxu0 0.0
  %6484 = vmatpush1.msra.mxu0 0.0
  %6485 = vmatprep.subr.mxu0 0.0
  %6486 = vmatpush1.msra.mxu0 0.0
  %6487 = vmatprep.subr.mxu0 0.0
  %6488 = vmatpush1.msra.mxu0 0.0
  %6489 = vmatprep.subr.mxu0 0.0
  %6490 = vmatpush1.msra.mxu0 0.0
  %6491 = vmatprep.subr.mxu0 0.0
  %6492 = vmatpush1.msra.mxu0 0.0
  %6493 = vmatprep.subr.mxu0 0.0
  %6494 = vmatpush1.msra.mxu0 0.0
  %6495 = vmatprep.subr.mxu0 0.0
  %6496 = vmatpush1.msra.mxu0 0.0
  %6497 = vmatprep.subr.mxu0 0.0
  %6498 = vmatpush1.msra.mxu0 0.0
  %6499 = vmatprep.subr.mxu0 0.0
  %6500 = vmatpush1.msra.mxu0 0.0
  %6501 = vmatprep.subr.mxu0 0.0
  %6502 = vmatpush1.msra.mxu0 0.0
  %6503 = vmatprep.subr.mxu0 0.0
  %6504 = vmatpush1.msra.mxu0 0.0
  %6505 = vmatprep.subr.mxu0 0.0
  %6506 = vmatpush1.msra.mxu0 0.0
  %6507 = vmatprep.subr.mxu0 0.0
  %6508 = vmatpush1.msra.mxu0 0.0
  %6509 = vmatprep.subr.mxu0 0.0
  %6510 = vmatpush1.msra.mxu0 0.0
  %6511 = vmatprep.subr.mxu0 0.0
  %6512 = vmatpush1.msra.mxu0 0.0
  %6513 = vmatprep.subr.mxu0 0.0
  %6514 = vmatpush1.msra.mxu0 0.0
  %6515 = vmatprep.subr.mxu0 0.0
  %6516 = vmatpush1.msra.mxu0 0.0
  %6517 = vmatprep.subr.mxu0 0.0
  %6518 = vmatpush1.msra.mxu0 0.0
  %6519 = vmatprep.mubr.f32.mxu0 0.0
  %6520 = vmatmul.mubr.f32.gmra.mrb[0].mxu0 %v86
  %v6521 = vpop.f32.mrb[0].mxu0
  %v6522 = vadd.f32 0.0, %v6521
  %v6523 = vpop.f32.mrb[0].mxu0
  %6524 = vmatprep.mubr.f32.mxu0 0.0
  %6525 = vmatmul.mubr.f32.gmra.mrb[0].mxu0 %v89
  %v6526 = vpop.f32.mrb[0].mxu0
  %v6527 = vadd.f32 0.0, %v6526
  %v6528 = vpop.f32.mrb[0].mxu0
  %6529 = vmatprep.mubr.f32.mxu0 0.0
  %6530 = vmatmul.mubr.f32.gmra.mrb[0].mxu0 %v92
  %v6531 = vpop.f32.mrb[0].mxu0
  %v6532 = vadd.f32 0.0, %v6531
  %v6533 = vpop.f32.mrb[0].mxu0
  %6534 = vmatprep.mubr.f32.mxu0 0.0
  %6535 = vmatmul.mubr.f32.gmra.mrb[0].mxu0 %v95
  %v6536 = vpop.f32.mrb[0].mxu0
  %v6537 = vadd.f32 0.0, %v6536
  %v6538 = vpop.f32.mrb[0].mxu0
  %6539 = vdwg.mxu0
  %6540 = vmatprep.subr.mxu0 0.0
  %6541 = vmatpush1.msra.mxu0 %v6522
  %6542 = vmatprep.subr.mxu0 0.0
  %6543 = vmatpush1.msra.mxu0 %v6527
  %6544 = vmatprep.subr.mxu0 0.0
  %6545 = vmatpush1.msra.mxu0 %v6532
  %6546 = vmatprep.subr.mxu0 0.0
  %6547 = vmatpush1.msra.mxu0 %v6537
  %6548 = vmatprep.subr.mxu0 0.0
  %6549 = vmatpush1.msra.mxu0 0.0
  %6550 = vmatprep.subr.mxu0 0.0
  %6551 = vmatpush1.msra.mxu0 0.0
  %6552 = vmatprep.subr.mxu0 0.0
  %6553 = vmatpush1.msra.mxu0 0.0
  %6554 = vmatprep.subr.mxu0 0.0
  %6555 = vmatpush1.msra.mxu0 0.0
  %6556 = vmatprep.subr.mxu0 0.0
  %6557 = vmatpush1.msra.mxu0 0.0
  %6558 = vmatprep.subr.mxu0 0.0
  %6559 = vmatpush1.msra.mxu0 0.0
  %6560 = vmatprep.subr.mxu0 0.0
  %6561 = vmatpush1.msra.mxu0 0.0
  %6562 = vmatprep.subr.mxu0 0.0
  %6563 = vmatpush1.msra.mxu0 0.0
  %6564 = vmatprep.subr.mxu0 0.0
  %6565 = vmatpush1.msra.mxu0 0.0
  %6566 = vmatprep.subr.mxu0 0.0
  %6567 = vmatpush1.msra.mxu0 0.0
  %6568 = vmatprep.subr.mxu0 0.0
  %6569 = vmatpush1.msra.mxu0 0.0
  %6570 = vmatprep.subr.mxu0 0.0
  %6571 = vmatpush1.msra.mxu0 0.0
  %6572 = vmatprep.subr.mxu0 0.0
  %6573 = vmatpush1.msra.mxu0 0.0
  %6574 = vmatprep.subr.mxu0 0.0
  %6575 = vmatpush1.msra.mxu0 0.0
  %6576 = vmatprep.subr.mxu0 0.0
  %6577 = vmatpush1.msra.mxu0 0.0
  %6578 = vmatprep.subr.mxu0 0.0
  %6579 = vmatpush1.msra.mxu0 0.0
  %6580 = vmatprep.subr.mxu0 0.0
  %6581 = vmatpush1.msra.mxu0 0.0
  %6582 = vmatprep.subr.mxu0 0.0
  %6583 = vmatpush1.msra.mxu0 0.0
  %6584 = vmatprep.subr.mxu0 0.0
  %6585 = vmatpush1.msra.mxu0 0.0
  %6586 = vmatprep.subr.mxu0 0.0
  %6587 = vmatpush1.msra.mxu0 0.0
  %6588 = vmatprep.subr.mxu0 0.0
  %6589 = vmatpush1.msra.mxu0 0.0
  %6590 = vmatprep.subr.mxu0 0.0
  %6591 = vmatpush1.msra.mxu0 0.0
  %6592 = vmatprep.subr.mxu0 0.0
  %6593 = vmatpush1.msra.mxu0 0.0
  %6594 = vmatprep.subr.mxu0 0.0
  %6595 = vmatpush1.msra.mxu0 0.0
  %6596 = vmatprep.subr.mxu0 0.0
  %6597 = vmatpush1.msra.mxu0 0.0
  %6598 = vmatprep.subr.mxu0 0.0
  %6599 = vmatpush1.msra.mxu0 0.0
  %6600 = vmatprep.subr.mxu0 0.0
  %6601 = vmatpush1.msra.mxu0 0.0
  %6602 = vmatprep.subr.mxu0 0.0
  %6603 = vmatpush1.msra.mxu0 0.0
  %6604 = vmatprep.mubr.f32.mxu0 0.0
  %6605 = vmatmul.mubr.f32.gmra.mrb[0].mxu0 %v86
  %v6606 = vpop.f32.mrb[0].mxu0
  %v6607 = vadd.f32 0.0, %v6606
  %v6608 = vpop.f32.mrb[0].mxu0
  %6609 = vmatprep.mubr.f32.mxu0 0.0
  %6610 = vmatmul.mubr.f32.gmra.mrb[0].mxu0 %v89
  %v6611 = vpop.f32.mrb[0].mxu0
  %v6612 = vadd.f32 0.0, %v6611
  %v6613 = vpop.f32.mrb[0].mxu0
  %6614 = vmatprep.mubr.f32.mxu0 0.0
  %6615 = vmatmul.mubr.f32.gmra.mrb[0].mxu0 %v92
  %v6616 = vpop.f32.mrb[0].mxu0
  %v6617 = vadd.f32 0.0, %v6616
  %v6618 = vpop.f32.mrb[0].mxu0
  %6619 = vmatprep.mubr.f32.mxu0 0.0
  %6620 = vmatmul.mubr.f32.gmra.mrb[0].mxu0 %v95
  %v6621 = vpop.f32.mrb[0].mxu0
  %v6622 = vadd.f32 0.0, %v6621
  %v6623 = vpop.f32.mrb[0].mxu0
  %6624 = vdwg.mxu0
  %v6625 = vmul.f32 %v6607, 2.0
  %v6626 = vmul.f32 %v6612, 2.0
  %v6627 = vmul.f32 %v6617, 2.0
  %v6628 = vmul.f32 %v6622, 2.0
  %v6629 = vsub.f32 %v6625, %v6451
  %v6630 = vsub.f32 %v6626, %v6452
  %v6631 = vsub.f32 %v6627, %v6453
  %v6632 = vsub.f32 %v6628, %v6454
  %6637 = vrot.lane.b32.xlu0 %v6522, 33
  %v6638 = vpop.permute.xlu0 %6637
  %6639 = vrot.lane.b32.xlu0 %v6527, 33
  %v6640 = vpop.permute.xlu0 %6639
  %6641 = vrot.lane.b32.xlu0 %v6532, 33
  %v6642 = vpop.permute.xlu0 %6641
  %6643 = vrot.lane.b32.xlu0 %v6537, 33
  %v6644 = vpop.permute.xlu0 %6643
  %6653 = vrot.lane.b32.xlu0 %v6629, 66
  %v6654 = vpop.permute.xlu0 %6653
  %6655 = vrot.lane.b32.xlu0 %v6630, 66
  %v6656 = vpop.permute.xlu0 %6655
  %6657 = vrot.lane.b32.xlu0 %v6631, 66
  %v6658 = vpop.permute.xlu0 %6657
  %6659 = vrot.lane.b32.xlu0 %v6632, 66
  %v6660 = vpop.permute.xlu0 %6659
  %vm6665 = vcmask 269312
  %v6666 = vsel %vm6665, %v6451, %v6638
  %v6667 = vsel %vm6665, %v6452, %v6640
  %v6668 = vsel %vm6665, %v6453, %v6642
  %v6669 = vsel %vm6665, %v6454, %v6644
  %vm6670 = vcmask 539648
  %v6671 = vsel %vm6670, %v6666, %v6654
  %v6672 = vsel %vm6670, %v6667, %v6656
  %v6673 = vsel %vm6670, %v6668, %v6658
  %v6674 = vsel %vm6670, %v6669, %v6660
  %v6676 = vlaneseq
  %v6677 = vshrl.u32 %v6676, 7
  %v6678 = vsub.s32 0, %v6677
  %v6679 = vrot.slane %v6419, %v6678
  %vm6681 = vcmask 809984
  %v6683 = vsel %vm6681, %v6671, 0
  %v6686 = vsel %vm6681, %v6672, 0
  %v6689 = vsel %vm6681, %v6673, 0
  %v6692 = vsel %vm6681, %v6674, 0
  %vm6694 = vcmask 1042432
  %v6696 = vsel %vm6694, %v6418, 0
  %6698 = vmatprep.subr.mxu0 0.0
  %6699 = vmatpush1.msra.mxu0 %v6406
  %6700 = vmatprep.subr.mxu0 0.0
  %6701 = vmatpush1.msra.mxu0 %v6407
  %6702 = vmatprep.subr.mxu0 0.0
  %6703 = vmatpush1.msra.mxu0 %v6408
  %6704 = vmatprep.subr.mxu0 0.0
  %6705 = vmatpush1.msra.mxu0 %v6409
  %6706 = vmatprep.subr.mxu0 0.0
  %6707 = vmatpush1.msra.mxu0 %v6410
  %6708 = vmatprep.subr.mxu0 0.0
  %6709 = vmatpush1.msra.mxu0 %v6411
  %6710 = vmatprep.subr.mxu0 0.0
  %6711 = vmatpush1.msra.mxu0 %v6412
  %6712 = vmatprep.subr.mxu0 0.0
  %6713 = vmatpush1.msra.mxu0 %v6413
  %6714 = vmatprep.subr.mxu0 0.0
  %6715 = vmatpush1.msra.mxu0 %v6414
  %6716 = vmatprep.subr.mxu0 0.0
  %6717 = vmatpush1.msra.mxu0 %v6415
  %6718 = vmatprep.subr.mxu0 0.0
  %6719 = vmatpush1.msra.mxu0 %v6416
  %6720 = vmatprep.subr.mxu0 0.0
  %6721 = vmatpush1.msra.mxu0 %v6417
  %6722 = vmatprep.subr.mxu0 0.0
  %6723 = vmatpush1.msra.mxu0 %v6696
  %6724 = vmatprep.subr.mxu0 0.0
  %6725 = vmatpush1.msra.mxu0 0.0
  %6726 = vmatprep.subr.mxu0 0.0
  %6727 = vmatpush1.msra.mxu0 0.0
  %6728 = vmatprep.subr.mxu0 0.0
  %6729 = vmatpush1.msra.mxu0 0.0
  %6730 = vmatprep.subr.mxu0 0.0
  %6731 = vmatpush1.msra.mxu0 0.0
  %6732 = vmatprep.subr.mxu0 0.0
  %6733 = vmatpush1.msra.mxu0 0.0
  %6734 = vmatprep.subr.mxu0 0.0
  %6735 = vmatpush1.msra.mxu0 0.0
  %6736 = vmatprep.subr.mxu0 0.0
  %6737 = vmatpush1.msra.mxu0 0.0
  %6738 = vmatprep.subr.mxu0 0.0
  %6739 = vmatpush1.msra.mxu0 0.0
  %6740 = vmatprep.subr.mxu0 0.0
  %6741 = vmatpush1.msra.mxu0 0.0
  %6742 = vmatprep.subr.mxu0 0.0
  %6743 = vmatpush1.msra.mxu0 0.0
  %6744 = vmatprep.subr.mxu0 0.0
  %6745 = vmatpush1.msra.mxu0 0.0
  %6746 = vmatprep.subr.mxu0 0.0
  %6747 = vmatpush1.msra.mxu0 0.0
  %6748 = vmatprep.subr.mxu0 0.0
  %6749 = vmatpush1.msra.mxu0 0.0
  %6750 = vmatprep.subr.mxu0 0.0
  %6751 = vmatpush1.msra.mxu0 0.0
  %6752 = vmatprep.subr.mxu0 0.0
  %6753 = vmatpush1.msra.mxu0 0.0
  %6754 = vmatprep.subr.mxu0 0.0
  %6755 = vmatpush1.msra.mxu0 0.0
  %6756 = vmatprep.subr.mxu0 0.0
  %6757 = vmatpush1.msra.mxu0 0.0
  %6758 = vmatprep.subr.mxu0 0.0
  %6759 = vmatpush1.msra.mxu0 0.0
  %6760 = vmatprep.subr.mxu0 0.0
  %6761 = vmatpush1.msra.mxu0 0.0
  %6762 = vmatprep.mubr.f32.mxu0 0.0
  %6763 = vmatmul.mubr.f32.gmra.mrb[0].mxu0 %v6683
  %v6764 = vpop.f32.mrb[0].mxu0
  %v6765 = vadd.f32 %v6679, %v6764
  %v6766 = vpop.f32.mrb[0].mxu0
  %6767 = vmatprep.mubr.f32.mxu0 0.0
  %6768 = vmatmul.mubr.f32.gmra.mrb[0].mxu0 %v6686
  %v6769 = vpop.f32.mrb[0].mxu0
  %v6770 = vadd.f32 %v6679, %v6769
  %v6771 = vpop.f32.mrb[0].mxu0
  %6772 = vmatprep.mubr.f32.mxu0 0.0
  %6773 = vmatmul.mubr.f32.gmra.mrb[0].mxu0 %v6689
  %v6774 = vpop.f32.mrb[0].mxu0
  %v6775 = vadd.f32 %v6679, %v6774
  %v6776 = vpop.f32.mrb[0].mxu0
  %6777 = vmatprep.mubr.f32.mxu0 0.0
  %6778 = vmatmul.mubr.f32.gmra.mrb[0].mxu0 %v6692
  %v6779 = vpop.f32.mrb[0].mxu0
  %v6780 = vadd.f32 %v6679, %v6779
  %v6781 = vpop.f32.mrb[0].mxu0
  %6782 = vdwg.mxu0
  %v6783 = vxor.u32 %v6765, 2147483648
  %v6784 = vxor.u32 %v6770, 2147483648
  %v6785 = vxor.u32 %v6775, 2147483648
  %v6786 = vxor.u32 %v6780, 2147483648
  %v6787 = vmul.f32 %v6783, 1.442695
  %v6788 = vpow.pop %v6787
  %v6789 = vmul.f32 %v6784, 1.442695
  %v6790 = vpow.pop %v6789
  %v6791 = vmul.f32 %v6785, 1.442695
  %v6792 = vpow.pop %v6791
  %v6793 = vmul.f32 %v6786, 1.442695
  %v6794 = vpow.pop %v6793
  %v6795 = vadd.f32 %v6788, 1.0
  %v6796 = vadd.f32 %v6790, 1.0
  %v6797 = vadd.f32 %v6792, 1.0
  %v6798 = vadd.f32 %v6794, 1.0
  %v6799 = vrcp.pop %v6795
  %v6800 = vmul.f32 1.0, %v6799
  %v6801 = vrcp.pop %v6796
  %v6802 = vmul.f32 1.0, %v6801
  %v6803 = vrcp.pop %v6797
  %v6804 = vmul.f32 1.0, %v6803
  %v6805 = vrcp.pop %v6798
  %v6806 = vmul.f32 1.0, %v6805
  %6807 = vrot.lane.b32.xlu0 %v6402, 96
  %v6808 = vpop.permute.xlu0 %6807
  %6809 = vrot.lane.b32.xlu0 %v6403, 96
  %v6810 = vpop.permute.xlu0 %6809
  %6811 = vrot.lane.b32.xlu0 %v6404, 96
  %v6812 = vpop.permute.xlu0 %6811
  %6813 = vrot.lane.b32.xlu0 %v6405, 96
  %v6814 = vpop.permute.xlu0 %6813
  %v6819 = vmul.f32 %v6800, %v6808
  %v6820 = vmul.f32 %v6802, %v6810
  %v6821 = vmul.f32 %v6804, %v6812
  %v6822 = vmul.f32 %v6806, %v6814
  %6823 = vmatprep.subr.mxu0 0.0
  %6824 = vmatpush1.msra.mxu0 %v6819
  %6825 = vmatprep.subr.mxu0 0.0
  %6826 = vmatpush1.msra.mxu0 %v6820
  %6827 = vmatprep.subr.mxu0 0.0
  %6828 = vmatpush1.msra.mxu0 %v6821
  %6829 = vmatprep.subr.mxu0 0.0
  %6830 = vmatpush1.msra.mxu0 %v6822
  %6831 = vmatprep.subr.mxu0 0.0
  %6832 = vmatpush1.msra.mxu0 0.0
  %6833 = vmatprep.subr.mxu0 0.0
  %6834 = vmatpush1.msra.mxu0 0.0
  %6835 = vmatprep.subr.mxu0 0.0
  %6836 = vmatpush1.msra.mxu0 0.0
  %6837 = vmatprep.subr.mxu0 0.0
  %6838 = vmatpush1.msra.mxu0 0.0
  %6839 = vmatprep.subr.mxu0 0.0
  %6840 = vmatpush1.msra.mxu0 0.0
  %6841 = vmatprep.subr.mxu0 0.0
  %6842 = vmatpush1.msra.mxu0 0.0
  %6843 = vmatprep.subr.mxu0 0.0
  %6844 = vmatpush1.msra.mxu0 0.0
  %6845 = vmatprep.subr.mxu0 0.0
  %6846 = vmatpush1.msra.mxu0 0.0
  %6847 = vmatprep.subr.mxu0 0.0
  %6848 = vmatpush1.msra.mxu0 0.0
  %6849 = vmatprep.subr.mxu0 0.0
  %6850 = vmatpush1.msra.mxu0 0.0
  %6851 = vmatprep.subr.mxu0 0.0
  %6852 = vmatpush1.msra.mxu0 0.0
  %6853 = vmatprep.subr.mxu0 0.0
  %6854 = vmatpush1.msra.mxu0 0.0
  %6855 = vmatprep.subr.mxu0 0.0
  %6856 = vmatpush1.msra.mxu0 0.0
  %6857 = vmatprep.subr.mxu0 0.0
  %6858 = vmatpush1.msra.mxu0 0.0
  %6859 = vmatprep.subr.mxu0 0.0
  %6860 = vmatpush1.msra.mxu0 0.0
  %6861 = vmatprep.subr.mxu0 0.0
  %6862 = vmatpush1.msra.mxu0 0.0
  %6863 = vmatprep.subr.mxu0 0.0
  %6864 = vmatpush1.msra.mxu0 0.0
  %6865 = vmatprep.subr.mxu0 0.0
  %6866 = vmatpush1.msra.mxu0 0.0
  %6867 = vmatprep.subr.mxu0 0.0
  %6868 = vmatpush1.msra.mxu0 0.0
  %6869 = vmatprep.subr.mxu0 0.0
  %6870 = vmatpush1.msra.mxu0 0.0
  %6871 = vmatprep.subr.mxu0 0.0
  %6872 = vmatpush1.msra.mxu0 0.0
  %6873 = vmatprep.subr.mxu0 0.0
  %6874 = vmatpush1.msra.mxu0 0.0
  %6875 = vmatprep.subr.mxu0 0.0
  %6876 = vmatpush1.msra.mxu0 0.0
  %6877 = vmatprep.subr.mxu0 0.0
  %6878 = vmatpush1.msra.mxu0 0.0
  %6879 = vmatprep.subr.mxu0 0.0
  %6880 = vmatpush1.msra.mxu0 0.0
  %6881 = vmatprep.subr.mxu0 0.0
  %6882 = vmatpush1.msra.mxu0 0.0
  %6883 = vmatprep.subr.mxu0 0.0
  %6884 = vmatpush1.msra.mxu0 0.0
  %6885 = vmatprep.subr.mxu0 0.0
  %6886 = vmatpush1.msra.mxu0 0.0
  %6887 = vmatprep.mubr.f32.mxu0 0.0
  %6888 = vmatmul.mubr.f32.gmra.mrb[0].mxu0 %v86
  %v6889 = vpop.f32.mrb[0].mxu0
  %v6890 = vadd.f32 0.0, %v6889
  %v6891 = vpop.f32.mrb[0].mxu0
  %6892 = vmatprep.mubr.f32.mxu0 0.0
  %6893 = vmatmul.mubr.f32.gmra.mrb[0].mxu0 %v89
  %v6894 = vpop.f32.mrb[0].mxu0
  %v6895 = vadd.f32 0.0, %v6894
  %v6896 = vpop.f32.mrb[0].mxu0
  %6897 = vmatprep.mubr.f32.mxu0 0.0
  %6898 = vmatmul.mubr.f32.gmra.mrb[0].mxu0 %v92
  %v6899 = vpop.f32.mrb[0].mxu0
  %v6900 = vadd.f32 0.0, %v6899
  %v6901 = vpop.f32.mrb[0].mxu0
  %6902 = vmatprep.mubr.f32.mxu0 0.0
  %6903 = vmatmul.mubr.f32.gmra.mrb[0].mxu0 %v95
  %v6904 = vpop.f32.mrb[0].mxu0
  %v6905 = vadd.f32 0.0, %v6904
  %v6906 = vpop.f32.mrb[0].mxu0
  %6907 = vdwg.mxu0
  %6908 = vmatprep.subr.mxu0 0.0
  %6909 = vmatpush1.msra.mxu0 %v6890
  %6910 = vmatprep.subr.mxu0 0.0
  %6911 = vmatpush1.msra.mxu0 %v6895
  %6912 = vmatprep.subr.mxu0 0.0
  %6913 = vmatpush1.msra.mxu0 %v6900
  %6914 = vmatprep.subr.mxu0 0.0
  %6915 = vmatpush1.msra.mxu0 %v6905
  %6916 = vmatprep.subr.mxu0 0.0
  %6917 = vmatpush1.msra.mxu0 0.0
  %6918 = vmatprep.subr.mxu0 0.0
  %6919 = vmatpush1.msra.mxu0 0.0
  %6920 = vmatprep.subr.mxu0 0.0
  %6921 = vmatpush1.msra.mxu0 0.0
  %6922 = vmatprep.subr.mxu0 0.0
  %6923 = vmatpush1.msra.mxu0 0.0
  %6924 = vmatprep.subr.mxu0 0.0
  %6925 = vmatpush1.msra.mxu0 0.0
  %6926 = vmatprep.subr.mxu0 0.0
  %6927 = vmatpush1.msra.mxu0 0.0
  %6928 = vmatprep.subr.mxu0 0.0
  %6929 = vmatpush1.msra.mxu0 0.0
  %6930 = vmatprep.subr.mxu0 0.0
  %6931 = vmatpush1.msra.mxu0 0.0
  %6932 = vmatprep.subr.mxu0 0.0
  %6933 = vmatpush1.msra.mxu0 0.0
  %6934 = vmatprep.subr.mxu0 0.0
  %6935 = vmatpush1.msra.mxu0 0.0
  %6936 = vmatprep.subr.mxu0 0.0
  %6937 = vmatpush1.msra.mxu0 0.0
  %6938 = vmatprep.subr.mxu0 0.0
  %6939 = vmatpush1.msra.mxu0 0.0
  %6940 = vmatprep.subr.mxu0 0.0
  %6941 = vmatpush1.msra.mxu0 0.0
  %6942 = vmatprep.subr.mxu0 0.0
  %6943 = vmatpush1.msra.mxu0 0.0
  %6944 = vmatprep.subr.mxu0 0.0
  %6945 = vmatpush1.msra.mxu0 0.0
  %6946 = vmatprep.subr.mxu0 0.0
  %6947 = vmatpush1.msra.mxu0 0.0
  %6948 = vmatprep.subr.mxu0 0.0
  %6949 = vmatpush1.msra.mxu0 0.0
  %6950 = vmatprep.subr.mxu0 0.0
  %6951 = vmatpush1.msra.mxu0 0.0
  %6952 = vmatprep.subr.mxu0 0.0
  %6953 = vmatpush1.msra.mxu0 0.0
  %6954 = vmatprep.subr.mxu0 0.0
  %6955 = vmatpush1.msra.mxu0 0.0
  %6956 = vmatprep.subr.mxu0 0.0
  %6957 = vmatpush1.msra.mxu0 0.0
  %6958 = vmatprep.subr.mxu0 0.0
  %6959 = vmatpush1.msra.mxu0 0.0
  %6960 = vmatprep.subr.mxu0 0.0
  %6961 = vmatpush1.msra.mxu0 0.0
  %6962 = vmatprep.subr.mxu0 0.0
  %6963 = vmatpush1.msra.mxu0 0.0
  %6964 = vmatprep.subr.mxu0 0.0
  %6965 = vmatpush1.msra.mxu0 0.0
  %6966 = vmatprep.subr.mxu0 0.0
  %6967 = vmatpush1.msra.mxu0 0.0
  %6968 = vmatprep.subr.mxu0 0.0
  %6969 = vmatpush1.msra.mxu0 0.0
  %6970 = vmatprep.subr.mxu0 0.0
  %6971 = vmatpush1.msra.mxu0 0.0
  %6972 = vmatprep.mubr.f32.mxu0 0.0
  %6973 = vmatmul.mubr.f32.gmra.mrb[0].mxu0 %v86
  %v6974 = vpop.f32.mrb[0].mxu0
  %v6975 = vadd.f32 0.0, %v6974
  %v6976 = vpop.f32.mrb[0].mxu0
  %6977 = vmatprep.mubr.f32.mxu0 0.0
  %6978 = vmatmul.mubr.f32.gmra.mrb[0].mxu0 %v89
  %v6979 = vpop.f32.mrb[0].mxu0
  %v6980 = vadd.f32 0.0, %v6979
  %v6981 = vpop.f32.mrb[0].mxu0
  %6982 = vmatprep.mubr.f32.mxu0 0.0
  %6983 = vmatmul.mubr.f32.gmra.mrb[0].mxu0 %v92
  %v6984 = vpop.f32.mrb[0].mxu0
  %v6985 = vadd.f32 0.0, %v6984
  %v6986 = vpop.f32.mrb[0].mxu0
  %6987 = vmatprep.mubr.f32.mxu0 0.0
  %6988 = vmatmul.mubr.f32.gmra.mrb[0].mxu0 %v95
  %v6989 = vpop.f32.mrb[0].mxu0
  %v6990 = vadd.f32 0.0, %v6989
  %v6991 = vpop.f32.mrb[0].mxu0
  %6992 = vdwg.mxu0
  %v6993 = vmul.f32 %v6975, 2.0
  %v6994 = vmul.f32 %v6980, 2.0
  %v6995 = vmul.f32 %v6985, 2.0
  %v6996 = vmul.f32 %v6990, 2.0
  %v6997 = vsub.f32 %v6993, %v6819
  %v6998 = vsub.f32 %v6994, %v6820
  %v6999 = vsub.f32 %v6995, %v6821
  %v7000 = vsub.f32 %v6996, %v6822
  %7005 = vrot.lane.b32.xlu0 %v6819, 1
  %v7006 = vpop.permute.xlu0 %7005
  %7007 = vrot.lane.b32.xlu0 %v6820, 1
  %v7008 = vpop.permute.xlu0 %7007
  %7009 = vrot.lane.b32.xlu0 %v6821, 1
  %v7010 = vpop.permute.xlu0 %7009
  %7011 = vrot.lane.b32.xlu0 %v6822, 1
  %v7012 = vpop.permute.xlu0 %7011
  %v7017 = vsel %vm6450, %v6451, %v7006
  %v7018 = vsel %vm6450, %v6452, %v7008
  %v7019 = vsel %vm6450, %v6453, %v7010
  %v7020 = vsel %vm6450, %v6454, %v7012
  %7025 = vrot.lane.b32.xlu0 %v6890, 1
  %v7026 = vpop.permute.xlu0 %7025
  %7027 = vrot.lane.b32.xlu0 %v6895, 1
  %v7028 = vpop.permute.xlu0 %7027
  %7029 = vrot.lane.b32.xlu0 %v6900, 1
  %v7030 = vpop.permute.xlu0 %7029
  %7031 = vrot.lane.b32.xlu0 %v6905, 1
  %v7032 = vpop.permute.xlu0 %7031
  %v7037 = vsel %vm6450, %v6522, %v7026
  %v7038 = vsel %vm6450, %v6527, %v7028
  %v7039 = vsel %vm6450, %v6532, %v7030
  %v7040 = vsel %vm6450, %v6537, %v7032
  %7045 = vrot.lane.b32.xlu0 %v6997, 1
  %v7046 = vpop.permute.xlu0 %7045
  %7047 = vrot.lane.b32.xlu0 %v6998, 1
  %v7048 = vpop.permute.xlu0 %7047
  %7049 = vrot.lane.b32.xlu0 %v6999, 1
  %v7050 = vpop.permute.xlu0 %7049
  %7051 = vrot.lane.b32.xlu0 %v7000, 1
  %v7052 = vpop.permute.xlu0 %7051
  %v7057 = vsel %vm6450, %v6629, %v7046
  %v7058 = vsel %vm6450, %v6630, %v7048
  %v7059 = vsel %vm6450, %v6631, %v7050
  %v7060 = vsel %vm6450, %v6632, %v7052
  %7065 = vrot.lane.b32.xlu0 %v7037, 33
  %v7066 = vpop.permute.xlu0 %7065
  %7067 = vrot.lane.b32.xlu0 %v7038, 33
  %v7068 = vpop.permute.xlu0 %7067
  %7069 = vrot.lane.b32.xlu0 %v7039, 33
  %v7070 = vpop.permute.xlu0 %7069
  %7071 = vrot.lane.b32.xlu0 %v7040, 33
  %v7072 = vpop.permute.xlu0 %7071
  %7081 = vrot.lane.b32.xlu0 %v7057, 66
  %v7082 = vpop.permute.xlu0 %7081
  %7083 = vrot.lane.b32.xlu0 %v7058, 66
  %v7084 = vpop.permute.xlu0 %7083
  %7085 = vrot.lane.b32.xlu0 %v7059, 66
  %v7086 = vpop.permute.xlu0 %7085
  %7087 = vrot.lane.b32.xlu0 %v7060, 66
  %v7088 = vpop.permute.xlu0 %7087
  %v7093 = vsel %vm6665, %v7017, %v7066
  %v7094 = vsel %vm6665, %v7018, %v7068
  %v7095 = vsel %vm6665, %v7019, %v7070
  %v7096 = vsel %vm6665, %v7020, %v7072
  %v7097 = vsel %vm6670, %v7093, %v7082
  %v7098 = vsel %vm6670, %v7094, %v7084
  %v7099 = vsel %vm6670, %v7095, %v7086
  %v7100 = vsel %vm6670, %v7096, %v7088
  %v7102 = vlaneseq
  %v7103 = vshrl.u32 %v7102, 7
  %v7104 = vsub.s32 0, %v7103
  %v7105 = vrot.slane %v6433, %v7104
  %v7108 = vsel %vm6681, %v7097, 0
  %v7111 = vsel %vm6681, %v7098, 0
  %v7114 = vsel %vm6681, %v7099, 0
  %v7117 = vsel %vm6681, %v7100, 0
  %v7120 = vsel %vm6694, %v6432, 0
  %7122 = vmatprep.subr.mxu0 0.0
  %7123 = vmatpush1.msra.mxu0 %v6420
  %7124 = vmatprep.subr.mxu0 0.0
  %7125 = vmatpush1.msra.mxu0 %v6421
  %7126 = vmatprep.subr.mxu0 0.0
  %7127 = vmatpush1.msra.mxu0 %v6422
  %7128 = vmatprep.subr.mxu0 0.0
  %7129 = vmatpush1.msra.mxu0 %v6423
  %7130 = vmatprep.subr.mxu0 0.0
  %7131 = vmatpush1.msra.mxu0 %v6424
  %7132 = vmatprep.subr.mxu0 0.0
  %7133 = vmatpush1.msra.mxu0 %v6425
  %7134 = vmatprep.subr.mxu0 0.0
  %7135 = vmatpush1.msra.mxu0 %v6426
  %7136 = vmatprep.subr.mxu0 0.0
  %7137 = vmatpush1.msra.mxu0 %v6427
  %7138 = vmatprep.subr.mxu0 0.0
  %7139 = vmatpush1.msra.mxu0 %v6428
  %7140 = vmatprep.subr.mxu0 0.0
  %7141 = vmatpush1.msra.mxu0 %v6429
  %7142 = vmatprep.subr.mxu0 0.0
  %7143 = vmatpush1.msra.mxu0 %v6430
  %7144 = vmatprep.subr.mxu0 0.0
  %7145 = vmatpush1.msra.mxu0 %v6431
  %7146 = vmatprep.subr.mxu0 0.0
  %7147 = vmatpush1.msra.mxu0 %v7120
  %7148 = vmatprep.subr.mxu0 0.0
  %7149 = vmatpush1.msra.mxu0 0.0
  %7150 = vmatprep.subr.mxu0 0.0
  %7151 = vmatpush1.msra.mxu0 0.0
  %7152 = vmatprep.subr.mxu0 0.0
  %7153 = vmatpush1.msra.mxu0 0.0
  %7154 = vmatprep.subr.mxu0 0.0
  %7155 = vmatpush1.msra.mxu0 0.0
  %7156 = vmatprep.subr.mxu0 0.0
  %7157 = vmatpush1.msra.mxu0 0.0
  %7158 = vmatprep.subr.mxu0 0.0
  %7159 = vmatpush1.msra.mxu0 0.0
  %7160 = vmatprep.subr.mxu0 0.0
  %7161 = vmatpush1.msra.mxu0 0.0
  %7162 = vmatprep.subr.mxu0 0.0
  %7163 = vmatpush1.msra.mxu0 0.0
  %7164 = vmatprep.subr.mxu0 0.0
  %7165 = vmatpush1.msra.mxu0 0.0
  %7166 = vmatprep.subr.mxu0 0.0
  %7167 = vmatpush1.msra.mxu0 0.0
  %7168 = vmatprep.subr.mxu0 0.0
  %7169 = vmatpush1.msra.mxu0 0.0
  %7170 = vmatprep.subr.mxu0 0.0
  %7171 = vmatpush1.msra.mxu0 0.0
  %7172 = vmatprep.subr.mxu0 0.0
  %7173 = vmatpush1.msra.mxu0 0.0
  %7174 = vmatprep.subr.mxu0 0.0
  %7175 = vmatpush1.msra.mxu0 0.0
  %7176 = vmatprep.subr.mxu0 0.0
  %7177 = vmatpush1.msra.mxu0 0.0
  %7178 = vmatprep.subr.mxu0 0.0
  %7179 = vmatpush1.msra.mxu0 0.0
  %7180 = vmatprep.subr.mxu0 0.0
  %7181 = vmatpush1.msra.mxu0 0.0
  %7182 = vmatprep.subr.mxu0 0.0
  %7183 = vmatpush1.msra.mxu0 0.0
  %7184 = vmatprep.subr.mxu0 0.0
  %7185 = vmatpush1.msra.mxu0 0.0
  %7186 = vmatprep.mubr.f32.mxu0 0.0
  %7187 = vmatmul.mubr.f32.gmra.mrb[0].mxu0 %v7108
  %v7188 = vpop.f32.mrb[0].mxu0
  %v7189 = vadd.f32 %v7105, %v7188
  %v7190 = vpop.f32.mrb[0].mxu0
  %7191 = vmatprep.mubr.f32.mxu0 0.0
  %7192 = vmatmul.mubr.f32.gmra.mrb[0].mxu0 %v7111
  %v7193 = vpop.f32.mrb[0].mxu0
  %v7194 = vadd.f32 %v7105, %v7193
  %v7195 = vpop.f32.mrb[0].mxu0
  %7196 = vmatprep.mubr.f32.mxu0 0.0
  %7197 = vmatmul.mubr.f32.gmra.mrb[0].mxu0 %v7114
  %v7198 = vpop.f32.mrb[0].mxu0
  %v7199 = vadd.f32 %v7105, %v7198
  %v7200 = vpop.f32.mrb[0].mxu0
  %7201 = vmatprep.mubr.f32.mxu0 0.0
  %7202 = vmatmul.mubr.f32.gmra.mrb[0].mxu0 %v7117
  %v7203 = vpop.f32.mrb[0].mxu0
  %v7204 = vadd.f32 %v7105, %v7203
  %v7205 = vpop.f32.mrb[0].mxu0
  %7206 = vdwg.mxu0
  %v7207 = vtanh.pop %v7189
  %v7208 = vtanh.pop %v7194
  %v7209 = vtanh.pop %v7199
  %v7210 = vtanh.pop %v7204
  %v7211 = vmul.f32 %v6800, %v6402
  %v7212 = vmul.f32 %v6802, %v6403
  %v7213 = vmul.f32 %v6804, %v6404
  %v7214 = vmul.f32 %v6806, %v6405
  %v7215 = vsub.f32 1.0, %v6800
  %v7216 = vsub.f32 1.0, %v6802
  %v7217 = vsub.f32 1.0, %v6804
  %v7218 = vsub.f32 1.0, %v6806
  %7223 = vrot.lane.b32.xlu0 %v7207, 32
  %v7224 = vpop.permute.xlu0 %7223
  %7225 = vrot.lane.b32.xlu0 %v7208, 32
  %v7226 = vpop.permute.xlu0 %7225
  %7227 = vrot.lane.b32.xlu0 %v7209, 32
  %v7228 = vpop.permute.xlu0 %7227
  %7229 = vrot.lane.b32.xlu0 %v7210, 32
  %v7230 = vpop.permute.xlu0 %7229
  %v7235 = vmul.f32 %v7215, %v7224
  %v7236 = vmul.f32 %v7216, %v7226
  %v7237 = vmul.f32 %v7217, %v7228
  %v7238 = vmul.f32 %v7218, %v7230
  %v7239 = vadd.f32 %v7211, %v7235
  %v7240 = vadd.f32 %v7212, %v7236
  %v7241 = vadd.f32 %v7213, %v7237
  %v7242 = vadd.f32 %v7214, %v7238
  %v7243 = vld [vmem:[%s10] sm:$0xff]
  %v7244 = vld [vmem:[%s10 + $0x8] sm:$0xff]
  %v7245 = vld [vmem:[%s10 + $0x10] sm:$0xff]
  %v7246 = vld [vmem:[%s10 + $0x18] sm:$0xff]
  %v7247 = vld [vmem:[#allocation2] sm:$0x1]
  %v7249 = vlaneseq
  %v7250 = vshrl.u32 %v7249, 7
  %v7251 = vsub.s32 0, %v7250
  %v7252 = vrot.slane %v7247, %v7251
  %7258 = vrot.lane.b32.xlu0 %v7239, 96
  %v7259 = vpop.permute.xlu0 %7258
  %7260 = vrot.lane.b32.xlu0 %v7240, 96
  %v7261 = vpop.permute.xlu0 %7260
  %7262 = vrot.lane.b32.xlu0 %v7241, 96
  %v7263 = vpop.permute.xlu0 %7262
  %7264 = vrot.lane.b32.xlu0 %v7242, 96
  %v7265 = vpop.permute.xlu0 %7264
  %v7266 = vsel %vm84, %v7259, 0
  %v7268 = vsel %vm84, %v7261, 0
  %v7270 = vsel %vm84, %v7263, 0
  %v7272 = vsel %vm84, %v7265, 0
  %7274 = vmatprep.subr.mxu0 0.0
  %7275 = vmatpush1.msra.mxu0 %v7243
  %7276 = vmatprep.subr.mxu0 0.0
  %7277 = vmatpush1.msra.mxu0 %v7244
  %7278 = vmatprep.subr.mxu0 0.0
  %7279 = vmatpush1.msra.mxu0 %v7245
  %7280 = vmatprep.subr.mxu0 0.0
  %7281 = vmatpush1.msra.mxu0 %v7246
  %7282 = vmatprep.subr.mxu0 0.0
  %7283 = vmatpush1.msra.mxu0 0.0
  %7284 = vmatprep.subr.mxu0 0.0
  %7285 = vmatpush1.msra.mxu0 0.0
  %7286 = vmatprep.subr.mxu0 0.0
  %7287 = vmatpush1.msra.mxu0 0.0
  %7288 = vmatprep.subr.mxu0 0.0
  %7289 = vmatpush1.msra.mxu0 0.0
  %7290 = vmatprep.subr.mxu0 0.0
  %7291 = vmatpush1.msra.mxu0 0.0
  %7292 = vmatprep.subr.mxu0 0.0
  %7293 = vmatpush1.msra.mxu0 0.0
  %7294 = vmatprep.subr.mxu0 0.0
  %7295 = vmatpush1.msra.mxu0 0.0
  %7296 = vmatprep.subr.mxu0 0.0
  %7297 = vmatpush1.msra.mxu0 0.0
  %7298 = vmatprep.subr.mxu0 0.0
  %7299 = vmatpush1.msra.mxu0 0.0
  %7300 = vmatprep.subr.mxu0 0.0
  %7301 = vmatpush1.msra.mxu0 0.0
  %7302 = vmatprep.subr.mxu0 0.0
  %7303 = vmatpush1.msra.mxu0 0.0
  %7304 = vmatprep.subr.mxu0 0.0
  %7305 = vmatpush1.msra.mxu0 0.0
  %7306 = vmatprep.subr.mxu0 0.0
  %7307 = vmatpush1.msra.mxu0 0.0
  %7308 = vmatprep.subr.mxu0 0.0
  %7309 = vmatpush1.msra.mxu0 0.0
  %7310 = vmatprep.subr.mxu0 0.0
  %7311 = vmatpush1.msra.mxu0 0.0
  %7312 = vmatprep.subr.mxu0 0.0
  %7313 = vmatpush1.msra.mxu0 0.0
  %7314 = vmatprep.subr.mxu0 0.0
  %7315 = vmatpush1.msra.mxu0 0.0
  %7316 = vmatprep.subr.mxu0 0.0
  %7317 = vmatpush1.msra.mxu0 0.0
  %7318 = vmatprep.subr.mxu0 0.0
  %7319 = vmatpush1.msra.mxu0 0.0
  %7320 = vmatprep.subr.mxu0 0.0
  %7321 = vmatpush1.msra.mxu0 0.0
  %7322 = vmatprep.subr.mxu0 0.0
  %7323 = vmatpush1.msra.mxu0 0.0
  %7324 = vmatprep.subr.mxu0 0.0
  %7325 = vmatpush1.msra.mxu0 0.0
  %7326 = vmatprep.subr.mxu0 0.0
  %7327 = vmatpush1.msra.mxu0 0.0
  %7328 = vmatprep.subr.mxu0 0.0
  %7329 = vmatpush1.msra.mxu0 0.0
  %7330 = vmatprep.subr.mxu0 0.0
  %7331 = vmatpush1.msra.mxu0 0.0
  %7332 = vmatprep.subr.mxu0 0.0
  %7333 = vmatpush1.msra.mxu0 0.0
  %7334 = vmatprep.subr.mxu0 0.0
  %7335 = vmatpush1.msra.mxu0 0.0
  %7336 = vmatprep.subr.mxu0 0.0
  %7337 = vmatpush1.msra.mxu0 0.0
  %7338 = vmatprep.mubr.f32.mxu0 0.0
  %7339 = vmatmul.mubr.f32.gmra.mrb[0].mxu0 %v7266
  %v7340 = vpop.f32.mrb[0].mxu0
  %v7341 = vadd.f32 %v7252, %v7340
  %v7342 = vpop.f32.mrb[0].mxu0
  %7343 = vmatprep.mubr.f32.mxu0 0.0
  %7344 = vmatmul.mubr.f32.gmra.mrb[0].mxu0 %v7268
  %v7345 = vpop.f32.mrb[0].mxu0
  %v7346 = vadd.f32 %v7252, %v7345
  %v7347 = vpop.f32.mrb[0].mxu0
  %7348 = vmatprep.mubr.f32.mxu0 0.0
  %7349 = vmatmul.mubr.f32.gmra.mrb[0].mxu0 %v7270
  %v7350 = vpop.f32.mrb[0].mxu0
  %v7351 = vadd.f32 %v7252, %v7350
  %v7352 = vpop.f32.mrb[0].mxu0
  %7353 = vmatprep.mubr.f32.mxu0 0.0
  %7354 = vmatmul.mubr.f32.gmra.mrb[0].mxu0 %v7272
  %v7355 = vpop.f32.mrb[0].mxu0
  %v7356 = vadd.f32 %v7252, %v7355
  %v7357 = vpop.f32.mrb[0].mxu0
  %7358 = vdwg.mxu0
  %7359 = vst.msk [vmem:[%s12] sm:$0xff] %vm6450, %v7341
  %7360 = vst.msk [vmem:[%s12 + $0x8] sm:$0xff] %vm6450, %v7346
  %7361 = vst.msk [vmem:[%s12 + $0x10] sm:$0xff] %vm6450, %v7351
  %7362 = vst.msk [vmem:[%s12 + $0x18] sm:$0xff] %vm6450, %v7356
  %v7363 = vld [vmem:[%s6] sm:$0xff]
  %v7364 = vld [vmem:[%s6 + $0x8] sm:$0xff]
  %v7365 = vld [vmem:[%s6 + $0x10] sm:$0xff]
  %v7366 = vld [vmem:[%s6 + $0x18] sm:$0xff]
  %v7367 = vld [vmem:[%s6 + $0x20] sm:$0xff]
  %v7368 = vld [vmem:[%s6 + $0x28] sm:$0xff]
  %v7369 = vld [vmem:[%s6 + $0x30] sm:$0xff]
  %v7370 = vld [vmem:[%s6 + $0x38] sm:$0xff]
  %v7371 = vld [vmem:[%s6 + $0x40] sm:$0xff]
  %v7372 = vld [vmem:[%s6 + $0x48] sm:$0xff]
  %v7373 = vld [vmem:[%s6 + $0x50] sm:$0xff]
  %v7374 = vld [vmem:[%s6 + $0x58] sm:$0xff]
  %v7375 = vld [vmem:[%s6 + $0x60] sm:$0x7]
  %v7376 = vld [vmem:[%s7] sm:$0x1]
  %v7377 = vld [vmem:[%s8] sm:$0xff]
  %v7378 = vld [vmem:[%s8 + $0x8] sm:$0xff]
  %v7379 = vld [vmem:[%s8 + $0x10] sm:$0xff]
  %v7380 = vld [vmem:[%s8 + $0x18] sm:$0xff]
  %v7381 = vld [vmem:[%s8 + $0x20] sm:$0xff]
  %v7382 = vld [vmem:[%s8 + $0x28] sm:$0xff]
  %v7383 = vld [vmem:[%s8 + $0x30] sm:$0xff]
  %v7384 = vld [vmem:[%s8 + $0x38] sm:$0xff]
  %v7385 = vld [vmem:[%s8 + $0x40] sm:$0xff]
  %v7386 = vld [vmem:[%s8 + $0x48] sm:$0xff]
  %v7387 = vld [vmem:[%s8 + $0x50] sm:$0xff]
  %v7388 = vld [vmem:[%s8 + $0x58] sm:$0xff]
  %v7389 = vld [vmem:[%s8 + $0x60] sm:$0x7]
  %v7390 = vld [vmem:[%s9] sm:$0x1]
  %7391 = vrot.lane.b32.xlu0 %v7239, 97
  %v7392 = vpop.permute.xlu0 %7391
  %7393 = vrot.lane.b32.xlu0 %v7240, 97
  %v7394 = vpop.permute.xlu0 %7393
  %7395 = vrot.lane.b32.xlu0 %v7241, 97
  %v7396 = vpop.permute.xlu0 %7395
  %7397 = vrot.lane.b32.xlu0 %v7242, 97
  %v7398 = vpop.permute.xlu0 %7397
  %v7403 = vsel %vm6450, %v7341, %v7392
  %v7404 = vsel %vm6450, %v7346, %v7394
  %v7405 = vsel %vm6450, %v7351, %v7396
  %v7406 = vsel %vm6450, %v7356, %v7398
  %7407 = vmatprep.subr.mxu0 0.0
  %7408 = vmatpush1.msra.mxu0 %v7403
  %7409 = vmatprep.subr.mxu0 0.0
  %7410 = vmatpush1.msra.mxu0 %v7404
  %7411 = vmatprep.subr.mxu0 0.0
  %7412 = vmatpush1.msra.mxu0 %v7405
  %7413 = vmatprep.subr.mxu0 0.0
  %7414 = vmatpush1.msra.mxu0 %v7406
  %7415 = vmatprep.subr.mxu0 0.0
  %7416 = vmatpush1.msra.mxu0 0.0
  %7417 = vmatprep.subr.mxu0 0.0
  %7418 = vmatpush1.msra.mxu0 0.0
  %7419 = vmatprep.subr.mxu0 0.0
  %7420 = vmatpush1.msra.mxu0 0.0
  %7421 = vmatprep.subr.mxu0 0.0
  %7422 = vmatpush1.msra.mxu0 0.0
  %7423 = vmatprep.subr.mxu0 0.0
  %7424 = vmatpush1.msra.mxu0 0.0
  %7425 = vmatprep.subr.mxu0 0.0
  %7426 = vmatpush1.msra.mxu0 0.0
  %7427 = vmatprep.subr.mxu0 0.0
  %7428 = vmatpush1.msra.mxu0 0.0
  %7429 = vmatprep.subr.mxu0 0.0
  %7430 = vmatpush1.msra.mxu0 0.0
  %7431 = vmatprep.subr.mxu0 0.0
  %7432 = vmatpush1.msra.mxu0 0.0
  %7433 = vmatprep.subr.mxu0 0.0
  %7434 = vmatpush1.msra.mxu0 0.0
  %7435 = vmatprep.subr.mxu0 0.0
  %7436 = vmatpush1.msra.mxu0 0.0
  %7437 = vmatprep.subr.mxu0 0.0
  %7438 = vmatpush1.msra.mxu0 0.0
  %7439 = vmatprep.subr.mxu0 0.0
  %7440 = vmatpush1.msra.mxu0 0.0
  %7441 = vmatprep.subr.mxu0 0.0
  %7442 = vmatpush1.msra.mxu0 0.0
  %7443 = vmatprep.subr.mxu0 0.0
  %7444 = vmatpush1.msra.mxu0 0.0
  %7445 = vmatprep.subr.mxu0 0.0
  %7446 = vmatpush1.msra.mxu0 0.0
  %7447 = vmatprep.subr.mxu0 0.0
  %7448 = vmatpush1.msra.mxu0 0.0
  %7449 = vmatprep.subr.mxu0 0.0
  %7450 = vmatpush1.msra.mxu0 0.0
  %7451 = vmatprep.subr.mxu0 0.0
  %7452 = vmatpush1.msra.mxu0 0.0
  %7453 = vmatprep.subr.mxu0 0.0
  %7454 = vmatpush1.msra.mxu0 0.0
  %7455 = vmatprep.subr.mxu0 0.0
  %7456 = vmatpush1.msra.mxu0 0.0
  %7457 = vmatprep.subr.mxu0 0.0
  %7458 = vmatpush1.msra.mxu0 0.0
  %7459 = vmatprep.subr.mxu0 0.0
  %7460 = vmatpush1.msra.mxu0 0.0
  %7461 = vmatprep.subr.mxu0 0.0
  %7462 = vmatpush1.msra.mxu0 0.0
  %7463 = vmatprep.subr.mxu0 0.0
  %7464 = vmatpush1.msra.mxu0 0.0
  %7465 = vmatprep.subr.mxu0 0.0
  %7466 = vmatpush1.msra.mxu0 0.0
  %7467 = vmatprep.subr.mxu0 0.0
  %7468 = vmatpush1.msra.mxu0 0.0
  %7469 = vmatprep.subr.mxu0 0.0
  %7470 = vmatpush1.msra.mxu0 0.0
  %7471 = vmatprep.mubr.f32.mxu0 0.0
  %7472 = vmatmul.mubr.f32.gmra.mrb[0].mxu0 %v86
  %v7473 = vpop.f32.mrb[0].mxu0
  %v7474 = vadd.f32 0.0, %v7473
  %v7475 = vpop.f32.mrb[0].mxu0
  %7476 = vmatprep.mubr.f32.mxu0 0.0
  %7477 = vmatmul.mubr.f32.gmra.mrb[0].mxu0 %v89
  %v7478 = vpop.f32.mrb[0].mxu0
  %v7479 = vadd.f32 0.0, %v7478
  %v7480 = vpop.f32.mrb[0].mxu0
  %7481 = vmatprep.mubr.f32.mxu0 0.0
  %7482 = vmatmul.mubr.f32.gmra.mrb[0].mxu0 %v92
  %v7483 = vpop.f32.mrb[0].mxu0
  %v7484 = vadd.f32 0.0, %v7483
  %v7485 = vpop.f32.mrb[0].mxu0
  %7486 = vmatprep.mubr.f32.mxu0 0.0
  %7487 = vmatmul.mubr.f32.gmra.mrb[0].mxu0 %v95
  %v7488 = vpop.f32.mrb[0].mxu0
  %v7489 = vadd.f32 0.0, %v7488
  %v7490 = vpop.f32.mrb[0].mxu0
  %7491 = vdwg.mxu0
  %7492 = vmatprep.subr.mxu0 0.0
  %7493 = vmatpush1.msra.mxu0 %v7474
  %7494 = vmatprep.subr.mxu0 0.0
  %7495 = vmatpush1.msra.mxu0 %v7479
  %7496 = vmatprep.subr.mxu0 0.0
  %7497 = vmatpush1.msra.mxu0 %v7484
  %7498 = vmatprep.subr.mxu0 0.0
  %7499 = vmatpush1.msra.mxu0 %v7489
  %7500 = vmatprep.subr.mxu0 0.0
  %7501 = vmatpush1.msra.mxu0 0.0
  %7502 = vmatprep.subr.mxu0 0.0
  %7503 = vmatpush1.msra.mxu0 0.0
  %7504 = vmatprep.subr.mxu0 0.0
  %7505 = vmatpush1.msra.mxu0 0.0
  %7506 = vmatprep.subr.mxu0 0.0
  %7507 = vmatpush1.msra.mxu0 0.0
  %7508 = vmatprep.subr.mxu0 0.0
  %7509 = vmatpush1.msra.mxu0 0.0
  %7510 = vmatprep.subr.mxu0 0.0
  %7511 = vmatpush1.msra.mxu0 0.0
  %7512 = vmatprep.subr.mxu0 0.0
  %7513 = vmatpush1.msra.mxu0 0.0
  %7514 = vmatprep.subr.mxu0 0.0
  %7515 = vmatpush1.msra.mxu0 0.0
  %7516 = vmatprep.subr.mxu0 0.0
  %7517 = vmatpush1.msra.mxu0 0.0
  %7518 = vmatprep.subr.mxu0 0.0
  %7519 = vmatpush1.msra.mxu0 0.0
  %7520 = vmatprep.subr.mxu0 0.0
  %7521 = vmatpush1.msra.mxu0 0.0
  %7522 = vmatprep.subr.mxu0 0.0
  %7523 = vmatpush1.msra.mxu0 0.0
  %7524 = vmatprep.subr.mxu0 0.0
  %7525 = vmatpush1.msra.mxu0 0.0
  %7526 = vmatprep.subr.mxu0 0.0
  %7527 = vmatpush1.msra.mxu0 0.0
  %7528 = vmatprep.subr.mxu0 0.0
  %7529 = vmatpush1.msra.mxu0 0.0
  %7530 = vmatprep.subr.mxu0 0.0
  %7531 = vmatpush1.msra.mxu0 0.0
  %7532 = vmatprep.subr.mxu0 0.0
  %7533 = vmatpush1.msra.mxu0 0.0
  %7534 = vmatprep.subr.mxu0 0.0
  %7535 = vmatpush1.msra.mxu0 0.0
  %7536 = vmatprep.subr.mxu0 0.0
  %7537 = vmatpush1.msra.mxu0 0.0
  %7538 = vmatprep.subr.mxu0 0.0
  %7539 = vmatpush1.msra.mxu0 0.0
  %7540 = vmatprep.subr.mxu0 0.0
  %7541 = vmatpush1.msra.mxu0 0.0
  %7542 = vmatprep.subr.mxu0 0.0
  %7543 = vmatpush1.msra.mxu0 0.0
  %7544 = vmatprep.subr.mxu0 0.0
  %7545 = vmatpush1.msra.mxu0 0.0
  %7546 = vmatprep.subr.mxu0 0.0
  %7547 = vmatpush1.msra.mxu0 0.0
  %7548 = vmatprep.subr.mxu0 0.0
  %7549 = vmatpush1.msra.mxu0 0.0
  %7550 = vmatprep.subr.mxu0 0.0
  %7551 = vmatpush1.msra.mxu0 0.0
  %7552 = vmatprep.subr.mxu0 0.0
  %7553 = vmatpush1.msra.mxu0 0.0
  %7554 = vmatprep.subr.mxu0 0.0
  %7555 = vmatpush1.msra.mxu0 0.0
  %7556 = vmatprep.mubr.f32.mxu0 0.0
  %7557 = vmatmul.mubr.f32.gmra.mrb[0].mxu0 %v86
  %v7558 = vpop.f32.mrb[0].mxu0
  %v7559 = vadd.f32 0.0, %v7558
  %v7560 = vpop.f32.mrb[0].mxu0
  %7561 = vmatprep.mubr.f32.mxu0 0.0
  %7562 = vmatmul.mubr.f32.gmra.mrb[0].mxu0 %v89
  %v7563 = vpop.f32.mrb[0].mxu0
  %v7564 = vadd.f32 0.0, %v7563
  %v7565 = vpop.f32.mrb[0].mxu0
  %7566 = vmatprep.mubr.f32.mxu0 0.0
  %7567 = vmatmul.mubr.f32.gmra.mrb[0].mxu0 %v92
  %v7568 = vpop.f32.mrb[0].mxu0
  %v7569 = vadd.f32 0.0, %v7568
  %v7570 = vpop.f32.mrb[0].mxu0
  %7571 = vmatprep.mubr.f32.mxu0 0.0
  %7572 = vmatmul.mubr.f32.gmra.mrb[0].mxu0 %v95
  %v7573 = vpop.f32.mrb[0].mxu0
  %v7574 = vadd.f32 0.0, %v7573
  %v7575 = vpop.f32.mrb[0].mxu0
  %7576 = vdwg.mxu0
  %v7577 = vmul.f32 %v7559, 2.0
  %v7578 = vmul.f32 %v7564, 2.0
  %v7579 = vmul.f32 %v7569, 2.0
  %v7580 = vmul.f32 %v7574, 2.0
  %v7581 = vsub.f32 %v7577, %v7403
  %v7582 = vsub.f32 %v7578, %v7404
  %v7583 = vsub.f32 %v7579, %v7405
  %v7584 = vsub.f32 %v7580, %v7406
  %7589 = vrot.lane.b32.xlu0 %v7474, 33
  %v7590 = vpop.permute.xlu0 %7589
  %7591 = vrot.lane.b32.xlu0 %v7479, 33
  %v7592 = vpop.permute.xlu0 %7591
  %7593 = vrot.lane.b32.xlu0 %v7484, 33
  %v7594 = vpop.permute.xlu0 %7593
  %7595 = vrot.lane.b32.xlu0 %v7489, 33
  %v7596 = vpop.permute.xlu0 %7595
  %7605 = vrot.lane.b32.xlu0 %v7581, 66
  %v7606 = vpop.permute.xlu0 %7605
  %7607 = vrot.lane.b32.xlu0 %v7582, 66
  %v7608 = vpop.permute.xlu0 %7607
  %7609 = vrot.lane.b32.xlu0 %v7583, 66
  %v7610 = vpop.permute.xlu0 %7609
  %7611 = vrot.lane.b32.xlu0 %v7584, 66
  %v7612 = vpop.permute.xlu0 %7611
  %v7617 = vsel %vm6665, %v7403, %v7590
  %v7618 = vsel %vm6665, %v7404, %v7592
  %v7619 = vsel %vm6665, %v7405, %v7594
  %v7620 = vsel %vm6665, %v7406, %v7596
  %v7621 = vsel %vm6670, %v7617, %v7606
  %v7622 = vsel %vm6670, %v7618, %v7608
  %v7623 = vsel %vm6670, %v7619, %v7610
  %v7624 = vsel %vm6670, %v7620, %v7612
  %v7626 = vlaneseq
  %v7627 = vshrl.u32 %v7626, 7
  %v7628 = vsub.s32 0, %v7627
  %v7629 = vrot.slane %v7376, %v7628
  %v7632 = vsel %vm6681, %v7621, 0
  %v7635 = vsel %vm6681, %v7622, 0
  %v7638 = vsel %vm6681, %v7623, 0
  %v7641 = vsel %vm6681, %v7624, 0
  %v7644 = vsel %vm6694, %v7375, 0
  %7646 = vmatprep.subr.mxu0 0.0
  %7647 = vmatpush1.msra.mxu0 %v7363
  %7648 = vmatprep.subr.mxu0 0.0
  %7649 = vmatpush1.msra.mxu0 %v7364
  %7650 = vmatprep.subr.mxu0 0.0
  %7651 = vmatpush1.msra.mxu0 %v7365
  %7652 = vmatprep.subr.mxu0 0.0
  %7653 = vmatpush1.msra.mxu0 %v7366
  %7654 = vmatprep.subr.mxu0 0.0
  %7655 = vmatpush1.msra.mxu0 %v7367
  %7656 = vmatprep.subr.mxu0 0.0
  %7657 = vmatpush1.msra.mxu0 %v7368
  %7658 = vmatprep.subr.mxu0 0.0
  %7659 = vmatpush1.msra.mxu0 %v7369
  %7660 = vmatprep.subr.mxu0 0.0
  %7661 = vmatpush1.msra.mxu0 %v7370
  %7662 = vmatprep.subr.mxu0 0.0
  %7663 = vmatpush1.msra.mxu0 %v7371
  %7664 = vmatprep.subr.mxu0 0.0
  %7665 = vmatpush1.msra.mxu0 %v7372
  %7666 = vmatprep.subr.mxu0 0.0
  %7667 = vmatpush1.msra.mxu0 %v7373
  %7668 = vmatprep.subr.mxu0 0.0
  %7669 = vmatpush1.msra.mxu0 %v7374
  %7670 = vmatprep.subr.mxu0 0.0
  %7671 = vmatpush1.msra.mxu0 %v7644
  %7672 = vmatprep.subr.mxu0 0.0
  %7673 = vmatpush1.msra.mxu0 0.0
  %7674 = vmatprep.subr.mxu0 0.0
  %7675 = vmatpush1.msra.mxu0 0.0
  %7676 = vmatprep.subr.mxu0 0.0
  %7677 = vmatpush1.msra.mxu0 0.0
  %7678 = vmatprep.subr.mxu0 0.0
  %7679 = vmatpush1.msra.mxu0 0.0
  %7680 = vmatprep.subr.mxu0 0.0
  %7681 = vmatpush1.msra.mxu0 0.0
  %7682 = vmatprep.subr.mxu0 0.0
  %7683 = vmatpush1.msra.mxu0 0.0
  %7684 = vmatprep.subr.mxu0 0.0
  %7685 = vmatpush1.msra.mxu0 0.0
  %7686 = vmatprep.subr.mxu0 0.0
  %7687 = vmatpush1.msra.mxu0 0.0
  %7688 = vmatprep.subr.mxu0 0.0
  %7689 = vmatpush1.msra.mxu0 0.0
  %7690 = vmatprep.subr.mxu0 0.0
  %7691 = vmatpush1.msra.mxu0 0.0
  %7692 = vmatprep.subr.mxu0 0.0
  %7693 = vmatpush1.msra.mxu0 0.0
  %7694 = vmatprep.subr.mxu0 0.0
  %7695 = vmatpush1.msra.mxu0 0.0
  %7696 = vmatprep.subr.mxu0 0.0
  %7697 = vmatpush1.msra.mxu0 0.0
  %7698 = vmatprep.subr.mxu0 0.0
  %7699 = vmatpush1.msra.mxu0 0.0
  %7700 = vmatprep.subr.mxu0 0.0
  %7701 = vmatpush1.msra.mxu0 0.0
  %7702 = vmatprep.subr.mxu0 0.0
  %7703 = vmatpush1.msra.mxu0 0.0
  %7704 = vmatprep.subr.mxu0 0.0
  %7705 = vmatpush1.msra.mxu0 0.0
  %7706 = vmatprep.subr.mxu0 0.0
  %7707 = vmatpush1.msra.mxu0 0.0
  %7708 = vmatprep.subr.mxu0 0.0
  %7709 = vmatpush1.msra.mxu0 0.0
  %7710 = vmatprep.mubr.f32.mxu0 0.0
  %7711 = vmatmul.mubr.f32.gmra.mrb[0].mxu0 %v7632
  %v7712 = vpop.f32.mrb[0].mxu0
  %v7713 = vadd.f32 %v7629, %v7712
  %v7714 = vpop.f32.mrb[0].mxu0
  %7715 = vmatprep.mubr.f32.mxu0 0.0
  %7716 = vmatmul.mubr.f32.gmra.mrb[0].mxu0 %v7635
  %v7717 = vpop.f32.mrb[0].mxu0
  %v7718 = vadd.f32 %v7629, %v7717
  %v7719 = vpop.f32.mrb[0].mxu0
  %7720 = vmatprep.mubr.f32.mxu0 0.0
  %7721 = vmatmul.mubr.f32.gmra.mrb[0].mxu0 %v7638
  %v7722 = vpop.f32.mrb[0].mxu0
  %v7723 = vadd.f32 %v7629, %v7722
  %v7724 = vpop.f32.mrb[0].mxu0
  %7725 = vmatprep.mubr.f32.mxu0 0.0
  %7726 = vmatmul.mubr.f32.gmra.mrb[0].mxu0 %v7641
  %v7727 = vpop.f32.mrb[0].mxu0
  %v7728 = vadd.f32 %v7629, %v7727
  %v7729 = vpop.f32.mrb[0].mxu0
  %7730 = vdwg.mxu0
  %v7731 = vxor.u32 %v7713, 2147483648
  %v7732 = vxor.u32 %v7718, 2147483648
  %v7733 = vxor.u32 %v7723, 2147483648
  %v7734 = vxor.u32 %v7728, 2147483648
  %v7735 = vmul.f32 %v7731, 1.442695
  %v7736 = vpow.pop %v7735
  %v7737 = vmul.f32 %v7732, 1.442695
  %v7738 = vpow.pop %v7737
  %v7739 = vmul.f32 %v7733, 1.442695
  %v7740 = vpow.pop %v7739
  %v7741 = vmul.f32 %v7734, 1.442695
  %v7742 = vpow.pop %v7741
  %v7743 = vadd.f32 %v7736, 1.0
  %v7744 = vadd.f32 %v7738, 1.0
  %v7745 = vadd.f32 %v7740, 1.0
  %v7746 = vadd.f32 %v7742, 1.0
  %v7747 = vrcp.pop %v7743
  %v7748 = vmul.f32 1.0, %v7747
  %v7749 = vrcp.pop %v7744
  %v7750 = vmul.f32 1.0, %v7749
  %v7751 = vrcp.pop %v7745
  %v7752 = vmul.f32 1.0, %v7751
  %v7753 = vrcp.pop %v7746
  %v7754 = vmul.f32 1.0, %v7753
  %v7759 = vmul.f32 %v7748, %v7259
  %v7760 = vmul.f32 %v7750, %v7261
  %v7761 = vmul.f32 %v7752, %v7263
  %v7762 = vmul.f32 %v7754, %v7265
  %7763 = vmatprep.subr.mxu0 0.0
  %7764 = vmatpush1.msra.mxu0 %v7759
  %7765 = vmatprep.subr.mxu0 0.0
  %7766 = vmatpush1.msra.mxu0 %v7760
  %7767 = vmatprep.subr.mxu0 0.0
  %7768 = vmatpush1.msra.mxu0 %v7761
  %7769 = vmatprep.subr.mxu0 0.0
  %7770 = vmatpush1.msra.mxu0 %v7762
  %7771 = vmatprep.subr.mxu0 0.0
  %7772 = vmatpush1.msra.mxu0 0.0
  %7773 = vmatprep.subr.mxu0 0.0
  %7774 = vmatpush1.msra.mxu0 0.0
  %7775 = vmatprep.subr.mxu0 0.0
  %7776 = vmatpush1.msra.mxu0 0.0
  %7777 = vmatprep.subr.mxu0 0.0
  %7778 = vmatpush1.msra.mxu0 0.0
  %7779 = vmatprep.subr.mxu0 0.0
  %7780 = vmatpush1.msra.mxu0 0.0
  %7781 = vmatprep.subr.mxu0 0.0
  %7782 = vmatpush1.msra.mxu0 0.0
  %7783 = vmatprep.subr.mxu0 0.0
  %7784 = vmatpush1.msra.mxu0 0.0
  %7785 = vmatprep.subr.mxu0 0.0
  %7786 = vmatpush1.msra.mxu0 0.0
  %7787 = vmatprep.subr.mxu0 0.0
  %7788 = vmatpush1.msra.mxu0 0.0
  %7789 = vmatprep.subr.mxu0 0.0
  %7790 = vmatpush1.msra.mxu0 0.0
  %7791 = vmatprep.subr.mxu0 0.0
  %7792 = vmatpush1.msra.mxu0 0.0
  %7793 = vmatprep.subr.mxu0 0.0
  %7794 = vmatpush1.msra.mxu0 0.0
  %7795 = vmatprep.subr.mxu0 0.0
  %7796 = vmatpush1.msra.mxu0 0.0
  %7797 = vmatprep.subr.mxu0 0.0
  %7798 = vmatpush1.msra.mxu0 0.0
  %7799 = vmatprep.subr.mxu0 0.0
  %7800 = vmatpush1.msra.mxu0 0.0
  %7801 = vmatprep.subr.mxu0 0.0
  %7802 = vmatpush1.msra.mxu0 0.0
  %7803 = vmatprep.subr.mxu0 0.0
  %7804 = vmatpush1.msra.mxu0 0.0
  %7805 = vmatprep.subr.mxu0 0.0
  %7806 = vmatpush1.msra.mxu0 0.0
  %7807 = vmatprep.subr.mxu0 0.0
  %7808 = vmatpush1.msra.mxu0 0.0
  %7809 = vmatprep.subr.mxu0 0.0
  %7810 = vmatpush1.msra.mxu0 0.0
  %7811 = vmatprep.subr.mxu0 0.0
  %7812 = vmatpush1.msra.mxu0 0.0
  %7813 = vmatprep.subr.mxu0 0.0
  %7814 = vmatpush1.msra.mxu0 0.0
  %7815 = vmatprep.subr.mxu0 0.0
  %7816 = vmatpush1.msra.mxu0 0.0
  %7817 = vmatprep.subr.mxu0 0.0
  %7818 = vmatpush1.msra.mxu0 0.0
  %7819 = vmatprep.subr.mxu0 0.0
  %7820 = vmatpush1.msra.mxu0 0.0
  %7821 = vmatprep.subr.mxu0 0.0
  %7822 = vmatpush1.msra.mxu0 0.0
  %7823 = vmatprep.subr.mxu0 0.0
  %7824 = vmatpush1.msra.mxu0 0.0
  %7825 = vmatprep.subr.mxu0 0.0
  %7826 = vmatpush1.msra.mxu0 0.0
  %7827 = vmatprep.mubr.f32.mxu0 0.0
  %7828 = vmatmul.mubr.f32.gmra.mrb[0].mxu0 %v86
  %v7829 = vpop.f32.mrb[0].mxu0
  %v7830 = vadd.f32 0.0, %v7829
  %v7831 = vpop.f32.mrb[0].mxu0
  %7832 = vmatprep.mubr.f32.mxu0 0.0
  %7833 = vmatmul.mubr.f32.gmra.mrb[0].mxu0 %v89
  %v7834 = vpop.f32.mrb[0].mxu0
  %v7835 = vadd.f32 0.0, %v7834
  %v7836 = vpop.f32.mrb[0].mxu0
  %7837 = vmatprep.mubr.f32.mxu0 0.0
  %7838 = vmatmul.mubr.f32.gmra.mrb[0].mxu0 %v92
  %v7839 = vpop.f32.mrb[0].mxu0
  %v7840 = vadd.f32 0.0, %v7839
  %v7841 = vpop.f32.mrb[0].mxu0
  %7842 = vmatprep.mubr.f32.mxu0 0.0
  %7843 = vmatmul.mubr.f32.gmra.mrb[0].mxu0 %v95
  %v7844 = vpop.f32.mrb[0].mxu0
  %v7845 = vadd.f32 0.0, %v7844
  %v7846 = vpop.f32.mrb[0].mxu0
  %7847 = vdwg.mxu0
  %7848 = vmatprep.subr.mxu0 0.0
  %7849 = vmatpush1.msra.mxu0 %v7830
  %7850 = vmatprep.subr.mxu0 0.0
  %7851 = vmatpush1.msra.mxu0 %v7835
  %7852 = vmatprep.subr.mxu0 0.0
  %7853 = vmatpush1.msra.mxu0 %v7840
  %7854 = vmatprep.subr.mxu0 0.0
  %7855 = vmatpush1.msra.mxu0 %v7845
  %7856 = vmatprep.subr.mxu0 0.0
  %7857 = vmatpush1.msra.mxu0 0.0
  %7858 = vmatprep.subr.mxu0 0.0
  %7859 = vmatpush1.msra.mxu0 0.0
  %7860 = vmatprep.subr.mxu0 0.0
  %7861 = vmatpush1.msra.mxu0 0.0
  %7862 = vmatprep.subr.mxu0 0.0
  %7863 = vmatpush1.msra.mxu0 0.0
  %7864 = vmatprep.subr.mxu0 0.0
  %7865 = vmatpush1.msra.mxu0 0.0
  %7866 = vmatprep.subr.mxu0 0.0
  %7867 = vmatpush1.msra.mxu0 0.0
  %7868 = vmatprep.subr.mxu0 0.0
  %7869 = vmatpush1.msra.mxu0 0.0
  %7870 = vmatprep.subr.mxu0 0.0
  %7871 = vmatpush1.msra.mxu0 0.0
  %7872 = vmatprep.subr.mxu0 0.0
  %7873 = vmatpush1.msra.mxu0 0.0
  %7874 = vmatprep.subr.mxu0 0.0
  %7875 = vmatpush1.msra.mxu0 0.0
  %7876 = vmatprep.subr.mxu0 0.0
  %7877 = vmatpush1.msra.mxu0 0.0
  %7878 = vmatprep.subr.mxu0 0.0
  %7879 = vmatpush1.msra.mxu0 0.0
  %7880 = vmatprep.subr.mxu0 0.0
  %7881 = vmatpush1.msra.mxu0 0.0
  %7882 = vmatprep.subr.mxu0 0.0
  %7883 = vmatpush1.msra.mxu0 0.0
  %7884 = vmatprep.subr.mxu0 0.0
  %7885 = vmatpush1.msra.mxu0 0.0
  %7886 = vmatprep.subr.mxu0 0.0
  %7887 = vmatpush1.msra.mxu0 0.0
  %7888 = vmatprep.subr.mxu0 0.0
  %7889 = vmatpush1.msra.mxu0 0.0
  %7890 = vmatprep.subr.mxu0 0.0
  %7891 = vmatpush1.msra.mxu0 0.0
  %7892 = vmatprep.subr.mxu0 0.0
  %7893 = vmatpush1.msra.mxu0 0.0
  %7894 = vmatprep.subr.mxu0 0.0
  %7895 = vmatpush1.msra.mxu0 0.0
  %7896 = vmatprep.subr.mxu0 0.0
  %7897 = vmatpush1.msra.mxu0 0.0
  %7898 = vmatprep.subr.mxu0 0.0
  %7899 = vmatpush1.msra.mxu0 0.0
  %7900 = vmatprep.subr.mxu0 0.0
  %7901 = vmatpush1.msra.mxu0 0.0
  %7902 = vmatprep.subr.mxu0 0.0
  %7903 = vmatpush1.msra.mxu0 0.0
  %7904 = vmatprep.subr.mxu0 0.0
  %7905 = vmatpush1.msra.mxu0 0.0
  %7906 = vmatprep.subr.mxu0 0.0
  %7907 = vmatpush1.msra.mxu0 0.0
  %7908 = vmatprep.subr.mxu0 0.0
  %7909 = vmatpush1.msra.mxu0 0.0
  %7910 = vmatprep.subr.mxu0 0.0
  %7911 = vmatpush1.msra.mxu0 0.0
  %7912 = vmatprep.mubr.f32.mxu0 0.0
  %7913 = vmatmul.mubr.f32.gmra.mrb[0].mxu0 %v86
  %v7914 = vpop.f32.mrb[0].mxu0
  %v7915 = vadd.f32 0.0, %v7914
  %v7916 = vpop.f32.mrb[0].mxu0
  %7917 = vmatprep.mubr.f32.mxu0 0.0
  %7918 = vmatmul.mubr.f32.gmra.mrb[0].mxu0 %v89
  %v7919 = vpop.f32.mrb[0].mxu0
  %v7920 = vadd.f32 0.0, %v7919
  %v7921 = vpop.f32.mrb[0].mxu0
  %7922 = vmatprep.mubr.f32.mxu0 0.0
  %7923 = vmatmul.mubr.f32.gmra.mrb[0].mxu0 %v92
  %v7924 = vpop.f32.mrb[0].mxu0
  %v7925 = vadd.f32 0.0, %v7924
  %v7926 = vpop.f32.mrb[0].mxu0
  %7927 = vmatprep.mubr.f32.mxu0 0.0
  %7928 = vmatmul.mubr.f32.gmra.mrb[0].mxu0 %v95
  %v7929 = vpop.f32.mrb[0].mxu0
  %v7930 = vadd.f32 0.0, %v7929
  %v7931 = vpop.f32.mrb[0].mxu0
  %7932 = vdwg.mxu0
  %v7933 = vmul.f32 %v7915, 2.0
  %v7934 = vmul.f32 %v7920, 2.0
  %v7935 = vmul.f32 %v7925, 2.0
  %v7936 = vmul.f32 %v7930, 2.0
  %v7937 = vsub.f32 %v7933, %v7759
  %v7938 = vsub.f32 %v7934, %v7760
  %v7939 = vsub.f32 %v7935, %v7761
  %v7940 = vsub.f32 %v7936, %v7762
  %7945 = vrot.lane.b32.xlu0 %v7759, 1
  %v7946 = vpop.permute.xlu0 %7945
  %7947 = vrot.lane.b32.xlu0 %v7760, 1
  %v7948 = vpop.permute.xlu0 %7947
  %7949 = vrot.lane.b32.xlu0 %v7761, 1
  %v7950 = vpop.permute.xlu0 %7949
  %7951 = vrot.lane.b32.xlu0 %v7762, 1
  %v7952 = vpop.permute.xlu0 %7951
  %v7957 = vsel %vm6450, %v7403, %v7946
  %v7958 = vsel %vm6450, %v7404, %v7948
  %v7959 = vsel %vm6450, %v7405, %v7950
  %v7960 = vsel %vm6450, %v7406, %v7952
  %7965 = vrot.lane.b32.xlu0 %v7830, 1
  %v7966 = vpop.permute.xlu0 %7965
  %7967 = vrot.lane.b32.xlu0 %v7835, 1
  %v7968 = vpop.permute.xlu0 %7967
  %7969 = vrot.lane.b32.xlu0 %v7840, 1
  %v7970 = vpop.permute.xlu0 %7969
  %7971 = vrot.lane.b32.xlu0 %v7845, 1
  %v7972 = vpop.permute.xlu0 %7971
  %v7977 = vsel %vm6450, %v7474, %v7966
  %v7978 = vsel %vm6450, %v7479, %v7968
  %v7979 = vsel %vm6450, %v7484, %v7970
  %v7980 = vsel %vm6450, %v7489, %v7972
  %7985 = vrot.lane.b32.xlu0 %v7937, 1
  %v7986 = vpop.permute.xlu0 %7985
  %7987 = vrot.lane.b32.xlu0 %v7938, 1
  %v7988 = vpop.permute.xlu0 %7987
  %7989 = vrot.lane.b32.xlu0 %v7939, 1
  %v7990 = vpop.permute.xlu0 %7989
  %7991 = vrot.lane.b32.xlu0 %v7940, 1
  %v7992 = vpop.permute.xlu0 %7991
  %v7997 = vsel %vm6450, %v7581, %v7986
  %v7998 = vsel %vm6450, %v7582, %v7988
  %v7999 = vsel %vm6450, %v7583, %v7990
  %v8000 = vsel %vm6450, %v7584, %v7992
  %8005 = vrot.lane.b32.xlu0 %v7977, 33
  %v8006 = vpop.permute.xlu0 %8005
  %8007 = vrot.lane.b32.xlu0 %v7978, 33
  %v8008 = vpop.permute.xlu0 %8007
  %8009 = vrot.lane.b32.xlu0 %v7979, 33
  %v8010 = vpop.permute.xlu0 %8009
  %8011 = vrot.lane.b32.xlu0 %v7980, 33
  %v8012 = vpop.permute.xlu0 %8011
  %8021 = vrot.lane.b32.xlu0 %v7997, 66
  %v8022 = vpop.permute.xlu0 %8021
  %8023 = vrot.lane.b32.xlu0 %v7998, 66
  %v8024 = vpop.permute.xlu0 %8023
  %8025 = vrot.lane.b32.xlu0 %v7999, 66
  %v8026 = vpop.permute.xlu0 %8025
  %8027 = vrot.lane.b32.xlu0 %v8000, 66
  %v8028 = vpop.permute.xlu0 %8027
  %v8033 = vsel %vm6665, %v7957, %v8006
  %v8034 = vsel %vm6665, %v7958, %v8008
  %v8035 = vsel %vm6665, %v7959, %v8010
  %v8036 = vsel %vm6665, %v7960, %v8012
  %v8037 = vsel %vm6670, %v8033, %v8022
  %v8038 = vsel %vm6670, %v8034, %v8024
  %v8039 = vsel %vm6670, %v8035, %v8026
  %v8040 = vsel %vm6670, %v8036, %v8028
  %v8042 = vlaneseq
  %v8043 = vshrl.u32 %v8042, 7
  %v8044 = vsub.s32 0, %v8043
  %v8045 = vrot.slane %v7390, %v8044
  %v8048 = vsel %vm6681, %v8037, 0
  %v8051 = vsel %vm6681, %v8038, 0
  %v8054 = vsel %vm6681, %v8039, 0
  %v8057 = vsel %vm6681, %v8040, 0
  %v8060 = vsel %vm6694, %v7389, 0
  %8062 = vmatprep.subr.mxu0 0.0
  %8063 = vmatpush1.msra.mxu0 %v7377
  %8064 = vmatprep.subr.mxu0 0.0
  %8065 = vmatpush1.msra.mxu0 %v7378
  %8066 = vmatprep.subr.mxu0 0.0
  %8067 = vmatpush1.msra.mxu0 %v7379
  %8068 = vmatprep.subr.mxu0 0.0
  %8069 = vmatpush1.msra.mxu0 %v7380
  %8070 = vmatprep.subr.mxu0 0.0
  %8071 = vmatpush1.msra.mxu0 %v7381
  %8072 = vmatprep.subr.mxu0 0.0
  %8073 = vmatpush1.msra.mxu0 %v7382
  %8074 = vmatprep.subr.mxu0 0.0
  %8075 = vmatpush1.msra.mxu0 %v7383
  %8076 = vmatprep.subr.mxu0 0.0
  %8077 = vmatpush1.msra.mxu0 %v7384
  %8078 = vmatprep.subr.mxu0 0.0
  %8079 = vmatpush1.msra.mxu0 %v7385
  %8080 = vmatprep.subr.mxu0 0.0
  %8081 = vmatpush1.msra.mxu0 %v7386
  %8082 = vmatprep.subr.mxu0 0.0
  %8083 = vmatpush1.msra.mxu0 %v7387
  %8084 = vmatprep.subr.mxu0 0.0
  %8085 = vmatpush1.msra.mxu0 %v7388
  %8086 = vmatprep.subr.mxu0 0.0
  %8087 = vmatpush1.msra.mxu0 %v8060
  %8088 = vmatprep.subr.mxu0 0.0
  %8089 = vmatpush1.msra.mxu0 0.0
  %8090 = vmatprep.subr.mxu0 0.0
  %8091 = vmatpush1.msra.mxu0 0.0
  %8092 = vmatprep.subr.mxu0 0.0
  %8093 = vmatpush1.msra.mxu0 0.0
  %8094 = vmatprep.subr.mxu0 0.0
  %8095 = vmatpush1.msra.mxu0 0.0
  %8096 = vmatprep.subr.mxu0 0.0
  %8097 = vmatpush1.msra.mxu0 0.0
  %8098 = vmatprep.subr.mxu0 0.0
  %8099 = vmatpush1.msra.mxu0 0.0
  %8100 = vmatprep.subr.mxu0 0.0
  %8101 = vmatpush1.msra.mxu0 0.0
  %8102 = vmatprep.subr.mxu0 0.0
  %8103 = vmatpush1.msra.mxu0 0.0
  %8104 = vmatprep.subr.mxu0 0.0
  %8105 = vmatpush1.msra.mxu0 0.0
  %8106 = vmatprep.subr.mxu0 0.0
  %8107 = vmatpush1.msra.mxu0 0.0
  %8108 = vmatprep.subr.mxu0 0.0
  %8109 = vmatpush1.msra.mxu0 0.0
  %8110 = vmatprep.subr.mxu0 0.0
  %8111 = vmatpush1.msra.mxu0 0.0
  %8112 = vmatprep.subr.mxu0 0.0
  %8113 = vmatpush1.msra.mxu0 0.0
  %8114 = vmatprep.subr.mxu0 0.0
  %8115 = vmatpush1.msra.mxu0 0.0
  %8116 = vmatprep.subr.mxu0 0.0
  %8117 = vmatpush1.msra.mxu0 0.0
  %8118 = vmatprep.subr.mxu0 0.0
  %8119 = vmatpush1.msra.mxu0 0.0
  %8120 = vmatprep.subr.mxu0 0.0
  %8121 = vmatpush1.msra.mxu0 0.0
  %8122 = vmatprep.subr.mxu0 0.0
  %8123 = vmatpush1.msra.mxu0 0.0
  %8124 = vmatprep.subr.mxu0 0.0
  %8125 = vmatpush1.msra.mxu0 0.0
  %8126 = vmatprep.mubr.f32.mxu0 0.0
  %8127 = vmatmul.mubr.f32.gmra.mrb[0].mxu0 %v8048
  %v8128 = vpop.f32.mrb[0].mxu0
  %v8129 = vadd.f32 %v8045, %v8128
  %v8130 = vpop.f32.mrb[0].mxu0
  %8131 = vmatprep.mubr.f32.mxu0 0.0
  %8132 = vmatmul.mubr.f32.gmra.mrb[0].mxu0 %v8051
  %v8133 = vpop.f32.mrb[0].mxu0
  %v8134 = vadd.f32 %v8045, %v8133
  %v8135 = vpop.f32.mrb[0].mxu0
  %8136 = vmatprep.mubr.f32.mxu0 0.0
  %8137 = vmatmul.mubr.f32.gmra.mrb[0].mxu0 %v8054
  %v8138 = vpop.f32.mrb[0].mxu0
  %v8139 = vadd.f32 %v8045, %v8138
  %v8140 = vpop.f32.mrb[0].mxu0
  %8141 = vmatprep.mubr.f32.mxu0 0.0
  %8142 = vmatmul.mubr.f32.gmra.mrb[0].mxu0 %v8057
  %v8143 = vpop.f32.mrb[0].mxu0
  %v8144 = vadd.f32 %v8045, %v8143
  %v8145 = vpop.f32.mrb[0].mxu0
  %8146 = vdwg.mxu0
  %v8147 = vtanh.pop %v8129
  %v8148 = vtanh.pop %v8134
  %v8149 = vtanh.pop %v8139
  %v8150 = vtanh.pop %v8144
  %v8151 = vmul.f32 %v7748, %v7239
  %v8152 = vmul.f32 %v7750, %v7240
  %v8153 = vmul.f32 %v7752, %v7241
  %v8154 = vmul.f32 %v7754, %v7242
  %v8155 = vsub.f32 1.0, %v7748
  %v8156 = vsub.f32 1.0, %v7750
  %v8157 = vsub.f32 1.0, %v7752
  %v8158 = vsub.f32 1.0, %v7754
  %8163 = vrot.lane.b32.xlu0 %v8147, 32
  %v8164 = vpop.permute.xlu0 %8163
  %8165 = vrot.lane.b32.xlu0 %v8148, 32
  %v8166 = vpop.permute.xlu0 %8165
  %8167 = vrot.lane.b32.xlu0 %v8149, 32
  %v8168 = vpop.permute.xlu0 %8167
  %8169 = vrot.lane.b32.xlu0 %v8150, 32
  %v8170 = vpop.permute.xlu0 %8169
  %v8175 = vmul.f32 %v8155, %v8164
  %v8176 = vmul.f32 %v8156, %v8166
  %v8177 = vmul.f32 %v8157, %v8168
  %v8178 = vmul.f32 %v8158, %v8170
  %v8179 = vadd.f32 %v8151, %v8175
  %v8180 = vadd.f32 %v8152, %v8176
  %v8181 = vadd.f32 %v8153, %v8177
  %v8182 = vadd.f32 %v8154, %v8178
  %v8183 = vld [vmem:[%s10] sm:$0xff]
  %v8184 = vld [vmem:[%s10 + $0x8] sm:$0xff]
  %v8185 = vld [vmem:[%s10 + $0x10] sm:$0xff]
  %v8186 = vld [vmem:[%s10 + $0x18] sm:$0xff]
  %v8187 = vld [vmem:[#allocation2] sm:$0x1]
  %v8189 = vlaneseq
  %v8190 = vshrl.u32 %v8189, 7
  %v8191 = vsub.s32 0, %v8190
  %v8192 = vrot.slane %v8187, %v8191
  %8198 = vrot.lane.b32.xlu0 %v8179, 96
  %v8199 = vpop.permute.xlu0 %8198
  %8200 = vrot.lane.b32.xlu0 %v8180, 96
  %v8201 = vpop.permute.xlu0 %8200
  %8202 = vrot.lane.b32.xlu0 %v8181, 96
  %v8203 = vpop.permute.xlu0 %8202
  %8204 = vrot.lane.b32.xlu0 %v8182, 96
  %v8205 = vpop.permute.xlu0 %8204
  %v8206 = vsel %vm84, %v8199, 0
  %v8208 = vsel %vm84, %v8201, 0
  %v8210 = vsel %vm84, %v8203, 0
  %v8212 = vsel %vm84, %v8205, 0
  %8214 = vmatprep.subr.mxu0 0.0
  %8215 = vmatpush1.msra.mxu0 %v8183
  %8216 = vmatprep.subr.mxu0 0.0
  %8217 = vmatpush1.msra.mxu0 %v8184
  %8218 = vmatprep.subr.mxu0 0.0
  %8219 = vmatpush1.msra.mxu0 %v8185
  %8220 = vmatprep.subr.mxu0 0.0
  %8221 = vmatpush1.msra.mxu0 %v8186
  %8222 = vmatprep.subr.mxu0 0.0
  %8223 = vmatpush1.msra.mxu0 0.0
  %8224 = vmatprep.subr.mxu0 0.0
  %8225 = vmatpush1.msra.mxu0 0.0
  %8226 = vmatprep.subr.mxu0 0.0
  %8227 = vmatpush1.msra.mxu0 0.0
  %8228 = vmatprep.subr.mxu0 0.0
  %8229 = vmatpush1.msra.mxu0 0.0
  %8230 = vmatprep.subr.mxu0 0.0
  %8231 = vmatpush1.msra.mxu0 0.0
  %8232 = vmatprep.subr.mxu0 0.0
  %8233 = vmatpush1.msra.mxu0 0.0
  %8234 = vmatprep.subr.mxu0 0.0
  %8235 = vmatpush1.msra.mxu0 0.0
  %8236 = vmatprep.subr.mxu0 0.0
  %8237 = vmatpush1.msra.mxu0 0.0
  %8238 = vmatprep.subr.mxu0 0.0
  %8239 = vmatpush1.msra.mxu0 0.0
  %8240 = vmatprep.subr.mxu0 0.0
  %8241 = vmatpush1.msra.mxu0 0.0
  %8242 = vmatprep.subr.mxu0 0.0
  %8243 = vmatpush1.msra.mxu0 0.0
  %8244 = vmatprep.subr.mxu0 0.0
  %8245 = vmatpush1.msra.mxu0 0.0
  %8246 = vmatprep.subr.mxu0 0.0
  %8247 = vmatpush1.msra.mxu0 0.0
  %8248 = vmatprep.subr.mxu0 0.0
  %8249 = vmatpush1.msra.mxu0 0.0
  %8250 = vmatprep.subr.mxu0 0.0
  %8251 = vmatpush1.msra.mxu0 0.0
  %8252 = vmatprep.subr.mxu0 0.0
  %8253 = vmatpush1.msra.mxu0 0.0
  %8254 = vmatprep.subr.mxu0 0.0
  %8255 = vmatpush1.msra.mxu0 0.0
  %8256 = vmatprep.subr.mxu0 0.0
  %8257 = vmatpush1.msra.mxu0 0.0
  %8258 = vmatprep.subr.mxu0 0.0
  %8259 = vmatpush1.msra.mxu0 0.0
  %8260 = vmatprep.subr.mxu0 0.0
  %8261 = vmatpush1.msra.mxu0 0.0
  %8262 = vmatprep.subr.mxu0 0.0
  %8263 = vmatpush1.msra.mxu0 0.0
  %8264 = vmatprep.subr.mxu0 0.0
  %8265 = vmatpush1.msra.mxu0 0.0
  %8266 = vmatprep.subr.mxu0 0.0
  %8267 = vmatpush1.msra.mxu0 0.0
  %8268 = vmatprep.subr.mxu0 0.0
  %8269 = vmatpush1.msra.mxu0 0.0
  %8270 = vmatprep.subr.mxu0 0.0
  %8271 = vmatpush1.msra.mxu0 0.0
  %8272 = vmatprep.subr.mxu0 0.0
  %8273 = vmatpush1.msra.mxu0 0.0
  %8274 = vmatprep.subr.mxu0 0.0
  %8275 = vmatpush1.msra.mxu0 0.0
  %8276 = vmatprep.subr.mxu0 0.0
  %8277 = vmatpush1.msra.mxu0 0.0
  %8278 = vmatprep.mubr.f32.mxu0 0.0
  %8279 = vmatmul.mubr.f32.gmra.mrb[0].mxu0 %v8206
  %v8280 = vpop.f32.mrb[0].mxu0
  %v8281 = vadd.f32 %v8192, %v8280
  %v8282 = vpop.f32.mrb[0].mxu0
  %8283 = vmatprep.mubr.f32.mxu0 0.0
  %8284 = vmatmul.mubr.f32.gmra.mrb[0].mxu0 %v8208
  %v8285 = vpop.f32.mrb[0].mxu0
  %v8286 = vadd.f32 %v8192, %v8285
  %v8287 = vpop.f32.mrb[0].mxu0
  %8288 = vmatprep.mubr.f32.mxu0 0.0
  %8289 = vmatmul.mubr.f32.gmra.mrb[0].mxu0 %v8210
  %v8290 = vpop.f32.mrb[0].mxu0
  %v8291 = vadd.f32 %v8192, %v8290
  %v8292 = vpop.f32.mrb[0].mxu0
  %8293 = vmatprep.mubr.f32.mxu0 0.0
  %8294 = vmatmul.mubr.f32.gmra.mrb[0].mxu0 %v8212
  %v8295 = vpop.f32.mrb[0].mxu0
  %v8296 = vadd.f32 %v8192, %v8295
  %v8297 = vpop.f32.mrb[0].mxu0
  %8298 = vdwg.mxu0
  %s8299 = scalar_lea.vmem %s12, 32
  %8300 = vst.msk [vmem:[%s8299] sm:$0xff] %vm6450, %v8281
  %8301 = vst.msk [vmem:[%s8299 + $0x8] sm:$0xff] %vm6450, %v8286
  %8302 = vst.msk [vmem:[%s8299 + $0x10] sm:$0xff] %vm6450, %v8291
  %8303 = vst.msk [vmem:[%s8299 + $0x18] sm:$0xff] %vm6450, %v8296
  %v8304 = vld [vmem:[%s6] sm:$0xff]
  %v8305 = vld [vmem:[%s6 + $0x8] sm:$0xff]
  %v8306 = vld [vmem:[%s6 + $0x10] sm:$0xff]
  %v8307 = vld [vmem:[%s6 + $0x18] sm:$0xff]
  %v8308 = vld [vmem:[%s6 + $0x20] sm:$0xff]
  %v8309 = vld [vmem:[%s6 + $0x28] sm:$0xff]
  %v8310 = vld [vmem:[%s6 + $0x30] sm:$0xff]
  %v8311 = vld [vmem:[%s6 + $0x38] sm:$0xff]
  %v8312 = vld [vmem:[%s6 + $0x40] sm:$0xff]
  %v8313 = vld [vmem:[%s6 + $0x48] sm:$0xff]
  %v8314 = vld [vmem:[%s6 + $0x50] sm:$0xff]
  %v8315 = vld [vmem:[%s6 + $0x58] sm:$0xff]
  %v8316 = vld [vmem:[%s6 + $0x60] sm:$0x7]
  %v8317 = vld [vmem:[%s7] sm:$0x1]
  %v8318 = vld [vmem:[%s8] sm:$0xff]
  %v8319 = vld [vmem:[%s8 + $0x8] sm:$0xff]
  %v8320 = vld [vmem:[%s8 + $0x10] sm:$0xff]
  %v8321 = vld [vmem:[%s8 + $0x18] sm:$0xff]
  %v8322 = vld [vmem:[%s8 + $0x20] sm:$0xff]
  %v8323 = vld [vmem:[%s8 + $0x28] sm:$0xff]
  %v8324 = vld [vmem:[%s8 + $0x30] sm:$0xff]
  %v8325 = vld [vmem:[%s8 + $0x38] sm:$0xff]
  %v8326 = vld [vmem:[%s8 + $0x40] sm:$0xff]
  %v8327 = vld [vmem:[%s8 + $0x48] sm:$0xff]
  %v8328 = vld [vmem:[%s8 + $0x50] sm:$0xff]
  %v8329 = vld [vmem:[%s8 + $0x58] sm:$0xff]
  %v8330 = vld [vmem:[%s8 + $0x60] sm:$0x7]
  %v8331 = vld [vmem:[%s9] sm:$0x1]
  %8332 = vrot.lane.b32.xlu0 %v8179, 97
  %v8333 = vpop.permute.xlu0 %8332
  %8334 = vrot.lane.b32.xlu0 %v8180, 97
  %v8335 = vpop.permute.xlu0 %8334
  %8336 = vrot.lane.b32.xlu0 %v8181, 97
  %v8337 = vpop.permute.xlu0 %8336
  %8338 = vrot.lane.b32.xlu0 %v8182, 97
  %v8339 = vpop.permute.xlu0 %8338
  %v8344 = vsel %vm6450, %v8281, %v8333
  %v8345 = vsel %vm6450, %v8286, %v8335
  %v8346 = vsel %vm6450, %v8291, %v8337
  %v8347 = vsel %vm6450, %v8296, %v8339
  %8348 = vmatprep.subr.mxu0 0.0
  %8349 = vmatpush1.msra.mxu0 %v8344
  %8350 = vmatprep.subr.mxu0 0.0
  %8351 = vmatpush1.msra.mxu0 %v8345
  %8352 = vmatprep.subr.mxu0 0.0
  %8353 = vmatpush1.msra.mxu0 %v8346
  %8354 = vmatprep.subr.mxu0 0.0
  %8355 = vmatpush1.msra.mxu0 %v8347
  %8356 = vmatprep.subr.mxu0 0.0
  %8357 = vmatpush1.msra.mxu0 0.0
  %8358 = vmatprep.subr.mxu0 0.0
  %8359 = vmatpush1.msra.mxu0 0.0
  %8360 = vmatprep.subr.mxu0 0.0
  %8361 = vmatpush1.msra.mxu0 0.0
  %8362 = vmatprep.subr.mxu0 0.0
  %8363 = vmatpush1.msra.mxu0 0.0
  %8364 = vmatprep.subr.mxu0 0.0
  %8365 = vmatpush1.msra.mxu0 0.0
  %8366 = vmatprep.subr.mxu0 0.0
  %8367 = vmatpush1.msra.mxu0 0.0
  %8368 = vmatprep.subr.mxu0 0.0
  %8369 = vmatpush1.msra.mxu0 0.0
  %8370 = vmatprep.subr.mxu0 0.0
  %8371 = vmatpush1.msra.mxu0 0.0
  %8372 = vmatprep.subr.mxu0 0.0
  %8373 = vmatpush1.msra.mxu0 0.0
  %8374 = vmatprep.subr.mxu0 0.0
  %8375 = vmatpush1.msra.mxu0 0.0
  %8376 = vmatprep.subr.mxu0 0.0
  %8377 = vmatpush1.msra.mxu0 0.0
  %8378 = vmatprep.subr.mxu0 0.0
  %8379 = vmatpush1.msra.mxu0 0.0
  %8380 = vmatprep.subr.mxu0 0.0
  %8381 = vmatpush1.msra.mxu0 0.0
  %8382 = vmatprep.subr.mxu0 0.0
  %8383 = vmatpush1.msra.mxu0 0.0
  %8384 = vmatprep.subr.mxu0 0.0
  %8385 = vmatpush1.msra.mxu0 0.0
  %8386 = vmatprep.subr.mxu0 0.0
  %8387 = vmatpush1.msra.mxu0 0.0
  %8388 = vmatprep.subr.mxu0 0.0
  %8389 = vmatpush1.msra.mxu0 0.0
  %8390 = vmatprep.subr.mxu0 0.0
  %8391 = vmatpush1.msra.mxu0 0.0
  %8392 = vmatprep.subr.mxu0 0.0
  %8393 = vmatpush1.msra.mxu0 0.0
  %8394 = vmatprep.subr.mxu0 0.0
  %8395 = vmatpush1.msra.mxu0 0.0
  %8396 = vmatprep.subr.mxu0 0.0
  %8397 = vmatpush1.msra.mxu0 0.0
  %8398 = vmatprep.subr.mxu0 0.0
  %8399 = vmatpush1.msra.mxu0 0.0
  %8400 = vmatprep.subr.mxu0 0.0
  %8401 = vmatpush1.msra.mxu0 0.0
  %8402 = vmatprep.subr.mxu0 0.0
  %8403 = vmatpush1.msra.mxu0 0.0
  %8404 = vmatprep.subr.mxu0 0.0
  %8405 = vmatpush1.msra.mxu0 0.0
  %8406 = vmatprep.subr.mxu0 0.0
  %8407 = vmatpush1.msra.mxu0 0.0
  %8408 = vmatprep.subr.mxu0 0.0
  %8409 = vmatpush1.msra.mxu0 0.0
  %8410 = vmatprep.subr.mxu0 0.0
  %8411 = vmatpush1.msra.mxu0 0.0
  %8412 = vmatprep.mubr.f32.mxu0 0.0
  %8413 = vmatmul.mubr.f32.gmra.mrb[0].mxu0 %v86
  %v8414 = vpop.f32.mrb[0].mxu0
  %v8415 = vadd.f32 0.0, %v8414
  %v8416 = vpop.f32.mrb[0].mxu0
  %8417 = vmatprep.mubr.f32.mxu0 0.0
  %8418 = vmatmul.mubr.f32.gmra.mrb[0].mxu0 %v89
  %v8419 = vpop.f32.mrb[0].mxu0
  %v8420 = vadd.f32 0.0, %v8419
  %v8421 = vpop.f32.mrb[0].mxu0
  %8422 = vmatprep.mubr.f32.mxu0 0.0
  %8423 = vmatmul.mubr.f32.gmra.mrb[0].mxu0 %v92
  %v8424 = vpop.f32.mrb[0].mxu0
  %v8425 = vadd.f32 0.0, %v8424
  %v8426 = vpop.f32.mrb[0].mxu0
  %8427 = vmatprep.mubr.f32.mxu0 0.0
  %8428 = vmatmul.mubr.f32.gmra.mrb[0].mxu0 %v95
  %v8429 = vpop.f32.mrb[0].mxu0
  %v8430 = vadd.f32 0.0, %v8429
  %v8431 = vpop.f32.mrb[0].mxu0
  %8432 = vdwg.mxu0
  %8433 = vmatprep.subr.mxu0 0.0
  %8434 = vmatpush1.msra.mxu0 %v8415
  %8435 = vmatprep.subr.mxu0 0.0
  %8436 = vmatpush1.msra.mxu0 %v8420
  %8437 = vmatprep.subr.mxu0 0.0
  %8438 = vmatpush1.msra.mxu0 %v8425
  %8439 = vmatprep.subr.mxu0 0.0
  %8440 = vmatpush1.msra.mxu0 %v8430
  %8441 = vmatprep.subr.mxu0 0.0
  %8442 = vmatpush1.msra.mxu0 0.0
  %8443 = vmatprep.subr.mxu0 0.0
  %8444 = vmatpush1.msra.mxu0 0.0
  %8445 = vmatprep.subr.mxu0 0.0
  %8446 = vmatpush1.msra.mxu0 0.0
  %8447 = vmatprep.subr.mxu0 0.0
  %8448 = vmatpush1.msra.mxu0 0.0
  %8449 = vmatprep.subr.mxu0 0.0
  %8450 = vmatpush1.msra.mxu0 0.0
  %8451 = vmatprep.subr.mxu0 0.0
  %8452 = vmatpush1.msra.mxu0 0.0
  %8453 = vmatprep.subr.mxu0 0.0
  %8454 = vmatpush1.msra.mxu0 0.0
  %8455 = vmatprep.subr.mxu0 0.0
  %8456 = vmatpush1.msra.mxu0 0.0
  %8457 = vmatprep.subr.mxu0 0.0
  %8458 = vmatpush1.msra.mxu0 0.0
  %8459 = vmatprep.subr.mxu0 0.0
  %8460 = vmatpush1.msra.mxu0 0.0
  %8461 = vmatprep.subr.mxu0 0.0
  %8462 = vmatpush1.msra.mxu0 0.0
  %8463 = vmatprep.subr.mxu0 0.0
  %8464 = vmatpush1.msra.mxu0 0.0
  %8465 = vmatprep.subr.mxu0 0.0
  %8466 = vmatpush1.msra.mxu0 0.0
  %8467 = vmatprep.subr.mxu0 0.0
  %8468 = vmatpush1.msra.mxu0 0.0
  %8469 = vmatprep.subr.mxu0 0.0
  %8470 = vmatpush1.msra.mxu0 0.0
  %8471 = vmatprep.subr.mxu0 0.0
  %8472 = vmatpush1.msra.mxu0 0.0
  %8473 = vmatprep.subr.mxu0 0.0
  %8474 = vmatpush1.msra.mxu0 0.0
  %8475 = vmatprep.subr.mxu0 0.0
  %8476 = vmatpush1.msra.mxu0 0.0
  %8477 = vmatprep.subr.mxu0 0.0
  %8478 = vmatpush1.msra.mxu0 0.0
  %8479 = vmatprep.subr.mxu0 0.0
  %8480 = vmatpush1.msra.mxu0 0.0
  %8481 = vmatprep.subr.mxu0 0.0
  %8482 = vmatpush1.msra.mxu0 0.0
  %8483 = vmatprep.subr.mxu0 0.0
  %8484 = vmatpush1.msra.mxu0 0.0
  %8485 = vmatprep.subr.mxu0 0.0
  %8486 = vmatpush1.msra.mxu0 0.0
  %8487 = vmatprep.subr.mxu0 0.0
  %8488 = vmatpush1.msra.mxu0 0.0
  %8489 = vmatprep.subr.mxu0 0.0
  %8490 = vmatpush1.msra.mxu0 0.0
  %8491 = vmatprep.subr.mxu0 0.0
  %8492 = vmatpush1.msra.mxu0 0.0
  %8493 = vmatprep.subr.mxu0 0.0
  %8494 = vmatpush1.msra.mxu0 0.0
  %8495 = vmatprep.subr.mxu0 0.0
  %8496 = vmatpush1.msra.mxu0 0.0
  %8497 = vmatprep.mubr.f32.mxu0 0.0
  %8498 = vmatmul.mubr.f32.gmra.mrb[0].mxu0 %v86
  %v8499 = vpop.f32.mrb[0].mxu0
  %v8500 = vadd.f32 0.0, %v8499
  %v8501 = vpop.f32.mrb[0].mxu0
  %8502 = vmatprep.mubr.f32.mxu0 0.0
  %8503 = vmatmul.mubr.f32.gmra.mrb[0].mxu0 %v89
  %v8504 = vpop.f32.mrb[0].mxu0
  %v8505 = vadd.f32 0.0, %v8504
  %v8506 = vpop.f32.mrb[0].mxu0
  %8507 = vmatprep.mubr.f32.mxu0 0.0
  %8508 = vmatmul.mubr.f32.gmra.mrb[0].mxu0 %v92
  %v8509 = vpop.f32.mrb[0].mxu0
  %v8510 = vadd.f32 0.0, %v8509
  %v8511 = vpop.f32.mrb[0].mxu0
  %8512 = vmatprep.mubr.f32.mxu0 0.0
  %8513 = vmatmul.mubr.f32.gmra.mrb[0].mxu0 %v95
  %v8514 = vpop.f32.mrb[0].mxu0
  %v8515 = vadd.f32 0.0, %v8514
  %v8516 = vpop.f32.mrb[0].mxu0
  %8517 = vdwg.mxu0
  %v8518 = vmul.f32 %v8500, 2.0
  %v8519 = vmul.f32 %v8505, 2.0
  %v8520 = vmul.f32 %v8510, 2.0
  %v8521 = vmul.f32 %v8515, 2.0
  %v8522 = vsub.f32 %v8518, %v8344
  %v8523 = vsub.f32 %v8519, %v8345
  %v8524 = vsub.f32 %v8520, %v8346
  %v8525 = vsub.f32 %v8521, %v8347
  %8530 = vrot.lane.b32.xlu0 %v8415, 33
  %v8531 = vpop.permute.xlu0 %8530
  %8532 = vrot.lane.b32.xlu0 %v8420, 33
  %v8533 = vpop.permute.xlu0 %8532
  %8534 = vrot.lane.b32.xlu0 %v8425, 33
  %v8535 = vpop.permute.xlu0 %8534
  %8536 = vrot.lane.b32.xlu0 %v8430, 33
  %v8537 = vpop.permute.xlu0 %8536
  %8546 = vrot.lane.b32.xlu0 %v8522, 66
  %v8547 = vpop.permute.xlu0 %8546
  %8548 = vrot.lane.b32.xlu0 %v8523, 66
  %v8549 = vpop.permute.xlu0 %8548
  %8550 = vrot.lane.b32.xlu0 %v8524, 66
  %v8551 = vpop.permute.xlu0 %8550
  %8552 = vrot.lane.b32.xlu0 %v8525, 66
  %v8553 = vpop.permute.xlu0 %8552
  %v8558 = vsel %vm6665, %v8344, %v8531
  %v8559 = vsel %vm6665, %v8345, %v8533
  %v8560 = vsel %vm6665, %v8346, %v8535
  %v8561 = vsel %vm6665, %v8347, %v8537
  %v8562 = vsel %vm6670, %v8558, %v8547
  %v8563 = vsel %vm6670, %v8559, %v8549
  %v8564 = vsel %vm6670, %v8560, %v8551
  %v8565 = vsel %vm6670, %v8561, %v8553
  %v8567 = vlaneseq
  %v8568 = vshrl.u32 %v8567, 7
  %v8569 = vsub.s32 0, %v8568
  %v8570 = vrot.slane %v8317, %v8569
  %v8573 = vsel %vm6681, %v8562, 0
  %v8576 = vsel %vm6681, %v8563, 0
  %v8579 = vsel %vm6681, %v8564, 0
  %v8582 = vsel %vm6681, %v8565, 0
  %v8585 = vsel %vm6694, %v8316, 0
  %8587 = vmatprep.subr.mxu0 0.0
  %8588 = vmatpush1.msra.mxu0 %v8304
  %8589 = vmatprep.subr.mxu0 0.0
  %8590 = vmatpush1.msra.mxu0 %v8305
  %8591 = vmatprep.subr.mxu0 0.0
  %8592 = vmatpush1.msra.mxu0 %v8306
  %8593 = vmatprep.subr.mxu0 0.0
  %8594 = vmatpush1.msra.mxu0 %v8307
  %8595 = vmatprep.subr.mxu0 0.0
  %8596 = vmatpush1.msra.mxu0 %v8308
  %8597 = vmatprep.subr.mxu0 0.0
  %8598 = vmatpush1.msra.mxu0 %v8309
  %8599 = vmatprep.subr.mxu0 0.0
  %8600 = vmatpush1.msra.mxu0 %v8310
  %8601 = vmatprep.subr.mxu0 0.0
  %8602 = vmatpush1.msra.mxu0 %v8311
  %8603 = vmatprep.subr.mxu0 0.0
  %8604 = vmatpush1.msra.mxu0 %v8312
  %8605 = vmatprep.subr.mxu0 0.0
  %8606 = vmatpush1.msra.mxu0 %v8313
  %8607 = vmatprep.subr.mxu0 0.0
  %8608 = vmatpush1.msra.mxu0 %v8314
  %8609 = vmatprep.subr.mxu0 0.0
  %8610 = vmatpush1.msra.mxu0 %v8315
  %8611 = vmatprep.subr.mxu0 0.0
  %8612 = vmatpush1.msra.mxu0 %v8585
  %8613 = vmatprep.subr.mxu0 0.0
  %8614 = vmatpush1.msra.mxu0 0.0
  %8615 = vmatprep.subr.mxu0 0.0
  %8616 = vmatpush1.msra.mxu0 0.0
  %8617 = vmatprep.subr.mxu0 0.0
  %8618 = vmatpush1.msra.mxu0 0.0
  %8619 = vmatprep.subr.mxu0 0.0
  %8620 = vmatpush1.msra.mxu0 0.0
  %8621 = vmatprep.subr.mxu0 0.0
  %8622 = vmatpush1.msra.mxu0 0.0
  %8623 = vmatprep.subr.mxu0 0.0
  %8624 = vmatpush1.msra.mxu0 0.0
  %8625 = vmatprep.subr.mxu0 0.0
  %8626 = vmatpush1.msra.mxu0 0.0
  %8627 = vmatprep.subr.mxu0 0.0
  %8628 = vmatpush1.msra.mxu0 0.0
  %8629 = vmatprep.subr.mxu0 0.0
  %8630 = vmatpush1.msra.mxu0 0.0
  %8631 = vmatprep.subr.mxu0 0.0
  %8632 = vmatpush1.msra.mxu0 0.0
  %8633 = vmatprep.subr.mxu0 0.0
  %8634 = vmatpush1.msra.mxu0 0.0
  %8635 = vmatprep.subr.mxu0 0.0
  %8636 = vmatpush1.msra.mxu0 0.0
  %8637 = vmatprep.subr.mxu0 0.0
  %8638 = vmatpush1.msra.mxu0 0.0
  %8639 = vmatprep.subr.mxu0 0.0
  %8640 = vmatpush1.msra.mxu0 0.0
  %8641 = vmatprep.subr.mxu0 0.0
  %8642 = vmatpush1.msra.mxu0 0.0
  %8643 = vmatprep.subr.mxu0 0.0
  %8644 = vmatpush1.msra.mxu0 0.0
  %8645 = vmatprep.subr.mxu0 0.0
  %8646 = vmatpush1.msra.mxu0 0.0
  %8647 = vmatprep.subr.mxu0 0.0
  %8648 = vmatpush1.msra.mxu0 0.0
  %8649 = vmatprep.subr.mxu0 0.0
  %8650 = vmatpush1.msra.mxu0 0.0
  %8651 = vmatprep.mubr.f32.mxu0 0.0
  %8652 = vmatmul.mubr.f32.gmra.mrb[0].mxu0 %v8573
  %v8653 = vpop.f32.mrb[0].mxu0
  %v8654 = vadd.f32 %v8570, %v8653
  %v8655 = vpop.f32.mrb[0].mxu0
  %8656 = vmatprep.mubr.f32.mxu0 0.0
  %8657 = vmatmul.mubr.f32.gmra.mrb[0].mxu0 %v8576
  %v8658 = vpop.f32.mrb[0].mxu0
  %v8659 = vadd.f32 %v8570, %v8658
  %v8660 = vpop.f32.mrb[0].mxu0
  %8661 = vmatprep.mubr.f32.mxu0 0.0
  %8662 = vmatmul.mubr.f32.gmra.mrb[0].mxu0 %v8579
  %v8663 = vpop.f32.mrb[0].mxu0
  %v8664 = vadd.f32 %v8570, %v8663
  %v8665 = vpop.f32.mrb[0].mxu0
  %8666 = vmatprep.mubr.f32.mxu0 0.0
  %8667 = vmatmul.mubr.f32.gmra.mrb[0].mxu0 %v8582
  %v8668 = vpop.f32.mrb[0].mxu0
  %v8669 = vadd.f32 %v8570, %v8668
  %v8670 = vpop.f32.mrb[0].mxu0
  %8671 = vdwg.mxu0
  %v8672 = vxor.u32 %v8654, 2147483648
  %v8673 = vxor.u32 %v8659, 2147483648
  %v8674 = vxor.u32 %v8664, 2147483648
  %v8675 = vxor.u32 %v8669, 2147483648
  %v8676 = vmul.f32 %v8672, 1.442695
  %v8677 = vpow.pop %v8676
  %v8678 = vmul.f32 %v8673, 1.442695
  %v8679 = vpow.pop %v8678
  %v8680 = vmul.f32 %v8674, 1.442695
  %v8681 = vpow.pop %v8680
  %v8682 = vmul.f32 %v8675, 1.442695
  %v8683 = vpow.pop %v8682
  %v8684 = vadd.f32 %v8677, 1.0
  %v8685 = vadd.f32 %v8679, 1.0
  %v8686 = vadd.f32 %v8681, 1.0
  %v8687 = vadd.f32 %v8683, 1.0
  %v8688 = vrcp.pop %v8684
  %v8689 = vmul.f32 1.0, %v8688
  %v8690 = vrcp.pop %v8685
  %v8691 = vmul.f32 1.0, %v8690
  %v8692 = vrcp.pop %v8686
  %v8693 = vmul.f32 1.0, %v8692
  %v8694 = vrcp.pop %v8687
  %v8695 = vmul.f32 1.0, %v8694
  %v8700 = vmul.f32 %v8689, %v8199
  %v8701 = vmul.f32 %v8691, %v8201
  %v8702 = vmul.f32 %v8693, %v8203
  %v8703 = vmul.f32 %v8695, %v8205
  %8704 = vmatprep.subr.mxu0 0.0
  %8705 = vmatpush1.msra.mxu0 %v8700
  %8706 = vmatprep.subr.mxu0 0.0
  %8707 = vmatpush1.msra.mxu0 %v8701
  %8708 = vmatprep.subr.mxu0 0.0
  %8709 = vmatpush1.msra.mxu0 %v8702
  %8710 = vmatprep.subr.mxu0 0.0
  %8711 = vmatpush1.msra.mxu0 %v8703
  %8712 = vmatprep.subr.mxu0 0.0
  %8713 = vmatpush1.msra.mxu0 0.0
  %8714 = vmatprep.subr.mxu0 0.0
  %8715 = vmatpush1.msra.mxu0 0.0
  %8716 = vmatprep.subr.mxu0 0.0
  %8717 = vmatpush1.msra.mxu0 0.0
  %8718 = vmatprep.subr.mxu0 0.0
  %8719 = vmatpush1.msra.mxu0 0.0
  %8720 = vmatprep.subr.mxu0 0.0
  %8721 = vmatpush1.msra.mxu0 0.0
  %8722 = vmatprep.subr.mxu0 0.0
  %8723 = vmatpush1.msra.mxu0 0.0
  %8724 = vmatprep.subr.mxu0 0.0
  %8725 = vmatpush1.msra.mxu0 0.0
  %8726 = vmatprep.subr.mxu0 0.0
  %8727 = vmatpush1.msra.mxu0 0.0
  %8728 = vmatprep.subr.mxu0 0.0
  %8729 = vmatpush1.msra.mxu0 0.0
  %8730 = vmatprep.subr.mxu0 0.0
  %8731 = vmatpush1.msra.mxu0 0.0
  %8732 = vmatprep.subr.mxu0 0.0
  %8733 = vmatpush1.msra.mxu0 0.0
  %8734 = vmatprep.subr.mxu0 0.0
  %8735 = vmatpush1.msra.mxu0 0.0
  %8736 = vmatprep.subr.mxu0 0.0
  %8737 = vmatpush1.msra.mxu0 0.0
  %8738 = vmatprep.subr.mxu0 0.0
  %8739 = vmatpush1.msra.mxu0 0.0
  %8740 = vmatprep.subr.mxu0 0.0
  %8741 = vmatpush1.msra.mxu0 0.0
  %8742 = vmatprep.subr.mxu0 0.0
  %8743 = vmatpush1.msra.mxu0 0.0
  %8744 = vmatprep.subr.mxu0 0.0
  %8745 = vmatpush1.msra.mxu0 0.0
  %8746 = vmatprep.subr.mxu0 0.0
  %8747 = vmatpush1.msra.mxu0 0.0
  %8748 = vmatprep.subr.mxu0 0.0
  %8749 = vmatpush1.msra.mxu0 0.0
  %8750 = vmatprep.subr.mxu0 0.0
  %8751 = vmatpush1.msra.mxu0 0.0
  %8752 = vmatprep.subr.mxu0 0.0
  %8753 = vmatpush1.msra.mxu0 0.0
  %8754 = vmatprep.subr.mxu0 0.0
  %8755 = vmatpush1.msra.mxu0 0.0
  %8756 = vmatprep.subr.mxu0 0.0
  %8757 = vmatpush1.msra.mxu0 0.0
  %8758 = vmatprep.subr.mxu0 0.0
  %8759 = vmatpush1.msra.mxu0 0.0
  %8760 = vmatprep.subr.mxu0 0.0
  %8761 = vmatpush1.msra.mxu0 0.0
  %8762 = vmatprep.subr.mxu0 0.0
  %8763 = vmatpush1.msra.mxu0 0.0
  %8764 = vmatprep.subr.mxu0 0.0
  %8765 = vmatpush1.msra.mxu0 0.0
  %8766 = vmatprep.subr.mxu0 0.0
  %8767 = vmatpush1.msra.mxu0 0.0
  %8768 = vmatprep.mubr.f32.mxu0 0.0
  %8769 = vmatmul.mubr.f32.gmra.mrb[0].mxu0 %v86
  %v8770 = vpop.f32.mrb[0].mxu0
  %v8771 = vadd.f32 0.0, %v8770
  %v8772 = vpop.f32.mrb[0].mxu0
  %8773 = vmatprep.mubr.f32.mxu0 0.0
  %8774 = vmatmul.mubr.f32.gmra.mrb[0].mxu0 %v89
  %v8775 = vpop.f32.mrb[0].mxu0
  %v8776 = vadd.f32 0.0, %v8775
  %v8777 = vpop.f32.mrb[0].mxu0
  %8778 = vmatprep.mubr.f32.mxu0 0.0
  %8779 = vmatmul.mubr.f32.gmra.mrb[0].mxu0 %v92
  %v8780 = vpop.f32.mrb[0].mxu0
  %v8781 = vadd.f32 0.0, %v8780
  %v8782 = vpop.f32.mrb[0].mxu0
  %8783 = vmatprep.mubr.f32.mxu0 0.0
  %8784 = vmatmul.mubr.f32.gmra.mrb[0].mxu0 %v95
  %v8785 = vpop.f32.mrb[0].mxu0
  %v8786 = vadd.f32 0.0, %v8785
  %v8787 = vpop.f32.mrb[0].mxu0
  %8788 = vdwg.mxu0
  %8789 = vmatprep.subr.mxu0 0.0
  %8790 = vmatpush1.msra.mxu0 %v8771
  %8791 = vmatprep.subr.mxu0 0.0
  %8792 = vmatpush1.msra.mxu0 %v8776
  %8793 = vmatprep.subr.mxu0 0.0
  %8794 = vmatpush1.msra.mxu0 %v8781
  %8795 = vmatprep.subr.mxu0 0.0
  %8796 = vmatpush1.msra.mxu0 %v8786
  %8797 = vmatprep.subr.mxu0 0.0
  %8798 = vmatpush1.msra.mxu0 0.0
  %8799 = vmatprep.subr.mxu0 0.0
  %8800 = vmatpush1.msra.mxu0 0.0
  %8801 = vmatprep.subr.mxu0 0.0
  %8802 = vmatpush1.msra.mxu0 0.0
  %8803 = vmatprep.subr.mxu0 0.0
  %8804 = vmatpush1.msra.mxu0 0.0
  %8805 = vmatprep.subr.mxu0 0.0
  %8806 = vmatpush1.msra.mxu0 0.0
  %8807 = vmatprep.subr.mxu0 0.0
  %8808 = vmatpush1.msra.mxu0 0.0
  %8809 = vmatprep.subr.mxu0 0.0
  %8810 = vmatpush1.msra.mxu0 0.0
  %8811 = vmatprep.subr.mxu0 0.0
  %8812 = vmatpush1.msra.mxu0 0.0
  %8813 = vmatprep.subr.mxu0 0.0
  %8814 = vmatpush1.msra.mxu0 0.0
  %8815 = vmatprep.subr.mxu0 0.0
  %8816 = vmatpush1.msra.mxu0 0.0
  %8817 = vmatprep.subr.mxu0 0.0
  %8818 = vmatpush1.msra.mxu0 0.0
  %8819 = vmatprep.subr.mxu0 0.0
  %8820 = vmatpush1.msra.mxu0 0.0
  %8821 = vmatprep.subr.mxu0 0.0
  %8822 = vmatpush1.msra.mxu0 0.0
  %8823 = vmatprep.subr.mxu0 0.0
  %8824 = vmatpush1.msra.mxu0 0.0
  %8825 = vmatprep.subr.mxu0 0.0
  %8826 = vmatpush1.msra.mxu0 0.0
  %8827 = vmatprep.subr.mxu0 0.0
  %8828 = vmatpush1.msra.mxu0 0.0
  %8829 = vmatprep.subr.mxu0 0.0
  %8830 = vmatpush1.msra.mxu0 0.0
  %8831 = vmatprep.subr.mxu0 0.0
  %8832 = vmatpush1.msra.mxu0 0.0
  %8833 = vmatprep.subr.mxu0 0.0
  %8834 = vmatpush1.msra.mxu0 0.0
  %8835 = vmatprep.subr.mxu0 0.0
  %8836 = vmatpush1.msra.mxu0 0.0
  %8837 = vmatprep.subr.mxu0 0.0
  %8838 = vmatpush1.msra.mxu0 0.0
  %8839 = vmatprep.subr.mxu0 0.0
  %8840 = vmatpush1.msra.mxu0 0.0
  %8841 = vmatprep.subr.mxu0 0.0
  %8842 = vmatpush1.msra.mxu0 0.0
  %8843 = vmatprep.subr.mxu0 0.0
  %8844 = vmatpush1.msra.mxu0 0.0
  %8845 = vmatprep.subr.mxu0 0.0
  %8846 = vmatpush1.msra.mxu0 0.0
  %8847 = vmatprep.subr.mxu0 0.0
  %8848 = vmatpush1.msra.mxu0 0.0
  %8849 = vmatprep.subr.mxu0 0.0
  %8850 = vmatpush1.msra.mxu0 0.0
  %8851 = vmatprep.subr.mxu0 0.0
  %8852 = vmatpush1.msra.mxu0 0.0
  %8853 = vmatprep.mubr.f32.mxu0 0.0
  %8854 = vmatmul.mubr.f32.gmra.mrb[0].mxu0 %v86
  %v8855 = vpop.f32.mrb[0].mxu0
  %v8856 = vadd.f32 0.0, %v8855
  %v8857 = vpop.f32.mrb[0].mxu0
  %8858 = vmatprep.mubr.f32.mxu0 0.0
  %8859 = vmatmul.mubr.f32.gmra.mrb[0].mxu0 %v89
  %v8860 = vpop.f32.mrb[0].mxu0
  %v8861 = vadd.f32 0.0, %v8860
  %v8862 = vpop.f32.mrb[0].mxu0
  %8863 = vmatprep.mubr.f32.mxu0 0.0
  %8864 = vmatmul.mubr.f32.gmra.mrb[0].mxu0 %v92
  %v8865 = vpop.f32.mrb[0].mxu0
  %v8866 = vadd.f32 0.0, %v8865
  %v8867 = vpop.f32.mrb[0].mxu0
  %8868 = vmatprep.mubr.f32.mxu0 0.0
  %8869 = vmatmul.mubr.f32.gmra.mrb[0].mxu0 %v95
  %v8870 = vpop.f32.mrb[0].mxu0
  %v8871 = vadd.f32 0.0, %v8870
  %v8872 = vpop.f32.mrb[0].mxu0
  %8873 = vdwg.mxu0
  %v8874 = vmul.f32 %v8856, 2.0
  %v8875 = vmul.f32 %v8861, 2.0
  %v8876 = vmul.f32 %v8866, 2.0
  %v8877 = vmul.f32 %v8871, 2.0
  %v8878 = vsub.f32 %v8874, %v8700
  %v8879 = vsub.f32 %v8875, %v8701
  %v8880 = vsub.f32 %v8876, %v8702
  %v8881 = vsub.f32 %v8877, %v8703
  %8886 = vrot.lane.b32.xlu0 %v8700, 1
  %v8887 = vpop.permute.xlu0 %8886
  %8888 = vrot.lane.b32.xlu0 %v8701, 1
  %v8889 = vpop.permute.xlu0 %8888
  %8890 = vrot.lane.b32.xlu0 %v8702, 1
  %v8891 = vpop.permute.xlu0 %8890
  %8892 = vrot.lane.b32.xlu0 %v8703, 1
  %v8893 = vpop.permute.xlu0 %8892
  %v8898 = vsel %vm6450, %v8344, %v8887
  %v8899 = vsel %vm6450, %v8345, %v8889
  %v8900 = vsel %vm6450, %v8346, %v8891
  %v8901 = vsel %vm6450, %v8347, %v8893
  %8906 = vrot.lane.b32.xlu0 %v8771, 1
  %v8907 = vpop.permute.xlu0 %8906
  %8908 = vrot.lane.b32.xlu0 %v8776, 1
  %v8909 = vpop.permute.xlu0 %8908
  %8910 = vrot.lane.b32.xlu0 %v8781, 1
  %v8911 = vpop.permute.xlu0 %8910
  %8912 = vrot.lane.b32.xlu0 %v8786, 1
  %v8913 = vpop.permute.xlu0 %8912
  %v8918 = vsel %vm6450, %v8415, %v8907
  %v8919 = vsel %vm6450, %v8420, %v8909
  %v8920 = vsel %vm6450, %v8425, %v8911
  %v8921 = vsel %vm6450, %v8430, %v8913
  %8926 = vrot.lane.b32.xlu0 %v8878, 1
  %v8927 = vpop.permute.xlu0 %8926
  %8928 = vrot.lane.b32.xlu0 %v8879, 1
  %v8929 = vpop.permute.xlu0 %8928
  %8930 = vrot.lane.b32.xlu0 %v8880, 1
  %v8931 = vpop.permute.xlu0 %8930
  %8932 = vrot.lane.b32.xlu0 %v8881, 1
  %v8933 = vpop.permute.xlu0 %8932
  %v8938 = vsel %vm6450, %v8522, %v8927
  %v8939 = vsel %vm6450, %v8523, %v8929
  %v8940 = vsel %vm6450, %v8524, %v8931
  %v8941 = vsel %vm6450, %v8525, %v8933
  %8946 = vrot.lane.b32.xlu0 %v8918, 33
  %v8947 = vpop.permute.xlu0 %8946
  %8948 = vrot.lane.b32.xlu0 %v8919, 33
  %v8949 = vpop.permute.xlu0 %8948
  %8950 = vrot.lane.b32.xlu0 %v8920, 33
  %v8951 = vpop.permute.xlu0 %8950
  %8952 = vrot.lane.b32.xlu0 %v8921, 33
  %v8953 = vpop.permute.xlu0 %8952
  %8962 = vrot.lane.b32.xlu0 %v8938, 66
  %v8963 = vpop.permute.xlu0 %8962
  %8964 = vrot.lane.b32.xlu0 %v8939, 66
  %v8965 = vpop.permute.xlu0 %8964
  %8966 = vrot.lane.b32.xlu0 %v8940, 66
  %v8967 = vpop.permute.xlu0 %8966
  %8968 = vrot.lane.b32.xlu0 %v8941, 66
  %v8969 = vpop.permute.xlu0 %8968
  %v8974 = vsel %vm6665, %v8898, %v8947
  %v8975 = vsel %vm6665, %v8899, %v8949
  %v8976 = vsel %vm6665, %v8900, %v8951
  %v8977 = vsel %vm6665, %v8901, %v8953
  %v8978 = vsel %vm6670, %v8974, %v8963
  %v8979 = vsel %vm6670, %v8975, %v8965
  %v8980 = vsel %vm6670, %v8976, %v8967
  %v8981 = vsel %vm6670, %v8977, %v8969
  %v8983 = vlaneseq
  %v8984 = vshrl.u32 %v8983, 7
  %v8985 = vsub.s32 0, %v8984
  %v8986 = vrot.slane %v8331, %v8985
  %v8989 = vsel %vm6681, %v8978, 0
  %v8992 = vsel %vm6681, %v8979, 0
  %v8995 = vsel %vm6681, %v8980, 0
  %v8998 = vsel %vm6681, %v8981, 0
  %v9001 = vsel %vm6694, %v8330, 0
  %9003 = vmatprep.subr.mxu0 0.0
  %9004 = vmatpush1.msra.mxu0 %v8318
  %9005 = vmatprep.subr.mxu0 0.0
  %9006 = vmatpush1.msra.mxu0 %v8319
  %9007 = vmatprep.subr.mxu0 0.0
  %9008 = vmatpush1.msra.mxu0 %v8320
  %9009 = vmatprep.subr.mxu0 0.0
  %9010 = vmatpush1.msra.mxu0 %v8321
  %9011 = vmatprep.subr.mxu0 0.0
  %9012 = vmatpush1.msra.mxu0 %v8322
  %9013 = vmatprep.subr.mxu0 0.0
  %9014 = vmatpush1.msra.mxu0 %v8323
  %9015 = vmatprep.subr.mxu0 0.0
  %9016 = vmatpush1.msra.mxu0 %v8324
  %9017 = vmatprep.subr.mxu0 0.0
  %9018 = vmatpush1.msra.mxu0 %v8325
  %9019 = vmatprep.subr.mxu0 0.0
  %9020 = vmatpush1.msra.mxu0 %v8326
  %9021 = vmatprep.subr.mxu0 0.0
  %9022 = vmatpush1.msra.mxu0 %v8327
  %9023 = vmatprep.subr.mxu0 0.0
  %9024 = vmatpush1.msra.mxu0 %v8328
  %9025 = vmatprep.subr.mxu0 0.0
  %9026 = vmatpush1.msra.mxu0 %v8329
  %9027 = vmatprep.subr.mxu0 0.0
  %9028 = vmatpush1.msra.mxu0 %v9001
  %9029 = vmatprep.subr.mxu0 0.0
  %9030 = vmatpush1.msra.mxu0 0.0
  %9031 = vmatprep.subr.mxu0 0.0
  %9032 = vmatpush1.msra.mxu0 0.0
  %9033 = vmatprep.subr.mxu0 0.0
  %9034 = vmatpush1.msra.mxu0 0.0
  %9035 = vmatprep.subr.mxu0 0.0
  %9036 = vmatpush1.msra.mxu0 0.0
  %9037 = vmatprep.subr.mxu0 0.0
  %9038 = vmatpush1.msra.mxu0 0.0
  %9039 = vmatprep.subr.mxu0 0.0
  %9040 = vmatpush1.msra.mxu0 0.0
  %9041 = vmatprep.subr.mxu0 0.0
  %9042 = vmatpush1.msra.mxu0 0.0
  %9043 = vmatprep.subr.mxu0 0.0
  %9044 = vmatpush1.msra.mxu0 0.0
  %9045 = vmatprep.subr.mxu0 0.0
  %9046 = vmatpush1.msra.mxu0 0.0
  %9047 = vmatprep.subr.mxu0 0.0
  %9048 = vmatpush1.msra.mxu0 0.0
  %9049 = vmatprep.subr.mxu0 0.0
  %9050 = vmatpush1.msra.mxu0 0.0
  %9051 = vmatprep.subr.mxu0 0.0
  %9052 = vmatpush1.msra.mxu0 0.0
  %9053 = vmatprep.subr.mxu0 0.0
  %9054 = vmatpush1.msra.mxu0 0.0
  %9055 = vmatprep.subr.mxu0 0.0
  %9056 = vmatpush1.msra.mxu0 0.0
  %9057 = vmatprep.subr.mxu0 0.0
  %9058 = vmatpush1.msra.mxu0 0.0
  %9059 = vmatprep.subr.mxu0 0.0
  %9060 = vmatpush1.msra.mxu0 0.0
  %9061 = vmatprep.subr.mxu0 0.0
  %9062 = vmatpush1.msra.mxu0 0.0
  %9063 = vmatprep.subr.mxu0 0.0
  %9064 = vmatpush1.msra.mxu0 0.0
  %9065 = vmatprep.subr.mxu0 0.0
  %9066 = vmatpush1.msra.mxu0 0.0
  %9067 = vmatprep.mubr.f32.mxu0 0.0
  %9068 = vmatmul.mubr.f32.gmra.mrb[0].mxu0 %v8989
  %v9069 = vpop.f32.mrb[0].mxu0
  %v9070 = vadd.f32 %v8986, %v9069
  %v9071 = vpop.f32.mrb[0].mxu0
  %9072 = vmatprep.mubr.f32.mxu0 0.0
  %9073 = vmatmul.mubr.f32.gmra.mrb[0].mxu0 %v8992
  %v9074 = vpop.f32.mrb[0].mxu0
  %v9075 = vadd.f32 %v8986, %v9074
  %v9076 = vpop.f32.mrb[0].mxu0
  %9077 = vmatprep.mubr.f32.mxu0 0.0
  %9078 = vmatmul.mubr.f32.gmra.mrb[0].mxu0 %v8995
  %v9079 = vpop.f32.mrb[0].mxu0
  %v9080 = vadd.f32 %v8986, %v9079
  %v9081 = vpop.f32.mrb[0].mxu0
  %9082 = vmatprep.mubr.f32.mxu0 0.0
  %9083 = vmatmul.mubr.f32.gmra.mrb[0].mxu0 %v8998
  %v9084 = vpop.f32.mrb[0].mxu0
  %v9085 = vadd.f32 %v8986, %v9084
  %v9086 = vpop.f32.mrb[0].mxu0
  %9087 = vdwg.mxu0
  %v9088 = vtanh.pop %v9070
  %v9089 = vtanh.pop %v9075
  %v9090 = vtanh.pop %v9080
  %v9091 = vtanh.pop %v9085
  %v9092 = vmul.f32 %v8689, %v8179
  %v9093 = vmul.f32 %v8691, %v8180
  %v9094 = vmul.f32 %v8693, %v8181
  %v9095 = vmul.f32 %v8695, %v8182
  %v9096 = vsub.f32 1.0, %v8689
  %v9097 = vsub.f32 1.0, %v8691
  %v9098 = vsub.f32 1.0, %v8693
  %v9099 = vsub.f32 1.0, %v8695
  %9104 = vrot.lane.b32.xlu0 %v9088, 32
  %v9105 = vpop.permute.xlu0 %9104
  %9106 = vrot.lane.b32.xlu0 %v9089, 32
  %v9107 = vpop.permute.xlu0 %9106
  %9108 = vrot.lane.b32.xlu0 %v9090, 32
  %v9109 = vpop.permute.xlu0 %9108
  %9110 = vrot.lane.b32.xlu0 %v9091, 32
  %v9111 = vpop.permute.xlu0 %9110
  %v9116 = vmul.f32 %v9096, %v9105
  %v9117 = vmul.f32 %v9097, %v9107
  %v9118 = vmul.f32 %v9098, %v9109
  %v9119 = vmul.f32 %v9099, %v9111
  %v9120 = vadd.f32 %v9092, %v9116
  %v9121 = vadd.f32 %v9093, %v9117
  %v9122 = vadd.f32 %v9094, %v9118
  %v9123 = vadd.f32 %v9095, %v9119
  %v9124 = vld [vmem:[%s10] sm:$0xff]
  %v9125 = vld [vmem:[%s10 + $0x8] sm:$0xff]
  %v9126 = vld [vmem:[%s10 + $0x10] sm:$0xff]
  %v9127 = vld [vmem:[%s10 + $0x18] sm:$0xff]
  %v9128 = vld [vmem:[#allocation2] sm:$0x1]
  %v9130 = vlaneseq
  %v9131 = vshrl.u32 %v9130, 7
  %v9132 = vsub.s32 0, %v9131
  %v9133 = vrot.slane %v9128, %v9132
  %9139 = vrot.lane.b32.xlu0 %v9120, 96
  %v9140 = vpop.permute.xlu0 %9139
  %9141 = vrot.lane.b32.xlu0 %v9121, 96
  %v9142 = vpop.permute.xlu0 %9141
  %9143 = vrot.lane.b32.xlu0 %v9122, 96
  %v9144 = vpop.permute.xlu0 %9143
  %9145 = vrot.lane.b32.xlu0 %v9123, 96
  %v9146 = vpop.permute.xlu0 %9145
  %v9147 = vsel %vm84, %v9140, 0
  %v9149 = vsel %vm84, %v9142, 0
  %v9151 = vsel %vm84, %v9144, 0
  %v9153 = vsel %vm84, %v9146, 0
  %9155 = vmatprep.subr.mxu0 0.0
  %9156 = vmatpush1.msra.mxu0 %v9124
  %9157 = vmatprep.subr.mxu0 0.0
  %9158 = vmatpush1.msra.mxu0 %v9125
  %9159 = vmatprep.subr.mxu0 0.0
  %9160 = vmatpush1.msra.mxu0 %v9126
  %9161 = vmatprep.subr.mxu0 0.0
  %9162 = vmatpush1.msra.mxu0 %v9127
  %9163 = vmatprep.subr.mxu0 0.0
  %9164 = vmatpush1.msra.mxu0 0.0
  %9165 = vmatprep.subr.mxu0 0.0
  %9166 = vmatpush1.msra.mxu0 0.0
  %9167 = vmatprep.subr.mxu0 0.0
  %9168 = vmatpush1.msra.mxu0 0.0
  %9169 = vmatprep.subr.mxu0 0.0
  %9170 = vmatpush1.msra.mxu0 0.0
  %9171 = vmatprep.subr.mxu0 0.0
  %9172 = vmatpush1.msra.mxu0 0.0
  %9173 = vmatprep.subr.mxu0 0.0
  %9174 = vmatpush1.msra.mxu0 0.0
  %9175 = vmatprep.subr.mxu0 0.0
  %9176 = vmatpush1.msra.mxu0 0.0
  %9177 = vmatprep.subr.mxu0 0.0
  %9178 = vmatpush1.msra.mxu0 0.0
  %9179 = vmatprep.subr.mxu0 0.0
  %9180 = vmatpush1.msra.mxu0 0.0
  %9181 = vmatprep.subr.mxu0 0.0
  %9182 = vmatpush1.msra.mxu0 0.0
  %9183 = vmatprep.subr.mxu0 0.0
  %9184 = vmatpush1.msra.mxu0 0.0
  %9185 = vmatprep.subr.mxu0 0.0
  %9186 = vmatpush1.msra.mxu0 0.0
  %9187 = vmatprep.subr.mxu0 0.0
  %9188 = vmatpush1.msra.mxu0 0.0
  %9189 = vmatprep.subr.mxu0 0.0
  %9190 = vmatpush1.msra.mxu0 0.0
  %9191 = vmatprep.subr.mxu0 0.0
  %9192 = vmatpush1.msra.mxu0 0.0
  %9193 = vmatprep.subr.mxu0 0.0
  %9194 = vmatpush1.msra.mxu0 0.0
  %9195 = vmatprep.subr.mxu0 0.0
  %9196 = vmatpush1.msra.mxu0 0.0
  %9197 = vmatprep.subr.mxu0 0.0
  %9198 = vmatpush1.msra.mxu0 0.0
  %9199 = vmatprep.subr.mxu0 0.0
  %9200 = vmatpush1.msra.mxu0 0.0
  %9201 = vmatprep.subr.mxu0 0.0
  %9202 = vmatpush1.msra.mxu0 0.0
  %9203 = vmatprep.subr.mxu0 0.0
  %9204 = vmatpush1.msra.mxu0 0.0
  %9205 = vmatprep.subr.mxu0 0.0
  %9206 = vmatpush1.msra.mxu0 0.0
  %9207 = vmatprep.subr.mxu0 0.0
  %9208 = vmatpush1.msra.mxu0 0.0
  %9209 = vmatprep.subr.mxu0 0.0
  %9210 = vmatpush1.msra.mxu0 0.0
  %9211 = vmatprep.subr.mxu0 0.0
  %9212 = vmatpush1.msra.mxu0 0.0
  %9213 = vmatprep.subr.mxu0 0.0
  %9214 = vmatpush1.msra.mxu0 0.0
  %9215 = vmatprep.subr.mxu0 0.0
  %9216 = vmatpush1.msra.mxu0 0.0
  %9217 = vmatprep.subr.mxu0 0.0
  %9218 = vmatpush1.msra.mxu0 0.0
  %9219 = vmatprep.mubr.f32.mxu0 0.0
  %9220 = vmatmul.mubr.f32.gmra.mrb[0].mxu0 %v9147
  %v9221 = vpop.f32.mrb[0].mxu0
  %v9222 = vadd.f32 %v9133, %v9221
  %v9223 = vpop.f32.mrb[0].mxu0
  %9224 = vmatprep.mubr.f32.mxu0 0.0
  %9225 = vmatmul.mubr.f32.gmra.mrb[0].mxu0 %v9149
  %v9226 = vpop.f32.mrb[0].mxu0
  %v9227 = vadd.f32 %v9133, %v9226
  %v9228 = vpop.f32.mrb[0].mxu0
  %9229 = vmatprep.mubr.f32.mxu0 0.0
  %9230 = vmatmul.mubr.f32.gmra.mrb[0].mxu0 %v9151
  %v9231 = vpop.f32.mrb[0].mxu0
  %v9232 = vadd.f32 %v9133, %v9231
  %v9233 = vpop.f32.mrb[0].mxu0
  %9234 = vmatprep.mubr.f32.mxu0 0.0
  %9235 = vmatmul.mubr.f32.gmra.mrb[0].mxu0 %v9153
  %v9236 = vpop.f32.mrb[0].mxu0
  %v9237 = vadd.f32 %v9133, %v9236
  %v9238 = vpop.f32.mrb[0].mxu0
  %9239 = vdwg.mxu0
  %s9240 = scalar_lea.vmem %s12, 64
  %9241 = vst.msk [vmem:[%s9240] sm:$0xff] %vm6450, %v9222
  %9242 = vst.msk [vmem:[%s9240 + $0x8] sm:$0xff] %vm6450, %v9227
  %9243 = vst.msk [vmem:[%s9240 + $0x10] sm:$0xff] %vm6450, %v9232
  %9244 = vst.msk [vmem:[%s9240 + $0x18] sm:$0xff] %vm6450, %v9237
  %v9245 = vld [vmem:[%s6] sm:$0xff]
  %v9246 = vld [vmem:[%s6 + $0x8] sm:$0xff]
  %v9247 = vld [vmem:[%s6 + $0x10] sm:$0xff]
  %v9248 = vld [vmem:[%s6 + $0x18] sm:$0xff]
  %v9249 = vld [vmem:[%s6 + $0x20] sm:$0xff]
  %v9250 = vld [vmem:[%s6 + $0x28] sm:$0xff]
  %v9251 = vld [vmem:[%s6 + $0x30] sm:$0xff]
  %v9252 = vld [vmem:[%s6 + $0x38] sm:$0xff]
  %v9253 = vld [vmem:[%s6 + $0x40] sm:$0xff]
  %v9254 = vld [vmem:[%s6 + $0x48] sm:$0xff]
  %v9255 = vld [vmem:[%s6 + $0x50] sm:$0xff]
  %v9256 = vld [vmem:[%s6 + $0x58] sm:$0xff]
  %v9257 = vld [vmem:[%s6 + $0x60] sm:$0x7]
  %v9258 = vld [vmem:[%s7] sm:$0x1]
  %v9259 = vld [vmem:[%s8] sm:$0xff]
  %v9260 = vld [vmem:[%s8 + $0x8] sm:$0xff]
  %v9261 = vld [vmem:[%s8 + $0x10] sm:$0xff]
  %v9262 = vld [vmem:[%s8 + $0x18] sm:$0xff]
  %v9263 = vld [vmem:[%s8 + $0x20] sm:$0xff]
  %v9264 = vld [vmem:[%s8 + $0x28] sm:$0xff]
  %v9265 = vld [vmem:[%s8 + $0x30] sm:$0xff]
  %v9266 = vld [vmem:[%s8 + $0x38] sm:$0xff]
  %v9267 = vld [vmem:[%s8 + $0x40] sm:$0xff]
  %v9268 = vld [vmem:[%s8 + $0x48] sm:$0xff]
  %v9269 = vld [vmem:[%s8 + $0x50] sm:$0xff]
  %v9270 = vld [vmem:[%s8 + $0x58] sm:$0xff]
  %v9271 = vld [vmem:[%s8 + $0x60] sm:$0x7]
  %v9272 = vld [vmem:[%s9] sm:$0x1]
  %9273 = vrot.lane.b32.xlu0 %v9120, 97
  %v9274 = vpop.permute.xlu0 %9273
  %9275 = vrot.lane.b32.xlu0 %v9121, 97
  %v9276 = vpop.permute.xlu0 %9275
  %9277 = vrot.lane.b32.xlu0 %v9122, 97
  %v9278 = vpop.permute.xlu0 %9277
  %9279 = vrot.lane.b32.xlu0 %v9123, 97
  %v9280 = vpop.permute.xlu0 %9279
  %v9285 = vsel %vm6450, %v9222, %v9274
  %v9286 = vsel %vm6450, %v9227, %v9276
  %v9287 = vsel %vm6450, %v9232, %v9278
  %v9288 = vsel %vm6450, %v9237, %v9280
  %9289 = vmatprep.subr.mxu0 0.0
  %9290 = vmatpush1.msra.mxu0 %v9285
  %9291 = vmatprep.subr.mxu0 0.0
  %9292 = vmatpush1.msra.mxu0 %v9286
  %9293 = vmatprep.subr.mxu0 0.0
  %9294 = vmatpush1.msra.mxu0 %v9287
  %9295 = vmatprep.subr.mxu0 0.0
  %9296 = vmatpush1.msra.mxu0 %v9288
  %9297 = vmatprep.subr.mxu0 0.0
  %9298 = vmatpush1.msra.mxu0 0.0
  %9299 = vmatprep.subr.mxu0 0.0
  %9300 = vmatpush1.msra.mxu0 0.0
  %9301 = vmatprep.subr.mxu0 0.0
  %9302 = vmatpush1.msra.mxu0 0.0
  %9303 = vmatprep.subr.mxu0 0.0
  %9304 = vmatpush1.msra.mxu0 0.0
  %9305 = vmatprep.subr.mxu0 0.0
  %9306 = vmatpush1.msra.mxu0 0.0
  %9307 = vmatprep.subr.mxu0 0.0
  %9308 = vmatpush1.msra.mxu0 0.0
  %9309 = vmatprep.subr.mxu0 0.0
  %9310 = vmatpush1.msra.mxu0 0.0
  %9311 = vmatprep.subr.mxu0 0.0
  %9312 = vmatpush1.msra.mxu0 0.0
  %9313 = vmatprep.subr.mxu0 0.0
  %9314 = vmatpush1.msra.mxu0 0.0
  %9315 = vmatprep.subr.mxu0 0.0
  %9316 = vmatpush1.msra.mxu0 0.0
  %9317 = vmatprep.subr.mxu0 0.0
  %9318 = vmatpush1.msra.mxu0 0.0
  %9319 = vmatprep.subr.mxu0 0.0
  %9320 = vmatpush1.msra.mxu0 0.0
  %9321 = vmatprep.subr.mxu0 0.0
  %9322 = vmatpush1.msra.mxu0 0.0
  %9323 = vmatprep.subr.mxu0 0.0
  %9324 = vmatpush1.msra.mxu0 0.0
  %9325 = vmatprep.subr.mxu0 0.0
  %9326 = vmatpush1.msra.mxu0 0.0
  %9327 = vmatprep.subr.mxu0 0.0
  %9328 = vmatpush1.msra.mxu0 0.0
  %9329 = vmatprep.subr.mxu0 0.0
  %9330 = vmatpush1.msra.mxu0 0.0
  %9331 = vmatprep.subr.mxu0 0.0
  %9332 = vmatpush1.msra.mxu0 0.0
  %9333 = vmatprep.subr.mxu0 0.0
  %9334 = vmatpush1.msra.mxu0 0.0
  %9335 = vmatprep.subr.mxu0 0.0
  %9336 = vmatpush1.msra.mxu0 0.0
  %9337 = vmatprep.subr.mxu0 0.0
  %9338 = vmatpush1.msra.mxu0 0.0
  %9339 = vmatprep.subr.mxu0 0.0
  %9340 = vmatpush1.msra.mxu0 0.0
  %9341 = vmatprep.subr.mxu0 0.0
  %9342 = vmatpush1.msra.mxu0 0.0
  %9343 = vmatprep.subr.mxu0 0.0
  %9344 = vmatpush1.msra.mxu0 0.0
  %9345 = vmatprep.subr.mxu0 0.0
  %9346 = vmatpush1.msra.mxu0 0.0
  %9347 = vmatprep.subr.mxu0 0.0
  %9348 = vmatpush1.msra.mxu0 0.0
  %9349 = vmatprep.subr.mxu0 0.0
  %9350 = vmatpush1.msra.mxu0 0.0
  %9351 = vmatprep.subr.mxu0 0.0
  %9352 = vmatpush1.msra.mxu0 0.0
  %9353 = vmatprep.mubr.f32.mxu0 0.0
  %9354 = vmatmul.mubr.f32.gmra.mrb[0].mxu0 %v86
  %v9355 = vpop.f32.mrb[0].mxu0
  %v9356 = vadd.f32 0.0, %v9355
  %v9357 = vpop.f32.mrb[0].mxu0
  %9358 = vmatprep.mubr.f32.mxu0 0.0
  %9359 = vmatmul.mubr.f32.gmra.mrb[0].mxu0 %v89
  %v9360 = vpop.f32.mrb[0].mxu0
  %v9361 = vadd.f32 0.0, %v9360
  %v9362 = vpop.f32.mrb[0].mxu0
  %9363 = vmatprep.mubr.f32.mxu0 0.0
  %9364 = vmatmul.mubr.f32.gmra.mrb[0].mxu0 %v92
  %v9365 = vpop.f32.mrb[0].mxu0
  %v9366 = vadd.f32 0.0, %v9365
  %v9367 = vpop.f32.mrb[0].mxu0
  %9368 = vmatprep.mubr.f32.mxu0 0.0
  %9369 = vmatmul.mubr.f32.gmra.mrb[0].mxu0 %v95
  %v9370 = vpop.f32.mrb[0].mxu0
  %v9371 = vadd.f32 0.0, %v9370
  %v9372 = vpop.f32.mrb[0].mxu0
  %9373 = vdwg.mxu0
  %9374 = vmatprep.subr.mxu0 0.0
  %9375 = vmatpush1.msra.mxu0 %v9356
  %9376 = vmatprep.subr.mxu0 0.0
  %9377 = vmatpush1.msra.mxu0 %v9361
  %9378 = vmatprep.subr.mxu0 0.0
  %9379 = vmatpush1.msra.mxu0 %v9366
  %9380 = vmatprep.subr.mxu0 0.0
  %9381 = vmatpush1.msra.mxu0 %v9371
  %9382 = vmatprep.subr.mxu0 0.0
  %9383 = vmatpush1.msra.mxu0 0.0
  %9384 = vmatprep.subr.mxu0 0.0
  %9385 = vmatpush1.msra.mxu0 0.0
  %9386 = vmatprep.subr.mxu0 0.0
  %9387 = vmatpush1.msra.mxu0 0.0
  %9388 = vmatprep.subr.mxu0 0.0
  %9389 = vmatpush1.msra.mxu0 0.0
  %9390 = vmatprep.subr.mxu0 0.0
  %9391 = vmatpush1.msra.mxu0 0.0
  %9392 = vmatprep.subr.mxu0 0.0
  %9393 = vmatpush1.msra.mxu0 0.0
  %9394 = vmatprep.subr.mxu0 0.0
  %9395 = vmatpush1.msra.mxu0 0.0
  %9396 = vmatprep.subr.mxu0 0.0
  %9397 = vmatpush1.msra.mxu0 0.0
  %9398 = vmatprep.subr.mxu0 0.0
  %9399 = vmatpush1.msra.mxu0 0.0
  %9400 = vmatprep.subr.mxu0 0.0
  %9401 = vmatpush1.msra.mxu0 0.0
  %9402 = vmatprep.subr.mxu0 0.0
  %9403 = vmatpush1.msra.mxu0 0.0
  %9404 = vmatprep.subr.mxu0 0.0
  %9405 = vmatpush1.msra.mxu0 0.0
  %9406 = vmatprep.subr.mxu0 0.0
  %9407 = vmatpush1.msra.mxu0 0.0
  %9408 = vmatprep.subr.mxu0 0.0
  %9409 = vmatpush1.msra.mxu0 0.0
  %9410 = vmatprep.subr.mxu0 0.0
  %9411 = vmatpush1.msra.mxu0 0.0
  %9412 = vmatprep.subr.mxu0 0.0
  %9413 = vmatpush1.msra.mxu0 0.0
  %9414 = vmatprep.subr.mxu0 0.0
  %9415 = vmatpush1.msra.mxu0 0.0
  %9416 = vmatprep.subr.mxu0 0.0
  %9417 = vmatpush1.msra.mxu0 0.0
  %9418 = vmatprep.subr.mxu0 0.0
  %9419 = vmatpush1.msra.mxu0 0.0
  %9420 = vmatprep.subr.mxu0 0.0
  %9421 = vmatpush1.msra.mxu0 0.0
  %9422 = vmatprep.subr.mxu0 0.0
  %9423 = vmatpush1.msra.mxu0 0.0
  %9424 = vmatprep.subr.mxu0 0.0
  %9425 = vmatpush1.msra.mxu0 0.0
  %9426 = vmatprep.subr.mxu0 0.0
  %9427 = vmatpush1.msra.mxu0 0.0
  %9428 = vmatprep.subr.mxu0 0.0
  %9429 = vmatpush1.msra.mxu0 0.0
  %9430 = vmatprep.subr.mxu0 0.0
  %9431 = vmatpush1.msra.mxu0 0.0
  %9432 = vmatprep.subr.mxu0 0.0
  %9433 = vmatpush1.msra.mxu0 0.0
  %9434 = vmatprep.subr.mxu0 0.0
  %9435 = vmatpush1.msra.mxu0 0.0
  %9436 = vmatprep.subr.mxu0 0.0
  %9437 = vmatpush1.msra.mxu0 0.0
  %9438 = vmatprep.mubr.f32.mxu0 0.0
  %9439 = vmatmul.mubr.f32.gmra.mrb[0].mxu0 %v86
  %v9440 = vpop.f32.mrb[0].mxu0
  %v9441 = vadd.f32 0.0, %v9440
  %v9442 = vpop.f32.mrb[0].mxu0
  %9443 = vmatprep.mubr.f32.mxu0 0.0
  %9444 = vmatmul.mubr.f32.gmra.mrb[0].mxu0 %v89
  %v9445 = vpop.f32.mrb[0].mxu0
  %v9446 = vadd.f32 0.0, %v9445
  %v9447 = vpop.f32.mrb[0].mxu0
  %9448 = vmatprep.mubr.f32.mxu0 0.0
  %9449 = vmatmul.mubr.f32.gmra.mrb[0].mxu0 %v92
  %v9450 = vpop.f32.mrb[0].mxu0
  %v9451 = vadd.f32 0.0, %v9450
  %v9452 = vpop.f32.mrb[0].mxu0
  %9453 = vmatprep.mubr.f32.mxu0 0.0
  %9454 = vmatmul.mubr.f32.gmra.mrb[0].mxu0 %v95
  %v9455 = vpop.f32.mrb[0].mxu0
  %v9456 = vadd.f32 0.0, %v9455
  %v9457 = vpop.f32.mrb[0].mxu0
  %9458 = vdwg.mxu0
  %v9459 = vmul.f32 %v9441, 2.0
  %v9460 = vmul.f32 %v9446, 2.0
  %v9461 = vmul.f32 %v9451, 2.0
  %v9462 = vmul.f32 %v9456, 2.0
  %v9463 = vsub.f32 %v9459, %v9285
  %v9464 = vsub.f32 %v9460, %v9286
  %v9465 = vsub.f32 %v9461, %v9287
  %v9466 = vsub.f32 %v9462, %v9288
  %9471 = vrot.lane.b32.xlu0 %v9356, 33
  %v9472 = vpop.permute.xlu0 %9471
  %9473 = vrot.lane.b32.xlu0 %v9361, 33
  %v9474 = vpop.permute.xlu0 %9473
  %9475 = vrot.lane.b32.xlu0 %v9366, 33
  %v9476 = vpop.permute.xlu0 %9475
  %9477 = vrot.lane.b32.xlu0 %v9371, 33
  %v9478 = vpop.permute.xlu0 %9477
  %9487 = vrot.lane.b32.xlu0 %v9463, 66
  %v9488 = vpop.permute.xlu0 %9487
  %9489 = vrot.lane.b32.xlu0 %v9464, 66
  %v9490 = vpop.permute.xlu0 %9489
  %9491 = vrot.lane.b32.xlu0 %v9465, 66
  %v9492 = vpop.permute.xlu0 %9491
  %9493 = vrot.lane.b32.xlu0 %v9466, 66
  %v9494 = vpop.permute.xlu0 %9493
  %v9499 = vsel %vm6665, %v9285, %v9472
  %v9500 = vsel %vm6665, %v9286, %v9474
  %v9501 = vsel %vm6665, %v9287, %v9476
  %v9502 = vsel %vm6665, %v9288, %v9478
  %v9503 = vsel %vm6670, %v9499, %v9488
  %v9504 = vsel %vm6670, %v9500, %v9490
  %v9505 = vsel %vm6670, %v9501, %v9492
  %v9506 = vsel %vm6670, %v9502, %v9494
  %v9508 = vlaneseq
  %v9509 = vshrl.u32 %v9508, 7
  %v9510 = vsub.s32 0, %v9509
  %v9511 = vrot.slane %v9258, %v9510
  %v9514 = vsel %vm6681, %v9503, 0
  %v9517 = vsel %vm6681, %v9504, 0
  %v9520 = vsel %vm6681, %v9505, 0
  %v9523 = vsel %vm6681, %v9506, 0
  %v9526 = vsel %vm6694, %v9257, 0
  %9528 = vmatprep.subr.mxu0 0.0
  %9529 = vmatpush1.msra.mxu0 %v9245
  %9530 = vmatprep.subr.mxu0 0.0
  %9531 = vmatpush1.msra.mxu0 %v9246
  %9532 = vmatprep.subr.mxu0 0.0
  %9533 = vmatpush1.msra.mxu0 %v9247
  %9534 = vmatprep.subr.mxu0 0.0
  %9535 = vmatpush1.msra.mxu0 %v9248
  %9536 = vmatprep.subr.mxu0 0.0
  %9537 = vmatpush1.msra.mxu0 %v9249
  %9538 = vmatprep.subr.mxu0 0.0
  %9539 = vmatpush1.msra.mxu0 %v9250
  %9540 = vmatprep.subr.mxu0 0.0
  %9541 = vmatpush1.msra.mxu0 %v9251
  %9542 = vmatprep.subr.mxu0 0.0
  %9543 = vmatpush1.msra.mxu0 %v9252
  %9544 = vmatprep.subr.mxu0 0.0
  %9545 = vmatpush1.msra.mxu0 %v9253
  %9546 = vmatprep.subr.mxu0 0.0
  %9547 = vmatpush1.msra.mxu0 %v9254
  %9548 = vmatprep.subr.mxu0 0.0
  %9549 = vmatpush1.msra.mxu0 %v9255
  %9550 = vmatprep.subr.mxu0 0.0
  %9551 = vmatpush1.msra.mxu0 %v9256
  %9552 = vmatprep.subr.mxu0 0.0
  %9553 = vmatpush1.msra.mxu0 %v9526
  %9554 = vmatprep.subr.mxu0 0.0
  %9555 = vmatpush1.msra.mxu0 0.0
  %9556 = vmatprep.subr.mxu0 0.0
  %9557 = vmatpush1.msra.mxu0 0.0
  %9558 = vmatprep.subr.mxu0 0.0
  %9559 = vmatpush1.msra.mxu0 0.0
  %9560 = vmatprep.subr.mxu0 0.0
  %9561 = vmatpush1.msra.mxu0 0.0
  %9562 = vmatprep.subr.mxu0 0.0
  %9563 = vmatpush1.msra.mxu0 0.0
  %9564 = vmatprep.subr.mxu0 0.0
  %9565 = vmatpush1.msra.mxu0 0.0
  %9566 = vmatprep.subr.mxu0 0.0
  %9567 = vmatpush1.msra.mxu0 0.0
  %9568 = vmatprep.subr.mxu0 0.0
  %9569 = vmatpush1.msra.mxu0 0.0
  %9570 = vmatprep.subr.mxu0 0.0
  %9571 = vmatpush1.msra.mxu0 0.0
  %9572 = vmatprep.subr.mxu0 0.0
  %9573 = vmatpush1.msra.mxu0 0.0
  %9574 = vmatprep.subr.mxu0 0.0
  %9575 = vmatpush1.msra.mxu0 0.0
  %9576 = vmatprep.subr.mxu0 0.0
  %9577 = vmatpush1.msra.mxu0 0.0
  %9578 = vmatprep.subr.mxu0 0.0
  %9579 = vmatpush1.msra.mxu0 0.0
  %9580 = vmatprep.subr.mxu0 0.0
  %9581 = vmatpush1.msra.mxu0 0.0
  %9582 = vmatprep.subr.mxu0 0.0
  %9583 = vmatpush1.msra.mxu0 0.0
  %9584 = vmatprep.subr.mxu0 0.0
  %9585 = vmatpush1.msra.mxu0 0.0
  %9586 = vmatprep.subr.mxu0 0.0
  %9587 = vmatpush1.msra.mxu0 0.0
  %9588 = vmatprep.subr.mxu0 0.0
  %9589 = vmatpush1.msra.mxu0 0.0
  %9590 = vmatprep.subr.mxu0 0.0
  %9591 = vmatpush1.msra.mxu0 0.0
  %9592 = vmatprep.mubr.f32.mxu0 0.0
  %9593 = vmatmul.mubr.f32.gmra.mrb[0].mxu0 %v9514
  %v9594 = vpop.f32.mrb[0].mxu0
  %v9595 = vadd.f32 %v9511, %v9594
  %v9596 = vpop.f32.mrb[0].mxu0
  %9597 = vmatprep.mubr.f32.mxu0 0.0
  %9598 = vmatmul.mubr.f32.gmra.mrb[0].mxu0 %v9517
  %v9599 = vpop.f32.mrb[0].mxu0
  %v9600 = vadd.f32 %v9511, %v9599
  %v9601 = vpop.f32.mrb[0].mxu0
  %9602 = vmatprep.mubr.f32.mxu0 0.0
  %9603 = vmatmul.mubr.f32.gmra.mrb[0].mxu0 %v9520
  %v9604 = vpop.f32.mrb[0].mxu0
  %v9605 = vadd.f32 %v9511, %v9604
  %v9606 = vpop.f32.mrb[0].mxu0
  %9607 = vmatprep.mubr.f32.mxu0 0.0
  %9608 = vmatmul.mubr.f32.gmra.mrb[0].mxu0 %v9523
  %v9609 = vpop.f32.mrb[0].mxu0
  %v9610 = vadd.f32 %v9511, %v9609
  %v9611 = vpop.f32.mrb[0].mxu0
  %9612 = vdwg.mxu0
  %v9613 = vxor.u32 %v9595, 2147483648
  %v9614 = vxor.u32 %v9600, 2147483648
  %v9615 = vxor.u32 %v9605, 2147483648
  %v9616 = vxor.u32 %v9610, 2147483648
  %v9617 = vmul.f32 %v9613, 1.442695
  %v9618 = vpow.pop %v9617
  %v9619 = vmul.f32 %v9614, 1.442695
  %v9620 = vpow.pop %v9619
  %v9621 = vmul.f32 %v9615, 1.442695
  %v9622 = vpow.pop %v9621
  %v9623 = vmul.f32 %v9616, 1.442695
  %v9624 = vpow.pop %v9623
  %v9625 = vadd.f32 %v9618, 1.0
  %v9626 = vadd.f32 %v9620, 1.0
  %v9627 = vadd.f32 %v9622, 1.0
  %v9628 = vadd.f32 %v9624, 1.0
  %v9629 = vrcp.pop %v9625
  %v9630 = vmul.f32 1.0, %v9629
  %v9631 = vrcp.pop %v9626
  %v9632 = vmul.f32 1.0, %v9631
  %v9633 = vrcp.pop %v9627
  %v9634 = vmul.f32 1.0, %v9633
  %v9635 = vrcp.pop %v9628
  %v9636 = vmul.f32 1.0, %v9635
  %v9641 = vmul.f32 %v9630, %v9140
  %v9642 = vmul.f32 %v9632, %v9142
  %v9643 = vmul.f32 %v9634, %v9144
  %v9644 = vmul.f32 %v9636, %v9146
  %9645 = vmatprep.subr.mxu0 0.0
  %9646 = vmatpush1.msra.mxu0 %v9641
  %9647 = vmatprep.subr.mxu0 0.0
  %9648 = vmatpush1.msra.mxu0 %v9642
  %9649 = vmatprep.subr.mxu0 0.0
  %9650 = vmatpush1.msra.mxu0 %v9643
  %9651 = vmatprep.subr.mxu0 0.0
  %9652 = vmatpush1.msra.mxu0 %v9644
  %9653 = vmatprep.subr.mxu0 0.0
  %9654 = vmatpush1.msra.mxu0 0.0
  %9655 = vmatprep.subr.mxu0 0.0
  %9656 = vmatpush1.msra.mxu0 0.0
  %9657 = vmatprep.subr.mxu0 0.0
  %9658 = vmatpush1.msra.mxu0 0.0
  %9659 = vmatprep.subr.mxu0 0.0
  %9660 = vmatpush1.msra.mxu0 0.0
  %9661 = vmatprep.subr.mxu0 0.0
  %9662 = vmatpush1.msra.mxu0 0.0
  %9663 = vmatprep.subr.mxu0 0.0
  %9664 = vmatpush1.msra.mxu0 0.0
  %9665 = vmatprep.subr.mxu0 0.0
  %9666 = vmatpush1.msra.mxu0 0.0
  %9667 = vmatprep.subr.mxu0 0.0
  %9668 = vmatpush1.msra.mxu0 0.0
  %9669 = vmatprep.subr.mxu0 0.0
  %9670 = vmatpush1.msra.mxu0 0.0
  %9671 = vmatprep.subr.mxu0 0.0
  %9672 = vmatpush1.msra.mxu0 0.0
  %9673 = vmatprep.subr.mxu0 0.0
  %9674 = vmatpush1.msra.mxu0 0.0
  %9675 = vmatprep.subr.mxu0 0.0
  %9676 = vmatpush1.msra.mxu0 0.0
  %9677 = vmatprep.subr.mxu0 0.0
  %9678 = vmatpush1.msra.mxu0 0.0
  %9679 = vmatprep.subr.mxu0 0.0
  %9680 = vmatpush1.msra.mxu0 0.0
  %9681 = vmatprep.subr.mxu0 0.0
  %9682 = vmatpush1.msra.mxu0 0.0
  %9683 = vmatprep.subr.mxu0 0.0
  %9684 = vmatpush1.msra.mxu0 0.0
  %9685 = vmatprep.subr.mxu0 0.0
  %9686 = vmatpush1.msra.mxu0 0.0
  %9687 = vmatprep.subr.mxu0 0.0
  %9688 = vmatpush1.msra.mxu0 0.0
  %9689 = vmatprep.subr.mxu0 0.0
  %9690 = vmatpush1.msra.mxu0 0.0
  %9691 = vmatprep.subr.mxu0 0.0
  %9692 = vmatpush1.msra.mxu0 0.0
  %9693 = vmatprep.subr.mxu0 0.0
  %9694 = vmatpush1.msra.mxu0 0.0
  %9695 = vmatprep.subr.mxu0 0.0
  %9696 = vmatpush1.msra.mxu0 0.0
  %9697 = vmatprep.subr.mxu0 0.0
  %9698 = vmatpush1.msra.mxu0 0.0
  %9699 = vmatprep.subr.mxu0 0.0
  %9700 = vmatpush1.msra.mxu0 0.0
  %9701 = vmatprep.subr.mxu0 0.0
  %9702 = vmatpush1.msra.mxu0 0.0
  %9703 = vmatprep.subr.mxu0 0.0
  %9704 = vmatpush1.msra.mxu0 0.0
  %9705 = vmatprep.subr.mxu0 0.0
  %9706 = vmatpush1.msra.mxu0 0.0
  %9707 = vmatprep.subr.mxu0 0.0
  %9708 = vmatpush1.msra.mxu0 0.0
  %9709 = vmatprep.mubr.f32.mxu0 0.0
  %9710 = vmatmul.mubr.f32.gmra.mrb[0].mxu0 %v86
  %v9711 = vpop.f32.mrb[0].mxu0
  %v9712 = vadd.f32 0.0, %v9711
  %v9713 = vpop.f32.mrb[0].mxu0
  %9714 = vmatprep.mubr.f32.mxu0 0.0
  %9715 = vmatmul.mubr.f32.gmra.mrb[0].mxu0 %v89
  %v9716 = vpop.f32.mrb[0].mxu0
  %v9717 = vadd.f32 0.0, %v9716
  %v9718 = vpop.f32.mrb[0].mxu0
  %9719 = vmatprep.mubr.f32.mxu0 0.0
  %9720 = vmatmul.mubr.f32.gmra.mrb[0].mxu0 %v92
  %v9721 = vpop.f32.mrb[0].mxu0
  %v9722 = vadd.f32 0.0, %v9721
  %v9723 = vpop.f32.mrb[0].mxu0
  %9724 = vmatprep.mubr.f32.mxu0 0.0
  %9725 = vmatmul.mubr.f32.gmra.mrb[0].mxu0 %v95
  %v9726 = vpop.f32.mrb[0].mxu0
  %v9727 = vadd.f32 0.0, %v9726
  %v9728 = vpop.f32.mrb[0].mxu0
  %9729 = vdwg.mxu0
  %9730 = vmatprep.subr.mxu0 0.0
  %9731 = vmatpush1.msra.mxu0 %v9712
  %9732 = vmatprep.subr.mxu0 0.0
  %9733 = vmatpush1.msra.mxu0 %v9717
  %9734 = vmatprep.subr.mxu0 0.0
  %9735 = vmatpush1.msra.mxu0 %v9722
  %9736 = vmatprep.subr.mxu0 0.0
  %9737 = vmatpush1.msra.mxu0 %v9727
  %9738 = vmatprep.subr.mxu0 0.0
  %9739 = vmatpush1.msra.mxu0 0.0
  %9740 = vmatprep.subr.mxu0 0.0
  %9741 = vmatpush1.msra.mxu0 0.0
  %9742 = vmatprep.subr.mxu0 0.0
  %9743 = vmatpush1.msra.mxu0 0.0
  %9744 = vmatprep.subr.mxu0 0.0
  %9745 = vmatpush1.msra.mxu0 0.0
  %9746 = vmatprep.subr.mxu0 0.0
  %9747 = vmatpush1.msra.mxu0 0.0
  %9748 = vmatprep.subr.mxu0 0.0
  %9749 = vmatpush1.msra.mxu0 0.0
  %9750 = vmatprep.subr.mxu0 0.0
  %9751 = vmatpush1.msra.mxu0 0.0
  %9752 = vmatprep.subr.mxu0 0.0
  %9753 = vmatpush1.msra.mxu0 0.0
  %9754 = vmatprep.subr.mxu0 0.0
  %9755 = vmatpush1.msra.mxu0 0.0
  %9756 = vmatprep.subr.mxu0 0.0
  %9757 = vmatpush1.msra.mxu0 0.0
  %9758 = vmatprep.subr.mxu0 0.0
  %9759 = vmatpush1.msra.mxu0 0.0
  %9760 = vmatprep.subr.mxu0 0.0
  %9761 = vmatpush1.msra.mxu0 0.0
  %9762 = vmatprep.subr.mxu0 0.0
  %9763 = vmatpush1.msra.mxu0 0.0
  %9764 = vmatprep.subr.mxu0 0.0
  %9765 = vmatpush1.msra.mxu0 0.0
  %9766 = vmatprep.subr.mxu0 0.0
  %9767 = vmatpush1.msra.mxu0 0.0
  %9768 = vmatprep.subr.mxu0 0.0
  %9769 = vmatpush1.msra.mxu0 0.0
  %9770 = vmatprep.subr.mxu0 0.0
  %9771 = vmatpush1.msra.mxu0 0.0
  %9772 = vmatprep.subr.mxu0 0.0
  %9773 = vmatpush1.msra.mxu0 0.0
  %9774 = vmatprep.subr.mxu0 0.0
  %9775 = vmatpush1.msra.mxu0 0.0
  %9776 = vmatprep.subr.mxu0 0.0
  %9777 = vmatpush1.msra.mxu0 0.0
  %9778 = vmatprep.subr.mxu0 0.0
  %9779 = vmatpush1.msra.mxu0 0.0
  %9780 = vmatprep.subr.mxu0 0.0
  %9781 = vmatpush1.msra.mxu0 0.0
  %9782 = vmatprep.subr.mxu0 0.0
  %9783 = vmatpush1.msra.mxu0 0.0
  %9784 = vmatprep.subr.mxu0 0.0
  %9785 = vmatpush1.msra.mxu0 0.0
  %9786 = vmatprep.subr.mxu0 0.0
  %9787 = vmatpush1.msra.mxu0 0.0
  %9788 = vmatprep.subr.mxu0 0.0
  %9789 = vmatpush1.msra.mxu0 0.0
  %9790 = vmatprep.subr.mxu0 0.0
  %9791 = vmatpush1.msra.mxu0 0.0
  %9792 = vmatprep.subr.mxu0 0.0
  %9793 = vmatpush1.msra.mxu0 0.0
  %9794 = vmatprep.mubr.f32.mxu0 0.0
  %9795 = vmatmul.mubr.f32.gmra.mrb[0].mxu0 %v86
  %v9796 = vpop.f32.mrb[0].mxu0
  %v9797 = vadd.f32 0.0, %v9796
  %v9798 = vpop.f32.mrb[0].mxu0
  %9799 = vmatprep.mubr.f32.mxu0 0.0
  %9800 = vmatmul.mubr.f32.gmra.mrb[0].mxu0 %v89
  %v9801 = vpop.f32.mrb[0].mxu0
  %v9802 = vadd.f32 0.0, %v9801
  %v9803 = vpop.f32.mrb[0].mxu0
  %9804 = vmatprep.mubr.f32.mxu0 0.0
  %9805 = vmatmul.mubr.f32.gmra.mrb[0].mxu0 %v92
  %v9806 = vpop.f32.mrb[0].mxu0
  %v9807 = vadd.f32 0.0, %v9806
  %v9808 = vpop.f32.mrb[0].mxu0
  %9809 = vmatprep.mubr.f32.mxu0 0.0
  %9810 = vmatmul.mubr.f32.gmra.mrb[0].mxu0 %v95
  %v9811 = vpop.f32.mrb[0].mxu0
  %v9812 = vadd.f32 0.0, %v9811
  %v9813 = vpop.f32.mrb[0].mxu0
  %9814 = vdwg.mxu0
  %v9815 = vmul.f32 %v9797, 2.0
  %v9816 = vmul.f32 %v9802, 2.0
  %v9817 = vmul.f32 %v9807, 2.0
  %v9818 = vmul.f32 %v9812, 2.0
  %v9819 = vsub.f32 %v9815, %v9641
  %v9820 = vsub.f32 %v9816, %v9642
  %v9821 = vsub.f32 %v9817, %v9643
  %v9822 = vsub.f32 %v9818, %v9644
  %9827 = vrot.lane.b32.xlu0 %v9641, 1
  %v9828 = vpop.permute.xlu0 %9827
  %9829 = vrot.lane.b32.xlu0 %v9642, 1
  %v9830 = vpop.permute.xlu0 %9829
  %9831 = vrot.lane.b32.xlu0 %v9643, 1
  %v9832 = vpop.permute.xlu0 %9831
  %9833 = vrot.lane.b32.xlu0 %v9644, 1
  %v9834 = vpop.permute.xlu0 %9833
  %v9839 = vsel %vm6450, %v9285, %v9828
  %v9840 = vsel %vm6450, %v9286, %v9830
  %v9841 = vsel %vm6450, %v9287, %v9832
  %v9842 = vsel %vm6450, %v9288, %v9834
  %9847 = vrot.lane.b32.xlu0 %v9712, 1
  %v9848 = vpop.permute.xlu0 %9847
  %9849 = vrot.lane.b32.xlu0 %v9717, 1
  %v9850 = vpop.permute.xlu0 %9849
  %9851 = vrot.lane.b32.xlu0 %v9722, 1
  %v9852 = vpop.permute.xlu0 %9851
  %9853 = vrot.lane.b32.xlu0 %v9727, 1
  %v9854 = vpop.permute.xlu0 %9853
  %v9859 = vsel %vm6450, %v9356, %v9848
  %v9860 = vsel %vm6450, %v9361, %v9850
  %v9861 = vsel %vm6450, %v9366, %v9852
  %v9862 = vsel %vm6450, %v9371, %v9854
  %9867 = vrot.lane.b32.xlu0 %v9819, 1
  %v9868 = vpop.permute.xlu0 %9867
  %9869 = vrot.lane.b32.xlu0 %v9820, 1
  %v9870 = vpop.permute.xlu0 %9869
  %9871 = vrot.lane.b32.xlu0 %v9821, 1
  %v9872 = vpop.permute.xlu0 %9871
  %9873 = vrot.lane.b32.xlu0 %v9822, 1
  %v9874 = vpop.permute.xlu0 %9873
  %v9879 = vsel %vm6450, %v9463, %v9868
  %v9880 = vsel %vm6450, %v9464, %v9870
  %v9881 = vsel %vm6450, %v9465, %v9872
  %v9882 = vsel %vm6450, %v9466, %v9874
  %9887 = vrot.lane.b32.xlu0 %v9859, 33
  %v9888 = vpop.permute.xlu0 %9887
  %9889 = vrot.lane.b32.xlu0 %v9860, 33
  %v9890 = vpop.permute.xlu0 %9889
  %9891 = vrot.lane.b32.xlu0 %v9861, 33
  %v9892 = vpop.permute.xlu0 %9891
  %9893 = vrot.lane.b32.xlu0 %v9862, 33
  %v9894 = vpop.permute.xlu0 %9893
  %9903 = vrot.lane.b32.xlu0 %v9879, 66
  %v9904 = vpop.permute.xlu0 %9903
  %9905 = vrot.lane.b32.xlu0 %v9880, 66
  %v9906 = vpop.permute.xlu0 %9905
  %9907 = vrot.lane.b32.xlu0 %v9881, 66
  %v9908 = vpop.permute.xlu0 %9907
  %9909 = vrot.lane.b32.xlu0 %v9882, 66
  %v9910 = vpop.permute.xlu0 %9909
  %v9915 = vsel %vm6665, %v9839, %v9888
  %v9916 = vsel %vm6665, %v9840, %v9890
  %v9917 = vsel %vm6665, %v9841, %v9892
  %v9918 = vsel %vm6665, %v9842, %v9894
  %v9919 = vsel %vm6670, %v9915, %v9904
  %v9920 = vsel %vm6670, %v9916, %v9906
  %v9921 = vsel %vm6670, %v9917, %v9908
  %v9922 = vsel %vm6670, %v9918, %v9910
  %v9924 = vlaneseq
  %v9925 = vshrl.u32 %v9924, 7
  %v9926 = vsub.s32 0, %v9925
  %v9927 = vrot.slane %v9272, %v9926
  %v9930 = vsel %vm6681, %v9919, 0
  %v9933 = vsel %vm6681, %v9920, 0
  %v9936 = vsel %vm6681, %v9921, 0
  %v9939 = vsel %vm6681, %v9922, 0
  %v9942 = vsel %vm6694, %v9271, 0
  %9944 = vmatprep.subr.mxu0 0.0
  %9945 = vmatpush1.msra.mxu0 %v9259
  %9946 = vmatprep.subr.mxu0 0.0
  %9947 = vmatpush1.msra.mxu0 %v9260
  %9948 = vmatprep.subr.mxu0 0.0
  %9949 = vmatpush1.msra.mxu0 %v9261
  %9950 = vmatprep.subr.mxu0 0.0
  %9951 = vmatpush1.msra.mxu0 %v9262
  %9952 = vmatprep.subr.mxu0 0.0
  %9953 = vmatpush1.msra.mxu0 %v9263
  %9954 = vmatprep.subr.mxu0 0.0
  %9955 = vmatpush1.msra.mxu0 %v9264
  %9956 = vmatprep.subr.mxu0 0.0
  %9957 = vmatpush1.msra.mxu0 %v9265
  %9958 = vmatprep.subr.mxu0 0.0
  %9959 = vmatpush1.msra.mxu0 %v9266
  %9960 = vmatprep.subr.mxu0 0.0
  %9961 = vmatpush1.msra.mxu0 %v9267
  %9962 = vmatprep.subr.mxu0 0.0
  %9963 = vmatpush1.msra.mxu0 %v9268
  %9964 = vmatprep.subr.mxu0 0.0
  %9965 = vmatpush1.msra.mxu0 %v9269
  %9966 = vmatprep.subr.mxu0 0.0
  %9967 = vmatpush1.msra.mxu0 %v9270
  %9968 = vmatprep.subr.mxu0 0.0
  %9969 = vmatpush1.msra.mxu0 %v9942
  %9970 = vmatprep.subr.mxu0 0.0
  %9971 = vmatpush1.msra.mxu0 0.0
  %9972 = vmatprep.subr.mxu0 0.0
  %9973 = vmatpush1.msra.mxu0 0.0
  %9974 = vmatprep.subr.mxu0 0.0
  %9975 = vmatpush1.msra.mxu0 0.0
  %9976 = vmatprep.subr.mxu0 0.0
  %9977 = vmatpush1.msra.mxu0 0.0
  %9978 = vmatprep.subr.mxu0 0.0
  %9979 = vmatpush1.msra.mxu0 0.0
  %9980 = vmatprep.subr.mxu0 0.0
  %9981 = vmatpush1.msra.mxu0 0.0
  %9982 = vmatprep.subr.mxu0 0.0
  %9983 = vmatpush1.msra.mxu0 0.0
  %9984 = vmatprep.subr.mxu0 0.0
  %9985 = vmatpush1.msra.mxu0 0.0
  %9986 = vmatprep.subr.mxu0 0.0
  %9987 = vmatpush1.msra.mxu0 0.0
  %9988 = vmatprep.subr.mxu0 0.0
  %9989 = vmatpush1.msra.mxu0 0.0
  %9990 = vmatprep.subr.mxu0 0.0
  %9991 = vmatpush1.msra.mxu0 0.0
  %9992 = vmatprep.subr.mxu0 0.0
  %9993 = vmatpush1.msra.mxu0 0.0
  %9994 = vmatprep.subr.mxu0 0.0
  %9995 = vmatpush1.msra.mxu0 0.0
  %9996 = vmatprep.subr.mxu0 0.0
  %9997 = vmatpush1.msra.mxu0 0.0
  %9998 = vmatprep.subr.mxu0 0.0
  %9999 = vmatpush1.msra.mxu0 0.0
  %10000 = vmatprep.subr.mxu0 0.0
  %10001 = vmatpush1.msra.mxu0 0.0
  %10002 = vmatprep.subr.mxu0 0.0
  %10003 = vmatpush1.msra.mxu0 0.0
  %10004 = vmatprep.subr.mxu0 0.0
  %10005 = vmatpush1.msra.mxu0 0.0
  %10006 = vmatprep.subr.mxu0 0.0
  %10007 = vmatpush1.msra.mxu0 0.0
  %10008 = vmatprep.mubr.f32.mxu0 0.0
  %10009 = vmatmul.mubr.f32.gmra.mrb[0].mxu0 %v9930
  %v10010 = vpop.f32.mrb[0].mxu0
  %v10011 = vadd.f32 %v9927, %v10010
  %v10012 = vpop.f32.mrb[0].mxu0
  %10013 = vmatprep.mubr.f32.mxu0 0.0
  %10014 = vmatmul.mubr.f32.gmra.mrb[0].mxu0 %v9933
  %v10015 = vpop.f32.mrb[0].mxu0
  %v10016 = vadd.f32 %v9927, %v10015
  %v10017 = vpop.f32.mrb[0].mxu0
  %10018 = vmatprep.mubr.f32.mxu0 0.0
  %10019 = vmatmul.mubr.f32.gmra.mrb[0].mxu0 %v9936
  %v10020 = vpop.f32.mrb[0].mxu0
  %v10021 = vadd.f32 %v9927, %v10020
  %v10022 = vpop.f32.mrb[0].mxu0
  %10023 = vmatprep.mubr.f32.mxu0 0.0
  %10024 = vmatmul.mubr.f32.gmra.mrb[0].mxu0 %v9939
  %v10025 = vpop.f32.mrb[0].mxu0
  %v10026 = vadd.f32 %v9927, %v10025
  %v10027 = vpop.f32.mrb[0].mxu0
  %10028 = vdwg.mxu0
  %v10029 = vtanh.pop %v10011
  %v10030 = vtanh.pop %v10016
  %v10031 = vtanh.pop %v10021
  %v10032 = vtanh.pop %v10026
  %v10033 = vmul.f32 %v9630, %v9120
  %v10034 = vmul.f32 %v9632, %v9121
  %v10035 = vmul.f32 %v9634, %v9122
  %v10036 = vmul.f32 %v9636, %v9123
  %v10037 = vsub.f32 1.0, %v9630
  %v10038 = vsub.f32 1.0, %v9632
  %v10039 = vsub.f32 1.0, %v9634
  %v10040 = vsub.f32 1.0, %v9636
  %10045 = vrot.lane.b32.xlu0 %v10029, 32
  %v10046 = vpop.permute.xlu0 %10045
  %10047 = vrot.lane.b32.xlu0 %v10030, 32
  %v10048 = vpop.permute.xlu0 %10047
  %10049 = vrot.lane.b32.xlu0 %v10031, 32
  %v10050 = vpop.permute.xlu0 %10049
  %10051 = vrot.lane.b32.xlu0 %v10032, 32
  %v10052 = vpop.permute.xlu0 %10051
  %v10057 = vmul.f32 %v10037, %v10046
  %v10058 = vmul.f32 %v10038, %v10048
  %v10059 = vmul.f32 %v10039, %v10050
  %v10060 = vmul.f32 %v10040, %v10052
  %v10061 = vadd.f32 %v10033, %v10057
  %v10062 = vadd.f32 %v10034, %v10058
  %v10063 = vadd.f32 %v10035, %v10059
  %v10064 = vadd.f32 %v10036, %v10060
  %v10065 = vld [vmem:[%s10] sm:$0xff]
  %v10066 = vld [vmem:[%s10 + $0x8] sm:$0xff]
  %v10067 = vld [vmem:[%s10 + $0x10] sm:$0xff]
  %v10068 = vld [vmem:[%s10 + $0x18] sm:$0xff]
  %v10069 = vld [vmem:[#allocation2] sm:$0x1]
  %v10071 = vlaneseq
  %v10072 = vshrl.u32 %v10071, 7
  %v10073 = vsub.s32 0, %v10072
  %v10074 = vrot.slane %v10069, %v10073
  %10080 = vrot.lane.b32.xlu0 %v10061, 96
  %v10081 = vpop.permute.xlu0 %10080
  %10082 = vrot.lane.b32.xlu0 %v10062, 96
  %v10083 = vpop.permute.xlu0 %10082
  %10084 = vrot.lane.b32.xlu0 %v10063, 96
  %v10085 = vpop.permute.xlu0 %10084
  %10086 = vrot.lane.b32.xlu0 %v10064, 96
  %v10087 = vpop.permute.xlu0 %10086
  %v10088 = vsel %vm84, %v10081, 0
  %v10090 = vsel %vm84, %v10083, 0
  %v10092 = vsel %vm84, %v10085, 0
  %v10094 = vsel %vm84, %v10087, 0
  %10096 = vmatprep.subr.mxu0 0.0
  %10097 = vmatpush1.msra.mxu0 %v10065
  %10098 = vmatprep.subr.mxu0 0.0
  %10099 = vmatpush1.msra.mxu0 %v10066
  %10100 = vmatprep.subr.mxu0 0.0
  %10101 = vmatpush1.msra.mxu0 %v10067
  %10102 = vmatprep.subr.mxu0 0.0
  %10103 = vmatpush1.msra.mxu0 %v10068
  %10104 = vmatprep.subr.mxu0 0.0
  %10105 = vmatpush1.msra.mxu0 0.0
  %10106 = vmatprep.subr.mxu0 0.0
  %10107 = vmatpush1.msra.mxu0 0.0
  %10108 = vmatprep.subr.mxu0 0.0
  %10109 = vmatpush1.msra.mxu0 0.0
  %10110 = vmatprep.subr.mxu0 0.0
  %10111 = vmatpush1.msra.mxu0 0.0
  %10112 = vmatprep.subr.mxu0 0.0
  %10113 = vmatpush1.msra.mxu0 0.0
  %10114 = vmatprep.subr.mxu0 0.0
  %10115 = vmatpush1.msra.mxu0 0.0
  %10116 = vmatprep.subr.mxu0 0.0
  %10117 = vmatpush1.msra.mxu0 0.0
  %10118 = vmatprep.subr.mxu0 0.0
  %10119 = vmatpush1.msra.mxu0 0.0
  %10120 = vmatprep.subr.mxu0 0.0
  %10121 = vmatpush1.msra.mxu0 0.0
  %10122 = vmatprep.subr.mxu0 0.0
  %10123 = vmatpush1.msra.mxu0 0.0
  %10124 = vmatprep.subr.mxu0 0.0
  %10125 = vmatpush1.msra.mxu0 0.0
  %10126 = vmatprep.subr.mxu0 0.0
  %10127 = vmatpush1.msra.mxu0 0.0
  %10128 = vmatprep.subr.mxu0 0.0
  %10129 = vmatpush1.msra.mxu0 0.0
  %10130 = vmatprep.subr.mxu0 0.0
  %10131 = vmatpush1.msra.mxu0 0.0
  %10132 = vmatprep.subr.mxu0 0.0
  %10133 = vmatpush1.msra.mxu0 0.0
  %10134 = vmatprep.subr.mxu0 0.0
  %10135 = vmatpush1.msra.mxu0 0.0
  %10136 = vmatprep.subr.mxu0 0.0
  %10137 = vmatpush1.msra.mxu0 0.0
  %10138 = vmatprep.subr.mxu0 0.0
  %10139 = vmatpush1.msra.mxu0 0.0
  %10140 = vmatprep.subr.mxu0 0.0
  %10141 = vmatpush1.msra.mxu0 0.0
  %10142 = vmatprep.subr.mxu0 0.0
  %10143 = vmatpush1.msra.mxu0 0.0
  %10144 = vmatprep.subr.mxu0 0.0
  %10145 = vmatpush1.msra.mxu0 0.0
  %10146 = vmatprep.subr.mxu0 0.0
  %10147 = vmatpush1.msra.mxu0 0.0
  %10148 = vmatprep.subr.mxu0 0.0
  %10149 = vmatpush1.msra.mxu0 0.0
  %10150 = vmatprep.subr.mxu0 0.0
  %10151 = vmatpush1.msra.mxu0 0.0
  %10152 = vmatprep.subr.mxu0 0.0
  %10153 = vmatpush1.msra.mxu0 0.0
  %10154 = vmatprep.subr.mxu0 0.0
  %10155 = vmatpush1.msra.mxu0 0.0
  %10156 = vmatprep.subr.mxu0 0.0
  %10157 = vmatpush1.msra.mxu0 0.0
  %10158 = vmatprep.subr.mxu0 0.0
  %10159 = vmatpush1.msra.mxu0 0.0
  %10160 = vmatprep.mubr.f32.mxu0 0.0
  %10161 = vmatmul.mubr.f32.gmra.mrb[0].mxu0 %v10088
  %v10162 = vpop.f32.mrb[0].mxu0
  %v10163 = vadd.f32 %v10074, %v10162
  %v10164 = vpop.f32.mrb[0].mxu0
  %10165 = vmatprep.mubr.f32.mxu0 0.0
  %10166 = vmatmul.mubr.f32.gmra.mrb[0].mxu0 %v10090
  %v10167 = vpop.f32.mrb[0].mxu0
  %v10168 = vadd.f32 %v10074, %v10167
  %v10169 = vpop.f32.mrb[0].mxu0
  %10170 = vmatprep.mubr.f32.mxu0 0.0
  %10171 = vmatmul.mubr.f32.gmra.mrb[0].mxu0 %v10092
  %v10172 = vpop.f32.mrb[0].mxu0
  %v10173 = vadd.f32 %v10074, %v10172
  %v10174 = vpop.f32.mrb[0].mxu0
  %10175 = vmatprep.mubr.f32.mxu0 0.0
  %10176 = vmatmul.mubr.f32.gmra.mrb[0].mxu0 %v10094
  %v10177 = vpop.f32.mrb[0].mxu0
  %v10178 = vadd.f32 %v10074, %v10177
  %v10179 = vpop.f32.mrb[0].mxu0
  %10180 = vdwg.mxu0
  %s10181 = scalar_lea.vmem %s12, 96
  %10182 = vst.msk [vmem:[%s10181] sm:$0xff] %vm6450, %v10163
  %10183 = vst.msk [vmem:[%s10181 + $0x8] sm:$0xff] %vm6450, %v10168
  %10184 = vst.msk [vmem:[%s10181 + $0x10] sm:$0xff] %vm6450, %v10173
  %10185 = vst.msk [vmem:[%s10181 + $0x18] sm:$0xff] %vm6450, %v10178
  // Predicated region
  $region50: #{dcrnn_forward.1} parent=0 // pred_check
    _
  $region51: #{dcrnn_forward.1} parent=0 // pred_check_branch
    %10187 = sbr.rel (0) target = $region53
  $region52: #{dcrnn_forward.1} parent=0 // pred_region
    _
  $region53: #{dcrnn_forward.1} parent=0 // pred_fallthru
    _
  // Predicated region
  $region54: #{dcrnn_forward.1} parent=0 // pred_check
    _
  $region55: #{dcrnn_forward.1} parent=0 // pred_check_branch
    %10189 = sbr.rel (0) target = $region57
  $region56: #{dcrnn_forward.1} parent=0 // pred_region
    _
  $region57: #{dcrnn_forward.1} parent=0 // pred_fallthru
    _

</llo_original>
